<compile_context>
chip_gen: v7x
topology: tpu7x:2x2x1
jax: 0.10.0
libtpu: 0.0.40
codegen_flags: <defaults>
</compile_context>

<pallas_src>
from functools import partial

import numpy as np
import jax
import jax.numpy as jnp
from jax import lax
from jax.experimental import pallas as pl
from jax.experimental.pallas import tpu as pltpu

CHAR_MAP_LEN = 14            # len(CHAR_MAP)
EPS = 1e-5

# Order of pooled conv1 rows t (=h1 row y) inside each row-parity half:
# odd t first (y_pad = t+1 even, ascending), then even t (y_pad odd, ascending).
# This makes the stage-1 -> scratch copy and all conv2 height taps contiguous.
_TAU = (1, 3, 5, 7, 9, 11, 13, 0, 2, 4, 6, 8, 10, 12)
_RIDX = np.zeros((2, 14, 3), np.int32)            # [p1, tau_pos, dy] -> input row
for _p1 in range(2):
    for _pos, _t in enumerate(_TAU):
        for _dy in range(3):
            _RIDX[_p1, _pos, _dy] = 2 * _t + _p1 + _dy


def _vmem_limit_bytes():
    try:
        cap = int(pltpu.get_tpu_info().vmem_capacity_bytes)
        return max(32 * 1024 * 1024, min(int(cap * 0.7), 96 * 1024 * 1024))
    except Exception:
        return 32 * 1024 * 1024


def _pick_block(batch):
    """Largest block in {32,16,8} that still yields >=2 grid steps if possible."""
    for bb in (32, 16, 8):
        if batch >= 2 * bb:
            return bb
    return 8


# -----------------------------------------------------------------------------
# Fused Pallas kernel: conv1+pool -> conv2+pool -> char/expr heads
# -----------------------------------------------------------------------------
def fused_forward_kernel(xg_ref, w1_ref, b1_ref, w2_ref, b2_ref,
                         wf1_ref, bf1_ref, wf2_ref, bf2_ref, o_ref, h_scr):
    """One batch block end to end.

    xg_ref : [28*bb, 96]   bf16  conv1 operand rows (p1-half | tau(t) | b),
                                 lanes (dy | padded col) of the 30x32 input.
    w1_ref : [96, 1024]    bf16  conv1 width-Toeplitz weight (BN folded);
                                 lanes (q1 parity | xp 0..15 | 32 ch).
    b1_ref : [1, 512]      f32   conv1 bias row (zero at xp in {0,15}).
    w2_ref : [3, 512, 1024]bf16  conv2 per-dy width-Toeplitz weight;
                                 lanes (q2 parity | s2 0..6(+pad) | 64 ch).
    b2_ref : [1, 512]      f32   conv2 bias row (zero on the pad lanes).
    wf1_ref: [7, 512, 256] bf16  fc1 (char|expr concat) per pooled row t2.
    bf1_ref: [1, 256]      f32
    wf2_ref: [256, 128]    bf16  block-diag fc2, lane-dense padded to 128.
    bf2_ref: [1, 128]      f32
    o_ref  : [bb, 128]     f32   char logits 0..13 | expr scalar 14 | zeros.
    h_scr  : [16*bb, 512]  f32   h1 with SAME padding, y-parity-grouped slabs.
    """
    bb = o_ref.shape[0]
    half = 14 * bb

    # ---- stage 1: conv1 (width-Toeplitz matmul) + 2x2 pool + bias + ReLU ----
    y1 = jnp.dot(xg_ref[...], w1_ref[...], preferred_element_type=jnp.float32)
    rmax = jnp.maximum(y1[:half], y1[half:])               # row pool (p1 halves)
    cmax = jnp.maximum(rmax[:, :512], rmax[:, 512:])        # col pool (q1 halves)
    h1 = jnp.maximum(cmax + b1_ref[...], 0.0)               # [14*bb, 512]

    # ---- scatter h1 into the zero-padded, y-parity-grouped scratch ----------
    # slabs 0..7  : y_pad = 0,2,...,14 (slab 0 = top zero pad)
    # slabs 8..15 : y_pad = 1,3,...,15 (slab 15 = bottom zero pad)
    zslab = jnp.zeros((bb, 512), jnp.float32)
    h_scr[0:bb, :] = zslab
    h_scr[bb:8 * bb, :] = h1[0:7 * bb]                      # t odd  -> y_pad even
    h_scr[8 * bb:15 * bb, :] = h1[7 * bb:14 * bb]           # t even -> y_pad odd
    h_scr[15 * bb:16 * bb, :] = zslab

    # ---- stage 2: conv2 as 3 height taps per output-row parity --------------
    def tap(lo, dy):
        xs = h_scr[lo * bb:(lo + 7) * bb, :].astype(jnp.bfloat16)
        return jnp.dot(xs, w2_ref[dy], preferred_element_type=jnp.float32)

    y2e = tap(0, 0) + tap(8, 1) + tap(1, 2)                 # even output rows
    y2o = tap(8, 0) + tap(1, 1) + tap(9, 2)                 # odd output rows
    p2 = jnp.maximum(y2e, y2o)                              # row pool  [7*bb, 1024]
    c2 = jnp.maximum(p2[:, :512], p2[:, 512:])              # col pool  [7*bb, 512]
    h2 = jnp.maximum(c2 + b2_ref[...], 0.0)                 # rows (t2, b)

    # ---- heads: fc1 accumulated over the 7 pooled rows, block-diag fc2 ------
    acc = jnp.dot(h2[0:bb, :].astype(jnp.bfloat16), wf1_ref[0],
                  preferred_element_type=jnp.float32)
    for t in range(1, 7):
        acc = acc + jnp.dot(h2[t * bb:(t + 1) * bb, :].astype(jnp.bfloat16),
                            wf1_ref[t], preferred_element_type=jnp.float32)
    hid = jnp.maximum(acc + bf1_ref[...], 0.0).astype(jnp.bfloat16)   # dropout = id
    o_ref[...] = (jnp.dot(hid, wf2_ref[...], preferred_element_type=jnp.float32)
                  + bf2_ref[...])


# -----------------------------------------------------------------------------
# Tiny XLA glue: gather the conv1 operand rows (no 9x patch expansion)
# -----------------------------------------------------------------------------
def _build_xg(x, b_pad, bb):
    B = x.shape[0]
    xin = x[:, 0, :, :]
    if b_pad != B:
        xin = jnp.pad(xin, ((0, b_pad - B), (0, 0), (0, 0)))
    xpad = jnp.pad(xin, ((0, 0), (1, 1), (1, 3)))           # [b_pad, 30, 32]
    xr = xpad[:, _RIDX, :]                                  # [b_pad, 2, 14, 3, 32]
    xr = xr.reshape(b_pad, 28, 96)
    nB = b_pad // bb
    xr = xr.reshape(nB, bb, 28, 96).transpose(0, 2, 1, 3).reshape(nB, 28 * bb, 96)
    return xr.astype(jnp.bfloat16)


# -----------------------------------------------------------------------------
# Parameters (deterministic synthetic init, PyTorch shapes)
# -----------------------------------------------------------------------------
def init_params(key):
    ks = jax.random.split(key, 20)

    def u(k, shape, fan_in):
        bound = 1.0 / np.sqrt(fan_in)
        return jax.random.uniform(k, shape, jnp.float32, -bound, bound)

    p = {}
    p['w1'] = u(ks[0], (32, 1, 3, 3), 9);      p['b1'] = u(ks[1], (32,), 9)
    p['g1'] = 1.0 + 0.1 * jax.random.normal(ks[2], (32,), jnp.float32)
    p['be1'] = 0.1 * jax.random.normal(ks[3], (32,), jnp.float32)
    p['rm1'] = 0.1 * jax.random.normal(ks[4], (32,), jnp.float32)
    p['rv1'] = 1.0 + 0.1 * jax.random.uniform(ks[5], (32,), jnp.float32)

    p['w2'] = u(ks[6], (64, 32, 3, 3), 288);   p['b2'] = u(ks[7], (64,), 288)
    p['g2'] = 1.0 + 0.1 * jax.random.normal(ks[8], (64,), jnp.float32)
    p['be2'] = 0.1 * jax.random.normal(ks[9], (64,), jnp.float32)
    p['rm2'] = 0.1 * jax.random.normal(ks[10], (64,), jnp.float32)
    p['rv2'] = 1.0 + 0.1 * jax.random.uniform(ks[11], (64,), jnp.float32)

    p['fc1c_w'] = u(ks[12], (128, 3136), 3136); p['fc1c_b'] = u(ks[13], (128,), 3136)
    p['fc2c_w'] = u(ks[14], (CHAR_MAP_LEN, 128), 128)
    p['fc2c_b'] = u(ks[15], (CHAR_MAP_LEN,), 128)
    p['fc1e_w'] = u(ks[16], (128, 3136), 3136); p['fc1e_b'] = u(ks[17], (128,), 3136)
    p['fc2e_w'] = u(ks[18], (1, 128), 128);     p['fc2e_b'] = u(ks[19], (1,), 128)
    return p


# -----------------------------------------------------------------------------
# One-time parameter preparation (BN fold + Toeplitz / head packing, on host)
# -----------------------------------------------------------------------------
def prepare_params(p):
    """Fold eval-mode BN and pack all weights into the kernel layouts.  Run ONCE."""
    f = lambda a: np.asarray(a, np.float32)

    s1 = f(p['g1']) / np.sqrt(f(p['rv1']) + EPS)
    sh1 = f(p['be1']) - f(p['rm1']) * s1
    w1eff = np.transpose(f(p['w1'])[:, 0, :, :], (1, 2, 0)) * s1[None, None, :]
    b1eff = f(p['b1']) * s1 + sh1

    s2 = f(p['g2']) / np.sqrt(f(p['rv2']) + EPS)
    sh2 = f(p['be2']) - f(p['rm2']) * s2
    w2eff = np.transpose(f(p['w2']), (2, 3, 1, 0)) * s2[None, None, None, :]
    b2eff = f(p['b2']) * s2 + sh2

    # conv1 width-Toeplitz weight: rows (dy|cpos), cols (q1|xp|channel).
    w1t = np.zeros((96, 1024), np.float32)
    for q1 in range(2):
        for xp in range(1, 15):
            j = 2 * (xp - 1) + q1                     # conv1 output column
            for dy in range(3):
                for dx in range(3):
                    cpos = j + dx                      # padded input column
                    w1t[dy * 32 + cpos,
                        q1 * 512 + xp * 32:q1 * 512 + xp * 32 + 32] = w1eff[dy, dx, :]
    b1row = np.zeros((1, 512), np.float32)
    for xp in range(1, 15):
        b1row[0, xp * 32:xp * 32 + 32] = b1eff

    # conv2 per-dy width-Toeplitz weight: rows (xp|ci), cols (q2|s2|co2).
    w2t = np.zeros((3, 512, 1024), np.float32)
    for dy in range(3):
        for q2 in range(2):
            for s2 in range(7):
                j2 = 2 * s2 + q2                       # conv2 output column
                for dx in range(3):
                    xp = j2 + dx                       # padded h1 column (0..15)
                    w2t[dy, xp * 32:(xp + 1) * 32,
                        q2 * 512 + s2 * 64:q2 * 512 + (s2 + 1) * 64] = w2eff[dy, dx, :, :]
    b2row = np.zeros((1, 512), np.float32)
    for s2 in range(7):
        b2row[0, s2 * 64:(s2 + 1) * 64] = b2eff

    # Heads: fc1 rows reordered to the kernel's (t2, s2, co2) feature layout,
    # char & expr fc1 concatenated on N; fc2 block-diagonal, lane-padded to 128.
    fc1c = f(p['fc1c_w'])
    fc1e = f(p['fc1e_w'])
    wf1 = np.zeros((7, 512, 256), np.float32)
    for t2 in range(7):
        for s2 in range(7):
            fidx = np.arange(64) * 49 + t2 * 7 + s2    # NCHW flatten index per co2
            wf1[t2, s2 * 64:(s2 + 1) * 64, :128] = fc1c[:, fidx].T
            wf1[t2, s2 * 64:(s2 + 1) * 64, 128:] = fc1e[:, fidx].T
    bf1 = np.concatenate([f(p['fc1c_b']), f(p['fc1e_b'])]).reshape(1, 256)

    wf2 = np.zeros((256, 128), np.float32)
    wf2[:128, :CHAR_MAP_LEN] = f(p['fc2c_w']).T
    wf2[128:, CHAR_MAP_LEN:CHAR_MAP_LEN + 1] = f(p['fc2e_w']).T
    bf2 = np.zeros((1, 128), np.float32)
    bf2[0, :CHAR_MAP_LEN] = f(p['fc2c_b'])
    bf2[0, CHAR_MAP_LEN] = f(p['fc2e_b'])[0]

    return {'w1t': jnp.asarray(w1t, jnp.bfloat16), 'b1': jnp.asarray(b1row),
            'w2t': jnp.asarray(w2t, jnp.bfloat16), 'b2': jnp.asarray(b2row),
            'wf1': jnp.asarray(wf1, jnp.bfloat16), 'bf1': jnp.asarray(bf1),
            'wf2': jnp.asarray(wf2, jnp.bfloat16), 'bf2': jnp.asarray(bf2)}


# -----------------------------------------------------------------------------
# Forward pass (Pallas path)
# -----------------------------------------------------------------------------
@partial(jax.jit, static_argnames=('bb',))
def _forward_core(prep, x, bb):
    B = x.shape[0]
    b_pad = ((B + bb - 1) // bb) * bb
    nB = b_pad // bb
    xg = _build_xg(x, b_pad, bb)

    flops_per_img = (2 * 28 * 96 * 1024 + 2 * 6 * 7 * 512 * 1024
                     + 2 * 7 * 512 * 256 + 2 * 256 * 128)
    weight_bytes = (2 * (96 * 1024 + 3 * 512 * 1024 + 7 * 512 * 256 + 256 * 128)
                    + 4 * (512 + 512 + 256 + 128))
    cost = pl.CostEstimate(
        flops=int(b_pad * flops_per_img),
        transcendentals=0,
        bytes_accessed=int(b_pad * (28 * 96 * 2 + 128 * 4) + weight_bytes))

    out = pl.pallas_call(
        fused_forward_kernel,
        out_shape=jax.ShapeDtypeStruct((b_pad, 128), jnp.float32),
        grid=(nB,),
        in_specs=[
            pl.BlockSpec((None, 28 * bb, 96), lambda i: (i, 0, 0)),
            pl.BlockSpec((96, 1024), lambda i: (0, 0)),
            pl.BlockSpec((1, 512), lambda i: (0, 0)),
            pl.BlockSpec((3, 512, 1024), lambda i: (0, 0, 0)),
            pl.BlockSpec((1, 512), lambda i: (0, 0)),
            pl.BlockSpec((7, 512, 256), lambda i: (0, 0, 0)),
            pl.BlockSpec((1, 256), lambda i: (0, 0)),
            pl.BlockSpec((256, 128), lambda i: (0, 0)),
            pl.BlockSpec((1, 128), lambda i: (0, 0)),
        ],
        out_specs=pl.BlockSpec((bb, 128), lambda i: (i, 0)),
        scratch_shapes=[pltpu.VMEM((16 * bb, 512), jnp.float32)],
        compiler_params=pltpu.CompilerParams(
            dimension_semantics=("parallel",),
            vmem_limit_bytes=_vmem_limit_bytes()),
        cost_estimate=cost,
    )(xg, prep['w1t'], prep['b1'], prep['w2t'], prep['b2'],
      prep['wf1'], prep['bf1'], prep['wf2'], prep['bf2'])

    char_out = out[:B, :CHAR_MAP_LEN]
    expr_out = out[:B, CHAR_MAP_LEN:CHAR_MAP_LEN + 1]
    return char_out, expr_out


def enhanced_math_model_forward(prep, x, task, block_b=None):
    B = x.shape[0]
    bb = _pick_block(B) if block_b is None else block_b
    char_out, expr_out = _forward_core(prep, x, bb)
    # Output width is decided host-side by task[0] (PyTorch: task[0].item()).
    task0 = int(task[0])
    if task0 == 0:
        # Rows with task==1 receive the expr scalar broadcast across the row
        # (PyTorch index_put_ broadcasting semantics).
        return jnp.where((task == 0)[:, None], char_out, expr_out)
    # TODO(synk): mixed tasks with task[0]==1 raise a shape error in PyTorch;
    # here every row gets the expr output in this branch.
    return expr_out


# -----------------------------------------------------------------------------
# Pure-JAX f32 reference (self-check only; no torch)
# -----------------------------------------------------------------------------
def reference_forward(params, x, task):
    p = params
    B = x.shape[0]
    task0 = int(task[0])
    s1 = p['g1'] / jnp.sqrt(p['rv1'] + EPS); sh1 = p['be1'] - p['rm1'] * s1
    s2 = p['g2'] / jnp.sqrt(p['rv2'] + EPS); sh2 = p['be2'] - p['rm2'] * s2
    dn = ('NHWC', 'HWIO', 'NHWC')

    y = lax.conv_general_dilated(jnp.transpose(x, (0, 2, 3, 1)),
                                 jnp.transpose(p['w1'], (2, 3, 1, 0)),
                                 (1, 1), 'SAME', dimension_numbers=dn)
    y = jnp.maximum(s1 * (y + p['b1']) + sh1, 0.0)
    y = y.reshape(B, 14, 2, 14, 2, 32).max(axis=(2, 4))

    y = lax.conv_general_dilated(y, jnp.transpose(p['w2'], (2, 3, 1, 0)),
                                 (1, 1), 'SAME', dimension_numbers=dn)
    y = jnp.maximum(s2 * (y + p['b2']) + sh2, 0.0)
    y = y.reshape(B, 7, 2, 7, 2, 64).max(axis=(2, 4))

    flat = jnp.transpose(y, (0, 3, 1, 2)).reshape(B, 64 * 7 * 7)   # NCHW flatten
    hc = jnp.maximum(flat @ p['fc1c_w'].T + p['fc1c_b'], 0.0)
    char = hc @ p['fc2c_w'].T + p['fc2c_b']
    he = jnp.maximum(flat @ p['fc1e_w'].T + p['fc1e_b'], 0.0)
    expr = he @ p['fc2e_w'].T + p['fc2e_b']
    if task0 == 0:
        return jnp.where((task == 0)[:, None], char, expr)
    return expr


if __name__ == "__main__":
    key = jax.random.PRNGKey(0)
    pkey, xkey = jax.random.split(key)
    params = init_params(pkey)
    prep = prepare_params(params)            # folded/packed once, reused

    B = 2
    x = jax.random.normal(xkey, (B, 1, 28, 28), jnp.float32)
    task = jnp.array([0, 1], dtype=jnp.int32)   # task[0]==0 -> 14-wide output

    out = jax.block_until_ready(enhanced_math_model_forward(prep, x, task))
    ref = jax.block_until_ready(reference_forward(params, x, task))

    assert out.shape == (B, CHAR_MAP_LEN), out.shape
    max_err = float(jnp.max(jnp.abs(out - ref)))
    # bf16 matmul operands (per the perf review) -> relaxed tolerance vs f32 ref.
    assert max_err < 3e-2, f"mismatch vs reference: {max_err}"
    print("KERNEL_OK")
</pallas_src>

<mosaic_0001>
module attributes {stable_mosaic.version = 11 : i64} {
  func.func @fused_forward_kernel(%arg0: i32, %arg1: memref<1x224x96xbf16, #tpu.memory_space<vmem>>, %arg2: memref<96x1024xbf16, #tpu.memory_space<vmem>>, %arg3: memref<1x512xf32, #tpu.memory_space<vmem>>, %arg4: memref<3x512x1024xbf16, #tpu.memory_space<vmem>>, %arg5: memref<1x512xf32, #tpu.memory_space<vmem>>, %arg6: memref<7x512x256xbf16, #tpu.memory_space<vmem>>, %arg7: memref<1x256xf32, #tpu.memory_space<vmem>>, %arg8: memref<256x128xbf16, #tpu.memory_space<vmem>>, %arg9: memref<1x128xf32, #tpu.memory_space<vmem>>, %arg10: memref<8x128xf32, #tpu.memory_space<vmem>>, %arg11: memref<128x512xf32, #tpu.memory_space<vmem>>) attributes {dimension_semantics = [#tpu.dimension_semantics<parallel>], iteration_bounds = array<i64: 1>, scalar_prefetch = 0 : i64, scratch_operands = 1 : i64, tpu.core_type = #tpu.core_type<tc>, window_params = [{transform_indices = @transform_0, window_bounds = array<i64: 1, 224, 96>}, {pipeline_mode = #tpu.pipeline_mode<synchronous>, transform_indices = @transform_1, window_bounds = array<i64: 96, 1024>}, {pipeline_mode = #tpu.pipeline_mode<synchronous>, transform_indices = @transform_2, window_bounds = array<i64: 1, 512>}, {pipeline_mode = #tpu.pipeline_mode<synchronous>, transform_indices = @transform_3, window_bounds = array<i64: 3, 512, 1024>}, {pipeline_mode = #tpu.pipeline_mode<synchronous>, transform_indices = @transform_4, window_bounds = array<i64: 1, 512>}, {pipeline_mode = #tpu.pipeline_mode<synchronous>, transform_indices = @transform_5, window_bounds = array<i64: 7, 512, 256>}, {pipeline_mode = #tpu.pipeline_mode<synchronous>, transform_indices = @transform_6, window_bounds = array<i64: 1, 256>}, {pipeline_mode = #tpu.pipeline_mode<synchronous>, transform_indices = @transform_7, window_bounds = array<i64: 256, 128>}, {pipeline_mode = #tpu.pipeline_mode<synchronous>, transform_indices = @transform_8, window_bounds = array<i64: 1, 128>}, {transform_indices = @transform_9, window_bounds = array<i64: 8, 128>}]} {
    %c0 = arith.constant 0 : index
    %c0_0 = arith.constant 0 : index
    %c0_1 = arith.constant 0 : index
    %0 = vector.load %arg1[%c0, %c0_0, %c0_1] : memref<1x224x96xbf16, #tpu.memory_space<vmem>>, vector<1x224x96xbf16>
    %1 = vector.shape_cast %0 : vector<1x224x96xbf16> to vector<224x96xbf16>
    %c0_2 = arith.constant 0 : index
    %c0_3 = arith.constant 0 : index
    %2 = vector.load %arg2[%c0_2, %c0_3] : memref<96x1024xbf16, #tpu.memory_space<vmem>>, vector<96x1024xbf16>
    %cst = arith.constant dense<0.000000e+00> : vector<224x1024xf32>
    %3 = tpu.matmul %1, %2, %cst {dimension_numbers = #tpu.dot_dimension_numbers<[1], [0], [0], [1], [0, 0, 1, 1], [], []>} : vector<224x96xbf16>, vector<96x1024xbf16>, vector<224x1024xf32> -> vector<224x1024xf32>
    %4 = vector.extract_strided_slice %3 {offsets = [0, 0], sizes = [112, 1024], strides = [1, 1]} : vector<224x1024xf32> to vector<112x1024xf32>
    %5 = vector.extract_strided_slice %3 {offsets = [112, 0], sizes = [112, 1024], strides = [1, 1]} : vector<224x1024xf32> to vector<112x1024xf32>
    %6 = arith.maximumf %4, %5 : vector<112x1024xf32>
    %7 = vector.extract_strided_slice %6 {offsets = [0, 0], sizes = [112, 512], strides = [1, 1]} : vector<112x1024xf32> to vector<112x512xf32>
    %8 = vector.extract_strided_slice %6 {offsets = [0, 512], sizes = [112, 512], strides = [1, 1]} : vector<112x1024xf32> to vector<112x512xf32>
    %9 = arith.maximumf %7, %8 : vector<112x512xf32>
    %c0_4 = arith.constant 0 : index
    %c0_5 = arith.constant 0 : index
    %10 = vector.load %arg3[%c0_4, %c0_5] : memref<1x512xf32, #tpu.memory_space<vmem>>, vector<1x512xf32>
    %11 = vector.broadcast %10 : vector<1x512xf32> to vector<112x512xf32>
    %12 = arith.addf %9, %11 : vector<112x512xf32>
    %cst_6 = arith.constant 0.000000e+00 : f32
    %13 = vector.broadcast %cst_6 : f32 to vector<112x512xf32>
    %14 = arith.maximumf %12, %13 : vector<112x512xf32>
    %cst_7 = arith.constant 0.000000e+00 : f32
    %15 = vector.broadcast %cst_7 : f32 to vector<8x512xf32>
    %c0_8 = arith.constant 0 : index
    %c0_9 = arith.constant 0 : index
    %16 = vector.load %arg11[%c0_8, %c0_9] : memref<128x512xf32, #tpu.memory_space<vmem>>, vector<8x512xf32>
    tpu.vector_store %arg11[%c0_8, %c0_9], %15 {strides = array<i32>} : memref<128x512xf32, #tpu.memory_space<vmem>>, vector<8x512xf32>,
    %17 = vector.extract_strided_slice %14 {offsets = [0, 0], sizes = [56, 512], strides = [1, 1]} : vector<112x512xf32> to vector<56x512xf32>
    %c8 = arith.constant 8 : index
    %c0_10 = arith.constant 0 : index
    %18 = vector.load %arg11[%c8, %c0_10] : memref<128x512xf32, #tpu.memory_space<vmem>>, vector<56x512xf32>
    tpu.vector_store %arg11[%c8, %c0_10], %17 {strides = array<i32>} : memref<128x512xf32, #tpu.memory_space<vmem>>, vector<56x512xf32>,
    %19 = vector.extract_strided_slice %14 {offsets = [56, 0], sizes = [56, 512], strides = [1, 1]} : vector<112x512xf32> to vector<56x512xf32>
    %c64 = arith.constant 64 : index
    %c0_11 = arith.constant 0 : index
    %20 = vector.load %arg11[%c64, %c0_11] : memref<128x512xf32, #tpu.memory_space<vmem>>, vector<56x512xf32>
    tpu.vector_store %arg11[%c64, %c0_11], %19 {strides = array<i32>} : memref<128x512xf32, #tpu.memory_space<vmem>>, vector<56x512xf32>,
    %c120 = arith.constant 120 : index
    %c0_12 = arith.constant 0 : index
    %21 = vector.load %arg11[%c120, %c0_12] : memref<128x512xf32, #tpu.memory_space<vmem>>, vector<8x512xf32>
    tpu.vector_store %arg11[%c120, %c0_12], %15 {strides = array<i32>} : memref<128x512xf32, #tpu.memory_space<vmem>>, vector<8x512xf32>,
    %c0_13 = arith.constant 0 : index
    %c0_14 = arith.constant 0 : index
    %22 = vector.load %arg11[%c0_13, %c0_14] : memref<128x512xf32, #tpu.memory_space<vmem>>, vector<56x512xf32>
    %23 = arith.truncf %22 : vector<56x512xf32> to vector<56x512xbf16>
    %c0_15 = arith.constant 0 : index
    %c0_16 = arith.constant 0 : index
    %c0_17 = arith.constant 0 : index
    %24 = vector.load %arg4[%c0_15, %c0_16, %c0_17] : memref<3x512x1024xbf16, #tpu.memory_space<vmem>>, vector<1x512x1024xbf16>
    %25 = vector.shape_cast %24 : vector<1x512x1024xbf16> to vector<512x1024xbf16>
    %cst_18 = arith.constant dense<0.000000e+00> : vector<56x1024xf32>
    %26 = tpu.matmul %23, %25, %cst_18 {dimension_numbers = #tpu.dot_dimension_numbers<[1], [0], [0], [1], [0, 0, 1, 1], [], []>} : vector<56x512xbf16>, vector<512x1024xbf16>, vector<56x1024xf32> -> vector<56x1024xf32>
    %c64_19 = arith.constant 64 : index
    %c0_20 = arith.constant 0 : index
    %27 = vector.load %arg11[%c64_19, %c0_20] : memref<128x512xf32, #tpu.memory_space<vmem>>, vector<56x512xf32>
    %28 = arith.truncf %27 : vector<56x512xf32> to vector<56x512xbf16>
    %c1 = arith.constant 1 : index
    %c0_21 = arith.constant 0 : index
    %c0_22 = arith.constant 0 : index
    %29 = vector.load %arg4[%c1, %c0_21, %c0_22] : memref<3x512x1024xbf16, #tpu.memory_space<vmem>>, vector<1x512x1024xbf16>
    %30 = vector.shape_cast %29 : vector<1x512x1024xbf16> to vector<512x1024xbf16>
    %cst_23 = arith.constant dense<0.000000e+00> : vector<56x1024xf32>
    %31 = tpu.matmul %28, %30, %cst_23 {dimension_numbers = #tpu.dot_dimension_numbers<[1], [0], [0], [1], [0, 0, 1, 1], [], []>} : vector<56x512xbf16>, vector<512x1024xbf16>, vector<56x1024xf32> -> vector<56x1024xf32>
    %32 = arith.addf %26, %31 : vector<56x1024xf32>
    %c8_24 = arith.constant 8 : index
    %c0_25 = arith.constant 0 : index
    %33 = vector.load %arg11[%c8_24, %c0_25] : memref<128x512xf32, #tpu.memory_space<vmem>>, vector<56x512xf32>
    %34 = arith.truncf %33 : vector<56x512xf32> to vector<56x512xbf16>
    %c2 = arith.constant 2 : index
    %c0_26 = arith.constant 0 : index
    %c0_27 = arith.constant 0 : index
    %35 = vector.load %arg4[%c2, %c0_26, %c0_27] : memref<3x512x1024xbf16, #tpu.memory_space<vmem>>, vector<1x512x1024xbf16>
    %36 = vector.shape_cast %35 : vector<1x512x1024xbf16> to vector<512x1024xbf16>
    %cst_28 = arith.constant dense<0.000000e+00> : vector<56x1024xf32>
    %37 = tpu.matmul %34, %36, %cst_28 {dimension_numbers = #tpu.dot_dimension_numbers<[1], [0], [0], [1], [0, 0, 1, 1], [], []>} : vector<56x512xbf16>, vector<512x1024xbf16>, vector<56x1024xf32> -> vector<56x1024xf32>
    %38 = arith.addf %32, %37 : vector<56x1024xf32>
    %c64_29 = arith.constant 64 : index
    %c0_30 = arith.constant 0 : index
    %39 = vector.load %arg11[%c64_29, %c0_30] : memref<128x512xf32, #tpu.memory_space<vmem>>, vector<56x512xf32>
    %40 = arith.truncf %39 : vector<56x512xf32> to vector<56x512xbf16>
    %c0_31 = arith.constant 0 : index
    %c0_32 = arith.constant 0 : index
    %c0_33 = arith.constant 0 : index
    %41 = vector.load %arg4[%c0_31, %c0_32, %c0_33] : memref<3x512x1024xbf16, #tpu.memory_space<vmem>>, vector<1x512x1024xbf16>
    %42 = vector.shape_cast %41 : vector<1x512x1024xbf16> to vector<512x1024xbf16>
    %cst_34 = arith.constant dense<0.000000e+00> : vector<56x1024xf32>
    %43 = tpu.matmul %40, %42, %cst_34 {dimension_numbers = #tpu.dot_dimension_numbers<[1], [0], [0], [1], [0, 0, 1, 1], [], []>} : vector<56x512xbf16>, vector<512x1024xbf16>, vector<56x1024xf32> -> vector<56x1024xf32>
    %c8_35 = arith.constant 8 : index
    %c0_36 = arith.constant 0 : index
    %44 = vector.load %arg11[%c8_35, %c0_36] : memref<128x512xf32, #tpu.memory_space<vmem>>, vector<56x512xf32>
    %45 = arith.truncf %44 : vector<56x512xf32> to vector<56x512xbf16>
    %c1_37 = arith.constant 1 : index
    %c0_38 = arith.constant 0 : index
    %c0_39 = arith.constant 0 : index
    %46 = vector.load %arg4[%c1_37, %c0_38, %c0_39] : memref<3x512x1024xbf16, #tpu.memory_space<vmem>>, vector<1x512x1024xbf16>
    %47 = vector.shape_cast %46 : vector<1x512x1024xbf16> to vector<512x1024xbf16>
    %cst_40 = arith.constant dense<0.000000e+00> : vector<56x1024xf32>
    %48 = tpu.matmul %45, %47, %cst_40 {dimension_numbers = #tpu.dot_dimension_numbers<[1], [0], [0], [1], [0, 0, 1, 1], [], []>} : vector<56x512xbf16>, vector<512x1024xbf16>, vector<56x1024xf32> -> vector<56x1024xf32>
    %49 = arith.addf %43, %48 : vector<56x1024xf32>
    %c72 = arith.constant 72 : index
    %c0_41 = arith.constant 0 : index
    %50 = vector.load %arg11[%c72, %c0_41] : memref<128x512xf32, #tpu.memory_space<vmem>>, vector<56x512xf32>
    %51 = arith.truncf %50 : vector<56x512xf32> to vector<56x512xbf16>
    %c2_42 = arith.constant 2 : index
    %c0_43 = arith.constant 0 : index
    %c0_44 = arith.constant 0 : index
    %52 = vector.load %arg4[%c2_42, %c0_43, %c0_44] : memref<3x512x1024xbf16, #tpu.memory_space<vmem>>, vector<1x512x1024xbf16>
    %53 = vector.shape_cast %52 : vector<1x512x1024xbf16> to vector<512x1024xbf16>
    %cst_45 = arith.constant dense<0.000000e+00> : vector<56x1024xf32>
    %54 = tpu.matmul %51, %53, %cst_45 {dimension_numbers = #tpu.dot_dimension_numbers<[1], [0], [0], [1], [0, 0, 1, 1], [], []>} : vector<56x512xbf16>, vector<512x1024xbf16>, vector<56x1024xf32> -> vector<56x1024xf32>
    %55 = arith.addf %49, %54 : vector<56x1024xf32>
    %56 = arith.maximumf %38, %55 : vector<56x1024xf32>
    %57 = vector.extract_strided_slice %56 {offsets = [0, 0], sizes = [56, 512], strides = [1, 1]} : vector<56x1024xf32> to vector<56x512xf32>
    %58 = vector.extract_strided_slice %56 {offsets = [0, 512], sizes = [56, 512], strides = [1, 1]} : vector<56x1024xf32> to vector<56x512xf32>
    %59 = arith.maximumf %57, %58 : vector<56x512xf32>
    %c0_46 = arith.constant 0 : index
    %c0_47 = arith.constant 0 : index
    %60 = vector.load %arg5[%c0_46, %c0_47] : memref<1x512xf32, #tpu.memory_space<vmem>>, vector<1x512xf32>
    %61 = vector.broadcast %60 : vector<1x512xf32> to vector<56x512xf32>
    %62 = arith.addf %59, %61 : vector<56x512xf32>
    %cst_48 = arith.constant 0.000000e+00 : f32
    %63 = vector.broadcast %cst_48 : f32 to vector<56x512xf32>
    %64 = arith.maximumf %62, %63 : vector<56x512xf32>
    %65 = vector.extract_strided_slice %64 {offsets = [0, 0], sizes = [8, 512], strides = [1, 1]} : vector<56x512xf32> to vector<8x512xf32>
    %66 = arith.truncf %65 : vector<8x512xf32> to vector<8x512xbf16>
    %c0_49 = arith.constant 0 : index
    %c0_50 = arith.constant 0 : index
    %c0_51 = arith.constant 0 : index
    %67 = vector.load %arg6[%c0_49, %c0_50, %c0_51] : memref<7x512x256xbf16, #tpu.memory_space<vmem>>, vector<1x512x256xbf16>
    %68 = vector.shape_cast %67 : vector<1x512x256xbf16> to vector<512x256xbf16>
    %cst_52 = arith.constant dense<0.000000e+00> : vector<8x256xf32>
    %69 = tpu.matmul %66, %68, %cst_52 {dimension_numbers = #tpu.dot_dimension_numbers<[1], [0], [0], [1], [0, 0, 1, 1], [], []>} : vector<8x512xbf16>, vector<512x256xbf16>, vector<8x256xf32> -> vector<8x256xf32>
    %70 = vector.extract_strided_slice %64 {offsets = [8, 0], sizes = [8, 512], strides = [1, 1]} : vector<56x512xf32> to vector<8x512xf32>
    %71 = arith.truncf %70 : vector<8x512xf32> to vector<8x512xbf16>
    %c1_53 = arith.constant 1 : index
    %c0_54 = arith.constant 0 : index
    %c0_55 = arith.constant 0 : index
    %72 = vector.load %arg6[%c1_53, %c0_54, %c0_55] : memref<7x512x256xbf16, #tpu.memory_space<vmem>>, vector<1x512x256xbf16>
    %73 = vector.shape_cast %72 : vector<1x512x256xbf16> to vector<512x256xbf16>
    %cst_56 = arith.constant dense<0.000000e+00> : vector<8x256xf32>
    %74 = tpu.matmul %71, %73, %cst_56 {dimension_numbers = #tpu.dot_dimension_numbers<[1], [0], [0], [1], [0, 0, 1, 1], [], []>} : vector<8x512xbf16>, vector<512x256xbf16>, vector<8x256xf32> -> vector<8x256xf32>
    %75 = arith.addf %69, %74 : vector<8x256xf32>
    %76 = vector.extract_strided_slice %64 {offsets = [16, 0], sizes = [8, 512], strides = [1, 1]} : vector<56x512xf32> to vector<8x512xf32>
    %77 = arith.truncf %76 : vector<8x512xf32> to vector<8x512xbf16>
    %c2_57 = arith.constant 2 : index
    %c0_58 = arith.constant 0 : index
    %c0_59 = arith.constant 0 : index
    %78 = vector.load %arg6[%c2_57, %c0_58, %c0_59] : memref<7x512x256xbf16, #tpu.memory_space<vmem>>, vector<1x512x256xbf16>
    %79 = vector.shape_cast %78 : vector<1x512x256xbf16> to vector<512x256xbf16>
    %cst_60 = arith.constant dense<0.000000e+00> : vector<8x256xf32>
    %80 = tpu.matmul %77, %79, %cst_60 {dimension_numbers = #tpu.dot_dimension_numbers<[1], [0], [0], [1], [0, 0, 1, 1], [], []>} : vector<8x512xbf16>, vector<512x256xbf16>, vector<8x256xf32> -> vector<8x256xf32>
    %81 = arith.addf %75, %80 : vector<8x256xf32>
    %82 = vector.extract_strided_slice %64 {offsets = [24, 0], sizes = [8, 512], strides = [1, 1]} : vector<56x512xf32> to vector<8x512xf32>
    %83 = arith.truncf %82 : vector<8x512xf32> to vector<8x512xbf16>
    %c3 = arith.constant 3 : index
    %c0_61 = arith.constant 0 : index
    %c0_62 = arith.constant 0 : index
    %84 = vector.load %arg6[%c3, %c0_61, %c0_62] : memref<7x512x256xbf16, #tpu.memory_space<vmem>>, vector<1x512x256xbf16>
    %85 = vector.shape_cast %84 : vector<1x512x256xbf16> to vector<512x256xbf16>
    %cst_63 = arith.constant dense<0.000000e+00> : vector<8x256xf32>
    %86 = tpu.matmul %83, %85, %cst_63 {dimension_numbers = #tpu.dot_dimension_numbers<[1], [0], [0], [1], [0, 0, 1, 1], [], []>} : vector<8x512xbf16>, vector<512x256xbf16>, vector<8x256xf32> -> vector<8x256xf32>
    %87 = arith.addf %81, %86 : vector<8x256xf32>
    %88 = vector.extract_strided_slice %64 {offsets = [32, 0], sizes = [8, 512], strides = [1, 1]} : vector<56x512xf32> to vector<8x512xf32>
    %89 = arith.truncf %88 : vector<8x512xf32> to vector<8x512xbf16>
    %c4 = arith.constant 4 : index
    %c0_64 = arith.constant 0 : index
    %c0_65 = arith.constant 0 : index
    %90 = vector.load %arg6[%c4, %c0_64, %c0_65] : memref<7x512x256xbf16, #tpu.memory_space<vmem>>, vector<1x512x256xbf16>
    %91 = vector.shape_cast %90 : vector<1x512x256xbf16> to vector<512x256xbf16>
    %cst_66 = arith.constant dense<0.000000e+00> : vector<8x256xf32>
    %92 = tpu.matmul %89, %91, %cst_66 {dimension_numbers = #tpu.dot_dimension_numbers<[1], [0], [0], [1], [0, 0, 1, 1], [], []>} : vector<8x512xbf16>, vector<512x256xbf16>, vector<8x256xf32> -> vector<8x256xf32>
    %93 = arith.addf %87, %92 : vector<8x256xf32>
    %94 = vector.extract_strided_slice %64 {offsets = [40, 0], sizes = [8, 512], strides = [1, 1]} : vector<56x512xf32> to vector<8x512xf32>
    %95 = arith.truncf %94 : vector<8x512xf32> to vector<8x512xbf16>
    %c5 = arith.constant 5 : index
    %c0_67 = arith.constant 0 : index
    %c0_68 = arith.constant 0 : index
    %96 = vector.load %arg6[%c5, %c0_67, %c0_68] : memref<7x512x256xbf16, #tpu.memory_space<vmem>>, vector<1x512x256xbf16>
    %97 = vector.shape_cast %96 : vector<1x512x256xbf16> to vector<512x256xbf16>
    %cst_69 = arith.constant dense<0.000000e+00> : vector<8x256xf32>
    %98 = tpu.matmul %95, %97, %cst_69 {dimension_numbers = #tpu.dot_dimension_numbers<[1], [0], [0], [1], [0, 0, 1, 1], [], []>} : vector<8x512xbf16>, vector<512x256xbf16>, vector<8x256xf32> -> vector<8x256xf32>
    %99 = arith.addf %93, %98 : vector<8x256xf32>
    %100 = vector.extract_strided_slice %64 {offsets = [48, 0], sizes = [8, 512], strides = [1, 1]} : vector<56x512xf32> to vector<8x512xf32>
    %101 = arith.truncf %100 : vector<8x512xf32> to vector<8x512xbf16>
    %c6 = arith.constant 6 : index
    %c0_70 = arith.constant 0 : index
    %c0_71 = arith.constant 0 : index
    %102 = vector.load %arg6[%c6, %c0_70, %c0_71] : memref<7x512x256xbf16, #tpu.memory_space<vmem>>, vector<1x512x256xbf16>
    %103 = vector.shape_cast %102 : vector<1x512x256xbf16> to vector<512x256xbf16>
    %cst_72 = arith.constant dense<0.000000e+00> : vector<8x256xf32>
    %104 = tpu.matmul %101, %103, %cst_72 {dimension_numbers = #tpu.dot_dimension_numbers<[1], [0], [0], [1], [0, 0, 1, 1], [], []>} : vector<8x512xbf16>, vector<512x256xbf16>, vector<8x256xf32> -> vector<8x256xf32>
    %105 = arith.addf %99, %104 : vector<8x256xf32>
    %c0_73 = arith.constant 0 : index
    %c0_74 = arith.constant 0 : index
    %106 = vector.load %arg7[%c0_73, %c0_74] : memref<1x256xf32, #tpu.memory_space<vmem>>, vector<1x256xf32>
    %107 = vector.broadcast %106 : vector<1x256xf32> to vector<8x256xf32>
    %108 = arith.addf %105, %107 : vector<8x256xf32>
    %cst_75 = arith.constant 0.000000e+00 : f32
    %109 = vector.broadcast %cst_75 : f32 to vector<8x256xf32>
    %110 = arith.maximumf %108, %109 : vector<8x256xf32>
    %111 = arith.truncf %110 : vector<8x256xf32> to vector<8x256xbf16>
    %c0_76 = arith.constant 0 : index
    %c0_77 = arith.constant 0 : index
    %112 = vector.load %arg8[%c0_76, %c0_77] : memref<256x128xbf16, #tpu.memory_space<vmem>>, vector<256x128xbf16>
    %cst_78 = arith.constant dense<0.000000e+00> : vector<8x128xf32>
    %113 = tpu.matmul %111, %112, %cst_78 {dimension_numbers = #tpu.dot_dimension_numbers<[1], [0], [0], [1], [0, 0, 1, 1], [], []>} : vector<8x256xbf16>, vector<256x128xbf16>, vector<8x128xf32> -> vector<8x128xf32>
    %c0_79 = arith.constant 0 : index
    %c0_80 = arith.constant 0 : index
    %114 = vector.load %arg9[%c0_79, %c0_80] : memref<1x128xf32, #tpu.memory_space<vmem>>, vector<1x128xf32>
    %115 = vector.broadcast %114 : vector<1x128xf32> to vector<8x128xf32>
    %116 = arith.addf %113, %115 : vector<8x128xf32>
    %c0_81 = arith.constant 0 : index
    %c0_82 = arith.constant 0 : index
    %117 = vector.load %arg10[%c0_81, %c0_82] : memref<8x128xf32, #tpu.memory_space<vmem>>, vector<8x128xf32>
    tpu.vector_store %arg10[%c0_81, %c0_82], %116 {strides = array<i32>} : memref<8x128xf32, #tpu.memory_space<vmem>>, vector<8x128xf32>,
    return
  }
  func.func @transform_0(%arg0: i32) -> (i32, i32, i32) {
    %c0_i32 = arith.constant 0 : i32
    %c0_i32_0 = arith.constant 0 : i32
    %c0_i32_1 = arith.constant 0 : i32
    return %arg0, %c0_i32, %c0_i32_0 : i32, i32, i32
  }
  func.func @transform_1(%arg0: i32) -> (i32, i32) {
    %c0_i32 = arith.constant 0 : i32
    %c0_i32_0 = arith.constant 0 : i32
    %c0_i32_1 = arith.constant 0 : i32
    return %c0_i32, %c0_i32_0 : i32, i32
  }
  func.func @transform_2(%arg0: i32) -> (i32, i32) {
    %c0_i32 = arith.constant 0 : i32
    %c0_i32_0 = arith.constant 0 : i32
    %c0_i32_1 = arith.constant 0 : i32
    return %c0_i32, %c0_i32_0 : i32, i32
  }
  func.func @transform_3(%arg0: i32) -> (i32, i32, i32) {
    %c0_i32 = arith.constant 0 : i32
    %c0_i32_0 = arith.constant 0 : i32
    %c0_i32_1 = arith.constant 0 : i32
    %c0_i32_2 = arith.constant 0 : i32
    return %c0_i32, %c0_i32_0, %c0_i32_1 : i32, i32, i32
  }
  func.func @transform_4(%arg0: i32) -> (i32, i32) {
    %c0_i32 = arith.constant 0 : i32
    %c0_i32_0 = arith.constant 0 : i32
    %c0_i32_1 = arith.constant 0 : i32
    return %c0_i32, %c0_i32_0 : i32, i32
  }
  func.func @transform_5(%arg0: i32) -> (i32, i32, i32) {
    %c0_i32 = arith.constant 0 : i32
    %c0_i32_0 = arith.constant 0 : i32
    %c0_i32_1 = arith.constant 0 : i32
    %c0_i32_2 = arith.constant 0 : i32
    return %c0_i32, %c0_i32_0, %c0_i32_1 : i32, i32, i32
  }
  func.func @transform_6(%arg0: i32) -> (i32, i32) {
    %c0_i32 = arith.constant 0 : i32
    %c0_i32_0 = arith.constant 0 : i32
    %c0_i32_1 = arith.constant 0 : i32
    return %c0_i32, %c0_i32_0 : i32, i32
  }
  func.func @transform_7(%arg0: i32) -> (i32, i32) {
    %c0_i32 = arith.constant 0 : i32
    %c0_i32_0 = arith.constant 0 : i32
    %c0_i32_1 = arith.constant 0 : i32
    return %c0_i32, %c0_i32_0 : i32, i32
  }
  func.func @transform_8(%arg0: i32) -> (i32, i32) {
    %c0_i32 = arith.constant 0 : i32
    %c0_i32_0 = arith.constant 0 : i32
    %c0_i32_1 = arith.constant 0 : i32
    return %c0_i32, %c0_i32_0 : i32, i32
  }
  func.func @transform_9(%arg0: i32) -> (i32, i32) {
    %c0_i32 = arith.constant 0 : i32
    %c0_i32_0 = arith.constant 0 : i32
    return %arg0, %c0_i32 : i32, i32
  }
}

</mosaic_0001>

<llo_original>
// kernel: _forward_core.1
$region0: #{_forward_core.1}
  #allocation0 [shape = 'u32[]', space=smem, size = 0x4, offset = 0x4, fixed_abs, tag = 'smem constant byte address 0x4 - core index']
  #allocation1 [shape = 'u32[144,128]{1,0:T(1,128)}', space=vmem, size = 0x12000, scoped, tag = 'internal scratch']
  #allocation2 [shape = 'f32[128,512]{1,0:T(8,128)}', space=vmem, size = 0x40000, scoped, tag = 'scratch operand']
  %s0 = inlined_call_operand.vmem [shape: bf16[1,224,96], index: 0, kind: input, shape index: {}]
  %s1 = inlined_call_operand.hbm [shape: bf16[96,1024], index: 1, kind: input, shape index: {}]
  %s2 = inlined_call_operand.hbm [shape: f32[1,512], index: 2, kind: input, shape index: {}]
  %s3 = inlined_call_operand.hbm [shape: bf16[3,512,1024], index: 3, kind: input, shape index: {}]
  %s4 = inlined_call_operand.hbm [shape: f32[1,512], index: 4, kind: input, shape index: {}]
  %s5 = inlined_call_operand.hbm [shape: bf16[7,512,256], index: 5, kind: input, shape index: {}]
  %s6 = inlined_call_operand.hbm [shape: f32[1,256], index: 6, kind: input, shape index: {}]
  %s7 = inlined_call_operand.hbm [shape: bf16[256,128], index: 7, kind: input, shape index: {}]
  %s8 = inlined_call_operand.hbm [shape: f32[1,128], index: 8, kind: input, shape index: {}]
  %s9 = inlined_call_operand.vmem [shape: f32[8,128], index: 9, kind: output, shape index: {}]
  %s10 = sld [smem:[#allocation0]]
  $region78: #{_forward_core.1} parent=0
    _
  %s12 = ssub.s32 1, %s10
  %s13 = scalar_select 0, %s12, %s10
  $region1: #{_forward_core.1} parent=0
    #allocation3 [shape = 'u8[196608]{0}', space=vmem, size = 0x30000, scoped, tag = 'input window, operand 1, single buffered']
    #allocation4 [shape = 's32[1]{0}', space=sflag, size = 0x4, scoped, tag = 'scoped memory for _forward_core.1']
    #allocation5 [shape = 'u8[2048]{0}', space=vmem, size = 0x800, scoped, tag = 'input window, operand 2, single buffered']
    #allocation6 [shape = 's32[1]{0}', space=sflag, size = 0x4, scoped, tag = 'scoped memory for _forward_core.1']
    #allocation7 [shape = 'u8[3145728]{0}', space=vmem, size = 0x300000, scoped, tag = 'input window, operand 3, single buffered']
    #allocation8 [shape = 'u8[2048]{0}', space=vmem, size = 0x800, scoped, tag = 'input window, operand 4, single buffered']
    #allocation9 [shape = 's32[1]{0}', space=sflag, size = 0x4, scoped, tag = 'scoped memory for _forward_core.1']
    #allocation10 [shape = 'u8[1835008]{0}', space=vmem, size = 0x1c0000, scoped, tag = 'input window, operand 5, single buffered']
    #allocation11 [shape = 'u8[1024]{0}', space=vmem, size = 0x400, scoped, tag = 'input window, operand 6, single buffered']
    #allocation12 [shape = 's32[1]{0}', space=sflag, size = 0x4, scoped, tag = 'scoped memory for _forward_core.1']
    #allocation13 [shape = 'u8[65536]{0}', space=vmem, size = 0x10000, scoped, tag = 'input window, operand 7, single buffered']
    #allocation14 [shape = 'u8[512]{0}', space=vmem, size = 0x400, scoped, tag = 'input window, operand 8, single buffered']
    #allocation15 [shape = 's32[1]{0}', space=sflag, size = 0x4, scoped, tag = 'scoped memory for _forward_core.1']
    %14 = vsyncpa [#allocation4], 0
    %15 = vsyncpa [#allocation6], 0
    %16 = vsyncpa [#allocation9], 0
    %17 = vsyncpa [#allocation12], 0
    %18 = vsyncpa [#allocation15], 0
    // Predicated region
    $region2: #{_forward_core.1} parent=1 // pred_check
      _
    $region3: #{_forward_core.1} parent=1 // pred_check_branch
      %20 = sbr.rel (0) target = $region5
    $region4: #{_forward_core.1} parent=1 // pred_region
      _
    $region5: #{_forward_core.1} parent=1 // pred_fallthru
      _
    // Predicated region
    $region6: #{_forward_core.1} parent=1 // pred_check
      _
    $region7: #{_forward_core.1} parent=1 // pred_check_branch
      %22 = sbr.rel (0) target = $region9
    $region8: #{_forward_core.1} parent=1 // pred_region
      %s24 = ssub.s32 6144, 6144
      %25 = vsyncadd [#allocation4], %s24
      %s26 = sshll.u32 [#allocation3], 4
      %s27 = int_to_ptr.vmem [resolvable:$true] %s26
      %32 = dma.hbm_to_vmem [thread:$0]  %s1, 6144, %s27, [#allocation4], 512, 512, 32
    $region9: #{_forward_core.1} parent=1 // pred_fallthru
      _
    // Predicated region
    $region10: #{_forward_core.1} parent=1 // pred_check
      _
    $region11: #{_forward_core.1} parent=1 // pred_check_branch
      %34 = sbr.rel (0) target = $region13
    $region12: #{_forward_core.1} parent=1 // pred_region
      %s36 = ssub.s32 64, 64
      %37 = vsyncadd [#allocation6], %s36
      %s39 = sshll.u32 [#allocation5], 4
      %s40 = int_to_ptr.vmem [resolvable:$true] %s39
      %42 = dma.hbm_to_vmem [thread:$0]  %s2, 64, %s40, [#allocation6]
    $region13: #{_forward_core.1} parent=1 // pred_fallthru
      _
    // Predicated region
    $region14: #{_forward_core.1} parent=1 // pred_check
      _
    $region15: #{_forward_core.1} parent=1 // pred_check_branch
      %44 = sbr.rel (0) target = $region17
    $region16: #{_forward_core.1} parent=1 // pred_region
      %s46 = ssub.s32 98304, 98304
      %47 = vsyncadd [#allocation6], %s46
      %s48 = sshll.u32 [#allocation7], 4
      %s49 = int_to_ptr.vmem [resolvable:$true] %s48
      %54 = dma.hbm_to_vmem [thread:$0]  %s3, 98304, %s49, [#allocation6], 512, 512, 32
    $region17: #{_forward_core.1} parent=1 // pred_fallthru
      _
    // Predicated region
    $region18: #{_forward_core.1} parent=1 // pred_check
      _
    $region19: #{_forward_core.1} parent=1 // pred_check_branch
      %56 = sbr.rel (0) target = $region21
    $region20: #{_forward_core.1} parent=1 // pred_region
      %s58 = ssub.s32 64, 64
      %59 = vsyncadd [#allocation9], %s58
      %s61 = sshll.u32 [#allocation8], 4
      %s62 = int_to_ptr.vmem [resolvable:$true] %s61
      %64 = dma.hbm_to_vmem [thread:$0]  %s4, 64, %s62, [#allocation9]
    $region21: #{_forward_core.1} parent=1 // pred_fallthru
      _
    // Predicated region
    $region22: #{_forward_core.1} parent=1 // pred_check
      _
    $region23: #{_forward_core.1} parent=1 // pred_check_branch
      %66 = sbr.rel (0) target = $region25
    $region24: #{_forward_core.1} parent=1 // pred_region
      %s68 = ssub.s32 57344, 57344
      %69 = vsyncadd [#allocation9], %s68
      %s70 = sshll.u32 [#allocation10], 4
      %s71 = int_to_ptr.vmem [resolvable:$true] %s70
      %76 = dma.hbm_to_vmem [thread:$0]  %s5, 57344, %s71, [#allocation9], 128, 128, 8
    $region25: #{_forward_core.1} parent=1 // pred_fallthru
      _
    // Predicated region
    $region26: #{_forward_core.1} parent=1 // pred_check
      _
    $region27: #{_forward_core.1} parent=1 // pred_check_branch
      %78 = sbr.rel (0) target = $region29
    $region28: #{_forward_core.1} parent=1 // pred_region
      %s80 = ssub.s32 32, 32
      %81 = vsyncadd [#allocation12], %s80
      %s83 = sshll.u32 [#allocation11], 4
      %s84 = int_to_ptr.vmem [resolvable:$true] %s83
      %86 = dma.hbm_to_vmem [thread:$0]  %s6, 32, %s84, [#allocation12]
    $region29: #{_forward_core.1} parent=1 // pred_fallthru
      _
    // Predicated region
    $region30: #{_forward_core.1} parent=1 // pred_check
      _
    $region31: #{_forward_core.1} parent=1 // pred_check_branch
      %88 = sbr.rel (0) target = $region33
    $region32: #{_forward_core.1} parent=1 // pred_region
      %s90 = ssub.s32 2048, 2048
      %91 = vsyncadd [#allocation12], %s90
      %s92 = sshll.u32 [#allocation13], 4
      %s93 = int_to_ptr.vmem [resolvable:$true] %s92
      %98 = dma.hbm_to_vmem [thread:$0]  %s7, 2048, %s93, [#allocation12], 64, 64, 4
    $region33: #{_forward_core.1} parent=1 // pred_fallthru
      _
    // Predicated region
    $region34: #{_forward_core.1} parent=1 // pred_check
      _
    $region35: #{_forward_core.1} parent=1 // pred_check_branch
      %100 = sbr.rel (0) target = $region37
    $region36: #{_forward_core.1} parent=1 // pred_region
      %s102 = ssub.s32 16, 16
      %103 = vsyncadd [#allocation15], %s102
      %s105 = sshll.u32 [#allocation14], 4
      %s106 = int_to_ptr.vmem [resolvable:$true] %s105
      %108 = dma.hbm_to_vmem [thread:$0]  %s8, 16, %s106, [#allocation15]
    $region37: #{_forward_core.1} parent=1 // pred_fallthru
      _
    // Predicated region
    $region38: #{_forward_core.1} parent=1 // pred_check
      _
    $region39: #{_forward_core.1} parent=1 // pred_check_branch
      %110 = sbr.rel (0) target = $region41
    $region40: #{_forward_core.1} parent=1 // pred_region
      %111 = dma.done [#allocation4], 6144
    $region41: #{_forward_core.1} parent=1 // pred_fallthru
      _
    // Predicated region
    $region42: #{_forward_core.1} parent=1 // pred_check
      _
    $region43: #{_forward_core.1} parent=1 // pred_check_branch
      %113 = sbr.rel (0) target = $region45
    $region44: #{_forward_core.1} parent=1 // pred_region
      %114 = dma.done [#allocation6], 64
    $region45: #{_forward_core.1} parent=1 // pred_fallthru
      _
    // Predicated region
    $region46: #{_forward_core.1} parent=1 // pred_check
      _
    $region47: #{_forward_core.1} parent=1 // pred_check_branch
      %116 = sbr.rel (0) target = $region49
    $region48: #{_forward_core.1} parent=1 // pred_region
      %117 = dma.done [#allocation6], 98304
    $region49: #{_forward_core.1} parent=1 // pred_fallthru
      _
    // Predicated region
    $region50: #{_forward_core.1} parent=1 // pred_check
      _
    $region51: #{_forward_core.1} parent=1 // pred_check_branch
      %119 = sbr.rel (0) target = $region53
    $region52: #{_forward_core.1} parent=1 // pred_region
      %120 = dma.done [#allocation9], 64
    $region53: #{_forward_core.1} parent=1 // pred_fallthru
      _
    // Predicated region
    $region54: #{_forward_core.1} parent=1 // pred_check
      _
    $region55: #{_forward_core.1} parent=1 // pred_check_branch
      %122 = sbr.rel (0) target = $region57
    $region56: #{_forward_core.1} parent=1 // pred_region
      %123 = dma.done [#allocation9], 57344
    $region57: #{_forward_core.1} parent=1 // pred_fallthru
      _
    // Predicated region
    $region58: #{_forward_core.1} parent=1 // pred_check
      _
    $region59: #{_forward_core.1} parent=1 // pred_check_branch
      %125 = sbr.rel (0) target = $region61
    $region60: #{_forward_core.1} parent=1 // pred_region
      %126 = dma.done [#allocation12], 32
    $region61: #{_forward_core.1} parent=1 // pred_fallthru
      _
    // Predicated region
    $region62: #{_forward_core.1} parent=1 // pred_check
      _
    $region63: #{_forward_core.1} parent=1 // pred_check_branch
      %128 = sbr.rel (0) target = $region65
    $region64: #{_forward_core.1} parent=1 // pred_region
      %129 = dma.done [#allocation12], 2048
    $region65: #{_forward_core.1} parent=1 // pred_fallthru
      _
    // Predicated region
    $region66: #{_forward_core.1} parent=1 // pred_check
      _
    $region67: #{_forward_core.1} parent=1 // pred_check_branch
      %131 = sbr.rel (0) target = $region69
    $region68: #{_forward_core.1} parent=1 // pred_region
      %132 = dma.done [#allocation15], 16
    $region69: #{_forward_core.1} parent=1 // pred_fallthru
      _
    %v134 = vld [vmem:[%s0] sm:$0xf]
    %v135 = vld [vmem:[%s0 + $0x4] sm:$0xf]
    %v136 = vld [vmem:[%s0 + $0x8] sm:$0xf]
    %v137 = vld [vmem:[%s0 + $0xc] sm:$0xf]
    %v138 = vld [vmem:[%s0 + $0x10] sm:$0xf]
    %v139 = vld [vmem:[%s0 + $0x14] sm:$0xf]
    %v140 = vld [vmem:[%s0 + $0x18] sm:$0xf]
    %v141 = vld [vmem:[%s0 + $0x1c] sm:$0xf]
    %v142 = vld [vmem:[%s0 + $0x20] sm:$0xf]
    %v143 = vld [vmem:[%s0 + $0x24] sm:$0xf]
    %v144 = vld [vmem:[%s0 + $0x28] sm:$0xf]
    %v145 = vld [vmem:[%s0 + $0x2c] sm:$0xf]
    %v146 = vld [vmem:[%s0 + $0x30] sm:$0xf]
    %v147 = vld [vmem:[%s0 + $0x34] sm:$0xf]
    %v148 = vld [vmem:[%s0 + $0x38] sm:$0xf]
    %v149 = vld [vmem:[%s0 + $0x3c] sm:$0xf]
    %v150 = vld [vmem:[%s0 + $0x40] sm:$0xf]
    %v151 = vld [vmem:[%s0 + $0x44] sm:$0xf]
    %v152 = vld [vmem:[%s0 + $0x48] sm:$0xf]
    %v153 = vld [vmem:[%s0 + $0x4c] sm:$0xf]
    %v154 = vld [vmem:[%s0 + $0x50] sm:$0xf]
    %v155 = vld [vmem:[%s0 + $0x54] sm:$0xf]
    %v156 = vld [vmem:[%s0 + $0x58] sm:$0xf]
    %v157 = vld [vmem:[%s0 + $0x5c] sm:$0xf]
    %v158 = vld [vmem:[%s0 + $0x60] sm:$0xf]
    %v159 = vld [vmem:[%s0 + $0x64] sm:$0xf]
    %v160 = vld [vmem:[%s0 + $0x68] sm:$0xf]
    %v161 = vld [vmem:[%s0 + $0x6c] sm:$0xf]
    %v162 = vld [vmem:[#allocation3] sm:$0xff]
    %v163 = vld [vmem:[#allocation3 + $0x8] sm:$0xff]
    %v164 = vld [vmem:[#allocation3 + $0x10] sm:$0xff]
    %v165 = vld [vmem:[#allocation3 + $0x18] sm:$0xff]
    %v166 = vld [vmem:[#allocation3 + $0x20] sm:$0xff]
    %v167 = vld [vmem:[#allocation3 + $0x28] sm:$0xff]
    %v168 = vld [vmem:[#allocation3 + $0x30] sm:$0xff]
    %v169 = vld [vmem:[#allocation3 + $0x38] sm:$0xff]
    %v170 = vld [vmem:[#allocation3 + $0x40] sm:$0xff]
    %v171 = vld [vmem:[#allocation3 + $0x48] sm:$0xff]
    %v172 = vld [vmem:[#allocation3 + $0x50] sm:$0xff]
    %v173 = vld [vmem:[#allocation3 + $0x58] sm:$0xff]
    %v174 = vld [vmem:[#allocation3 + $0x60] sm:$0xff]
    %v175 = vld [vmem:[#allocation3 + $0x68] sm:$0xff]
    %v176 = vld [vmem:[#allocation3 + $0x70] sm:$0xff]
    %v177 = vld [vmem:[#allocation3 + $0x78] sm:$0xff]
    %v178 = vld [vmem:[#allocation3 + $0x80] sm:$0xff]
    %v179 = vld [vmem:[#allocation3 + $0x88] sm:$0xff]
    %v180 = vld [vmem:[#allocation3 + $0x90] sm:$0xff]
    %v181 = vld [vmem:[#allocation3 + $0x98] sm:$0xff]
    %v182 = vld [vmem:[#allocation3 + $0xa0] sm:$0xff]
    %v183 = vld [vmem:[#allocation3 + $0xa8] sm:$0xff]
    %v184 = vld [vmem:[#allocation3 + $0xb0] sm:$0xff]
    %v185 = vld [vmem:[#allocation3 + $0xb8] sm:$0xff]
    %v186 = vld [vmem:[#allocation3 + $0xc0] sm:$0xff]
    %v187 = vld [vmem:[#allocation3 + $0xc8] sm:$0xff]
    %v188 = vld [vmem:[#allocation3 + $0xd0] sm:$0xff]
    %v189 = vld [vmem:[#allocation3 + $0xd8] sm:$0xff]
    %v190 = vld [vmem:[#allocation3 + $0xe0] sm:$0xff]
    %v191 = vld [vmem:[#allocation3 + $0xe8] sm:$0xff]
    %v192 = vld [vmem:[#allocation3 + $0xf0] sm:$0xff]
    %v193 = vld [vmem:[#allocation3 + $0xf8] sm:$0xff]
    %v194 = vld [vmem:[#allocation3 + $0x100] sm:$0xff]
    %v195 = vld [vmem:[#allocation3 + $0x108] sm:$0xff]
    %v196 = vld [vmem:[#allocation3 + $0x110] sm:$0xff]
    %v197 = vld [vmem:[#allocation3 + $0x118] sm:$0xff]
    %v198 = vld [vmem:[#allocation3 + $0x120] sm:$0xff]
    %v199 = vld [vmem:[#allocation3 + $0x128] sm:$0xff]
    %v200 = vld [vmem:[#allocation3 + $0x130] sm:$0xff]
    %v201 = vld [vmem:[#allocation3 + $0x138] sm:$0xff]
    %v202 = vld [vmem:[#allocation3 + $0x140] sm:$0xff]
    %v203 = vld [vmem:[#allocation3 + $0x148] sm:$0xff]
    %v204 = vld [vmem:[#allocation3 + $0x150] sm:$0xff]
    %v205 = vld [vmem:[#allocation3 + $0x158] sm:$0xff]
    %v206 = vld [vmem:[#allocation3 + $0x160] sm:$0xff]
    %v207 = vld [vmem:[#allocation3 + $0x168] sm:$0xff]
    %v208 = vld [vmem:[#allocation3 + $0x170] sm:$0xff]
    %v209 = vld [vmem:[#allocation3 + $0x178] sm:$0xff]
    %v238 = vunpack.c.l.b16 %v134
    %v239 = vunpack.c.l.b16 %v135
    %v240 = vunpack.c.l.b16 %v136
    %v241 = vunpack.c.l.b16 %v137
    %v242 = vunpack.c.l.b16 %v138
    %v243 = vunpack.c.l.b16 %v139
    %v244 = vunpack.c.l.b16 %v140
    %v245 = vunpack.c.l.b16 %v141
    %v246 = vunpack.c.l.b16 %v142
    %v247 = vunpack.c.l.b16 %v143
    %v248 = vunpack.c.l.b16 %v144
    %v249 = vunpack.c.l.b16 %v145
    %v250 = vunpack.c.l.b16 %v146
    %v251 = vunpack.c.l.b16 %v147
    %v252 = vunpack.c.l.b16 %v148
    %v253 = vunpack.c.l.b16 %v149
    %v254 = vunpack.c.l.b16 %v150
    %v255 = vunpack.c.l.b16 %v151
    %v256 = vunpack.c.l.b16 %v152
    %v257 = vunpack.c.l.b16 %v153
    %v258 = vunpack.c.l.b16 %v154
    %v259 = vunpack.c.l.b16 %v155
    %v260 = vunpack.c.l.b16 %v156
    %v261 = vunpack.c.l.b16 %v157
    %v262 = vunpack.c.l.b16 %v158
    %v263 = vunpack.c.l.b16 %v159
    %v264 = vunpack.c.l.b16 %v160
    %v265 = vunpack.c.l.b16 %v161
    %v266 = vpack.c.b16 %v239, %v238
    %v267 = vpack.c.b16 %v241, %v240
    %v268 = vpack.c.b16 %v243, %v242
    %v269 = vpack.c.b16 %v245, %v244
    %v270 = vpack.c.b16 %v247, %v246
    %v271 = vpack.c.b16 %v249, %v248
    %v272 = vpack.c.b16 %v251, %v250
    %v273 = vpack.c.b16 %v253, %v252
    %v274 = vpack.c.b16 %v255, %v254
    %v275 = vpack.c.b16 %v257, %v256
    %v276 = vpack.c.b16 %v259, %v258
    %v277 = vpack.c.b16 %v261, %v260
    %v278 = vpack.c.b16 %v263, %v262
    %v279 = vpack.c.b16 %v265, %v264
    %v328 = vunpack.c.l.b16 %v162
    %v329 = vunpack.c.h.b16 %v162
    %v330 = vunpack.c.l.b16 %v163
    %v331 = vunpack.c.h.b16 %v163
    %v332 = vunpack.c.l.b16 %v164
    %v333 = vunpack.c.h.b16 %v164
    %v334 = vunpack.c.l.b16 %v165
    %v335 = vunpack.c.h.b16 %v165
    %v336 = vunpack.c.l.b16 %v166
    %v337 = vunpack.c.h.b16 %v166
    %v338 = vunpack.c.l.b16 %v167
    %v339 = vunpack.c.h.b16 %v167
    %v340 = vunpack.c.l.b16 %v168
    %v341 = vunpack.c.h.b16 %v168
    %v342 = vunpack.c.l.b16 %v169
    %v343 = vunpack.c.h.b16 %v169
    %v344 = vunpack.c.l.b16 %v170
    %v345 = vunpack.c.h.b16 %v170
    %v346 = vunpack.c.l.b16 %v171
    %v347 = vunpack.c.h.b16 %v171
    %v348 = vunpack.c.l.b16 %v172
    %v349 = vunpack.c.h.b16 %v172
    %v350 = vunpack.c.l.b16 %v173
    %v351 = vunpack.c.h.b16 %v173
    %v352 = vunpack.c.l.b16 %v174
    %v353 = vunpack.c.h.b16 %v174
    %v354 = vunpack.c.l.b16 %v175
    %v355 = vunpack.c.h.b16 %v175
    %v356 = vunpack.c.l.b16 %v176
    %v357 = vunpack.c.h.b16 %v176
    %v358 = vunpack.c.l.b16 %v177
    %v359 = vunpack.c.h.b16 %v177
    %v360 = vunpack.c.l.b16 %v178
    %v361 = vunpack.c.h.b16 %v178
    %v362 = vunpack.c.l.b16 %v179
    %v363 = vunpack.c.h.b16 %v179
    %v364 = vunpack.c.l.b16 %v180
    %v365 = vunpack.c.h.b16 %v180
    %v366 = vunpack.c.l.b16 %v181
    %v367 = vunpack.c.h.b16 %v181
    %v368 = vunpack.c.l.b16 %v182
    %v369 = vunpack.c.h.b16 %v182
    %v370 = vunpack.c.l.b16 %v183
    %v371 = vunpack.c.h.b16 %v183
    %v372 = vunpack.c.l.b16 %v184
    %v373 = vunpack.c.h.b16 %v184
    %v374 = vunpack.c.l.b16 %v185
    %v375 = vunpack.c.h.b16 %v185
    %v376 = vunpack.c.l.b16 %v186
    %v377 = vunpack.c.h.b16 %v186
    %v378 = vunpack.c.l.b16 %v187
    %v379 = vunpack.c.h.b16 %v187
    %v380 = vunpack.c.l.b16 %v188
    %v381 = vunpack.c.h.b16 %v188
    %v382 = vunpack.c.l.b16 %v189
    %v383 = vunpack.c.h.b16 %v189
    %v384 = vunpack.c.l.b16 %v190
    %v385 = vunpack.c.h.b16 %v190
    %v386 = vunpack.c.l.b16 %v191
    %v387 = vunpack.c.h.b16 %v191
    %v388 = vunpack.c.l.b16 %v192
    %v389 = vunpack.c.h.b16 %v192
    %v390 = vunpack.c.l.b16 %v193
    %v391 = vunpack.c.h.b16 %v193
    %v392 = vunpack.c.l.b16 %v194
    %v393 = vunpack.c.h.b16 %v194
    %v394 = vunpack.c.l.b16 %v195
    %v395 = vunpack.c.h.b16 %v195
    %v396 = vunpack.c.l.b16 %v196
    %v397 = vunpack.c.h.b16 %v196
    %v398 = vunpack.c.l.b16 %v197
    %v399 = vunpack.c.h.b16 %v197
    %v400 = vunpack.c.l.b16 %v198
    %v401 = vunpack.c.h.b16 %v198
    %v402 = vunpack.c.l.b16 %v199
    %v403 = vunpack.c.h.b16 %v199
    %v404 = vunpack.c.l.b16 %v200
    %v405 = vunpack.c.h.b16 %v200
    %v406 = vunpack.c.l.b16 %v201
    %v407 = vunpack.c.h.b16 %v201
    %v408 = vunpack.c.l.b16 %v202
    %v409 = vunpack.c.h.b16 %v202
    %v410 = vunpack.c.l.b16 %v203
    %v411 = vunpack.c.h.b16 %v203
    %v412 = vunpack.c.l.b16 %v204
    %v413 = vunpack.c.h.b16 %v204
    %v414 = vunpack.c.l.b16 %v205
    %v415 = vunpack.c.h.b16 %v205
    %v416 = vunpack.c.l.b16 %v206
    %v417 = vunpack.c.h.b16 %v206
    %v418 = vunpack.c.l.b16 %v207
    %v419 = vunpack.c.h.b16 %v207
    %v420 = vunpack.c.l.b16 %v208
    %v421 = vunpack.c.h.b16 %v208
    %v422 = vunpack.c.l.b16 %v209
    %v423 = vunpack.c.h.b16 %v209
    %v424 = vpack.c.b16 %v336, %v328
    %v425 = vpack.c.b16 %v337, %v329
    %v426 = vpack.c.b16 %v338, %v330
    %v427 = vpack.c.b16 %v339, %v331
    %v428 = vpack.c.b16 %v340, %v332
    %v429 = vpack.c.b16 %v341, %v333
    %v430 = vpack.c.b16 %v342, %v334
    %v431 = vpack.c.b16 %v343, %v335
    %v432 = vpack.c.b16 %v352, %v344
    %v433 = vpack.c.b16 %v353, %v345
    %v434 = vpack.c.b16 %v354, %v346
    %v435 = vpack.c.b16 %v355, %v347
    %v436 = vpack.c.b16 %v356, %v348
    %v437 = vpack.c.b16 %v357, %v349
    %v438 = vpack.c.b16 %v358, %v350
    %v439 = vpack.c.b16 %v359, %v351
    %v440 = vpack.c.b16 %v368, %v360
    %v441 = vpack.c.b16 %v369, %v361
    %v442 = vpack.c.b16 %v370, %v362
    %v443 = vpack.c.b16 %v371, %v363
    %v444 = vpack.c.b16 %v372, %v364
    %v445 = vpack.c.b16 %v373, %v365
    %v446 = vpack.c.b16 %v374, %v366
    %v447 = vpack.c.b16 %v375, %v367
    %v448 = vpack.c.b16 %v384, %v376
    %v449 = vpack.c.b16 %v385, %v377
    %v450 = vpack.c.b16 %v386, %v378
    %v451 = vpack.c.b16 %v387, %v379
    %v452 = vpack.c.b16 %v388, %v380
    %v453 = vpack.c.b16 %v389, %v381
    %v454 = vpack.c.b16 %v390, %v382
    %v455 = vpack.c.b16 %v391, %v383
    %v456 = vpack.c.b16 %v400, %v392
    %v457 = vpack.c.b16 %v401, %v393
    %v458 = vpack.c.b16 %v402, %v394
    %v459 = vpack.c.b16 %v403, %v395
    %v460 = vpack.c.b16 %v404, %v396
    %v461 = vpack.c.b16 %v405, %v397
    %v462 = vpack.c.b16 %v406, %v398
    %v463 = vpack.c.b16 %v407, %v399
    %v464 = vpack.c.b16 %v416, %v408
    %v465 = vpack.c.b16 %v417, %v409
    %v466 = vpack.c.b16 %v418, %v410
    %v467 = vpack.c.b16 %v419, %v411
    %v468 = vpack.c.b16 %v420, %v412
    %v469 = vpack.c.b16 %v421, %v413
    %v470 = vpack.c.b16 %v422, %v414
    %v471 = vpack.c.b16 %v423, %v415
    %vm520 = vcmask 785408
    %v522 = vsel %vm520, %v266, 0
    %v525 = vsel %vm520, %v267, 0
    %v528 = vsel %vm520, %v268, 0
    %v531 = vsel %vm520, %v269, 0
    %v534 = vsel %vm520, %v270, 0
    %v537 = vsel %vm520, %v271, 0
    %v540 = vsel %vm520, %v272, 0
    %v543 = vsel %vm520, %v273, 0
    %v546 = vsel %vm520, %v274, 0
    %v549 = vsel %vm520, %v275, 0
    %v552 = vsel %vm520, %v276, 0
    %v555 = vsel %vm520, %v277, 0
    %v558 = vsel %vm520, %v278, 0
    %v561 = vsel %vm520, %v279, 0
    %563 = vmatprep.subr.bf16.mxu0 %v425
    %564 = vmatpush1.bf16.msra.mxu0 %v424
    %565 = vmatprep.subr.bf16.mxu0 %v433
    %566 = vmatpush1.bf16.msra.mxu0 %v432
    %567 = vmatprep.subr.bf16.mxu0 %v441
    %568 = vmatpush1.bf16.msra.mxu0 %v440
    %569 = vmatprep.subr.bf16.mxu0 %v449
    %570 = vmatpush1.bf16.msra.mxu0 %v448
    %571 = vmatprep.subr.bf16.mxu0 %v457
    %572 = vmatpush1.bf16.msra.mxu0 %v456
    %573 = vmatprep.subr.bf16.mxu0 %v465
    %574 = vmatpush1.bf16.msra.mxu0 %v464
    %575 = vmatprep.subr.bf16.mxu0 0
    %576 = vmatpush1.bf16.msra.mxu0 0
    %577 = vmatprep.subr.bf16.mxu0 0
    %578 = vmatpush1.bf16.msra.mxu0 0
    %579 = vmatprep.subr.bf16.mxu0 0
    %580 = vmatpush1.bf16.msra.mxu0 0
    %581 = vmatprep.subr.bf16.mxu0 0
    %582 = vmatpush1.bf16.msra.mxu0 0
    %583 = vmatprep.subr.bf16.mxu0 0
    %584 = vmatpush1.bf16.msra.mxu0 0
    %585 = vmatprep.subr.bf16.mxu0 0
    %586 = vmatpush1.bf16.msra.mxu0 0
    %587 = vmatprep.subr.bf16.mxu0 0
    %588 = vmatpush1.bf16.msra.mxu0 0
    %589 = vmatprep.subr.bf16.mxu0 0
    %590 = vmatpush1.bf16.msra.mxu0 0
    %591 = vmatprep.subr.bf16.mxu0 0
    %592 = vmatpush1.bf16.msra.mxu0 0
    %593 = vmatprep.subr.bf16.mxu0 0
    %594 = vmatpush1.bf16.msra.mxu0 0
    %595 = vmatprep.mubr.bf16.mxu0 0
    %596 = vmatmul.mubr.bf16.gmra.mrb[0].mxu0 %v522
    %v597 = vpop.f32.mrb[0].mxu0
    %v598 = vadd.f32 0.0, %v597
    %v599 = vpop.f32.mrb[0].mxu0
    %v600 = vadd.f32 0.0, %v599
    %v601 = vpop.f32.mrb[0].mxu0
    %v602 = vadd.f32 0.0, %v601
    %v603 = vpop.f32.mrb[0].mxu0
    %v604 = vadd.f32 0.0, %v603
    %605 = vmatprep.mubr.bf16.mxu0 0
    %606 = vmatmul.mubr.bf16.gmra.mrb[0].mxu0 %v525
    %v607 = vpop.f32.mrb[0].mxu0
    %v608 = vadd.f32 0.0, %v607
    %v609 = vpop.f32.mrb[0].mxu0
    %v610 = vadd.f32 0.0, %v609
    %v611 = vpop.f32.mrb[0].mxu0
    %v612 = vadd.f32 0.0, %v611
    %v613 = vpop.f32.mrb[0].mxu0
    %v614 = vadd.f32 0.0, %v613
    %615 = vmatprep.mubr.bf16.mxu0 0
    %616 = vmatmul.mubr.bf16.gmra.mrb[0].mxu0 %v528
    %v617 = vpop.f32.mrb[0].mxu0
    %v618 = vadd.f32 0.0, %v617
    %v619 = vpop.f32.mrb[0].mxu0
    %v620 = vadd.f32 0.0, %v619
    %v621 = vpop.f32.mrb[0].mxu0
    %v622 = vadd.f32 0.0, %v621
    %v623 = vpop.f32.mrb[0].mxu0
    %v624 = vadd.f32 0.0, %v623
    %625 = vmatprep.mubr.bf16.mxu0 0
    %626 = vmatmul.mubr.bf16.gmra.mrb[0].mxu0 %v531
    %v627 = vpop.f32.mrb[0].mxu0
    %v628 = vadd.f32 0.0, %v627
    %v629 = vpop.f32.mrb[0].mxu0
    %v630 = vadd.f32 0.0, %v629
    %v631 = vpop.f32.mrb[0].mxu0
    %v632 = vadd.f32 0.0, %v631
    %v633 = vpop.f32.mrb[0].mxu0
    %v634 = vadd.f32 0.0, %v633
    %635 = vmatprep.mubr.bf16.mxu0 0
    %636 = vmatmul.mubr.bf16.gmra.mrb[0].mxu0 %v534
    %v637 = vpop.f32.mrb[0].mxu0
    %v638 = vadd.f32 0.0, %v637
    %v639 = vpop.f32.mrb[0].mxu0
    %v640 = vadd.f32 0.0, %v639
    %v641 = vpop.f32.mrb[0].mxu0
    %v642 = vadd.f32 0.0, %v641
    %v643 = vpop.f32.mrb[0].mxu0
    %v644 = vadd.f32 0.0, %v643
    %645 = vmatprep.mubr.bf16.mxu0 0
    %646 = vmatmul.mubr.bf16.gmra.mrb[0].mxu0 %v537
    %v647 = vpop.f32.mrb[0].mxu0
    %v648 = vadd.f32 0.0, %v647
    %v649 = vpop.f32.mrb[0].mxu0
    %v650 = vadd.f32 0.0, %v649
    %v651 = vpop.f32.mrb[0].mxu0
    %v652 = vadd.f32 0.0, %v651
    %v653 = vpop.f32.mrb[0].mxu0
    %v654 = vadd.f32 0.0, %v653
    %655 = vmatprep.mubr.bf16.mxu0 0
    %656 = vmatmul.mubr.bf16.gmra.mrb[0].mxu0 %v540
    %v657 = vpop.f32.mrb[0].mxu0
    %v658 = vadd.f32 0.0, %v657
    %v659 = vpop.f32.mrb[0].mxu0
    %v660 = vadd.f32 0.0, %v659
    %v661 = vpop.f32.mrb[0].mxu0
    %v662 = vadd.f32 0.0, %v661
    %v663 = vpop.f32.mrb[0].mxu0
    %v664 = vadd.f32 0.0, %v663
    %665 = vmatprep.mubr.bf16.mxu0 0
    %666 = vmatmul.mubr.bf16.gmra.mrb[0].mxu0 %v543
    %v667 = vpop.f32.mrb[0].mxu0
    %v668 = vadd.f32 0.0, %v667
    %v669 = vpop.f32.mrb[0].mxu0
    %v670 = vadd.f32 0.0, %v669
    %v671 = vpop.f32.mrb[0].mxu0
    %v672 = vadd.f32 0.0, %v671
    %v673 = vpop.f32.mrb[0].mxu0
    %v674 = vadd.f32 0.0, %v673
    %675 = vmatprep.mubr.bf16.mxu0 0
    %676 = vmatmul.mubr.bf16.gmra.mrb[0].mxu0 %v546
    %v677 = vpop.f32.mrb[0].mxu0
    %v678 = vadd.f32 0.0, %v677
    %v679 = vpop.f32.mrb[0].mxu0
    %v680 = vadd.f32 0.0, %v679
    %v681 = vpop.f32.mrb[0].mxu0
    %v682 = vadd.f32 0.0, %v681
    %v683 = vpop.f32.mrb[0].mxu0
    %v684 = vadd.f32 0.0, %v683
    %685 = vmatprep.mubr.bf16.mxu0 0
    %686 = vmatmul.mubr.bf16.gmra.mrb[0].mxu0 %v549
    %v687 = vpop.f32.mrb[0].mxu0
    %v688 = vadd.f32 0.0, %v687
    %v689 = vpop.f32.mrb[0].mxu0
    %v690 = vadd.f32 0.0, %v689
    %v691 = vpop.f32.mrb[0].mxu0
    %v692 = vadd.f32 0.0, %v691
    %v693 = vpop.f32.mrb[0].mxu0
    %v694 = vadd.f32 0.0, %v693
    %695 = vmatprep.mubr.bf16.mxu0 0
    %696 = vmatmul.mubr.bf16.gmra.mrb[0].mxu0 %v552
    %v697 = vpop.f32.mrb[0].mxu0
    %v698 = vadd.f32 0.0, %v697
    %v699 = vpop.f32.mrb[0].mxu0
    %v700 = vadd.f32 0.0, %v699
    %v701 = vpop.f32.mrb[0].mxu0
    %v702 = vadd.f32 0.0, %v701
    %v703 = vpop.f32.mrb[0].mxu0
    %v704 = vadd.f32 0.0, %v703
    %705 = vmatprep.mubr.bf16.mxu0 0
    %706 = vmatmul.mubr.bf16.gmra.mrb[0].mxu0 %v555
    %v707 = vpop.f32.mrb[0].mxu0
    %v708 = vadd.f32 0.0, %v707
    %v709 = vpop.f32.mrb[0].mxu0
    %v710 = vadd.f32 0.0, %v709
    %v711 = vpop.f32.mrb[0].mxu0
    %v712 = vadd.f32 0.0, %v711
    %v713 = vpop.f32.mrb[0].mxu0
    %v714 = vadd.f32 0.0, %v713
    %715 = vmatprep.mubr.bf16.mxu0 0
    %716 = vmatmul.mubr.bf16.gmra.mrb[0].mxu0 %v558
    %v717 = vpop.f32.mrb[0].mxu0
    %v718 = vadd.f32 0.0, %v717
    %v719 = vpop.f32.mrb[0].mxu0
    %v720 = vadd.f32 0.0, %v719
    %v721 = vpop.f32.mrb[0].mxu0
    %v722 = vadd.f32 0.0, %v721
    %v723 = vpop.f32.mrb[0].mxu0
    %v724 = vadd.f32 0.0, %v723
    %725 = vmatprep.mubr.bf16.mxu0 0
    %726 = vmatmul.mubr.bf16.gmra.mrb[0].mxu0 %v561
    %v727 = vpop.f32.mrb[0].mxu0
    %v728 = vadd.f32 0.0, %v727
    %v729 = vpop.f32.mrb[0].mxu0
    %v730 = vadd.f32 0.0, %v729
    %v731 = vpop.f32.mrb[0].mxu0
    %v732 = vadd.f32 0.0, %v731
    %v733 = vpop.f32.mrb[0].mxu0
    %v734 = vadd.f32 0.0, %v733
    %735 = vdwg.mxu0
    %736 = vmatprep.subr.bf16.mxu0 %v427
    %737 = vmatpush1.bf16.msra.mxu0 %v426
    %738 = vmatprep.subr.bf16.mxu0 %v435
    %739 = vmatpush1.bf16.msra.mxu0 %v434
    %740 = vmatprep.subr.bf16.mxu0 %v443
    %741 = vmatpush1.bf16.msra.mxu0 %v442
    %742 = vmatprep.subr.bf16.mxu0 %v451
    %743 = vmatpush1.bf16.msra.mxu0 %v450
    %744 = vmatprep.subr.bf16.mxu0 %v459
    %745 = vmatpush1.bf16.msra.mxu0 %v458
    %746 = vmatprep.subr.bf16.mxu0 %v467
    %747 = vmatpush1.bf16.msra.mxu0 %v466
    %748 = vmatprep.subr.bf16.mxu0 0
    %749 = vmatpush1.bf16.msra.mxu0 0
    %750 = vmatprep.subr.bf16.mxu0 0
    %751 = vmatpush1.bf16.msra.mxu0 0
    %752 = vmatprep.subr.bf16.mxu0 0
    %753 = vmatpush1.bf16.msra.mxu0 0
    %754 = vmatprep.subr.bf16.mxu0 0
    %755 = vmatpush1.bf16.msra.mxu0 0
    %756 = vmatprep.subr.bf16.mxu0 0
    %757 = vmatpush1.bf16.msra.mxu0 0
    %758 = vmatprep.subr.bf16.mxu0 0
    %759 = vmatpush1.bf16.msra.mxu0 0
    %760 = vmatprep.subr.bf16.mxu0 0
    %761 = vmatpush1.bf16.msra.mxu0 0
    %762 = vmatprep.subr.bf16.mxu0 0
    %763 = vmatpush1.bf16.msra.mxu0 0
    %764 = vmatprep.subr.bf16.mxu0 0
    %765 = vmatpush1.bf16.msra.mxu0 0
    %766 = vmatprep.subr.bf16.mxu0 0
    %767 = vmatpush1.bf16.msra.mxu0 0
    %768 = vmatprep.mubr.bf16.mxu0 0
    %769 = vmatmul.mubr.bf16.gmra.mrb[0].mxu0 %v522
    %v770 = vpop.f32.mrb[0].mxu0
    %v771 = vadd.f32 0.0, %v770
    %v772 = vpop.f32.mrb[0].mxu0
    %v773 = vadd.f32 0.0, %v772
    %v774 = vpop.f32.mrb[0].mxu0
    %v775 = vadd.f32 0.0, %v774
    %v776 = vpop.f32.mrb[0].mxu0
    %v777 = vadd.f32 0.0, %v776
    %778 = vmatprep.mubr.bf16.mxu0 0
    %779 = vmatmul.mubr.bf16.gmra.mrb[0].mxu0 %v525
    %v780 = vpop.f32.mrb[0].mxu0
    %v781 = vadd.f32 0.0, %v780
    %v782 = vpop.f32.mrb[0].mxu0
    %v783 = vadd.f32 0.0, %v782
    %v784 = vpop.f32.mrb[0].mxu0
    %v785 = vadd.f32 0.0, %v784
    %v786 = vpop.f32.mrb[0].mxu0
    %v787 = vadd.f32 0.0, %v786
    %788 = vmatprep.mubr.bf16.mxu0 0
    %789 = vmatmul.mubr.bf16.gmra.mrb[0].mxu0 %v528
    %v790 = vpop.f32.mrb[0].mxu0
    %v791 = vadd.f32 0.0, %v790
    %v792 = vpop.f32.mrb[0].mxu0
    %v793 = vadd.f32 0.0, %v792
    %v794 = vpop.f32.mrb[0].mxu0
    %v795 = vadd.f32 0.0, %v794
    %v796 = vpop.f32.mrb[0].mxu0
    %v797 = vadd.f32 0.0, %v796
    %798 = vmatprep.mubr.bf16.mxu0 0
    %799 = vmatmul.mubr.bf16.gmra.mrb[0].mxu0 %v531
    %v800 = vpop.f32.mrb[0].mxu0
    %v801 = vadd.f32 0.0, %v800
    %v802 = vpop.f32.mrb[0].mxu0
    %v803 = vadd.f32 0.0, %v802
    %v804 = vpop.f32.mrb[0].mxu0
    %v805 = vadd.f32 0.0, %v804
    %v806 = vpop.f32.mrb[0].mxu0
    %v807 = vadd.f32 0.0, %v806
    %808 = vmatprep.mubr.bf16.mxu0 0
    %809 = vmatmul.mubr.bf16.gmra.mrb[0].mxu0 %v534
    %v810 = vpop.f32.mrb[0].mxu0
    %v811 = vadd.f32 0.0, %v810
    %v812 = vpop.f32.mrb[0].mxu0
    %v813 = vadd.f32 0.0, %v812
    %v814 = vpop.f32.mrb[0].mxu0
    %v815 = vadd.f32 0.0, %v814
    %v816 = vpop.f32.mrb[0].mxu0
    %v817 = vadd.f32 0.0, %v816
    %818 = vmatprep.mubr.bf16.mxu0 0
    %819 = vmatmul.mubr.bf16.gmra.mrb[0].mxu0 %v537
    %v820 = vpop.f32.mrb[0].mxu0
    %v821 = vadd.f32 0.0, %v820
    %v822 = vpop.f32.mrb[0].mxu0
    %v823 = vadd.f32 0.0, %v822
    %v824 = vpop.f32.mrb[0].mxu0
    %v825 = vadd.f32 0.0, %v824
    %v826 = vpop.f32.mrb[0].mxu0
    %v827 = vadd.f32 0.0, %v826
    %828 = vmatprep.mubr.bf16.mxu0 0
    %829 = vmatmul.mubr.bf16.gmra.mrb[0].mxu0 %v540
    %v830 = vpop.f32.mrb[0].mxu0
    %v831 = vadd.f32 0.0, %v830
    %v832 = vpop.f32.mrb[0].mxu0
    %v833 = vadd.f32 0.0, %v832
    %v834 = vpop.f32.mrb[0].mxu0
    %v835 = vadd.f32 0.0, %v834
    %v836 = vpop.f32.mrb[0].mxu0
    %v837 = vadd.f32 0.0, %v836
    %838 = vmatprep.mubr.bf16.mxu0 0
    %839 = vmatmul.mubr.bf16.gmra.mrb[0].mxu0 %v543
    %v840 = vpop.f32.mrb[0].mxu0
    %v841 = vadd.f32 0.0, %v840
    %v842 = vpop.f32.mrb[0].mxu0
    %v843 = vadd.f32 0.0, %v842
    %v844 = vpop.f32.mrb[0].mxu0
    %v845 = vadd.f32 0.0, %v844
    %v846 = vpop.f32.mrb[0].mxu0
    %v847 = vadd.f32 0.0, %v846
    %848 = vmatprep.mubr.bf16.mxu0 0
    %849 = vmatmul.mubr.bf16.gmra.mrb[0].mxu0 %v546
    %v850 = vpop.f32.mrb[0].mxu0
    %v851 = vadd.f32 0.0, %v850
    %v852 = vpop.f32.mrb[0].mxu0
    %v853 = vadd.f32 0.0, %v852
    %v854 = vpop.f32.mrb[0].mxu0
    %v855 = vadd.f32 0.0, %v854
    %v856 = vpop.f32.mrb[0].mxu0
    %v857 = vadd.f32 0.0, %v856
    %858 = vmatprep.mubr.bf16.mxu0 0
    %859 = vmatmul.mubr.bf16.gmra.mrb[0].mxu0 %v549
    %v860 = vpop.f32.mrb[0].mxu0
    %v861 = vadd.f32 0.0, %v860
    %v862 = vpop.f32.mrb[0].mxu0
    %v863 = vadd.f32 0.0, %v862
    %v864 = vpop.f32.mrb[0].mxu0
    %v865 = vadd.f32 0.0, %v864
    %v866 = vpop.f32.mrb[0].mxu0
    %v867 = vadd.f32 0.0, %v866
    %868 = vmatprep.mubr.bf16.mxu0 0
    %869 = vmatmul.mubr.bf16.gmra.mrb[0].mxu0 %v552
    %v870 = vpop.f32.mrb[0].mxu0
    %v871 = vadd.f32 0.0, %v870
    %v872 = vpop.f32.mrb[0].mxu0
    %v873 = vadd.f32 0.0, %v872
    %v874 = vpop.f32.mrb[0].mxu0
    %v875 = vadd.f32 0.0, %v874
    %v876 = vpop.f32.mrb[0].mxu0
    %v877 = vadd.f32 0.0, %v876
    %878 = vmatprep.mubr.bf16.mxu0 0
    %879 = vmatmul.mubr.bf16.gmra.mrb[0].mxu0 %v555
    %v880 = vpop.f32.mrb[0].mxu0
    %v881 = vadd.f32 0.0, %v880
    %v882 = vpop.f32.mrb[0].mxu0
    %v883 = vadd.f32 0.0, %v882
    %v884 = vpop.f32.mrb[0].mxu0
    %v885 = vadd.f32 0.0, %v884
    %v886 = vpop.f32.mrb[0].mxu0
    %v887 = vadd.f32 0.0, %v886
    %888 = vmatprep.mubr.bf16.mxu0 0
    %889 = vmatmul.mubr.bf16.gmra.mrb[0].mxu0 %v558
    %v890 = vpop.f32.mrb[0].mxu0
    %v891 = vadd.f32 0.0, %v890
    %v892 = vpop.f32.mrb[0].mxu0
    %v893 = vadd.f32 0.0, %v892
    %v894 = vpop.f32.mrb[0].mxu0
    %v895 = vadd.f32 0.0, %v894
    %v896 = vpop.f32.mrb[0].mxu0
    %v897 = vadd.f32 0.0, %v896
    %898 = vmatprep.mubr.bf16.mxu0 0
    %899 = vmatmul.mubr.bf16.gmra.mrb[0].mxu0 %v561
    %v900 = vpop.f32.mrb[0].mxu0
    %v901 = vadd.f32 0.0, %v900
    %v902 = vpop.f32.mrb[0].mxu0
    %v903 = vadd.f32 0.0, %v902
    %v904 = vpop.f32.mrb[0].mxu0
    %v905 = vadd.f32 0.0, %v904
    %v906 = vpop.f32.mrb[0].mxu0
    %v907 = vadd.f32 0.0, %v906
    %908 = vdwg.mxu0
    %909 = vmatprep.subr.bf16.mxu0 %v429
    %910 = vmatpush1.bf16.msra.mxu0 %v428
    %911 = vmatprep.subr.bf16.mxu0 %v437
    %912 = vmatpush1.bf16.msra.mxu0 %v436
    %913 = vmatprep.subr.bf16.mxu0 %v445
    %914 = vmatpush1.bf16.msra.mxu0 %v444
    %915 = vmatprep.subr.bf16.mxu0 %v453
    %916 = vmatpush1.bf16.msra.mxu0 %v452
    %917 = vmatprep.subr.bf16.mxu0 %v461
    %918 = vmatpush1.bf16.msra.mxu0 %v460
    %919 = vmatprep.subr.bf16.mxu0 %v469
    %920 = vmatpush1.bf16.msra.mxu0 %v468
    %921 = vmatprep.subr.bf16.mxu0 0
    %922 = vmatpush1.bf16.msra.mxu0 0
    %923 = vmatprep.subr.bf16.mxu0 0
    %924 = vmatpush1.bf16.msra.mxu0 0
    %925 = vmatprep.subr.bf16.mxu0 0
    %926 = vmatpush1.bf16.msra.mxu0 0
    %927 = vmatprep.subr.bf16.mxu0 0
    %928 = vmatpush1.bf16.msra.mxu0 0
    %929 = vmatprep.subr.bf16.mxu0 0
    %930 = vmatpush1.bf16.msra.mxu0 0
    %931 = vmatprep.subr.bf16.mxu0 0
    %932 = vmatpush1.bf16.msra.mxu0 0
    %933 = vmatprep.subr.bf16.mxu0 0
    %934 = vmatpush1.bf16.msra.mxu0 0
    %935 = vmatprep.subr.bf16.mxu0 0
    %936 = vmatpush1.bf16.msra.mxu0 0
    %937 = vmatprep.subr.bf16.mxu0 0
    %938 = vmatpush1.bf16.msra.mxu0 0
    %939 = vmatprep.subr.bf16.mxu0 0
    %940 = vmatpush1.bf16.msra.mxu0 0
    %941 = vmatprep.mubr.bf16.mxu0 0
    %942 = vmatmul.mubr.bf16.gmra.mrb[0].mxu0 %v522
    %v943 = vpop.f32.mrb[0].mxu0
    %v944 = vadd.f32 0.0, %v943
    %v945 = vpop.f32.mrb[0].mxu0
    %v946 = vadd.f32 0.0, %v945
    %v947 = vpop.f32.mrb[0].mxu0
    %v948 = vadd.f32 0.0, %v947
    %v949 = vpop.f32.mrb[0].mxu0
    %v950 = vadd.f32 0.0, %v949
    %951 = vmatprep.mubr.bf16.mxu0 0
    %952 = vmatmul.mubr.bf16.gmra.mrb[0].mxu0 %v525
    %v953 = vpop.f32.mrb[0].mxu0
    %v954 = vadd.f32 0.0, %v953
    %v955 = vpop.f32.mrb[0].mxu0
    %v956 = vadd.f32 0.0, %v955
    %v957 = vpop.f32.mrb[0].mxu0
    %v958 = vadd.f32 0.0, %v957
    %v959 = vpop.f32.mrb[0].mxu0
    %v960 = vadd.f32 0.0, %v959
    %961 = vmatprep.mubr.bf16.mxu0 0
    %962 = vmatmul.mubr.bf16.gmra.mrb[0].mxu0 %v528
    %v963 = vpop.f32.mrb[0].mxu0
    %v964 = vadd.f32 0.0, %v963
    %v965 = vpop.f32.mrb[0].mxu0
    %v966 = vadd.f32 0.0, %v965
    %v967 = vpop.f32.mrb[0].mxu0
    %v968 = vadd.f32 0.0, %v967
    %v969 = vpop.f32.mrb[0].mxu0
    %v970 = vadd.f32 0.0, %v969
    %971 = vmatprep.mubr.bf16.mxu0 0
    %972 = vmatmul.mubr.bf16.gmra.mrb[0].mxu0 %v531
    %v973 = vpop.f32.mrb[0].mxu0
    %v974 = vadd.f32 0.0, %v973
    %v975 = vpop.f32.mrb[0].mxu0
    %v976 = vadd.f32 0.0, %v975
    %v977 = vpop.f32.mrb[0].mxu0
    %v978 = vadd.f32 0.0, %v977
    %v979 = vpop.f32.mrb[0].mxu0
    %v980 = vadd.f32 0.0, %v979
    %981 = vmatprep.mubr.bf16.mxu0 0
    %982 = vmatmul.mubr.bf16.gmra.mrb[0].mxu0 %v534
    %v983 = vpop.f32.mrb[0].mxu0
    %v984 = vadd.f32 0.0, %v983
    %v985 = vpop.f32.mrb[0].mxu0
    %v986 = vadd.f32 0.0, %v985
    %v987 = vpop.f32.mrb[0].mxu0
    %v988 = vadd.f32 0.0, %v987
    %v989 = vpop.f32.mrb[0].mxu0
    %v990 = vadd.f32 0.0, %v989
    %991 = vmatprep.mubr.bf16.mxu0 0
    %992 = vmatmul.mubr.bf16.gmra.mrb[0].mxu0 %v537
    %v993 = vpop.f32.mrb[0].mxu0
    %v994 = vadd.f32 0.0, %v993
    %v995 = vpop.f32.mrb[0].mxu0
    %v996 = vadd.f32 0.0, %v995
    %v997 = vpop.f32.mrb[0].mxu0
    %v998 = vadd.f32 0.0, %v997
    %v999 = vpop.f32.mrb[0].mxu0
    %v1000 = vadd.f32 0.0, %v999
    %1001 = vmatprep.mubr.bf16.mxu0 0
    %1002 = vmatmul.mubr.bf16.gmra.mrb[0].mxu0 %v540
    %v1003 = vpop.f32.mrb[0].mxu0
    %v1004 = vadd.f32 0.0, %v1003
    %v1005 = vpop.f32.mrb[0].mxu0
    %v1006 = vadd.f32 0.0, %v1005
    %v1007 = vpop.f32.mrb[0].mxu0
    %v1008 = vadd.f32 0.0, %v1007
    %v1009 = vpop.f32.mrb[0].mxu0
    %v1010 = vadd.f32 0.0, %v1009
    %1011 = vmatprep.mubr.bf16.mxu0 0
    %1012 = vmatmul.mubr.bf16.gmra.mrb[0].mxu0 %v543
    %v1013 = vpop.f32.mrb[0].mxu0
    %v1014 = vadd.f32 0.0, %v1013
    %v1015 = vpop.f32.mrb[0].mxu0
    %v1016 = vadd.f32 0.0, %v1015
    %v1017 = vpop.f32.mrb[0].mxu0
    %v1018 = vadd.f32 0.0, %v1017
    %v1019 = vpop.f32.mrb[0].mxu0
    %v1020 = vadd.f32 0.0, %v1019
    %1021 = vmatprep.mubr.bf16.mxu0 0
    %1022 = vmatmul.mubr.bf16.gmra.mrb[0].mxu0 %v546
    %v1023 = vpop.f32.mrb[0].mxu0
    %v1024 = vadd.f32 0.0, %v1023
    %v1025 = vpop.f32.mrb[0].mxu0
    %v1026 = vadd.f32 0.0, %v1025
    %v1027 = vpop.f32.mrb[0].mxu0
    %v1028 = vadd.f32 0.0, %v1027
    %v1029 = vpop.f32.mrb[0].mxu0
    %v1030 = vadd.f32 0.0, %v1029
    %1031 = vmatprep.mubr.bf16.mxu0 0
    %1032 = vmatmul.mubr.bf16.gmra.mrb[0].mxu0 %v549
    %v1033 = vpop.f32.mrb[0].mxu0
    %v1034 = vadd.f32 0.0, %v1033
    %v1035 = vpop.f32.mrb[0].mxu0
    %v1036 = vadd.f32 0.0, %v1035
    %v1037 = vpop.f32.mrb[0].mxu0
    %v1038 = vadd.f32 0.0, %v1037
    %v1039 = vpop.f32.mrb[0].mxu0
    %v1040 = vadd.f32 0.0, %v1039
    %1041 = vmatprep.mubr.bf16.mxu0 0
    %1042 = vmatmul.mubr.bf16.gmra.mrb[0].mxu0 %v552
    %v1043 = vpop.f32.mrb[0].mxu0
    %v1044 = vadd.f32 0.0, %v1043
    %v1045 = vpop.f32.mrb[0].mxu0
    %v1046 = vadd.f32 0.0, %v1045
    %v1047 = vpop.f32.mrb[0].mxu0
    %v1048 = vadd.f32 0.0, %v1047
    %v1049 = vpop.f32.mrb[0].mxu0
    %v1050 = vadd.f32 0.0, %v1049
    %1051 = vmatprep.mubr.bf16.mxu0 0
    %1052 = vmatmul.mubr.bf16.gmra.mrb[0].mxu0 %v555
    %v1053 = vpop.f32.mrb[0].mxu0
    %v1054 = vadd.f32 0.0, %v1053
    %v1055 = vpop.f32.mrb[0].mxu0
    %v1056 = vadd.f32 0.0, %v1055
    %v1057 = vpop.f32.mrb[0].mxu0
    %v1058 = vadd.f32 0.0, %v1057
    %v1059 = vpop.f32.mrb[0].mxu0
    %v1060 = vadd.f32 0.0, %v1059
    %1061 = vmatprep.mubr.bf16.mxu0 0
    %1062 = vmatmul.mubr.bf16.gmra.mrb[0].mxu0 %v558
    %v1063 = vpop.f32.mrb[0].mxu0
    %v1064 = vadd.f32 0.0, %v1063
    %v1065 = vpop.f32.mrb[0].mxu0
    %v1066 = vadd.f32 0.0, %v1065
    %v1067 = vpop.f32.mrb[0].mxu0
    %v1068 = vadd.f32 0.0, %v1067
    %v1069 = vpop.f32.mrb[0].mxu0
    %v1070 = vadd.f32 0.0, %v1069
    %1071 = vmatprep.mubr.bf16.mxu0 0
    %1072 = vmatmul.mubr.bf16.gmra.mrb[0].mxu0 %v561
    %v1073 = vpop.f32.mrb[0].mxu0
    %v1074 = vadd.f32 0.0, %v1073
    %v1075 = vpop.f32.mrb[0].mxu0
    %v1076 = vadd.f32 0.0, %v1075
    %v1077 = vpop.f32.mrb[0].mxu0
    %v1078 = vadd.f32 0.0, %v1077
    %v1079 = vpop.f32.mrb[0].mxu0
    %v1080 = vadd.f32 0.0, %v1079
    %1081 = vdwg.mxu0
    %1082 = vmatprep.subr.bf16.mxu0 %v431
    %1083 = vmatpush1.bf16.msra.mxu0 %v430
    %1084 = vmatprep.subr.bf16.mxu0 %v439
    %1085 = vmatpush1.bf16.msra.mxu0 %v438
    %1086 = vmatprep.subr.bf16.mxu0 %v447
    %1087 = vmatpush1.bf16.msra.mxu0 %v446
    %1088 = vmatprep.subr.bf16.mxu0 %v455
    %1089 = vmatpush1.bf16.msra.mxu0 %v454
    %1090 = vmatprep.subr.bf16.mxu0 %v463
    %1091 = vmatpush1.bf16.msra.mxu0 %v462
    %1092 = vmatprep.subr.bf16.mxu0 %v471
    %1093 = vmatpush1.bf16.msra.mxu0 %v470
    %1094 = vmatprep.subr.bf16.mxu0 0
    %1095 = vmatpush1.bf16.msra.mxu0 0
    %1096 = vmatprep.subr.bf16.mxu0 0
    %1097 = vmatpush1.bf16.msra.mxu0 0
    %1098 = vmatprep.subr.bf16.mxu0 0
    %1099 = vmatpush1.bf16.msra.mxu0 0
    %1100 = vmatprep.subr.bf16.mxu0 0
    %1101 = vmatpush1.bf16.msra.mxu0 0
    %1102 = vmatprep.subr.bf16.mxu0 0
    %1103 = vmatpush1.bf16.msra.mxu0 0
    %1104 = vmatprep.subr.bf16.mxu0 0
    %1105 = vmatpush1.bf16.msra.mxu0 0
    %1106 = vmatprep.subr.bf16.mxu0 0
    %1107 = vmatpush1.bf16.msra.mxu0 0
    %1108 = vmatprep.subr.bf16.mxu0 0
    %1109 = vmatpush1.bf16.msra.mxu0 0
    %1110 = vmatprep.subr.bf16.mxu0 0
    %1111 = vmatpush1.bf16.msra.mxu0 0
    %1112 = vmatprep.subr.bf16.mxu0 0
    %1113 = vmatpush1.bf16.msra.mxu0 0
    %1114 = vmatprep.mubr.bf16.mxu0 0
    %1115 = vmatmul.mubr.bf16.gmra.mrb[0].mxu0 %v522
    %v1116 = vpop.f32.mrb[0].mxu0
    %v1117 = vadd.f32 0.0, %v1116
    %v1118 = vpop.f32.mrb[0].mxu0
    %v1119 = vadd.f32 0.0, %v1118
    %v1120 = vpop.f32.mrb[0].mxu0
    %v1121 = vadd.f32 0.0, %v1120
    %v1122 = vpop.f32.mrb[0].mxu0
    %v1123 = vadd.f32 0.0, %v1122
    %1124 = vmatprep.mubr.bf16.mxu0 0
    %1125 = vmatmul.mubr.bf16.gmra.mrb[0].mxu0 %v525
    %v1126 = vpop.f32.mrb[0].mxu0
    %v1127 = vadd.f32 0.0, %v1126
    %v1128 = vpop.f32.mrb[0].mxu0
    %v1129 = vadd.f32 0.0, %v1128
    %v1130 = vpop.f32.mrb[0].mxu0
    %v1131 = vadd.f32 0.0, %v1130
    %v1132 = vpop.f32.mrb[0].mxu0
    %v1133 = vadd.f32 0.0, %v1132
    %1134 = vmatprep.mubr.bf16.mxu0 0
    %1135 = vmatmul.mubr.bf16.gmra.mrb[0].mxu0 %v528
    %v1136 = vpop.f32.mrb[0].mxu0
    %v1137 = vadd.f32 0.0, %v1136
    %v1138 = vpop.f32.mrb[0].mxu0
    %v1139 = vadd.f32 0.0, %v1138
    %v1140 = vpop.f32.mrb[0].mxu0
    %v1141 = vadd.f32 0.0, %v1140
    %v1142 = vpop.f32.mrb[0].mxu0
    %v1143 = vadd.f32 0.0, %v1142
    %1144 = vmatprep.mubr.bf16.mxu0 0
    %1145 = vmatmul.mubr.bf16.gmra.mrb[0].mxu0 %v531
    %v1146 = vpop.f32.mrb[0].mxu0
    %v1147 = vadd.f32 0.0, %v1146
    %v1148 = vpop.f32.mrb[0].mxu0
    %v1149 = vadd.f32 0.0, %v1148
    %v1150 = vpop.f32.mrb[0].mxu0
    %v1151 = vadd.f32 0.0, %v1150
    %v1152 = vpop.f32.mrb[0].mxu0
    %v1153 = vadd.f32 0.0, %v1152
    %1154 = vmatprep.mubr.bf16.mxu0 0
    %1155 = vmatmul.mubr.bf16.gmra.mrb[0].mxu0 %v534
    %v1156 = vpop.f32.mrb[0].mxu0
    %v1157 = vadd.f32 0.0, %v1156
    %v1158 = vpop.f32.mrb[0].mxu0
    %v1159 = vadd.f32 0.0, %v1158
    %v1160 = vpop.f32.mrb[0].mxu0
    %v1161 = vadd.f32 0.0, %v1160
    %v1162 = vpop.f32.mrb[0].mxu0
    %v1163 = vadd.f32 0.0, %v1162
    %1164 = vmatprep.mubr.bf16.mxu0 0
    %1165 = vmatmul.mubr.bf16.gmra.mrb[0].mxu0 %v537
    %v1166 = vpop.f32.mrb[0].mxu0
    %v1167 = vadd.f32 0.0, %v1166
    %v1168 = vpop.f32.mrb[0].mxu0
    %v1169 = vadd.f32 0.0, %v1168
    %v1170 = vpop.f32.mrb[0].mxu0
    %v1171 = vadd.f32 0.0, %v1170
    %v1172 = vpop.f32.mrb[0].mxu0
    %v1173 = vadd.f32 0.0, %v1172
    %1174 = vmatprep.mubr.bf16.mxu0 0
    %1175 = vmatmul.mubr.bf16.gmra.mrb[0].mxu0 %v540
    %v1176 = vpop.f32.mrb[0].mxu0
    %v1177 = vadd.f32 0.0, %v1176
    %v1178 = vpop.f32.mrb[0].mxu0
    %v1179 = vadd.f32 0.0, %v1178
    %v1180 = vpop.f32.mrb[0].mxu0
    %v1181 = vadd.f32 0.0, %v1180
    %v1182 = vpop.f32.mrb[0].mxu0
    %v1183 = vadd.f32 0.0, %v1182
    %1184 = vmatprep.mubr.bf16.mxu0 0
    %1185 = vmatmul.mubr.bf16.gmra.mrb[0].mxu0 %v543
    %v1186 = vpop.f32.mrb[0].mxu0
    %v1187 = vadd.f32 0.0, %v1186
    %v1188 = vpop.f32.mrb[0].mxu0
    %v1189 = vadd.f32 0.0, %v1188
    %v1190 = vpop.f32.mrb[0].mxu0
    %v1191 = vadd.f32 0.0, %v1190
    %v1192 = vpop.f32.mrb[0].mxu0
    %v1193 = vadd.f32 0.0, %v1192
    %1194 = vmatprep.mubr.bf16.mxu0 0
    %1195 = vmatmul.mubr.bf16.gmra.mrb[0].mxu0 %v546
    %v1196 = vpop.f32.mrb[0].mxu0
    %v1197 = vadd.f32 0.0, %v1196
    %v1198 = vpop.f32.mrb[0].mxu0
    %v1199 = vadd.f32 0.0, %v1198
    %v1200 = vpop.f32.mrb[0].mxu0
    %v1201 = vadd.f32 0.0, %v1200
    %v1202 = vpop.f32.mrb[0].mxu0
    %v1203 = vadd.f32 0.0, %v1202
    %1204 = vmatprep.mubr.bf16.mxu0 0
    %1205 = vmatmul.mubr.bf16.gmra.mrb[0].mxu0 %v549
    %v1206 = vpop.f32.mrb[0].mxu0
    %v1207 = vadd.f32 0.0, %v1206
    %v1208 = vpop.f32.mrb[0].mxu0
    %v1209 = vadd.f32 0.0, %v1208
    %v1210 = vpop.f32.mrb[0].mxu0
    %v1211 = vadd.f32 0.0, %v1210
    %v1212 = vpop.f32.mrb[0].mxu0
    %v1213 = vadd.f32 0.0, %v1212
    %1214 = vmatprep.mubr.bf16.mxu0 0
    %1215 = vmatmul.mubr.bf16.gmra.mrb[0].mxu0 %v552
    %v1216 = vpop.f32.mrb[0].mxu0
    %v1217 = vadd.f32 0.0, %v1216
    %v1218 = vpop.f32.mrb[0].mxu0
    %v1219 = vadd.f32 0.0, %v1218
    %v1220 = vpop.f32.mrb[0].mxu0
    %v1221 = vadd.f32 0.0, %v1220
    %v1222 = vpop.f32.mrb[0].mxu0
    %v1223 = vadd.f32 0.0, %v1222
    %1224 = vmatprep.mubr.bf16.mxu0 0
    %1225 = vmatmul.mubr.bf16.gmra.mrb[0].mxu0 %v555
    %v1226 = vpop.f32.mrb[0].mxu0
    %v1227 = vadd.f32 0.0, %v1226
    %v1228 = vpop.f32.mrb[0].mxu0
    %v1229 = vadd.f32 0.0, %v1228
    %v1230 = vpop.f32.mrb[0].mxu0
    %v1231 = vadd.f32 0.0, %v1230
    %v1232 = vpop.f32.mrb[0].mxu0
    %v1233 = vadd.f32 0.0, %v1232
    %1234 = vmatprep.mubr.bf16.mxu0 0
    %1235 = vmatmul.mubr.bf16.gmra.mrb[0].mxu0 %v558
    %v1236 = vpop.f32.mrb[0].mxu0
    %v1237 = vadd.f32 0.0, %v1236
    %v1238 = vpop.f32.mrb[0].mxu0
    %v1239 = vadd.f32 0.0, %v1238
    %v1240 = vpop.f32.mrb[0].mxu0
    %v1241 = vadd.f32 0.0, %v1240
    %v1242 = vpop.f32.mrb[0].mxu0
    %v1243 = vadd.f32 0.0, %v1242
    %1244 = vmatprep.mubr.bf16.mxu0 0
    %1245 = vmatmul.mubr.bf16.gmra.mrb[0].mxu0 %v561
    %v1246 = vpop.f32.mrb[0].mxu0
    %v1247 = vadd.f32 0.0, %v1246
    %v1248 = vpop.f32.mrb[0].mxu0
    %v1249 = vadd.f32 0.0, %v1248
    %v1250 = vpop.f32.mrb[0].mxu0
    %v1251 = vadd.f32 0.0, %v1250
    %v1252 = vpop.f32.mrb[0].mxu0
    %v1253 = vadd.f32 0.0, %v1252
    %1254 = vdwg.mxu0
    %v1255 = vmax.f32 %v598, %v668
    %v1256 = vmax.f32 %v600, %v670
    %v1257 = vmax.f32 %v771, %v841
    %v1258 = vmax.f32 %v773, %v843
    %v1259 = vmax.f32 %v944, %v1014
    %v1260 = vmax.f32 %v946, %v1016
    %v1261 = vmax.f32 %v1117, %v1187
    %v1262 = vmax.f32 %v1119, %v1189
    %v1263 = vmax.f32 %v602, %v672
    %v1264 = vmax.f32 %v604, %v674
    %v1265 = vmax.f32 %v775, %v845
    %v1266 = vmax.f32 %v777, %v847
    %v1267 = vmax.f32 %v948, %v1018
    %v1268 = vmax.f32 %v950, %v1020
    %v1269 = vmax.f32 %v1121, %v1191
    %v1270 = vmax.f32 %v1123, %v1193
    %v1271 = vmax.f32 %v608, %v678
    %v1272 = vmax.f32 %v610, %v680
    %v1273 = vmax.f32 %v781, %v851
    %v1274 = vmax.f32 %v783, %v853
    %v1275 = vmax.f32 %v954, %v1024
    %v1276 = vmax.f32 %v956, %v1026
    %v1277 = vmax.f32 %v1127, %v1197
    %v1278 = vmax.f32 %v1129, %v1199
    %v1279 = vmax.f32 %v612, %v682
    %v1280 = vmax.f32 %v614, %v684
    %v1281 = vmax.f32 %v785, %v855
    %v1282 = vmax.f32 %v787, %v857
    %v1283 = vmax.f32 %v958, %v1028
    %v1284 = vmax.f32 %v960, %v1030
    %v1285 = vmax.f32 %v1131, %v1201
    %v1286 = vmax.f32 %v1133, %v1203
    %v1287 = vmax.f32 %v618, %v688
    %v1288 = vmax.f32 %v620, %v690
    %v1289 = vmax.f32 %v791, %v861
    %v1290 = vmax.f32 %v793, %v863
    %v1291 = vmax.f32 %v964, %v1034
    %v1292 = vmax.f32 %v966, %v1036
    %v1293 = vmax.f32 %v1137, %v1207
    %v1294 = vmax.f32 %v1139, %v1209
    %v1295 = vmax.f32 %v622, %v692
    %v1296 = vmax.f32 %v624, %v694
    %v1297 = vmax.f32 %v795, %v865
    %v1298 = vmax.f32 %v797, %v867
    %v1299 = vmax.f32 %v968, %v1038
    %v1300 = vmax.f32 %v970, %v1040
    %v1301 = vmax.f32 %v1141, %v1211
    %v1302 = vmax.f32 %v1143, %v1213
    %v1303 = vmax.f32 %v628, %v698
    %v1304 = vmax.f32 %v630, %v700
    %v1305 = vmax.f32 %v801, %v871
    %v1306 = vmax.f32 %v803, %v873
    %v1307 = vmax.f32 %v974, %v1044
    %v1308 = vmax.f32 %v976, %v1046
    %v1309 = vmax.f32 %v1147, %v1217
    %v1310 = vmax.f32 %v1149, %v1219
    %v1311 = vmax.f32 %v632, %v702
    %v1312 = vmax.f32 %v634, %v704
    %v1313 = vmax.f32 %v805, %v875
    %v1314 = vmax.f32 %v807, %v877
    %v1315 = vmax.f32 %v978, %v1048
    %v1316 = vmax.f32 %v980, %v1050
    %v1317 = vmax.f32 %v1151, %v1221
    %v1318 = vmax.f32 %v1153, %v1223
    %v1319 = vmax.f32 %v638, %v708
    %v1320 = vmax.f32 %v640, %v710
    %v1321 = vmax.f32 %v811, %v881
    %v1322 = vmax.f32 %v813, %v883
    %v1323 = vmax.f32 %v984, %v1054
    %v1324 = vmax.f32 %v986, %v1056
    %v1325 = vmax.f32 %v1157, %v1227
    %v1326 = vmax.f32 %v1159, %v1229
    %v1327 = vmax.f32 %v642, %v712
    %v1328 = vmax.f32 %v644, %v714
    %v1329 = vmax.f32 %v815, %v885
    %v1330 = vmax.f32 %v817, %v887
    %v1331 = vmax.f32 %v988, %v1058
    %v1332 = vmax.f32 %v990, %v1060
    %v1333 = vmax.f32 %v1161, %v1231
    %v1334 = vmax.f32 %v1163, %v1233
    %v1335 = vmax.f32 %v648, %v718
    %v1336 = vmax.f32 %v650, %v720
    %v1337 = vmax.f32 %v821, %v891
    %v1338 = vmax.f32 %v823, %v893
    %v1339 = vmax.f32 %v994, %v1064
    %v1340 = vmax.f32 %v996, %v1066
    %v1341 = vmax.f32 %v1167, %v1237
    %v1342 = vmax.f32 %v1169, %v1239
    %v1343 = vmax.f32 %v652, %v722
    %v1344 = vmax.f32 %v654, %v724
    %v1345 = vmax.f32 %v825, %v895
    %v1346 = vmax.f32 %v827, %v897
    %v1347 = vmax.f32 %v998, %v1068
    %v1348 = vmax.f32 %v1000, %v1070
    %v1349 = vmax.f32 %v1171, %v1241
    %v1350 = vmax.f32 %v1173, %v1243
    %v1351 = vmax.f32 %v658, %v728
    %v1352 = vmax.f32 %v660, %v730
    %v1353 = vmax.f32 %v831, %v901
    %v1354 = vmax.f32 %v833, %v903
    %v1355 = vmax.f32 %v1004, %v1074
    %v1356 = vmax.f32 %v1006, %v1076
    %v1357 = vmax.f32 %v1177, %v1247
    %v1358 = vmax.f32 %v1179, %v1249
    %v1359 = vmax.f32 %v662, %v732
    %v1360 = vmax.f32 %v664, %v734
    %v1361 = vmax.f32 %v835, %v905
    %v1362 = vmax.f32 %v837, %v907
    %v1363 = vmax.f32 %v1008, %v1078
    %v1364 = vmax.f32 %v1010, %v1080
    %v1365 = vmax.f32 %v1181, %v1251
    %v1366 = vmax.f32 %v1183, %v1253
    %v1367 = vmax.f32 %v1255, %v1259
    %v1368 = vmax.f32 %v1256, %v1260
    %v1369 = vmax.f32 %v1257, %v1261
    %v1370 = vmax.f32 %v1258, %v1262
    %v1371 = vmax.f32 %v1263, %v1267
    %v1372 = vmax.f32 %v1264, %v1268
    %v1373 = vmax.f32 %v1265, %v1269
    %v1374 = vmax.f32 %v1266, %v1270
    %v1375 = vmax.f32 %v1271, %v1275
    %v1376 = vmax.f32 %v1272, %v1276
    %v1377 = vmax.f32 %v1273, %v1277
    %v1378 = vmax.f32 %v1274, %v1278
    %v1379 = vmax.f32 %v1279, %v1283
    %v1380 = vmax.f32 %v1280, %v1284
    %v1381 = vmax.f32 %v1281, %v1285
    %v1382 = vmax.f32 %v1282, %v1286
    %v1383 = vmax.f32 %v1287, %v1291
    %v1384 = vmax.f32 %v1288, %v1292
    %v1385 = vmax.f32 %v1289, %v1293
    %v1386 = vmax.f32 %v1290, %v1294
    %v1387 = vmax.f32 %v1295, %v1299
    %v1388 = vmax.f32 %v1296, %v1300
    %v1389 = vmax.f32 %v1297, %v1301
    %v1390 = vmax.f32 %v1298, %v1302
    %v1391 = vmax.f32 %v1303, %v1307
    %v1392 = vmax.f32 %v1304, %v1308
    %v1393 = vmax.f32 %v1305, %v1309
    %v1394 = vmax.f32 %v1306, %v1310
    %v1395 = vmax.f32 %v1311, %v1315
    %v1396 = vmax.f32 %v1312, %v1316
    %v1397 = vmax.f32 %v1313, %v1317
    %v1398 = vmax.f32 %v1314, %v1318
    %v1399 = vmax.f32 %v1319, %v1323
    %v1400 = vmax.f32 %v1320, %v1324
    %v1401 = vmax.f32 %v1321, %v1325
    %v1402 = vmax.f32 %v1322, %v1326
    %v1403 = vmax.f32 %v1327, %v1331
    %v1404 = vmax.f32 %v1328, %v1332
    %v1405 = vmax.f32 %v1329, %v1333
    %v1406 = vmax.f32 %v1330, %v1334
    %v1407 = vmax.f32 %v1335, %v1339
    %v1408 = vmax.f32 %v1336, %v1340
    %v1409 = vmax.f32 %v1337, %v1341
    %v1410 = vmax.f32 %v1338, %v1342
    %v1411 = vmax.f32 %v1343, %v1347
    %v1412 = vmax.f32 %v1344, %v1348
    %v1413 = vmax.f32 %v1345, %v1349
    %v1414 = vmax.f32 %v1346, %v1350
    %v1415 = vmax.f32 %v1351, %v1355
    %v1416 = vmax.f32 %v1352, %v1356
    %v1417 = vmax.f32 %v1353, %v1357
    %v1418 = vmax.f32 %v1354, %v1358
    %v1419 = vmax.f32 %v1359, %v1363
    %v1420 = vmax.f32 %v1360, %v1364
    %v1421 = vmax.f32 %v1361, %v1365
    %v1422 = vmax.f32 %v1362, %v1366
    %v1423 = vld [vmem:[#allocation5] sm:$0xf]
    %v1425 = vlaneseq
    %v1426 = vshrl.u32 %v1425, 7
    %v1427 = vsub.s32 0, %v1426
    %v1428 = vrot.slane %v1423, %v1427
    %v1429 = vlaneseq
    %v1430 = vshrl.u32 %v1429, 7
    %v1431 = vsub.s32 1, %v1430
    %v1432 = vrot.slane %v1423, %v1431
    %v1433 = vlaneseq
    %v1434 = vshrl.u32 %v1433, 7
    %v1435 = vsub.s32 2, %v1434
    %v1436 = vrot.slane %v1423, %v1435
    %v1437 = vlaneseq
    %v1438 = vshrl.u32 %v1437, 7
    %v1439 = vsub.s32 3, %v1438
    %v1440 = vrot.slane %v1423, %v1439
    %v1445 = vadd.f32 %v1367, %v1428
    %v1446 = vadd.f32 %v1368, %v1432
    %v1447 = vadd.f32 %v1369, %v1436
    %v1448 = vadd.f32 %v1370, %v1440
    %v1449 = vadd.f32 %v1371, %v1428
    %v1450 = vadd.f32 %v1372, %v1432
    %v1451 = vadd.f32 %v1373, %v1436
    %v1452 = vadd.f32 %v1374, %v1440
    %v1453 = vadd.f32 %v1375, %v1428
    %v1454 = vadd.f32 %v1376, %v1432
    %v1455 = vadd.f32 %v1377, %v1436
    %v1456 = vadd.f32 %v1378, %v1440
    %v1457 = vadd.f32 %v1379, %v1428
    %v1458 = vadd.f32 %v1380, %v1432
    %v1459 = vadd.f32 %v1381, %v1436
    %v1460 = vadd.f32 %v1382, %v1440
    %v1461 = vadd.f32 %v1383, %v1428
    %v1462 = vadd.f32 %v1384, %v1432
    %v1463 = vadd.f32 %v1385, %v1436
    %v1464 = vadd.f32 %v1386, %v1440
    %v1465 = vadd.f32 %v1387, %v1428
    %v1466 = vadd.f32 %v1388, %v1432
    %v1467 = vadd.f32 %v1389, %v1436
    %v1468 = vadd.f32 %v1390, %v1440
    %v1469 = vadd.f32 %v1391, %v1428
    %v1470 = vadd.f32 %v1392, %v1432
    %v1471 = vadd.f32 %v1393, %v1436
    %v1472 = vadd.f32 %v1394, %v1440
    %v1473 = vadd.f32 %v1395, %v1428
    %v1474 = vadd.f32 %v1396, %v1432
    %v1475 = vadd.f32 %v1397, %v1436
    %v1476 = vadd.f32 %v1398, %v1440
    %v1477 = vadd.f32 %v1399, %v1428
    %v1478 = vadd.f32 %v1400, %v1432
    %v1479 = vadd.f32 %v1401, %v1436
    %v1480 = vadd.f32 %v1402, %v1440
    %v1481 = vadd.f32 %v1403, %v1428
    %v1482 = vadd.f32 %v1404, %v1432
    %v1483 = vadd.f32 %v1405, %v1436
    %v1484 = vadd.f32 %v1406, %v1440
    %v1485 = vadd.f32 %v1407, %v1428
    %v1486 = vadd.f32 %v1408, %v1432
    %v1487 = vadd.f32 %v1409, %v1436
    %v1488 = vadd.f32 %v1410, %v1440
    %v1489 = vadd.f32 %v1411, %v1428
    %v1490 = vadd.f32 %v1412, %v1432
    %v1491 = vadd.f32 %v1413, %v1436
    %v1492 = vadd.f32 %v1414, %v1440
    %v1493 = vadd.f32 %v1415, %v1428
    %v1494 = vadd.f32 %v1416, %v1432
    %v1495 = vadd.f32 %v1417, %v1436
    %v1496 = vadd.f32 %v1418, %v1440
    %v1497 = vadd.f32 %v1419, %v1428
    %v1498 = vadd.f32 %v1420, %v1432
    %v1499 = vadd.f32 %v1421, %v1436
    %v1500 = vadd.f32 %v1422, %v1440
    %v1501 = vmax.f32 %v1445, 0.0
    %v1502 = vmax.f32 %v1446, 0.0
    %v1503 = vmax.f32 %v1447, 0.0
    %v1504 = vmax.f32 %v1448, 0.0
    %v1505 = vmax.f32 %v1449, 0.0
    %v1506 = vmax.f32 %v1450, 0.0
    %v1507 = vmax.f32 %v1451, 0.0
    %v1508 = vmax.f32 %v1452, 0.0
    %v1509 = vmax.f32 %v1453, 0.0
    %v1510 = vmax.f32 %v1454, 0.0
    %v1511 = vmax.f32 %v1455, 0.0
    %v1512 = vmax.f32 %v1456, 0.0
    %v1513 = vmax.f32 %v1457, 0.0
    %v1514 = vmax.f32 %v1458, 0.0
    %v1515 = vmax.f32 %v1459, 0.0
    %v1516 = vmax.f32 %v1460, 0.0
    %v1517 = vmax.f32 %v1461, 0.0
    %v1518 = vmax.f32 %v1462, 0.0
    %v1519 = vmax.f32 %v1463, 0.0
    %v1520 = vmax.f32 %v1464, 0.0
    %v1521 = vmax.f32 %v1465, 0.0
    %v1522 = vmax.f32 %v1466, 0.0
    %v1523 = vmax.f32 %v1467, 0.0
    %v1524 = vmax.f32 %v1468, 0.0
    %v1525 = vmax.f32 %v1469, 0.0
    %v1526 = vmax.f32 %v1470, 0.0
    %v1527 = vmax.f32 %v1471, 0.0
    %v1528 = vmax.f32 %v1472, 0.0
    %v1529 = vmax.f32 %v1473, 0.0
    %v1530 = vmax.f32 %v1474, 0.0
    %v1531 = vmax.f32 %v1475, 0.0
    %v1532 = vmax.f32 %v1476, 0.0
    %v1533 = vmax.f32 %v1477, 0.0
    %v1534 = vmax.f32 %v1478, 0.0
    %v1535 = vmax.f32 %v1479, 0.0
    %v1536 = vmax.f32 %v1480, 0.0
    %v1537 = vmax.f32 %v1481, 0.0
    %v1538 = vmax.f32 %v1482, 0.0
    %v1539 = vmax.f32 %v1483, 0.0
    %v1540 = vmax.f32 %v1484, 0.0
    %v1541 = vmax.f32 %v1485, 0.0
    %v1542 = vmax.f32 %v1486, 0.0
    %v1543 = vmax.f32 %v1487, 0.0
    %v1544 = vmax.f32 %v1488, 0.0
    %v1545 = vmax.f32 %v1489, 0.0
    %v1546 = vmax.f32 %v1490, 0.0
    %v1547 = vmax.f32 %v1491, 0.0
    %v1548 = vmax.f32 %v1492, 0.0
    %v1549 = vmax.f32 %v1493, 0.0
    %v1550 = vmax.f32 %v1494, 0.0
    %v1551 = vmax.f32 %v1495, 0.0
    %v1552 = vmax.f32 %v1496, 0.0
    %v1553 = vmax.f32 %v1497, 0.0
    %v1554 = vmax.f32 %v1498, 0.0
    %v1555 = vmax.f32 %v1499, 0.0
    %v1556 = vmax.f32 %v1500, 0.0
    %1557 = vst [vmem:[#allocation2] sm:$0xff] 0.0
    %1558 = vst [vmem:[#allocation2 + $0x8] sm:$0xff] 0.0
    %1559 = vst [vmem:[#allocation2 + $0x10] sm:$0xff] 0.0
    %1560 = vst [vmem:[#allocation2 + $0x18] sm:$0xff] 0.0
    %1561 = vst [vmem:[#allocation2 + $0x20] sm:$0xff] %v1501
    %1562 = vst [vmem:[#allocation2 + $0x28] sm:$0xff] %v1502
    %1563 = vst [vmem:[#allocation2 + $0x30] sm:$0xff] %v1503
    %1564 = vst [vmem:[#allocation2 + $0x38] sm:$0xff] %v1504
    %1565 = vst [vmem:[#allocation2 + $0x40] sm:$0xff] %v1505
    %1566 = vst [vmem:[#allocation2 + $0x48] sm:$0xff] %v1506
    %1567 = vst [vmem:[#allocation2 + $0x50] sm:$0xff] %v1507
    %1568 = vst [vmem:[#allocation2 + $0x58] sm:$0xff] %v1508
    %1569 = vst [vmem:[#allocation2 + $0x60] sm:$0xff] %v1509
    %1570 = vst [vmem:[#allocation2 + $0x68] sm:$0xff] %v1510
    %1571 = vst [vmem:[#allocation2 + $0x70] sm:$0xff] %v1511
    %1572 = vst [vmem:[#allocation2 + $0x78] sm:$0xff] %v1512
    %1573 = vst [vmem:[#allocation2 + $0x80] sm:$0xff] %v1513
    %1574 = vst [vmem:[#allocation2 + $0x88] sm:$0xff] %v1514
    %1575 = vst [vmem:[#allocation2 + $0x90] sm:$0xff] %v1515
    %1576 = vst [vmem:[#allocation2 + $0x98] sm:$0xff] %v1516
    %1577 = vst [vmem:[#allocation2 + $0xa0] sm:$0xff] %v1517
    %1578 = vst [vmem:[#allocation2 + $0xa8] sm:$0xff] %v1518
    %1579 = vst [vmem:[#allocation2 + $0xb0] sm:$0xff] %v1519
    %1580 = vst [vmem:[#allocation2 + $0xb8] sm:$0xff] %v1520
    %1581 = vst [vmem:[#allocation2 + $0xc0] sm:$0xff] %v1521
    %1582 = vst [vmem:[#allocation2 + $0xc8] sm:$0xff] %v1522
    %1583 = vst [vmem:[#allocation2 + $0xd0] sm:$0xff] %v1523
    %1584 = vst [vmem:[#allocation2 + $0xd8] sm:$0xff] %v1524
    %1585 = vst [vmem:[#allocation2 + $0xe0] sm:$0xff] %v1525
    %1586 = vst [vmem:[#allocation2 + $0xe8] sm:$0xff] %v1526
    %1587 = vst [vmem:[#allocation2 + $0xf0] sm:$0xff] %v1527
    %1588 = vst [vmem:[#allocation2 + $0xf8] sm:$0xff] %v1528
    %1589 = vst [vmem:[#allocation2 + $0x100] sm:$0xff] %v1529
    %1590 = vst [vmem:[#allocation2 + $0x108] sm:$0xff] %v1530
    %1591 = vst [vmem:[#allocation2 + $0x110] sm:$0xff] %v1531
    %1592 = vst [vmem:[#allocation2 + $0x118] sm:$0xff] %v1532
    %1593 = vst [vmem:[#allocation2 + $0x120] sm:$0xff] %v1533
    %1594 = vst [vmem:[#allocation2 + $0x128] sm:$0xff] %v1534
    %1595 = vst [vmem:[#allocation2 + $0x130] sm:$0xff] %v1535
    %1596 = vst [vmem:[#allocation2 + $0x138] sm:$0xff] %v1536
    %1597 = vst [vmem:[#allocation2 + $0x140] sm:$0xff] %v1537
    %1598 = vst [vmem:[#allocation2 + $0x148] sm:$0xff] %v1538
    %1599 = vst [vmem:[#allocation2 + $0x150] sm:$0xff] %v1539
    %1600 = vst [vmem:[#allocation2 + $0x158] sm:$0xff] %v1540
    %1601 = vst [vmem:[#allocation2 + $0x160] sm:$0xff] %v1541
    %1602 = vst [vmem:[#allocation2 + $0x168] sm:$0xff] %v1542
    %1603 = vst [vmem:[#allocation2 + $0x170] sm:$0xff] %v1543
    %1604 = vst [vmem:[#allocation2 + $0x178] sm:$0xff] %v1544
    %1605 = vst [vmem:[#allocation2 + $0x180] sm:$0xff] %v1545
    %1606 = vst [vmem:[#allocation2 + $0x188] sm:$0xff] %v1546
    %1607 = vst [vmem:[#allocation2 + $0x190] sm:$0xff] %v1547
    %1608 = vst [vmem:[#allocation2 + $0x198] sm:$0xff] %v1548
    %1609 = vst [vmem:[#allocation2 + $0x1a0] sm:$0xff] %v1549
    %1610 = vst [vmem:[#allocation2 + $0x1a8] sm:$0xff] %v1550
    %1611 = vst [vmem:[#allocation2 + $0x1b0] sm:$0xff] %v1551
    %1612 = vst [vmem:[#allocation2 + $0x1b8] sm:$0xff] %v1552
    %1613 = vst [vmem:[#allocation2 + $0x1c0] sm:$0xff] %v1553
    %1614 = vst [vmem:[#allocation2 + $0x1c8] sm:$0xff] %v1554
    %1615 = vst [vmem:[#allocation2 + $0x1d0] sm:$0xff] %v1555
    %1616 = vst [vmem:[#allocation2 + $0x1d8] sm:$0xff] %v1556
    %1617 = vst [vmem:[#allocation2 + $0x1e0] sm:$0xff] 0.0
    %1618 = vst [vmem:[#allocation2 + $0x1e8] sm:$0xff] 0.0
    %1619 = vst [vmem:[#allocation2 + $0x1f0] sm:$0xff] 0.0
    %1620 = vst [vmem:[#allocation2 + $0x1f8] sm:$0xff] 0.0
    %v1621 = vld [vmem:[#allocation2] sm:$0xff]
    %v1622 = vld [vmem:[#allocation2 + $0x8] sm:$0xff]
    %v1623 = vld [vmem:[#allocation2 + $0x10] sm:$0xff]
    %v1624 = vld [vmem:[#allocation2 + $0x18] sm:$0xff]
    %v1625 = vld [vmem:[#allocation2 + $0x20] sm:$0xff]
    %v1626 = vld [vmem:[#allocation2 + $0x28] sm:$0xff]
    %v1627 = vld [vmem:[#allocation2 + $0x30] sm:$0xff]
    %v1628 = vld [vmem:[#allocation2 + $0x38] sm:$0xff]
    %v1629 = vld [vmem:[#allocation2 + $0x40] sm:$0xff]
    %v1630 = vld [vmem:[#allocation2 + $0x48] sm:$0xff]
    %v1631 = vld [vmem:[#allocation2 + $0x50] sm:$0xff]
    %v1632 = vld [vmem:[#allocation2 + $0x58] sm:$0xff]
    %v1633 = vld [vmem:[#allocation2 + $0x60] sm:$0xff]
    %v1634 = vld [vmem:[#allocation2 + $0x68] sm:$0xff]
    %v1635 = vld [vmem:[#allocation2 + $0x70] sm:$0xff]
    %v1636 = vld [vmem:[#allocation2 + $0x78] sm:$0xff]
    %v1637 = vld [vmem:[#allocation2 + $0x80] sm:$0xff]
    %v1638 = vld [vmem:[#allocation2 + $0x88] sm:$0xff]
    %v1639 = vld [vmem:[#allocation2 + $0x90] sm:$0xff]
    %v1640 = vld [vmem:[#allocation2 + $0x98] sm:$0xff]
    %v1641 = vld [vmem:[#allocation2 + $0xa0] sm:$0xff]
    %v1642 = vld [vmem:[#allocation2 + $0xa8] sm:$0xff]
    %v1643 = vld [vmem:[#allocation2 + $0xb0] sm:$0xff]
    %v1644 = vld [vmem:[#allocation2 + $0xb8] sm:$0xff]
    %v1645 = vld [vmem:[#allocation2 + $0xc0] sm:$0xff]
    %v1646 = vld [vmem:[#allocation2 + $0xc8] sm:$0xff]
    %v1647 = vld [vmem:[#allocation2 + $0xd0] sm:$0xff]
    %v1648 = vld [vmem:[#allocation2 + $0xd8] sm:$0xff]
    %v1649 = vpack.c.bf16 %v1625, %v1621
    %v1650 = vpack.c.bf16 %v1626, %v1622
    %v1651 = vpack.c.bf16 %v1627, %v1623
    %v1652 = vpack.c.bf16 %v1628, %v1624
    %v1653 = vpack.c.bf16 %v1633, %v1629
    %v1654 = vpack.c.bf16 %v1634, %v1630
    %v1655 = vpack.c.bf16 %v1635, %v1631
    %v1656 = vpack.c.bf16 %v1636, %v1632
    %v1657 = vpack.c.bf16 %v1641, %v1637
    %v1658 = vpack.c.bf16 %v1642, %v1638
    %v1659 = vpack.c.bf16 %v1643, %v1639
    %v1660 = vpack.c.bf16 %v1644, %v1640
    %v1661 = vpack.c.bf16 %v1645, %v1645
    %v1662 = vpack.c.bf16 %v1646, %v1646
    %v1663 = vpack.c.bf16 %v1647, %v1647
    %v1664 = vpack.c.bf16 %v1648, %v1648
    %v1665 = vld [vmem:[#allocation7] sm:$0xff]
    %v1666 = vld [vmem:[#allocation7 + $0x8] sm:$0xff]
    %v1667 = vld [vmem:[#allocation7 + $0x10] sm:$0xff]
    %v1668 = vld [vmem:[#allocation7 + $0x18] sm:$0xff]
    %v1669 = vld [vmem:[#allocation7 + $0x20] sm:$0xff]
    %v1670 = vld [vmem:[#allocation7 + $0x28] sm:$0xff]
    %v1671 = vld [vmem:[#allocation7 + $0x30] sm:$0xff]
    %v1672 = vld [vmem:[#allocation7 + $0x38] sm:$0xff]
    %v1673 = vld [vmem:[#allocation7 + $0x40] sm:$0xff]
    %v1674 = vld [vmem:[#allocation7 + $0x48] sm:$0xff]
    %v1675 = vld [vmem:[#allocation7 + $0x50] sm:$0xff]
    %v1676 = vld [vmem:[#allocation7 + $0x58] sm:$0xff]
    %v1677 = vld [vmem:[#allocation7 + $0x60] sm:$0xff]
    %v1678 = vld [vmem:[#allocation7 + $0x68] sm:$0xff]
    %v1679 = vld [vmem:[#allocation7 + $0x70] sm:$0xff]
    %v1680 = vld [vmem:[#allocation7 + $0x78] sm:$0xff]
    %v1681 = vld [vmem:[#allocation7 + $0x80] sm:$0xff]
    %v1682 = vld [vmem:[#allocation7 + $0x88] sm:$0xff]
    %v1683 = vld [vmem:[#allocation7 + $0x90] sm:$0xff]
    %v1684 = vld [vmem:[#allocation7 + $0x98] sm:$0xff]
    %v1685 = vld [vmem:[#allocation7 + $0xa0] sm:$0xff]
    %v1686 = vld [vmem:[#allocation7 + $0xa8] sm:$0xff]
    %v1687 = vld [vmem:[#allocation7 + $0xb0] sm:$0xff]
    %v1688 = vld [vmem:[#allocation7 + $0xb8] sm:$0xff]
    %v1689 = vld [vmem:[#allocation7 + $0xc0] sm:$0xff]
    %v1690 = vld [vmem:[#allocation7 + $0xc8] sm:$0xff]
    %v1691 = vld [vmem:[#allocation7 + $0xd0] sm:$0xff]
    %v1692 = vld [vmem:[#allocation7 + $0xd8] sm:$0xff]
    %v1693 = vld [vmem:[#allocation7 + $0xe0] sm:$0xff]
    %v1694 = vld [vmem:[#allocation7 + $0xe8] sm:$0xff]
    %v1695 = vld [vmem:[#allocation7 + $0xf0] sm:$0xff]
    %v1696 = vld [vmem:[#allocation7 + $0xf8] sm:$0xff]
    %v1697 = vld [vmem:[#allocation7 + $0x100] sm:$0xff]
    %v1698 = vld [vmem:[#allocation7 + $0x108] sm:$0xff]
    %v1699 = vld [vmem:[#allocation7 + $0x110] sm:$0xff]
    %v1700 = vld [vmem:[#allocation7 + $0x118] sm:$0xff]
    %v1701 = vld [vmem:[#allocation7 + $0x120] sm:$0xff]
    %v1702 = vld [vmem:[#allocation7 + $0x128] sm:$0xff]
    %v1703 = vld [vmem:[#allocation7 + $0x130] sm:$0xff]
    %v1704 = vld [vmem:[#allocation7 + $0x138] sm:$0xff]
    %v1705 = vld [vmem:[#allocation7 + $0x140] sm:$0xff]
    %v1706 = vld [vmem:[#allocation7 + $0x148] sm:$0xff]
    %v1707 = vld [vmem:[#allocation7 + $0x150] sm:$0xff]
    %v1708 = vld [vmem:[#allocation7 + $0x158] sm:$0xff]
    %v1709 = vld [vmem:[#allocation7 + $0x160] sm:$0xff]
    %v1710 = vld [vmem:[#allocation7 + $0x168] sm:$0xff]
    %v1711 = vld [vmem:[#allocation7 + $0x170] sm:$0xff]
    %v1712 = vld [vmem:[#allocation7 + $0x178] sm:$0xff]
    %v1713 = vld [vmem:[#allocation7 + $0x180] sm:$0xff]
    %v1714 = vld [vmem:[#allocation7 + $0x188] sm:$0xff]
    %v1715 = vld [vmem:[#allocation7 + $0x190] sm:$0xff]
    %v1716 = vld [vmem:[#allocation7 + $0x198] sm:$0xff]
    %v1717 = vld [vmem:[#allocation7 + $0x1a0] sm:$0xff]
    %v1718 = vld [vmem:[#allocation7 + $0x1a8] sm:$0xff]
    %v1719 = vld [vmem:[#allocation7 + $0x1b0] sm:$0xff]
    %v1720 = vld [vmem:[#allocation7 + $0x1b8] sm:$0xff]
    %v1721 = vld [vmem:[#allocation7 + $0x1c0] sm:$0xff]
    %v1722 = vld [vmem:[#allocation7 + $0x1c8] sm:$0xff]
    %v1723 = vld [vmem:[#allocation7 + $0x1d0] sm:$0xff]
    %v1724 = vld [vmem:[#allocation7 + $0x1d8] sm:$0xff]
    %v1725 = vld [vmem:[#allocation7 + $0x1e0] sm:$0xff]
    %v1726 = vld [vmem:[#allocation7 + $0x1e8] sm:$0xff]
    %v1727 = vld [vmem:[#allocation7 + $0x1f0] sm:$0xff]
    %v1728 = vld [vmem:[#allocation7 + $0x1f8] sm:$0xff]
    %v1729 = vld [vmem:[#allocation7 + $0x200] sm:$0xff]
    %v1730 = vld [vmem:[#allocation7 + $0x208] sm:$0xff]
    %v1731 = vld [vmem:[#allocation7 + $0x210] sm:$0xff]
    %v1732 = vld [vmem:[#allocation7 + $0x218] sm:$0xff]
    %v1733 = vld [vmem:[#allocation7 + $0x220] sm:$0xff]
    %v1734 = vld [vmem:[#allocation7 + $0x228] sm:$0xff]
    %v1735 = vld [vmem:[#allocation7 + $0x230] sm:$0xff]
    %v1736 = vld [vmem:[#allocation7 + $0x238] sm:$0xff]
    %v1737 = vld [vmem:[#allocation7 + $0x240] sm:$0xff]
    %v1738 = vld [vmem:[#allocation7 + $0x248] sm:$0xff]
    %v1739 = vld [vmem:[#allocation7 + $0x250] sm:$0xff]
    %v1740 = vld [vmem:[#allocation7 + $0x258] sm:$0xff]
    %v1741 = vld [vmem:[#allocation7 + $0x260] sm:$0xff]
    %v1742 = vld [vmem:[#allocation7 + $0x268] sm:$0xff]
    %v1743 = vld [vmem:[#allocation7 + $0x270] sm:$0xff]
    %v1744 = vld [vmem:[#allocation7 + $0x278] sm:$0xff]
    %v1745 = vld [vmem:[#allocation7 + $0x280] sm:$0xff]
    %v1746 = vld [vmem:[#allocation7 + $0x288] sm:$0xff]
    %v1747 = vld [vmem:[#allocation7 + $0x290] sm:$0xff]
    %v1748 = vld [vmem:[#allocation7 + $0x298] sm:$0xff]
    %v1749 = vld [vmem:[#allocation7 + $0x2a0] sm:$0xff]
    %v1750 = vld [vmem:[#allocation7 + $0x2a8] sm:$0xff]
    %v1751 = vld [vmem:[#allocation7 + $0x2b0] sm:$0xff]
    %v1752 = vld [vmem:[#allocation7 + $0x2b8] sm:$0xff]
    %v1753 = vld [vmem:[#allocation7 + $0x2c0] sm:$0xff]
    %v1754 = vld [vmem:[#allocation7 + $0x2c8] sm:$0xff]
    %v1755 = vld [vmem:[#allocation7 + $0x2d0] sm:$0xff]
    %v1756 = vld [vmem:[#allocation7 + $0x2d8] sm:$0xff]
    %v1757 = vld [vmem:[#allocation7 + $0x2e0] sm:$0xff]
    %v1758 = vld [vmem:[#allocation7 + $0x2e8] sm:$0xff]
    %v1759 = vld [vmem:[#allocation7 + $0x2f0] sm:$0xff]
    %v1760 = vld [vmem:[#allocation7 + $0x2f8] sm:$0xff]
    %v1761 = vld [vmem:[#allocation7 + $0x300] sm:$0xff]
    %v1762 = vld [vmem:[#allocation7 + $0x308] sm:$0xff]
    %v1763 = vld [vmem:[#allocation7 + $0x310] sm:$0xff]
    %v1764 = vld [vmem:[#allocation7 + $0x318] sm:$0xff]
    %v1765 = vld [vmem:[#allocation7 + $0x320] sm:$0xff]
    %v1766 = vld [vmem:[#allocation7 + $0x328] sm:$0xff]
    %v1767 = vld [vmem:[#allocation7 + $0x330] sm:$0xff]
    %v1768 = vld [vmem:[#allocation7 + $0x338] sm:$0xff]
    %v1769 = vld [vmem:[#allocation7 + $0x340] sm:$0xff]
    %v1770 = vld [vmem:[#allocation7 + $0x348] sm:$0xff]
    %v1771 = vld [vmem:[#allocation7 + $0x350] sm:$0xff]
    %v1772 = vld [vmem:[#allocation7 + $0x358] sm:$0xff]
    %v1773 = vld [vmem:[#allocation7 + $0x360] sm:$0xff]
    %v1774 = vld [vmem:[#allocation7 + $0x368] sm:$0xff]
    %v1775 = vld [vmem:[#allocation7 + $0x370] sm:$0xff]
    %v1776 = vld [vmem:[#allocation7 + $0x378] sm:$0xff]
    %v1777 = vld [vmem:[#allocation7 + $0x380] sm:$0xff]
    %v1778 = vld [vmem:[#allocation7 + $0x388] sm:$0xff]
    %v1779 = vld [vmem:[#allocation7 + $0x390] sm:$0xff]
    %v1780 = vld [vmem:[#allocation7 + $0x398] sm:$0xff]
    %v1781 = vld [vmem:[#allocation7 + $0x3a0] sm:$0xff]
    %v1782 = vld [vmem:[#allocation7 + $0x3a8] sm:$0xff]
    %v1783 = vld [vmem:[#allocation7 + $0x3b0] sm:$0xff]
    %v1784 = vld [vmem:[#allocation7 + $0x3b8] sm:$0xff]
    %v1785 = vld [vmem:[#allocation7 + $0x3c0] sm:$0xff]
    %v1786 = vld [vmem:[#allocation7 + $0x3c8] sm:$0xff]
    %v1787 = vld [vmem:[#allocation7 + $0x3d0] sm:$0xff]
    %v1788 = vld [vmem:[#allocation7 + $0x3d8] sm:$0xff]
    %v1789 = vld [vmem:[#allocation7 + $0x3e0] sm:$0xff]
    %v1790 = vld [vmem:[#allocation7 + $0x3e8] sm:$0xff]
    %v1791 = vld [vmem:[#allocation7 + $0x3f0] sm:$0xff]
    %v1792 = vld [vmem:[#allocation7 + $0x3f8] sm:$0xff]
    %v1793 = vld [vmem:[#allocation7 + $0x400] sm:$0xff]
    %v1794 = vld [vmem:[#allocation7 + $0x408] sm:$0xff]
    %v1795 = vld [vmem:[#allocation7 + $0x410] sm:$0xff]
    %v1796 = vld [vmem:[#allocation7 + $0x418] sm:$0xff]
    %v1797 = vld [vmem:[#allocation7 + $0x420] sm:$0xff]
    %v1798 = vld [vmem:[#allocation7 + $0x428] sm:$0xff]
    %v1799 = vld [vmem:[#allocation7 + $0x430] sm:$0xff]
    %v1800 = vld [vmem:[#allocation7 + $0x438] sm:$0xff]
    %v1801 = vld [vmem:[#allocation7 + $0x440] sm:$0xff]
    %v1802 = vld [vmem:[#allocation7 + $0x448] sm:$0xff]
    %v1803 = vld [vmem:[#allocation7 + $0x450] sm:$0xff]
    %v1804 = vld [vmem:[#allocation7 + $0x458] sm:$0xff]
    %v1805 = vld [vmem:[#allocation7 + $0x460] sm:$0xff]
    %v1806 = vld [vmem:[#allocation7 + $0x468] sm:$0xff]
    %v1807 = vld [vmem:[#allocation7 + $0x470] sm:$0xff]
    %v1808 = vld [vmem:[#allocation7 + $0x478] sm:$0xff]
    %v1809 = vld [vmem:[#allocation7 + $0x480] sm:$0xff]
    %v1810 = vld [vmem:[#allocation7 + $0x488] sm:$0xff]
    %v1811 = vld [vmem:[#allocation7 + $0x490] sm:$0xff]
    %v1812 = vld [vmem:[#allocation7 + $0x498] sm:$0xff]
    %v1813 = vld [vmem:[#allocation7 + $0x4a0] sm:$0xff]
    %v1814 = vld [vmem:[#allocation7 + $0x4a8] sm:$0xff]
    %v1815 = vld [vmem:[#allocation7 + $0x4b0] sm:$0xff]
    %v1816 = vld [vmem:[#allocation7 + $0x4b8] sm:$0xff]
    %v1817 = vld [vmem:[#allocation7 + $0x4c0] sm:$0xff]
    %v1818 = vld [vmem:[#allocation7 + $0x4c8] sm:$0xff]
    %v1819 = vld [vmem:[#allocation7 + $0x4d0] sm:$0xff]
    %v1820 = vld [vmem:[#allocation7 + $0x4d8] sm:$0xff]
    %v1821 = vld [vmem:[#allocation7 + $0x4e0] sm:$0xff]
    %v1822 = vld [vmem:[#allocation7 + $0x4e8] sm:$0xff]
    %v1823 = vld [vmem:[#allocation7 + $0x4f0] sm:$0xff]
    %v1824 = vld [vmem:[#allocation7 + $0x4f8] sm:$0xff]
    %v1825 = vld [vmem:[#allocation7 + $0x500] sm:$0xff]
    %v1826 = vld [vmem:[#allocation7 + $0x508] sm:$0xff]
    %v1827 = vld [vmem:[#allocation7 + $0x510] sm:$0xff]
    %v1828 = vld [vmem:[#allocation7 + $0x518] sm:$0xff]
    %v1829 = vld [vmem:[#allocation7 + $0x520] sm:$0xff]
    %v1830 = vld [vmem:[#allocation7 + $0x528] sm:$0xff]
    %v1831 = vld [vmem:[#allocation7 + $0x530] sm:$0xff]
    %v1832 = vld [vmem:[#allocation7 + $0x538] sm:$0xff]
    %v1833 = vld [vmem:[#allocation7 + $0x540] sm:$0xff]
    %v1834 = vld [vmem:[#allocation7 + $0x548] sm:$0xff]
    %v1835 = vld [vmem:[#allocation7 + $0x550] sm:$0xff]
    %v1836 = vld [vmem:[#allocation7 + $0x558] sm:$0xff]
    %v1837 = vld [vmem:[#allocation7 + $0x560] sm:$0xff]
    %v1838 = vld [vmem:[#allocation7 + $0x568] sm:$0xff]
    %v1839 = vld [vmem:[#allocation7 + $0x570] sm:$0xff]
    %v1840 = vld [vmem:[#allocation7 + $0x578] sm:$0xff]
    %v1841 = vld [vmem:[#allocation7 + $0x580] sm:$0xff]
    %v1842 = vld [vmem:[#allocation7 + $0x588] sm:$0xff]
    %v1843 = vld [vmem:[#allocation7 + $0x590] sm:$0xff]
    %v1844 = vld [vmem:[#allocation7 + $0x598] sm:$0xff]
    %v1845 = vld [vmem:[#allocation7 + $0x5a0] sm:$0xff]
    %v1846 = vld [vmem:[#allocation7 + $0x5a8] sm:$0xff]
    %v1847 = vld [vmem:[#allocation7 + $0x5b0] sm:$0xff]
    %v1848 = vld [vmem:[#allocation7 + $0x5b8] sm:$0xff]
    %v1849 = vld [vmem:[#allocation7 + $0x5c0] sm:$0xff]
    %v1850 = vld [vmem:[#allocation7 + $0x5c8] sm:$0xff]
    %v1851 = vld [vmem:[#allocation7 + $0x5d0] sm:$0xff]
    %v1852 = vld [vmem:[#allocation7 + $0x5d8] sm:$0xff]
    %v1853 = vld [vmem:[#allocation7 + $0x5e0] sm:$0xff]
    %v1854 = vld [vmem:[#allocation7 + $0x5e8] sm:$0xff]
    %v1855 = vld [vmem:[#allocation7 + $0x5f0] sm:$0xff]
    %v1856 = vld [vmem:[#allocation7 + $0x5f8] sm:$0xff]
    %v1857 = vld [vmem:[#allocation7 + $0x600] sm:$0xff]
    %v1858 = vld [vmem:[#allocation7 + $0x608] sm:$0xff]
    %v1859 = vld [vmem:[#allocation7 + $0x610] sm:$0xff]
    %v1860 = vld [vmem:[#allocation7 + $0x618] sm:$0xff]
    %v1861 = vld [vmem:[#allocation7 + $0x620] sm:$0xff]
    %v1862 = vld [vmem:[#allocation7 + $0x628] sm:$0xff]
    %v1863 = vld [vmem:[#allocation7 + $0x630] sm:$0xff]
    %v1864 = vld [vmem:[#allocation7 + $0x638] sm:$0xff]
    %v1865 = vld [vmem:[#allocation7 + $0x640] sm:$0xff]
    %v1866 = vld [vmem:[#allocation7 + $0x648] sm:$0xff]
    %v1867 = vld [vmem:[#allocation7 + $0x650] sm:$0xff]
    %v1868 = vld [vmem:[#allocation7 + $0x658] sm:$0xff]
    %v1869 = vld [vmem:[#allocation7 + $0x660] sm:$0xff]
    %v1870 = vld [vmem:[#allocation7 + $0x668] sm:$0xff]
    %v1871 = vld [vmem:[#allocation7 + $0x670] sm:$0xff]
    %v1872 = vld [vmem:[#allocation7 + $0x678] sm:$0xff]
    %v1873 = vld [vmem:[#allocation7 + $0x680] sm:$0xff]
    %v1874 = vld [vmem:[#allocation7 + $0x688] sm:$0xff]
    %v1875 = vld [vmem:[#allocation7 + $0x690] sm:$0xff]
    %v1876 = vld [vmem:[#allocation7 + $0x698] sm:$0xff]
    %v1877 = vld [vmem:[#allocation7 + $0x6a0] sm:$0xff]
    %v1878 = vld [vmem:[#allocation7 + $0x6a8] sm:$0xff]
    %v1879 = vld [vmem:[#allocation7 + $0x6b0] sm:$0xff]
    %v1880 = vld [vmem:[#allocation7 + $0x6b8] sm:$0xff]
    %v1881 = vld [vmem:[#allocation7 + $0x6c0] sm:$0xff]
    %v1882 = vld [vmem:[#allocation7 + $0x6c8] sm:$0xff]
    %v1883 = vld [vmem:[#allocation7 + $0x6d0] sm:$0xff]
    %v1884 = vld [vmem:[#allocation7 + $0x6d8] sm:$0xff]
    %v1885 = vld [vmem:[#allocation7 + $0x6e0] sm:$0xff]
    %v1886 = vld [vmem:[#allocation7 + $0x6e8] sm:$0xff]
    %v1887 = vld [vmem:[#allocation7 + $0x6f0] sm:$0xff]
    %v1888 = vld [vmem:[#allocation7 + $0x6f8] sm:$0xff]
    %v1889 = vld [vmem:[#allocation7 + $0x700] sm:$0xff]
    %v1890 = vld [vmem:[#allocation7 + $0x708] sm:$0xff]
    %v1891 = vld [vmem:[#allocation7 + $0x710] sm:$0xff]
    %v1892 = vld [vmem:[#allocation7 + $0x718] sm:$0xff]
    %v1893 = vld [vmem:[#allocation7 + $0x720] sm:$0xff]
    %v1894 = vld [vmem:[#allocation7 + $0x728] sm:$0xff]
    %v1895 = vld [vmem:[#allocation7 + $0x730] sm:$0xff]
    %v1896 = vld [vmem:[#allocation7 + $0x738] sm:$0xff]
    %v1897 = vld [vmem:[#allocation7 + $0x740] sm:$0xff]
    %v1898 = vld [vmem:[#allocation7 + $0x748] sm:$0xff]
    %v1899 = vld [vmem:[#allocation7 + $0x750] sm:$0xff]
    %v1900 = vld [vmem:[#allocation7 + $0x758] sm:$0xff]
    %v1901 = vld [vmem:[#allocation7 + $0x760] sm:$0xff]
    %v1902 = vld [vmem:[#allocation7 + $0x768] sm:$0xff]
    %v1903 = vld [vmem:[#allocation7 + $0x770] sm:$0xff]
    %v1904 = vld [vmem:[#allocation7 + $0x778] sm:$0xff]
    %v1905 = vld [vmem:[#allocation7 + $0x780] sm:$0xff]
    %v1906 = vld [vmem:[#allocation7 + $0x788] sm:$0xff]
    %v1907 = vld [vmem:[#allocation7 + $0x790] sm:$0xff]
    %v1908 = vld [vmem:[#allocation7 + $0x798] sm:$0xff]
    %v1909 = vld [vmem:[#allocation7 + $0x7a0] sm:$0xff]
    %v1910 = vld [vmem:[#allocation7 + $0x7a8] sm:$0xff]
    %v1911 = vld [vmem:[#allocation7 + $0x7b0] sm:$0xff]
    %v1912 = vld [vmem:[#allocation7 + $0x7b8] sm:$0xff]
    %v1913 = vld [vmem:[#allocation7 + $0x7c0] sm:$0xff]
    %v1914 = vld [vmem:[#allocation7 + $0x7c8] sm:$0xff]
    %v1915 = vld [vmem:[#allocation7 + $0x7d0] sm:$0xff]
    %v1916 = vld [vmem:[#allocation7 + $0x7d8] sm:$0xff]
    %v1917 = vld [vmem:[#allocation7 + $0x7e0] sm:$0xff]
    %v1918 = vld [vmem:[#allocation7 + $0x7e8] sm:$0xff]
    %v1919 = vld [vmem:[#allocation7 + $0x7f0] sm:$0xff]
    %v1920 = vld [vmem:[#allocation7 + $0x7f8] sm:$0xff]
    %v1921 = vld [vmem:[#allocation2 + $0x100] sm:$0xff]
    %v1922 = vld [vmem:[#allocation2 + $0x108] sm:$0xff]
    %v1923 = vld [vmem:[#allocation2 + $0x110] sm:$0xff]
    %v1924 = vld [vmem:[#allocation2 + $0x118] sm:$0xff]
    %v1925 = vld [vmem:[#allocation2 + $0x120] sm:$0xff]
    %v1926 = vld [vmem:[#allocation2 + $0x128] sm:$0xff]
    %v1927 = vld [vmem:[#allocation2 + $0x130] sm:$0xff]
    %v1928 = vld [vmem:[#allocation2 + $0x138] sm:$0xff]
    %v1929 = vld [vmem:[#allocation2 + $0x140] sm:$0xff]
    %v1930 = vld [vmem:[#allocation2 + $0x148] sm:$0xff]
    %v1931 = vld [vmem:[#allocation2 + $0x150] sm:$0xff]
    %v1932 = vld [vmem:[#allocation2 + $0x158] sm:$0xff]
    %v1933 = vld [vmem:[#allocation2 + $0x160] sm:$0xff]
    %v1934 = vld [vmem:[#allocation2 + $0x168] sm:$0xff]
    %v1935 = vld [vmem:[#allocation2 + $0x170] sm:$0xff]
    %v1936 = vld [vmem:[#allocation2 + $0x178] sm:$0xff]
    %v1937 = vld [vmem:[#allocation2 + $0x180] sm:$0xff]
    %v1938 = vld [vmem:[#allocation2 + $0x188] sm:$0xff]
    %v1939 = vld [vmem:[#allocation2 + $0x190] sm:$0xff]
    %v1940 = vld [vmem:[#allocation2 + $0x198] sm:$0xff]
    %v1941 = vld [vmem:[#allocation2 + $0x1a0] sm:$0xff]
    %v1942 = vld [vmem:[#allocation2 + $0x1a8] sm:$0xff]
    %v1943 = vld [vmem:[#allocation2 + $0x1b0] sm:$0xff]
    %v1944 = vld [vmem:[#allocation2 + $0x1b8] sm:$0xff]
    %v1945 = vld [vmem:[#allocation2 + $0x1c0] sm:$0xff]
    %v1946 = vld [vmem:[#allocation2 + $0x1c8] sm:$0xff]
    %v1947 = vld [vmem:[#allocation2 + $0x1d0] sm:$0xff]
    %v1948 = vld [vmem:[#allocation2 + $0x1d8] sm:$0xff]
    %v1949 = vpack.c.bf16 %v1925, %v1921
    %v1950 = vpack.c.bf16 %v1926, %v1922
    %v1951 = vpack.c.bf16 %v1927, %v1923
    %v1952 = vpack.c.bf16 %v1928, %v1924
    %v1953 = vpack.c.bf16 %v1933, %v1929
    %v1954 = vpack.c.bf16 %v1934, %v1930
    %v1955 = vpack.c.bf16 %v1935, %v1931
    %v1956 = vpack.c.bf16 %v1936, %v1932
    %v1957 = vpack.c.bf16 %v1941, %v1937
    %v1958 = vpack.c.bf16 %v1942, %v1938
    %v1959 = vpack.c.bf16 %v1943, %v1939
    %v1960 = vpack.c.bf16 %v1944, %v1940
    %v1961 = vpack.c.bf16 %v1945, %v1945
    %v1962 = vpack.c.bf16 %v1946, %v1946
    %v1963 = vpack.c.bf16 %v1947, %v1947
    %v1964 = vpack.c.bf16 %v1948, %v1948
    %s1965 = scalar_lea.vmem [#allocation7], 2048
    %v1966 = vld [vmem:[%s1965] sm:$0xff]
    %v1967 = vld [vmem:[%s1965 + $0x8] sm:$0xff]
    %v1968 = vld [vmem:[%s1965 + $0x10] sm:$0xff]
    %v1969 = vld [vmem:[%s1965 + $0x18] sm:$0xff]
    %v1970 = vld [vmem:[%s1965 + $0x20] sm:$0xff]
    %v1971 = vld [vmem:[%s1965 + $0x28] sm:$0xff]
    %v1972 = vld [vmem:[%s1965 + $0x30] sm:$0xff]
    %v1973 = vld [vmem:[%s1965 + $0x38] sm:$0xff]
    %v1974 = vld [vmem:[%s1965 + $0x40] sm:$0xff]
    %v1975 = vld [vmem:[%s1965 + $0x48] sm:$0xff]
    %v1976 = vld [vmem:[%s1965 + $0x50] sm:$0xff]
    %v1977 = vld [vmem:[%s1965 + $0x58] sm:$0xff]
    %v1978 = vld [vmem:[%s1965 + $0x60] sm:$0xff]
    %v1979 = vld [vmem:[%s1965 + $0x68] sm:$0xff]
    %v1980 = vld [vmem:[%s1965 + $0x70] sm:$0xff]
    %v1981 = vld [vmem:[%s1965 + $0x78] sm:$0xff]
    %v1982 = vld [vmem:[%s1965 + $0x80] sm:$0xff]
    %v1983 = vld [vmem:[%s1965 + $0x88] sm:$0xff]
    %v1984 = vld [vmem:[%s1965 + $0x90] sm:$0xff]
    %v1985 = vld [vmem:[%s1965 + $0x98] sm:$0xff]
    %v1986 = vld [vmem:[%s1965 + $0xa0] sm:$0xff]
    %v1987 = vld [vmem:[%s1965 + $0xa8] sm:$0xff]
    %v1988 = vld [vmem:[%s1965 + $0xb0] sm:$0xff]
    %v1989 = vld [vmem:[%s1965 + $0xb8] sm:$0xff]
    %v1990 = vld [vmem:[%s1965 + $0xc0] sm:$0xff]
    %v1991 = vld [vmem:[%s1965 + $0xc8] sm:$0xff]
    %v1992 = vld [vmem:[%s1965 + $0xd0] sm:$0xff]
    %v1993 = vld [vmem:[%s1965 + $0xd8] sm:$0xff]
    %v1994 = vld [vmem:[%s1965 + $0xe0] sm:$0xff]
    %v1995 = vld [vmem:[%s1965 + $0xe8] sm:$0xff]
    %v1996 = vld [vmem:[%s1965 + $0xf0] sm:$0xff]
    %v1997 = vld [vmem:[%s1965 + $0xf8] sm:$0xff]
    %v1998 = vld [vmem:[%s1965 + $0x100] sm:$0xff]
    %v1999 = vld [vmem:[%s1965 + $0x108] sm:$0xff]
    %v2000 = vld [vmem:[%s1965 + $0x110] sm:$0xff]
    %v2001 = vld [vmem:[%s1965 + $0x118] sm:$0xff]
    %v2002 = vld [vmem:[%s1965 + $0x120] sm:$0xff]
    %v2003 = vld [vmem:[%s1965 + $0x128] sm:$0xff]
    %v2004 = vld [vmem:[%s1965 + $0x130] sm:$0xff]
    %v2005 = vld [vmem:[%s1965 + $0x138] sm:$0xff]
    %v2006 = vld [vmem:[%s1965 + $0x140] sm:$0xff]
    %v2007 = vld [vmem:[%s1965 + $0x148] sm:$0xff]
    %v2008 = vld [vmem:[%s1965 + $0x150] sm:$0xff]
    %v2009 = vld [vmem:[%s1965 + $0x158] sm:$0xff]
    %v2010 = vld [vmem:[%s1965 + $0x160] sm:$0xff]
    %v2011 = vld [vmem:[%s1965 + $0x168] sm:$0xff]
    %v2012 = vld [vmem:[%s1965 + $0x170] sm:$0xff]
    %v2013 = vld [vmem:[%s1965 + $0x178] sm:$0xff]
    %v2014 = vld [vmem:[%s1965 + $0x180] sm:$0xff]
    %v2015 = vld [vmem:[%s1965 + $0x188] sm:$0xff]
    %v2016 = vld [vmem:[%s1965 + $0x190] sm:$0xff]
    %v2017 = vld [vmem:[%s1965 + $0x198] sm:$0xff]
    %v2018 = vld [vmem:[%s1965 + $0x1a0] sm:$0xff]
    %v2019 = vld [vmem:[%s1965 + $0x1a8] sm:$0xff]
    %v2020 = vld [vmem:[%s1965 + $0x1b0] sm:$0xff]
    %v2021 = vld [vmem:[%s1965 + $0x1b8] sm:$0xff]
    %v2022 = vld [vmem:[%s1965 + $0x1c0] sm:$0xff]
    %v2023 = vld [vmem:[%s1965 + $0x1c8] sm:$0xff]
    %v2024 = vld [vmem:[%s1965 + $0x1d0] sm:$0xff]
    %v2025 = vld [vmem:[%s1965 + $0x1d8] sm:$0xff]
    %v2026 = vld [vmem:[%s1965 + $0x1e0] sm:$0xff]
    %v2027 = vld [vmem:[%s1965 + $0x1e8] sm:$0xff]
    %v2028 = vld [vmem:[%s1965 + $0x1f0] sm:$0xff]
    %v2029 = vld [vmem:[%s1965 + $0x1f8] sm:$0xff]
    %v2030 = vld [vmem:[%s1965 + $0x200] sm:$0xff]
    %v2031 = vld [vmem:[%s1965 + $0x208] sm:$0xff]
    %v2032 = vld [vmem:[%s1965 + $0x210] sm:$0xff]
    %v2033 = vld [vmem:[%s1965 + $0x218] sm:$0xff]
    %v2034 = vld [vmem:[%s1965 + $0x220] sm:$0xff]
    %v2035 = vld [vmem:[%s1965 + $0x228] sm:$0xff]
    %v2036 = vld [vmem:[%s1965 + $0x230] sm:$0xff]
    %v2037 = vld [vmem:[%s1965 + $0x238] sm:$0xff]
    %v2038 = vld [vmem:[%s1965 + $0x240] sm:$0xff]
    %v2039 = vld [vmem:[%s1965 + $0x248] sm:$0xff]
    %v2040 = vld [vmem:[%s1965 + $0x250] sm:$0xff]
    %v2041 = vld [vmem:[%s1965 + $0x258] sm:$0xff]
    %v2042 = vld [vmem:[%s1965 + $0x260] sm:$0xff]
    %v2043 = vld [vmem:[%s1965 + $0x268] sm:$0xff]
    %v2044 = vld [vmem:[%s1965 + $0x270] sm:$0xff]
    %v2045 = vld [vmem:[%s1965 + $0x278] sm:$0xff]
    %v2046 = vld [vmem:[%s1965 + $0x280] sm:$0xff]
    %v2047 = vld [vmem:[%s1965 + $0x288] sm:$0xff]
    %v2048 = vld [vmem:[%s1965 + $0x290] sm:$0xff]
    %v2049 = vld [vmem:[%s1965 + $0x298] sm:$0xff]
    %v2050 = vld [vmem:[%s1965 + $0x2a0] sm:$0xff]
    %v2051 = vld [vmem:[%s1965 + $0x2a8] sm:$0xff]
    %v2052 = vld [vmem:[%s1965 + $0x2b0] sm:$0xff]
    %v2053 = vld [vmem:[%s1965 + $0x2b8] sm:$0xff]
    %v2054 = vld [vmem:[%s1965 + $0x2c0] sm:$0xff]
    %v2055 = vld [vmem:[%s1965 + $0x2c8] sm:$0xff]
    %v2056 = vld [vmem:[%s1965 + $0x2d0] sm:$0xff]
    %v2057 = vld [vmem:[%s1965 + $0x2d8] sm:$0xff]
    %v2058 = vld [vmem:[%s1965 + $0x2e0] sm:$0xff]
    %v2059 = vld [vmem:[%s1965 + $0x2e8] sm:$0xff]
    %v2060 = vld [vmem:[%s1965 + $0x2f0] sm:$0xff]
    %v2061 = vld [vmem:[%s1965 + $0x2f8] sm:$0xff]
    %v2062 = vld [vmem:[%s1965 + $0x300] sm:$0xff]
    %v2063 = vld [vmem:[%s1965 + $0x308] sm:$0xff]
    %v2064 = vld [vmem:[%s1965 + $0x310] sm:$0xff]
    %v2065 = vld [vmem:[%s1965 + $0x318] sm:$0xff]
    %v2066 = vld [vmem:[%s1965 + $0x320] sm:$0xff]
    %v2067 = vld [vmem:[%s1965 + $0x328] sm:$0xff]
    %v2068 = vld [vmem:[%s1965 + $0x330] sm:$0xff]
    %v2069 = vld [vmem:[%s1965 + $0x338] sm:$0xff]
    %v2070 = vld [vmem:[%s1965 + $0x340] sm:$0xff]
    %v2071 = vld [vmem:[%s1965 + $0x348] sm:$0xff]
    %v2072 = vld [vmem:[%s1965 + $0x350] sm:$0xff]
    %v2073 = vld [vmem:[%s1965 + $0x358] sm:$0xff]
    %v2074 = vld [vmem:[%s1965 + $0x360] sm:$0xff]
    %v2075 = vld [vmem:[%s1965 + $0x368] sm:$0xff]
    %v2076 = vld [vmem:[%s1965 + $0x370] sm:$0xff]
    %v2077 = vld [vmem:[%s1965 + $0x378] sm:$0xff]
    %v2078 = vld [vmem:[%s1965 + $0x380] sm:$0xff]
    %v2079 = vld [vmem:[%s1965 + $0x388] sm:$0xff]
    %v2080 = vld [vmem:[%s1965 + $0x390] sm:$0xff]
    %v2081 = vld [vmem:[%s1965 + $0x398] sm:$0xff]
    %v2082 = vld [vmem:[%s1965 + $0x3a0] sm:$0xff]
    %v2083 = vld [vmem:[%s1965 + $0x3a8] sm:$0xff]
    %v2084 = vld [vmem:[%s1965 + $0x3b0] sm:$0xff]
    %v2085 = vld [vmem:[%s1965 + $0x3b8] sm:$0xff]
    %v2086 = vld [vmem:[%s1965 + $0x3c0] sm:$0xff]
    %v2087 = vld [vmem:[%s1965 + $0x3c8] sm:$0xff]
    %v2088 = vld [vmem:[%s1965 + $0x3d0] sm:$0xff]
    %v2089 = vld [vmem:[%s1965 + $0x3d8] sm:$0xff]
    %v2090 = vld [vmem:[%s1965 + $0x3e0] sm:$0xff]
    %v2091 = vld [vmem:[%s1965 + $0x3e8] sm:$0xff]
    %v2092 = vld [vmem:[%s1965 + $0x3f0] sm:$0xff]
    %v2093 = vld [vmem:[%s1965 + $0x3f8] sm:$0xff]
    %v2094 = vld [vmem:[%s1965 + $0x400] sm:$0xff]
    %v2095 = vld [vmem:[%s1965 + $0x408] sm:$0xff]
    %v2096 = vld [vmem:[%s1965 + $0x410] sm:$0xff]
    %v2097 = vld [vmem:[%s1965 + $0x418] sm:$0xff]
    %v2098 = vld [vmem:[%s1965 + $0x420] sm:$0xff]
    %v2099 = vld [vmem:[%s1965 + $0x428] sm:$0xff]
    %v2100 = vld [vmem:[%s1965 + $0x430] sm:$0xff]
    %v2101 = vld [vmem:[%s1965 + $0x438] sm:$0xff]
    %v2102 = vld [vmem:[%s1965 + $0x440] sm:$0xff]
    %v2103 = vld [vmem:[%s1965 + $0x448] sm:$0xff]
    %v2104 = vld [vmem:[%s1965 + $0x450] sm:$0xff]
    %v2105 = vld [vmem:[%s1965 + $0x458] sm:$0xff]
    %v2106 = vld [vmem:[%s1965 + $0x460] sm:$0xff]
    %v2107 = vld [vmem:[%s1965 + $0x468] sm:$0xff]
    %v2108 = vld [vmem:[%s1965 + $0x470] sm:$0xff]
    %v2109 = vld [vmem:[%s1965 + $0x478] sm:$0xff]
    %v2110 = vld [vmem:[%s1965 + $0x480] sm:$0xff]
    %v2111 = vld [vmem:[%s1965 + $0x488] sm:$0xff]
    %v2112 = vld [vmem:[%s1965 + $0x490] sm:$0xff]
    %v2113 = vld [vmem:[%s1965 + $0x498] sm:$0xff]
    %v2114 = vld [vmem:[%s1965 + $0x4a0] sm:$0xff]
    %v2115 = vld [vmem:[%s1965 + $0x4a8] sm:$0xff]
    %v2116 = vld [vmem:[%s1965 + $0x4b0] sm:$0xff]
    %v2117 = vld [vmem:[%s1965 + $0x4b8] sm:$0xff]
    %v2118 = vld [vmem:[%s1965 + $0x4c0] sm:$0xff]
    %v2119 = vld [vmem:[%s1965 + $0x4c8] sm:$0xff]
    %v2120 = vld [vmem:[%s1965 + $0x4d0] sm:$0xff]
    %v2121 = vld [vmem:[%s1965 + $0x4d8] sm:$0xff]
    %v2122 = vld [vmem:[%s1965 + $0x4e0] sm:$0xff]
    %v2123 = vld [vmem:[%s1965 + $0x4e8] sm:$0xff]
    %v2124 = vld [vmem:[%s1965 + $0x4f0] sm:$0xff]
    %v2125 = vld [vmem:[%s1965 + $0x4f8] sm:$0xff]
    %v2126 = vld [vmem:[%s1965 + $0x500] sm:$0xff]
    %v2127 = vld [vmem:[%s1965 + $0x508] sm:$0xff]
    %v2128 = vld [vmem:[%s1965 + $0x510] sm:$0xff]
    %v2129 = vld [vmem:[%s1965 + $0x518] sm:$0xff]
    %v2130 = vld [vmem:[%s1965 + $0x520] sm:$0xff]
    %v2131 = vld [vmem:[%s1965 + $0x528] sm:$0xff]
    %v2132 = vld [vmem:[%s1965 + $0x530] sm:$0xff]
    %v2133 = vld [vmem:[%s1965 + $0x538] sm:$0xff]
    %v2134 = vld [vmem:[%s1965 + $0x540] sm:$0xff]
    %v2135 = vld [vmem:[%s1965 + $0x548] sm:$0xff]
    %v2136 = vld [vmem:[%s1965 + $0x550] sm:$0xff]
    %v2137 = vld [vmem:[%s1965 + $0x558] sm:$0xff]
    %v2138 = vld [vmem:[%s1965 + $0x560] sm:$0xff]
    %v2139 = vld [vmem:[%s1965 + $0x568] sm:$0xff]
    %v2140 = vld [vmem:[%s1965 + $0x570] sm:$0xff]
    %v2141 = vld [vmem:[%s1965 + $0x578] sm:$0xff]
    %v2142 = vld [vmem:[%s1965 + $0x580] sm:$0xff]
    %v2143 = vld [vmem:[%s1965 + $0x588] sm:$0xff]
    %v2144 = vld [vmem:[%s1965 + $0x590] sm:$0xff]
    %v2145 = vld [vmem:[%s1965 + $0x598] sm:$0xff]
    %v2146 = vld [vmem:[%s1965 + $0x5a0] sm:$0xff]
    %v2147 = vld [vmem:[%s1965 + $0x5a8] sm:$0xff]
    %v2148 = vld [vmem:[%s1965 + $0x5b0] sm:$0xff]
    %v2149 = vld [vmem:[%s1965 + $0x5b8] sm:$0xff]
    %v2150 = vld [vmem:[%s1965 + $0x5c0] sm:$0xff]
    %v2151 = vld [vmem:[%s1965 + $0x5c8] sm:$0xff]
    %v2152 = vld [vmem:[%s1965 + $0x5d0] sm:$0xff]
    %v2153 = vld [vmem:[%s1965 + $0x5d8] sm:$0xff]
    %v2154 = vld [vmem:[%s1965 + $0x5e0] sm:$0xff]
    %v2155 = vld [vmem:[%s1965 + $0x5e8] sm:$0xff]
    %v2156 = vld [vmem:[%s1965 + $0x5f0] sm:$0xff]
    %v2157 = vld [vmem:[%s1965 + $0x5f8] sm:$0xff]
    %v2158 = vld [vmem:[%s1965 + $0x600] sm:$0xff]
    %v2159 = vld [vmem:[%s1965 + $0x608] sm:$0xff]
    %v2160 = vld [vmem:[%s1965 + $0x610] sm:$0xff]
    %v2161 = vld [vmem:[%s1965 + $0x618] sm:$0xff]
    %v2162 = vld [vmem:[%s1965 + $0x620] sm:$0xff]
    %v2163 = vld [vmem:[%s1965 + $0x628] sm:$0xff]
    %v2164 = vld [vmem:[%s1965 + $0x630] sm:$0xff]
    %v2165 = vld [vmem:[%s1965 + $0x638] sm:$0xff]
    %v2166 = vld [vmem:[%s1965 + $0x640] sm:$0xff]
    %v2167 = vld [vmem:[%s1965 + $0x648] sm:$0xff]
    %v2168 = vld [vmem:[%s1965 + $0x650] sm:$0xff]
    %v2169 = vld [vmem:[%s1965 + $0x658] sm:$0xff]
    %v2170 = vld [vmem:[%s1965 + $0x660] sm:$0xff]
    %v2171 = vld [vmem:[%s1965 + $0x668] sm:$0xff]
    %v2172 = vld [vmem:[%s1965 + $0x670] sm:$0xff]
    %v2173 = vld [vmem:[%s1965 + $0x678] sm:$0xff]
    %v2174 = vld [vmem:[%s1965 + $0x680] sm:$0xff]
    %v2175 = vld [vmem:[%s1965 + $0x688] sm:$0xff]
    %v2176 = vld [vmem:[%s1965 + $0x690] sm:$0xff]
    %v2177 = vld [vmem:[%s1965 + $0x698] sm:$0xff]
    %v2178 = vld [vmem:[%s1965 + $0x6a0] sm:$0xff]
    %v2179 = vld [vmem:[%s1965 + $0x6a8] sm:$0xff]
    %v2180 = vld [vmem:[%s1965 + $0x6b0] sm:$0xff]
    %v2181 = vld [vmem:[%s1965 + $0x6b8] sm:$0xff]
    %v2182 = vld [vmem:[%s1965 + $0x6c0] sm:$0xff]
    %v2183 = vld [vmem:[%s1965 + $0x6c8] sm:$0xff]
    %v2184 = vld [vmem:[%s1965 + $0x6d0] sm:$0xff]
    %v2185 = vld [vmem:[%s1965 + $0x6d8] sm:$0xff]
    %v2186 = vld [vmem:[%s1965 + $0x6e0] sm:$0xff]
    %v2187 = vld [vmem:[%s1965 + $0x6e8] sm:$0xff]
    %v2188 = vld [vmem:[%s1965 + $0x6f0] sm:$0xff]
    %v2189 = vld [vmem:[%s1965 + $0x6f8] sm:$0xff]
    %v2190 = vld [vmem:[%s1965 + $0x700] sm:$0xff]
    %v2191 = vld [vmem:[%s1965 + $0x708] sm:$0xff]
    %v2192 = vld [vmem:[%s1965 + $0x710] sm:$0xff]
    %v2193 = vld [vmem:[%s1965 + $0x718] sm:$0xff]
    %v2194 = vld [vmem:[%s1965 + $0x720] sm:$0xff]
    %v2195 = vld [vmem:[%s1965 + $0x728] sm:$0xff]
    %v2196 = vld [vmem:[%s1965 + $0x730] sm:$0xff]
    %v2197 = vld [vmem:[%s1965 + $0x738] sm:$0xff]
    %v2198 = vld [vmem:[%s1965 + $0x740] sm:$0xff]
    %v2199 = vld [vmem:[%s1965 + $0x748] sm:$0xff]
    %v2200 = vld [vmem:[%s1965 + $0x750] sm:$0xff]
    %v2201 = vld [vmem:[%s1965 + $0x758] sm:$0xff]
    %v2202 = vld [vmem:[%s1965 + $0x760] sm:$0xff]
    %v2203 = vld [vmem:[%s1965 + $0x768] sm:$0xff]
    %v2204 = vld [vmem:[%s1965 + $0x770] sm:$0xff]
    %v2205 = vld [vmem:[%s1965 + $0x778] sm:$0xff]
    %v2206 = vld [vmem:[%s1965 + $0x780] sm:$0xff]
    %v2207 = vld [vmem:[%s1965 + $0x788] sm:$0xff]
    %v2208 = vld [vmem:[%s1965 + $0x790] sm:$0xff]
    %v2209 = vld [vmem:[%s1965 + $0x798] sm:$0xff]
    %v2210 = vld [vmem:[%s1965 + $0x7a0] sm:$0xff]
    %v2211 = vld [vmem:[%s1965 + $0x7a8] sm:$0xff]
    %v2212 = vld [vmem:[%s1965 + $0x7b0] sm:$0xff]
    %v2213 = vld [vmem:[%s1965 + $0x7b8] sm:$0xff]
    %v2214 = vld [vmem:[%s1965 + $0x7c0] sm:$0xff]
    %v2215 = vld [vmem:[%s1965 + $0x7c8] sm:$0xff]
    %v2216 = vld [vmem:[%s1965 + $0x7d0] sm:$0xff]
    %v2217 = vld [vmem:[%s1965 + $0x7d8] sm:$0xff]
    %v2218 = vld [vmem:[%s1965 + $0x7e0] sm:$0xff]
    %v2219 = vld [vmem:[%s1965 + $0x7e8] sm:$0xff]
    %v2220 = vld [vmem:[%s1965 + $0x7f0] sm:$0xff]
    %v2221 = vld [vmem:[%s1965 + $0x7f8] sm:$0xff]
    %v2478 = vunpack.c.l.b16 %v1966
    %v2479 = vunpack.c.h.b16 %v1966
    %v2480 = vunpack.c.l.b16 %v1967
    %v2481 = vunpack.c.h.b16 %v1967
    %v2482 = vunpack.c.l.b16 %v1968
    %v2483 = vunpack.c.h.b16 %v1968
    %v2484 = vunpack.c.l.b16 %v1969
    %v2485 = vunpack.c.h.b16 %v1969
    %v2486 = vunpack.c.l.b16 %v1970
    %v2487 = vunpack.c.h.b16 %v1970
    %v2488 = vunpack.c.l.b16 %v1971
    %v2489 = vunpack.c.h.b16 %v1971
    %v2490 = vunpack.c.l.b16 %v1972
    %v2491 = vunpack.c.h.b16 %v1972
    %v2492 = vunpack.c.l.b16 %v1973
    %v2493 = vunpack.c.h.b16 %v1973
    %v2494 = vunpack.c.l.b16 %v1974
    %v2495 = vunpack.c.h.b16 %v1974
    %v2496 = vunpack.c.l.b16 %v1975
    %v2497 = vunpack.c.h.b16 %v1975
    %v2498 = vunpack.c.l.b16 %v1976
    %v2499 = vunpack.c.h.b16 %v1976
    %v2500 = vunpack.c.l.b16 %v1977
    %v2501 = vunpack.c.h.b16 %v1977
    %v2502 = vunpack.c.l.b16 %v1978
    %v2503 = vunpack.c.h.b16 %v1978
    %v2504 = vunpack.c.l.b16 %v1979
    %v2505 = vunpack.c.h.b16 %v1979
    %v2506 = vunpack.c.l.b16 %v1980
    %v2507 = vunpack.c.h.b16 %v1980
    %v2508 = vunpack.c.l.b16 %v1981
    %v2509 = vunpack.c.h.b16 %v1981
    %v2510 = vunpack.c.l.b16 %v1982
    %v2511 = vunpack.c.h.b16 %v1982
    %v2512 = vunpack.c.l.b16 %v1983
    %v2513 = vunpack.c.h.b16 %v1983
    %v2514 = vunpack.c.l.b16 %v1984
    %v2515 = vunpack.c.h.b16 %v1984
    %v2516 = vunpack.c.l.b16 %v1985
    %v2517 = vunpack.c.h.b16 %v1985
    %v2518 = vunpack.c.l.b16 %v1986
    %v2519 = vunpack.c.h.b16 %v1986
    %v2520 = vunpack.c.l.b16 %v1987
    %v2521 = vunpack.c.h.b16 %v1987
    %v2522 = vunpack.c.l.b16 %v1988
    %v2523 = vunpack.c.h.b16 %v1988
    %v2524 = vunpack.c.l.b16 %v1989
    %v2525 = vunpack.c.h.b16 %v1989
    %v2526 = vunpack.c.l.b16 %v1990
    %v2527 = vunpack.c.h.b16 %v1990
    %v2528 = vunpack.c.l.b16 %v1991
    %v2529 = vunpack.c.h.b16 %v1991
    %v2530 = vunpack.c.l.b16 %v1992
    %v2531 = vunpack.c.h.b16 %v1992
    %v2532 = vunpack.c.l.b16 %v1993
    %v2533 = vunpack.c.h.b16 %v1993
    %v2534 = vunpack.c.l.b16 %v1994
    %v2535 = vunpack.c.h.b16 %v1994
    %v2536 = vunpack.c.l.b16 %v1995
    %v2537 = vunpack.c.h.b16 %v1995
    %v2538 = vunpack.c.l.b16 %v1996
    %v2539 = vunpack.c.h.b16 %v1996
    %v2540 = vunpack.c.l.b16 %v1997
    %v2541 = vunpack.c.h.b16 %v1997
    %v2542 = vunpack.c.l.b16 %v1998
    %v2543 = vunpack.c.h.b16 %v1998
    %v2544 = vunpack.c.l.b16 %v1999
    %v2545 = vunpack.c.h.b16 %v1999
    %v2546 = vunpack.c.l.b16 %v2000
    %v2547 = vunpack.c.h.b16 %v2000
    %v2548 = vunpack.c.l.b16 %v2001
    %v2549 = vunpack.c.h.b16 %v2001
    %v2550 = vunpack.c.l.b16 %v2002
    %v2551 = vunpack.c.h.b16 %v2002
    %v2552 = vunpack.c.l.b16 %v2003
    %v2553 = vunpack.c.h.b16 %v2003
    %v2554 = vunpack.c.l.b16 %v2004
    %v2555 = vunpack.c.h.b16 %v2004
    %v2556 = vunpack.c.l.b16 %v2005
    %v2557 = vunpack.c.h.b16 %v2005
    %v2558 = vunpack.c.l.b16 %v2006
    %v2559 = vunpack.c.h.b16 %v2006
    %v2560 = vunpack.c.l.b16 %v2007
    %v2561 = vunpack.c.h.b16 %v2007
    %v2562 = vunpack.c.l.b16 %v2008
    %v2563 = vunpack.c.h.b16 %v2008
    %v2564 = vunpack.c.l.b16 %v2009
    %v2565 = vunpack.c.h.b16 %v2009
    %v2566 = vunpack.c.l.b16 %v2010
    %v2567 = vunpack.c.h.b16 %v2010
    %v2568 = vunpack.c.l.b16 %v2011
    %v2569 = vunpack.c.h.b16 %v2011
    %v2570 = vunpack.c.l.b16 %v2012
    %v2571 = vunpack.c.h.b16 %v2012
    %v2572 = vunpack.c.l.b16 %v2013
    %v2573 = vunpack.c.h.b16 %v2013
    %v2574 = vunpack.c.l.b16 %v2014
    %v2575 = vunpack.c.h.b16 %v2014
    %v2576 = vunpack.c.l.b16 %v2015
    %v2577 = vunpack.c.h.b16 %v2015
    %v2578 = vunpack.c.l.b16 %v2016
    %v2579 = vunpack.c.h.b16 %v2016
    %v2580 = vunpack.c.l.b16 %v2017
    %v2581 = vunpack.c.h.b16 %v2017
    %v2582 = vunpack.c.l.b16 %v2018
    %v2583 = vunpack.c.h.b16 %v2018
    %v2584 = vunpack.c.l.b16 %v2019
    %v2585 = vunpack.c.h.b16 %v2019
    %v2586 = vunpack.c.l.b16 %v2020
    %v2587 = vunpack.c.h.b16 %v2020
    %v2588 = vunpack.c.l.b16 %v2021
    %v2589 = vunpack.c.h.b16 %v2021
    %v2590 = vunpack.c.l.b16 %v2022
    %v2591 = vunpack.c.h.b16 %v2022
    %v2592 = vunpack.c.l.b16 %v2023
    %v2593 = vunpack.c.h.b16 %v2023
    %v2594 = vunpack.c.l.b16 %v2024
    %v2595 = vunpack.c.h.b16 %v2024
    %v2596 = vunpack.c.l.b16 %v2025
    %v2597 = vunpack.c.h.b16 %v2025
    %v2598 = vunpack.c.l.b16 %v2026
    %v2599 = vunpack.c.h.b16 %v2026
    %v2600 = vunpack.c.l.b16 %v2027
    %v2601 = vunpack.c.h.b16 %v2027
    %v2602 = vunpack.c.l.b16 %v2028
    %v2603 = vunpack.c.h.b16 %v2028
    %v2604 = vunpack.c.l.b16 %v2029
    %v2605 = vunpack.c.h.b16 %v2029
    %v2606 = vunpack.c.l.b16 %v2030
    %v2607 = vunpack.c.h.b16 %v2030
    %v2608 = vunpack.c.l.b16 %v2031
    %v2609 = vunpack.c.h.b16 %v2031
    %v2610 = vunpack.c.l.b16 %v2032
    %v2611 = vunpack.c.h.b16 %v2032
    %v2612 = vunpack.c.l.b16 %v2033
    %v2613 = vunpack.c.h.b16 %v2033
    %v2614 = vunpack.c.l.b16 %v2034
    %v2615 = vunpack.c.h.b16 %v2034
    %v2616 = vunpack.c.l.b16 %v2035
    %v2617 = vunpack.c.h.b16 %v2035
    %v2618 = vunpack.c.l.b16 %v2036
    %v2619 = vunpack.c.h.b16 %v2036
    %v2620 = vunpack.c.l.b16 %v2037
    %v2621 = vunpack.c.h.b16 %v2037
    %v2622 = vunpack.c.l.b16 %v2038
    %v2623 = vunpack.c.h.b16 %v2038
    %v2624 = vunpack.c.l.b16 %v2039
    %v2625 = vunpack.c.h.b16 %v2039
    %v2626 = vunpack.c.l.b16 %v2040
    %v2627 = vunpack.c.h.b16 %v2040
    %v2628 = vunpack.c.l.b16 %v2041
    %v2629 = vunpack.c.h.b16 %v2041
    %v2630 = vunpack.c.l.b16 %v2042
    %v2631 = vunpack.c.h.b16 %v2042
    %v2632 = vunpack.c.l.b16 %v2043
    %v2633 = vunpack.c.h.b16 %v2043
    %v2634 = vunpack.c.l.b16 %v2044
    %v2635 = vunpack.c.h.b16 %v2044
    %v2636 = vunpack.c.l.b16 %v2045
    %v2637 = vunpack.c.h.b16 %v2045
    %v2638 = vunpack.c.l.b16 %v2046
    %v2639 = vunpack.c.h.b16 %v2046
    %v2640 = vunpack.c.l.b16 %v2047
    %v2641 = vunpack.c.h.b16 %v2047
    %v2642 = vunpack.c.l.b16 %v2048
    %v2643 = vunpack.c.h.b16 %v2048
    %v2644 = vunpack.c.l.b16 %v2049
    %v2645 = vunpack.c.h.b16 %v2049
    %v2646 = vunpack.c.l.b16 %v2050
    %v2647 = vunpack.c.h.b16 %v2050
    %v2648 = vunpack.c.l.b16 %v2051
    %v2649 = vunpack.c.h.b16 %v2051
    %v2650 = vunpack.c.l.b16 %v2052
    %v2651 = vunpack.c.h.b16 %v2052
    %v2652 = vunpack.c.l.b16 %v2053
    %v2653 = vunpack.c.h.b16 %v2053
    %v2654 = vunpack.c.l.b16 %v2054
    %v2655 = vunpack.c.h.b16 %v2054
    %v2656 = vunpack.c.l.b16 %v2055
    %v2657 = vunpack.c.h.b16 %v2055
    %v2658 = vunpack.c.l.b16 %v2056
    %v2659 = vunpack.c.h.b16 %v2056
    %v2660 = vunpack.c.l.b16 %v2057
    %v2661 = vunpack.c.h.b16 %v2057
    %v2662 = vunpack.c.l.b16 %v2058
    %v2663 = vunpack.c.h.b16 %v2058
    %v2664 = vunpack.c.l.b16 %v2059
    %v2665 = vunpack.c.h.b16 %v2059
    %v2666 = vunpack.c.l.b16 %v2060
    %v2667 = vunpack.c.h.b16 %v2060
    %v2668 = vunpack.c.l.b16 %v2061
    %v2669 = vunpack.c.h.b16 %v2061
    %v2670 = vunpack.c.l.b16 %v2062
    %v2671 = vunpack.c.h.b16 %v2062
    %v2672 = vunpack.c.l.b16 %v2063
    %v2673 = vunpack.c.h.b16 %v2063
    %v2674 = vunpack.c.l.b16 %v2064
    %v2675 = vunpack.c.h.b16 %v2064
    %v2676 = vunpack.c.l.b16 %v2065
    %v2677 = vunpack.c.h.b16 %v2065
    %v2678 = vunpack.c.l.b16 %v2066
    %v2679 = vunpack.c.h.b16 %v2066
    %v2680 = vunpack.c.l.b16 %v2067
    %v2681 = vunpack.c.h.b16 %v2067
    %v2682 = vunpack.c.l.b16 %v2068
    %v2683 = vunpack.c.h.b16 %v2068
    %v2684 = vunpack.c.l.b16 %v2069
    %v2685 = vunpack.c.h.b16 %v2069
    %v2686 = vunpack.c.l.b16 %v2070
    %v2687 = vunpack.c.h.b16 %v2070
    %v2688 = vunpack.c.l.b16 %v2071
    %v2689 = vunpack.c.h.b16 %v2071
    %v2690 = vunpack.c.l.b16 %v2072
    %v2691 = vunpack.c.h.b16 %v2072
    %v2692 = vunpack.c.l.b16 %v2073
    %v2693 = vunpack.c.h.b16 %v2073
    %v2694 = vunpack.c.l.b16 %v2074
    %v2695 = vunpack.c.h.b16 %v2074
    %v2696 = vunpack.c.l.b16 %v2075
    %v2697 = vunpack.c.h.b16 %v2075
    %v2698 = vunpack.c.l.b16 %v2076
    %v2699 = vunpack.c.h.b16 %v2076
    %v2700 = vunpack.c.l.b16 %v2077
    %v2701 = vunpack.c.h.b16 %v2077
    %v2702 = vunpack.c.l.b16 %v2078
    %v2703 = vunpack.c.h.b16 %v2078
    %v2704 = vunpack.c.l.b16 %v2079
    %v2705 = vunpack.c.h.b16 %v2079
    %v2706 = vunpack.c.l.b16 %v2080
    %v2707 = vunpack.c.h.b16 %v2080
    %v2708 = vunpack.c.l.b16 %v2081
    %v2709 = vunpack.c.h.b16 %v2081
    %v2710 = vunpack.c.l.b16 %v2082
    %v2711 = vunpack.c.h.b16 %v2082
    %v2712 = vunpack.c.l.b16 %v2083
    %v2713 = vunpack.c.h.b16 %v2083
    %v2714 = vunpack.c.l.b16 %v2084
    %v2715 = vunpack.c.h.b16 %v2084
    %v2716 = vunpack.c.l.b16 %v2085
    %v2717 = vunpack.c.h.b16 %v2085
    %v2718 = vunpack.c.l.b16 %v2086
    %v2719 = vunpack.c.h.b16 %v2086
    %v2720 = vunpack.c.l.b16 %v2087
    %v2721 = vunpack.c.h.b16 %v2087
    %v2722 = vunpack.c.l.b16 %v2088
    %v2723 = vunpack.c.h.b16 %v2088
    %v2724 = vunpack.c.l.b16 %v2089
    %v2725 = vunpack.c.h.b16 %v2089
    %v2726 = vunpack.c.l.b16 %v2090
    %v2727 = vunpack.c.h.b16 %v2090
    %v2728 = vunpack.c.l.b16 %v2091
    %v2729 = vunpack.c.h.b16 %v2091
    %v2730 = vunpack.c.l.b16 %v2092
    %v2731 = vunpack.c.h.b16 %v2092
    %v2732 = vunpack.c.l.b16 %v2093
    %v2733 = vunpack.c.h.b16 %v2093
    %v2734 = vunpack.c.l.b16 %v2094
    %v2735 = vunpack.c.h.b16 %v2094
    %v2736 = vunpack.c.l.b16 %v2095
    %v2737 = vunpack.c.h.b16 %v2095
    %v2738 = vunpack.c.l.b16 %v2096
    %v2739 = vunpack.c.h.b16 %v2096
    %v2740 = vunpack.c.l.b16 %v2097
    %v2741 = vunpack.c.h.b16 %v2097
    %v2742 = vunpack.c.l.b16 %v2098
    %v2743 = vunpack.c.h.b16 %v2098
    %v2744 = vunpack.c.l.b16 %v2099
    %v2745 = vunpack.c.h.b16 %v2099
    %v2746 = vunpack.c.l.b16 %v2100
    %v2747 = vunpack.c.h.b16 %v2100
    %v2748 = vunpack.c.l.b16 %v2101
    %v2749 = vunpack.c.h.b16 %v2101
    %v2750 = vunpack.c.l.b16 %v2102
    %v2751 = vunpack.c.h.b16 %v2102
    %v2752 = vunpack.c.l.b16 %v2103
    %v2753 = vunpack.c.h.b16 %v2103
    %v2754 = vunpack.c.l.b16 %v2104
    %v2755 = vunpack.c.h.b16 %v2104
    %v2756 = vunpack.c.l.b16 %v2105
    %v2757 = vunpack.c.h.b16 %v2105
    %v2758 = vunpack.c.l.b16 %v2106
    %v2759 = vunpack.c.h.b16 %v2106
    %v2760 = vunpack.c.l.b16 %v2107
    %v2761 = vunpack.c.h.b16 %v2107
    %v2762 = vunpack.c.l.b16 %v2108
    %v2763 = vunpack.c.h.b16 %v2108
    %v2764 = vunpack.c.l.b16 %v2109
    %v2765 = vunpack.c.h.b16 %v2109
    %v2766 = vunpack.c.l.b16 %v2110
    %v2767 = vunpack.c.h.b16 %v2110
    %v2768 = vunpack.c.l.b16 %v2111
    %v2769 = vunpack.c.h.b16 %v2111
    %v2770 = vunpack.c.l.b16 %v2112
    %v2771 = vunpack.c.h.b16 %v2112
    %v2772 = vunpack.c.l.b16 %v2113
    %v2773 = vunpack.c.h.b16 %v2113
    %v2774 = vunpack.c.l.b16 %v2114
    %v2775 = vunpack.c.h.b16 %v2114
    %v2776 = vunpack.c.l.b16 %v2115
    %v2777 = vunpack.c.h.b16 %v2115
    %v2778 = vunpack.c.l.b16 %v2116
    %v2779 = vunpack.c.h.b16 %v2116
    %v2780 = vunpack.c.l.b16 %v2117
    %v2781 = vunpack.c.h.b16 %v2117
    %v2782 = vunpack.c.l.b16 %v2118
    %v2783 = vunpack.c.h.b16 %v2118
    %v2784 = vunpack.c.l.b16 %v2119
    %v2785 = vunpack.c.h.b16 %v2119
    %v2786 = vunpack.c.l.b16 %v2120
    %v2787 = vunpack.c.h.b16 %v2120
    %v2788 = vunpack.c.l.b16 %v2121
    %v2789 = vunpack.c.h.b16 %v2121
    %v2790 = vunpack.c.l.b16 %v2122
    %v2791 = vunpack.c.h.b16 %v2122
    %v2792 = vunpack.c.l.b16 %v2123
    %v2793 = vunpack.c.h.b16 %v2123
    %v2794 = vunpack.c.l.b16 %v2124
    %v2795 = vunpack.c.h.b16 %v2124
    %v2796 = vunpack.c.l.b16 %v2125
    %v2797 = vunpack.c.h.b16 %v2125
    %v2798 = vunpack.c.l.b16 %v2126
    %v2799 = vunpack.c.h.b16 %v2126
    %v2800 = vunpack.c.l.b16 %v2127
    %v2801 = vunpack.c.h.b16 %v2127
    %v2802 = vunpack.c.l.b16 %v2128
    %v2803 = vunpack.c.h.b16 %v2128
    %v2804 = vunpack.c.l.b16 %v2129
    %v2805 = vunpack.c.h.b16 %v2129
    %v2806 = vunpack.c.l.b16 %v2130
    %v2807 = vunpack.c.h.b16 %v2130
    %v2808 = vunpack.c.l.b16 %v2131
    %v2809 = vunpack.c.h.b16 %v2131
    %v2810 = vunpack.c.l.b16 %v2132
    %v2811 = vunpack.c.h.b16 %v2132
    %v2812 = vunpack.c.l.b16 %v2133
    %v2813 = vunpack.c.h.b16 %v2133
    %v2814 = vunpack.c.l.b16 %v2134
    %v2815 = vunpack.c.h.b16 %v2134
    %v2816 = vunpack.c.l.b16 %v2135
    %v2817 = vunpack.c.h.b16 %v2135
    %v2818 = vunpack.c.l.b16 %v2136
    %v2819 = vunpack.c.h.b16 %v2136
    %v2820 = vunpack.c.l.b16 %v2137
    %v2821 = vunpack.c.h.b16 %v2137
    %v2822 = vunpack.c.l.b16 %v2138
    %v2823 = vunpack.c.h.b16 %v2138
    %v2824 = vunpack.c.l.b16 %v2139
    %v2825 = vunpack.c.h.b16 %v2139
    %v2826 = vunpack.c.l.b16 %v2140
    %v2827 = vunpack.c.h.b16 %v2140
    %v2828 = vunpack.c.l.b16 %v2141
    %v2829 = vunpack.c.h.b16 %v2141
    %v2830 = vunpack.c.l.b16 %v2142
    %v2831 = vunpack.c.h.b16 %v2142
    %v2832 = vunpack.c.l.b16 %v2143
    %v2833 = vunpack.c.h.b16 %v2143
    %v2834 = vunpack.c.l.b16 %v2144
    %v2835 = vunpack.c.h.b16 %v2144
    %v2836 = vunpack.c.l.b16 %v2145
    %v2837 = vunpack.c.h.b16 %v2145
    %v2838 = vunpack.c.l.b16 %v2146
    %v2839 = vunpack.c.h.b16 %v2146
    %v2840 = vunpack.c.l.b16 %v2147
    %v2841 = vunpack.c.h.b16 %v2147
    %v2842 = vunpack.c.l.b16 %v2148
    %v2843 = vunpack.c.h.b16 %v2148
    %v2844 = vunpack.c.l.b16 %v2149
    %v2845 = vunpack.c.h.b16 %v2149
    %v2846 = vunpack.c.l.b16 %v2150
    %v2847 = vunpack.c.h.b16 %v2150
    %v2848 = vunpack.c.l.b16 %v2151
    %v2849 = vunpack.c.h.b16 %v2151
    %v2850 = vunpack.c.l.b16 %v2152
    %v2851 = vunpack.c.h.b16 %v2152
    %v2852 = vunpack.c.l.b16 %v2153
    %v2853 = vunpack.c.h.b16 %v2153
    %v2854 = vunpack.c.l.b16 %v2154
    %v2855 = vunpack.c.h.b16 %v2154
    %v2856 = vunpack.c.l.b16 %v2155
    %v2857 = vunpack.c.h.b16 %v2155
    %v2858 = vunpack.c.l.b16 %v2156
    %v2859 = vunpack.c.h.b16 %v2156
    %v2860 = vunpack.c.l.b16 %v2157
    %v2861 = vunpack.c.h.b16 %v2157
    %v2862 = vunpack.c.l.b16 %v2158
    %v2863 = vunpack.c.h.b16 %v2158
    %v2864 = vunpack.c.l.b16 %v2159
    %v2865 = vunpack.c.h.b16 %v2159
    %v2866 = vunpack.c.l.b16 %v2160
    %v2867 = vunpack.c.h.b16 %v2160
    %v2868 = vunpack.c.l.b16 %v2161
    %v2869 = vunpack.c.h.b16 %v2161
    %v2870 = vunpack.c.l.b16 %v2162
    %v2871 = vunpack.c.h.b16 %v2162
    %v2872 = vunpack.c.l.b16 %v2163
    %v2873 = vunpack.c.h.b16 %v2163
    %v2874 = vunpack.c.l.b16 %v2164
    %v2875 = vunpack.c.h.b16 %v2164
    %v2876 = vunpack.c.l.b16 %v2165
    %v2877 = vunpack.c.h.b16 %v2165
    %v2878 = vunpack.c.l.b16 %v2166
    %v2879 = vunpack.c.h.b16 %v2166
    %v2880 = vunpack.c.l.b16 %v2167
    %v2881 = vunpack.c.h.b16 %v2167
    %v2882 = vunpack.c.l.b16 %v2168
    %v2883 = vunpack.c.h.b16 %v2168
    %v2884 = vunpack.c.l.b16 %v2169
    %v2885 = vunpack.c.h.b16 %v2169
    %v2886 = vunpack.c.l.b16 %v2170
    %v2887 = vunpack.c.h.b16 %v2170
    %v2888 = vunpack.c.l.b16 %v2171
    %v2889 = vunpack.c.h.b16 %v2171
    %v2890 = vunpack.c.l.b16 %v2172
    %v2891 = vunpack.c.h.b16 %v2172
    %v2892 = vunpack.c.l.b16 %v2173
    %v2893 = vunpack.c.h.b16 %v2173
    %v2894 = vunpack.c.l.b16 %v2174
    %v2895 = vunpack.c.h.b16 %v2174
    %v2896 = vunpack.c.l.b16 %v2175
    %v2897 = vunpack.c.h.b16 %v2175
    %v2898 = vunpack.c.l.b16 %v2176
    %v2899 = vunpack.c.h.b16 %v2176
    %v2900 = vunpack.c.l.b16 %v2177
    %v2901 = vunpack.c.h.b16 %v2177
    %v2902 = vunpack.c.l.b16 %v2178
    %v2903 = vunpack.c.h.b16 %v2178
    %v2904 = vunpack.c.l.b16 %v2179
    %v2905 = vunpack.c.h.b16 %v2179
    %v2906 = vunpack.c.l.b16 %v2180
    %v2907 = vunpack.c.h.b16 %v2180
    %v2908 = vunpack.c.l.b16 %v2181
    %v2909 = vunpack.c.h.b16 %v2181
    %v2910 = vunpack.c.l.b16 %v2182
    %v2911 = vunpack.c.h.b16 %v2182
    %v2912 = vunpack.c.l.b16 %v2183
    %v2913 = vunpack.c.h.b16 %v2183
    %v2914 = vunpack.c.l.b16 %v2184
    %v2915 = vunpack.c.h.b16 %v2184
    %v2916 = vunpack.c.l.b16 %v2185
    %v2917 = vunpack.c.h.b16 %v2185
    %v2918 = vunpack.c.l.b16 %v2186
    %v2919 = vunpack.c.h.b16 %v2186
    %v2920 = vunpack.c.l.b16 %v2187
    %v2921 = vunpack.c.h.b16 %v2187
    %v2922 = vunpack.c.l.b16 %v2188
    %v2923 = vunpack.c.h.b16 %v2188
    %v2924 = vunpack.c.l.b16 %v2189
    %v2925 = vunpack.c.h.b16 %v2189
    %v2926 = vunpack.c.l.b16 %v2190
    %v2927 = vunpack.c.h.b16 %v2190
    %v2928 = vunpack.c.l.b16 %v2191
    %v2929 = vunpack.c.h.b16 %v2191
    %v2930 = vunpack.c.l.b16 %v2192
    %v2931 = vunpack.c.h.b16 %v2192
    %v2932 = vunpack.c.l.b16 %v2193
    %v2933 = vunpack.c.h.b16 %v2193
    %v2934 = vunpack.c.l.b16 %v2194
    %v2935 = vunpack.c.h.b16 %v2194
    %v2936 = vunpack.c.l.b16 %v2195
    %v2937 = vunpack.c.h.b16 %v2195
    %v2938 = vunpack.c.l.b16 %v2196
    %v2939 = vunpack.c.h.b16 %v2196
    %v2940 = vunpack.c.l.b16 %v2197
    %v2941 = vunpack.c.h.b16 %v2197
    %v2942 = vunpack.c.l.b16 %v2198
    %v2943 = vunpack.c.h.b16 %v2198
    %v2944 = vunpack.c.l.b16 %v2199
    %v2945 = vunpack.c.h.b16 %v2199
    %v2946 = vunpack.c.l.b16 %v2200
    %v2947 = vunpack.c.h.b16 %v2200
    %v2948 = vunpack.c.l.b16 %v2201
    %v2949 = vunpack.c.h.b16 %v2201
    %v2950 = vunpack.c.l.b16 %v2202
    %v2951 = vunpack.c.h.b16 %v2202
    %v2952 = vunpack.c.l.b16 %v2203
    %v2953 = vunpack.c.h.b16 %v2203
    %v2954 = vunpack.c.l.b16 %v2204
    %v2955 = vunpack.c.h.b16 %v2204
    %v2956 = vunpack.c.l.b16 %v2205
    %v2957 = vunpack.c.h.b16 %v2205
    %v2958 = vunpack.c.l.b16 %v2206
    %v2959 = vunpack.c.h.b16 %v2206
    %v2960 = vunpack.c.l.b16 %v2207
    %v2961 = vunpack.c.h.b16 %v2207
    %v2962 = vunpack.c.l.b16 %v2208
    %v2963 = vunpack.c.h.b16 %v2208
    %v2964 = vunpack.c.l.b16 %v2209
    %v2965 = vunpack.c.h.b16 %v2209
    %v2966 = vunpack.c.l.b16 %v2210
    %v2967 = vunpack.c.h.b16 %v2210
    %v2968 = vunpack.c.l.b16 %v2211
    %v2969 = vunpack.c.h.b16 %v2211
    %v2970 = vunpack.c.l.b16 %v2212
    %v2971 = vunpack.c.h.b16 %v2212
    %v2972 = vunpack.c.l.b16 %v2213
    %v2973 = vunpack.c.h.b16 %v2213
    %v2974 = vunpack.c.l.b16 %v2214
    %v2975 = vunpack.c.h.b16 %v2214
    %v2976 = vunpack.c.l.b16 %v2215
    %v2977 = vunpack.c.h.b16 %v2215
    %v2978 = vunpack.c.l.b16 %v2216
    %v2979 = vunpack.c.h.b16 %v2216
    %v2980 = vunpack.c.l.b16 %v2217
    %v2981 = vunpack.c.h.b16 %v2217
    %v2982 = vunpack.c.l.b16 %v2218
    %v2983 = vunpack.c.h.b16 %v2218
    %v2984 = vunpack.c.l.b16 %v2219
    %v2985 = vunpack.c.h.b16 %v2219
    %v2986 = vunpack.c.l.b16 %v2220
    %v2987 = vunpack.c.h.b16 %v2220
    %v2988 = vunpack.c.l.b16 %v2221
    %v2989 = vunpack.c.h.b16 %v2221
    %v2990 = vpack.c.b16 %v2486, %v2478
    %v2991 = vpack.c.b16 %v2487, %v2479
    %v2992 = vpack.c.b16 %v2488, %v2480
    %v2993 = vpack.c.b16 %v2489, %v2481
    %v2994 = vpack.c.b16 %v2490, %v2482
    %v2995 = vpack.c.b16 %v2491, %v2483
    %v2996 = vpack.c.b16 %v2492, %v2484
    %v2997 = vpack.c.b16 %v2493, %v2485
    %v2998 = vpack.c.b16 %v2502, %v2494
    %v2999 = vpack.c.b16 %v2503, %v2495
    %v3000 = vpack.c.b16 %v2504, %v2496
    %v3001 = vpack.c.b16 %v2505, %v2497
    %v3002 = vpack.c.b16 %v2506, %v2498
    %v3003 = vpack.c.b16 %v2507, %v2499
    %v3004 = vpack.c.b16 %v2508, %v2500
    %v3005 = vpack.c.b16 %v2509, %v2501
    %v3006 = vpack.c.b16 %v2518, %v2510
    %v3007 = vpack.c.b16 %v2519, %v2511
    %v3008 = vpack.c.b16 %v2520, %v2512
    %v3009 = vpack.c.b16 %v2521, %v2513
    %v3010 = vpack.c.b16 %v2522, %v2514
    %v3011 = vpack.c.b16 %v2523, %v2515
    %v3012 = vpack.c.b16 %v2524, %v2516
    %v3013 = vpack.c.b16 %v2525, %v2517
    %v3014 = vpack.c.b16 %v2534, %v2526
    %v3015 = vpack.c.b16 %v2535, %v2527
    %v3016 = vpack.c.b16 %v2536, %v2528
    %v3017 = vpack.c.b16 %v2537, %v2529
    %v3018 = vpack.c.b16 %v2538, %v2530
    %v3019 = vpack.c.b16 %v2539, %v2531
    %v3020 = vpack.c.b16 %v2540, %v2532
    %v3021 = vpack.c.b16 %v2541, %v2533
    %v3022 = vpack.c.b16 %v2550, %v2542
    %v3023 = vpack.c.b16 %v2551, %v2543
    %v3024 = vpack.c.b16 %v2552, %v2544
    %v3025 = vpack.c.b16 %v2553, %v2545
    %v3026 = vpack.c.b16 %v2554, %v2546
    %v3027 = vpack.c.b16 %v2555, %v2547
    %v3028 = vpack.c.b16 %v2556, %v2548
    %v3029 = vpack.c.b16 %v2557, %v2549
    %v3030 = vpack.c.b16 %v2566, %v2558
    %v3031 = vpack.c.b16 %v2567, %v2559
    %v3032 = vpack.c.b16 %v2568, %v2560
    %v3033 = vpack.c.b16 %v2569, %v2561
    %v3034 = vpack.c.b16 %v2570, %v2562
    %v3035 = vpack.c.b16 %v2571, %v2563
    %v3036 = vpack.c.b16 %v2572, %v2564
    %v3037 = vpack.c.b16 %v2573, %v2565
    %v3038 = vpack.c.b16 %v2582, %v2574
    %v3039 = vpack.c.b16 %v2583, %v2575
    %v3040 = vpack.c.b16 %v2584, %v2576
    %v3041 = vpack.c.b16 %v2585, %v2577
    %v3042 = vpack.c.b16 %v2586, %v2578
    %v3043 = vpack.c.b16 %v2587, %v2579
    %v3044 = vpack.c.b16 %v2588, %v2580
    %v3045 = vpack.c.b16 %v2589, %v2581
    %v3046 = vpack.c.b16 %v2598, %v2590
    %v3047 = vpack.c.b16 %v2599, %v2591
    %v3048 = vpack.c.b16 %v2600, %v2592
    %v3049 = vpack.c.b16 %v2601, %v2593
    %v3050 = vpack.c.b16 %v2602, %v2594
    %v3051 = vpack.c.b16 %v2603, %v2595
    %v3052 = vpack.c.b16 %v2604, %v2596
    %v3053 = vpack.c.b16 %v2605, %v2597
    %v3054 = vpack.c.b16 %v2614, %v2606
    %v3055 = vpack.c.b16 %v2615, %v2607
    %v3056 = vpack.c.b16 %v2616, %v2608
    %v3057 = vpack.c.b16 %v2617, %v2609
    %v3058 = vpack.c.b16 %v2618, %v2610
    %v3059 = vpack.c.b16 %v2619, %v2611
    %v3060 = vpack.c.b16 %v2620, %v2612
    %v3061 = vpack.c.b16 %v2621, %v2613
    %v3062 = vpack.c.b16 %v2630, %v2622
    %v3063 = vpack.c.b16 %v2631, %v2623
    %v3064 = vpack.c.b16 %v2632, %v2624
    %v3065 = vpack.c.b16 %v2633, %v2625
    %v3066 = vpack.c.b16 %v2634, %v2626
    %v3067 = vpack.c.b16 %v2635, %v2627
    %v3068 = vpack.c.b16 %v2636, %v2628
    %v3069 = vpack.c.b16 %v2637, %v2629
    %v3070 = vpack.c.b16 %v2646, %v2638
    %v3071 = vpack.c.b16 %v2647, %v2639
    %v3072 = vpack.c.b16 %v2648, %v2640
    %v3073 = vpack.c.b16 %v2649, %v2641
    %v3074 = vpack.c.b16 %v2650, %v2642
    %v3075 = vpack.c.b16 %v2651, %v2643
    %v3076 = vpack.c.b16 %v2652, %v2644
    %v3077 = vpack.c.b16 %v2653, %v2645
    %v3078 = vpack.c.b16 %v2662, %v2654
    %v3079 = vpack.c.b16 %v2663, %v2655
    %v3080 = vpack.c.b16 %v2664, %v2656
    %v3081 = vpack.c.b16 %v2665, %v2657
    %v3082 = vpack.c.b16 %v2666, %v2658
    %v3083 = vpack.c.b16 %v2667, %v2659
    %v3084 = vpack.c.b16 %v2668, %v2660
    %v3085 = vpack.c.b16 %v2669, %v2661
    %v3086 = vpack.c.b16 %v2678, %v2670
    %v3087 = vpack.c.b16 %v2679, %v2671
    %v3088 = vpack.c.b16 %v2680, %v2672
    %v3089 = vpack.c.b16 %v2681, %v2673
    %v3090 = vpack.c.b16 %v2682, %v2674
    %v3091 = vpack.c.b16 %v2683, %v2675
    %v3092 = vpack.c.b16 %v2684, %v2676
    %v3093 = vpack.c.b16 %v2685, %v2677
    %v3094 = vpack.c.b16 %v2694, %v2686
    %v3095 = vpack.c.b16 %v2695, %v2687
    %v3096 = vpack.c.b16 %v2696, %v2688
    %v3097 = vpack.c.b16 %v2697, %v2689
    %v3098 = vpack.c.b16 %v2698, %v2690
    %v3099 = vpack.c.b16 %v2699, %v2691
    %v3100 = vpack.c.b16 %v2700, %v2692
    %v3101 = vpack.c.b16 %v2701, %v2693
    %v3102 = vpack.c.b16 %v2710, %v2702
    %v3103 = vpack.c.b16 %v2711, %v2703
    %v3104 = vpack.c.b16 %v2712, %v2704
    %v3105 = vpack.c.b16 %v2713, %v2705
    %v3106 = vpack.c.b16 %v2714, %v2706
    %v3107 = vpack.c.b16 %v2715, %v2707
    %v3108 = vpack.c.b16 %v2716, %v2708
    %v3109 = vpack.c.b16 %v2717, %v2709
    %v3110 = vpack.c.b16 %v2726, %v2718
    %v3111 = vpack.c.b16 %v2727, %v2719
    %v3112 = vpack.c.b16 %v2728, %v2720
    %v3113 = vpack.c.b16 %v2729, %v2721
    %v3114 = vpack.c.b16 %v2730, %v2722
    %v3115 = vpack.c.b16 %v2731, %v2723
    %v3116 = vpack.c.b16 %v2732, %v2724
    %v3117 = vpack.c.b16 %v2733, %v2725
    %v3118 = vpack.c.b16 %v2742, %v2734
    %v3119 = vpack.c.b16 %v2743, %v2735
    %v3120 = vpack.c.b16 %v2744, %v2736
    %v3121 = vpack.c.b16 %v2745, %v2737
    %v3122 = vpack.c.b16 %v2746, %v2738
    %v3123 = vpack.c.b16 %v2747, %v2739
    %v3124 = vpack.c.b16 %v2748, %v2740
    %v3125 = vpack.c.b16 %v2749, %v2741
    %v3126 = vpack.c.b16 %v2758, %v2750
    %v3127 = vpack.c.b16 %v2759, %v2751
    %v3128 = vpack.c.b16 %v2760, %v2752
    %v3129 = vpack.c.b16 %v2761, %v2753
    %v3130 = vpack.c.b16 %v2762, %v2754
    %v3131 = vpack.c.b16 %v2763, %v2755
    %v3132 = vpack.c.b16 %v2764, %v2756
    %v3133 = vpack.c.b16 %v2765, %v2757
    %v3134 = vpack.c.b16 %v2774, %v2766
    %v3135 = vpack.c.b16 %v2775, %v2767
    %v3136 = vpack.c.b16 %v2776, %v2768
    %v3137 = vpack.c.b16 %v2777, %v2769
    %v3138 = vpack.c.b16 %v2778, %v2770
    %v3139 = vpack.c.b16 %v2779, %v2771
    %v3140 = vpack.c.b16 %v2780, %v2772
    %v3141 = vpack.c.b16 %v2781, %v2773
    %v3142 = vpack.c.b16 %v2790, %v2782
    %v3143 = vpack.c.b16 %v2791, %v2783
    %v3144 = vpack.c.b16 %v2792, %v2784
    %v3145 = vpack.c.b16 %v2793, %v2785
    %v3146 = vpack.c.b16 %v2794, %v2786
    %v3147 = vpack.c.b16 %v2795, %v2787
    %v3148 = vpack.c.b16 %v2796, %v2788
    %v3149 = vpack.c.b16 %v2797, %v2789
    %v3150 = vpack.c.b16 %v2806, %v2798
    %v3151 = vpack.c.b16 %v2807, %v2799
    %v3152 = vpack.c.b16 %v2808, %v2800
    %v3153 = vpack.c.b16 %v2809, %v2801
    %v3154 = vpack.c.b16 %v2810, %v2802
    %v3155 = vpack.c.b16 %v2811, %v2803
    %v3156 = vpack.c.b16 %v2812, %v2804
    %v3157 = vpack.c.b16 %v2813, %v2805
    %v3158 = vpack.c.b16 %v2822, %v2814
    %v3159 = vpack.c.b16 %v2823, %v2815
    %v3160 = vpack.c.b16 %v2824, %v2816
    %v3161 = vpack.c.b16 %v2825, %v2817
    %v3162 = vpack.c.b16 %v2826, %v2818
    %v3163 = vpack.c.b16 %v2827, %v2819
    %v3164 = vpack.c.b16 %v2828, %v2820
    %v3165 = vpack.c.b16 %v2829, %v2821
    %v3166 = vpack.c.b16 %v2838, %v2830
    %v3167 = vpack.c.b16 %v2839, %v2831
    %v3168 = vpack.c.b16 %v2840, %v2832
    %v3169 = vpack.c.b16 %v2841, %v2833
    %v3170 = vpack.c.b16 %v2842, %v2834
    %v3171 = vpack.c.b16 %v2843, %v2835
    %v3172 = vpack.c.b16 %v2844, %v2836
    %v3173 = vpack.c.b16 %v2845, %v2837
    %v3174 = vpack.c.b16 %v2854, %v2846
    %v3175 = vpack.c.b16 %v2855, %v2847
    %v3176 = vpack.c.b16 %v2856, %v2848
    %v3177 = vpack.c.b16 %v2857, %v2849
    %v3178 = vpack.c.b16 %v2858, %v2850
    %v3179 = vpack.c.b16 %v2859, %v2851
    %v3180 = vpack.c.b16 %v2860, %v2852
    %v3181 = vpack.c.b16 %v2861, %v2853
    %v3182 = vpack.c.b16 %v2870, %v2862
    %v3183 = vpack.c.b16 %v2871, %v2863
    %v3184 = vpack.c.b16 %v2872, %v2864
    %v3185 = vpack.c.b16 %v2873, %v2865
    %v3186 = vpack.c.b16 %v2874, %v2866
    %v3187 = vpack.c.b16 %v2875, %v2867
    %v3188 = vpack.c.b16 %v2876, %v2868
    %v3189 = vpack.c.b16 %v2877, %v2869
    %v3190 = vpack.c.b16 %v2886, %v2878
    %v3191 = vpack.c.b16 %v2887, %v2879
    %v3192 = vpack.c.b16 %v2888, %v2880
    %v3193 = vpack.c.b16 %v2889, %v2881
    %v3194 = vpack.c.b16 %v2890, %v2882
    %v3195 = vpack.c.b16 %v2891, %v2883
    %v3196 = vpack.c.b16 %v2892, %v2884
    %v3197 = vpack.c.b16 %v2893, %v2885
    %v3198 = vpack.c.b16 %v2902, %v2894
    %v3199 = vpack.c.b16 %v2903, %v2895
    %v3200 = vpack.c.b16 %v2904, %v2896
    %v3201 = vpack.c.b16 %v2905, %v2897
    %v3202 = vpack.c.b16 %v2906, %v2898
    %v3203 = vpack.c.b16 %v2907, %v2899
    %v3204 = vpack.c.b16 %v2908, %v2900
    %v3205 = vpack.c.b16 %v2909, %v2901
    %v3206 = vpack.c.b16 %v2918, %v2910
    %v3207 = vpack.c.b16 %v2919, %v2911
    %v3208 = vpack.c.b16 %v2920, %v2912
    %v3209 = vpack.c.b16 %v2921, %v2913
    %v3210 = vpack.c.b16 %v2922, %v2914
    %v3211 = vpack.c.b16 %v2923, %v2915
    %v3212 = vpack.c.b16 %v2924, %v2916
    %v3213 = vpack.c.b16 %v2925, %v2917
    %v3214 = vpack.c.b16 %v2934, %v2926
    %v3215 = vpack.c.b16 %v2935, %v2927
    %v3216 = vpack.c.b16 %v2936, %v2928
    %v3217 = vpack.c.b16 %v2937, %v2929
    %v3218 = vpack.c.b16 %v2938, %v2930
    %v3219 = vpack.c.b16 %v2939, %v2931
    %v3220 = vpack.c.b16 %v2940, %v2932
    %v3221 = vpack.c.b16 %v2941, %v2933
    %v3222 = vpack.c.b16 %v2950, %v2942
    %v3223 = vpack.c.b16 %v2951, %v2943
    %v3224 = vpack.c.b16 %v2952, %v2944
    %v3225 = vpack.c.b16 %v2953, %v2945
    %v3226 = vpack.c.b16 %v2954, %v2946
    %v3227 = vpack.c.b16 %v2955, %v2947
    %v3228 = vpack.c.b16 %v2956, %v2948
    %v3229 = vpack.c.b16 %v2957, %v2949
    %v3230 = vpack.c.b16 %v2966, %v2958
    %v3231 = vpack.c.b16 %v2967, %v2959
    %v3232 = vpack.c.b16 %v2968, %v2960
    %v3233 = vpack.c.b16 %v2969, %v2961
    %v3234 = vpack.c.b16 %v2970, %v2962
    %v3235 = vpack.c.b16 %v2971, %v2963
    %v3236 = vpack.c.b16 %v2972, %v2964
    %v3237 = vpack.c.b16 %v2973, %v2965
    %v3238 = vpack.c.b16 %v2982, %v2974
    %v3239 = vpack.c.b16 %v2983, %v2975
    %v3240 = vpack.c.b16 %v2984, %v2976
    %v3241 = vpack.c.b16 %v2985, %v2977
    %v3242 = vpack.c.b16 %v2986, %v2978
    %v3243 = vpack.c.b16 %v2987, %v2979
    %v3244 = vpack.c.b16 %v2988, %v2980
    %v3245 = vpack.c.b16 %v2989, %v2981
    %3502 = vmatprep.subr.bf16.mxu0 %v2991
    %3503 = vmatpush1.bf16.msra.mxu0 %v2990
    %3504 = vmatprep.subr.bf16.mxu0 %v2999
    %3505 = vmatpush1.bf16.msra.mxu0 %v2998
    %3506 = vmatprep.subr.bf16.mxu0 %v3007
    %3507 = vmatpush1.bf16.msra.mxu0 %v3006
    %3508 = vmatprep.subr.bf16.mxu0 %v3015
    %3509 = vmatpush1.bf16.msra.mxu0 %v3014
    %3510 = vmatprep.subr.bf16.mxu0 %v3023
    %3511 = vmatpush1.bf16.msra.mxu0 %v3022
    %3512 = vmatprep.subr.bf16.mxu0 %v3031
    %3513 = vmatpush1.bf16.msra.mxu0 %v3030
    %3514 = vmatprep.subr.bf16.mxu0 %v3039
    %3515 = vmatpush1.bf16.msra.mxu0 %v3038
    %3516 = vmatprep.subr.bf16.mxu0 %v3047
    %3517 = vmatpush1.bf16.msra.mxu0 %v3046
    %3518 = vmatprep.subr.bf16.mxu0 %v3055
    %3519 = vmatpush1.bf16.msra.mxu0 %v3054
    %3520 = vmatprep.subr.bf16.mxu0 %v3063
    %3521 = vmatpush1.bf16.msra.mxu0 %v3062
    %3522 = vmatprep.subr.bf16.mxu0 %v3071
    %3523 = vmatpush1.bf16.msra.mxu0 %v3070
    %3524 = vmatprep.subr.bf16.mxu0 %v3079
    %3525 = vmatpush1.bf16.msra.mxu0 %v3078
    %3526 = vmatprep.subr.bf16.mxu0 %v3087
    %3527 = vmatpush1.bf16.msra.mxu0 %v3086
    %3528 = vmatprep.subr.bf16.mxu0 %v3095
    %3529 = vmatpush1.bf16.msra.mxu0 %v3094
    %3530 = vmatprep.subr.bf16.mxu0 %v3103
    %3531 = vmatpush1.bf16.msra.mxu0 %v3102
    %3532 = vmatprep.subr.bf16.mxu0 %v3111
    %3533 = vmatpush1.bf16.msra.mxu0 %v3110
    %3534 = vmatprep.mubr.bf16.mxu0 %v1950
    %3535 = vmatmul.mubr.bf16.gmra.mrb[0].mxu0 %v1949
    %v3536 = vpop.f32.mrb[0].mxu0
    %v3537 = vadd.f32 0.0, %v3536
    %v3538 = vpop.f32.mrb[0].mxu0
    %v3539 = vadd.f32 0.0, %v3538
    %v3540 = vpop.f32.mrb[0].mxu0
    %v3541 = vadd.f32 0.0, %v3540
    %v3542 = vpop.f32.mrb[0].mxu0
    %v3543 = vadd.f32 0.0, %v3542
    %3544 = vmatprep.mubr.bf16.mxu0 %v1954
    %3545 = vmatmul.mubr.bf16.gmra.mrb[0].mxu0 %v1953
    %v3546 = vpop.f32.mrb[0].mxu0
    %v3547 = vadd.f32 0.0, %v3546
    %v3548 = vpop.f32.mrb[0].mxu0
    %v3549 = vadd.f32 0.0, %v3548
    %v3550 = vpop.f32.mrb[0].mxu0
    %v3551 = vadd.f32 0.0, %v3550
    %v3552 = vpop.f32.mrb[0].mxu0
    %v3553 = vadd.f32 0.0, %v3552
    %3554 = vmatprep.mubr.bf16.mxu0 %v1958
    %3555 = vmatmul.mubr.bf16.gmra.mrb[0].mxu0 %v1957
    %v3556 = vpop.f32.mrb[0].mxu0
    %v3557 = vadd.f32 0.0, %v3556
    %v3558 = vpop.f32.mrb[0].mxu0
    %v3559 = vadd.f32 0.0, %v3558
    %v3560 = vpop.f32.mrb[0].mxu0
    %v3561 = vadd.f32 0.0, %v3560
    %v3562 = vpop.f32.mrb[0].mxu0
    %v3563 = vadd.f32 0.0, %v3562
    %3564 = vmatprep.mubr.bf16.mxu0 %v1962
    %3565 = vmatmul.mubr.bf16.gmra.mrb[0].mxu0 %v1961
    %v3566 = vpop.f32.mrb[0].mxu0
    %v3567 = vadd.f32 0.0, %v3566
    %v3568 = vpop.f32.mrb[0].mxu0
    %v3569 = vadd.f32 0.0, %v3568
    %v3570 = vpop.f32.mrb[0].mxu0
    %v3571 = vpop.f32.mrb[0].mxu0
    %3572 = vdwg.mxu0
    %3573 = vmatprep.subr.bf16.mxu0 %v3119
    %3574 = vmatpush1.bf16.msra.mxu0 %v3118
    %3575 = vmatprep.subr.bf16.mxu0 %v3127
    %3576 = vmatpush1.bf16.msra.mxu0 %v3126
    %3577 = vmatprep.subr.bf16.mxu0 %v3135
    %3578 = vmatpush1.bf16.msra.mxu0 %v3134
    %3579 = vmatprep.subr.bf16.mxu0 %v3143
    %3580 = vmatpush1.bf16.msra.mxu0 %v3142
    %3581 = vmatprep.subr.bf16.mxu0 %v3151
    %3582 = vmatpush1.bf16.msra.mxu0 %v3150
    %3583 = vmatprep.subr.bf16.mxu0 %v3159
    %3584 = vmatpush1.bf16.msra.mxu0 %v3158
    %3585 = vmatprep.subr.bf16.mxu0 %v3167
    %3586 = vmatpush1.bf16.msra.mxu0 %v3166
    %3587 = vmatprep.subr.bf16.mxu0 %v3175
    %3588 = vmatpush1.bf16.msra.mxu0 %v3174
    %3589 = vmatprep.subr.bf16.mxu0 %v3183
    %3590 = vmatpush1.bf16.msra.mxu0 %v3182
    %3591 = vmatprep.subr.bf16.mxu0 %v3191
    %3592 = vmatpush1.bf16.msra.mxu0 %v3190
    %3593 = vmatprep.subr.bf16.mxu0 %v3199
    %3594 = vmatpush1.bf16.msra.mxu0 %v3198
    %3595 = vmatprep.subr.bf16.mxu0 %v3207
    %3596 = vmatpush1.bf16.msra.mxu0 %v3206
    %3597 = vmatprep.subr.bf16.mxu0 %v3215
    %3598 = vmatpush1.bf16.msra.mxu0 %v3214
    %3599 = vmatprep.subr.bf16.mxu0 %v3223
    %3600 = vmatpush1.bf16.msra.mxu0 %v3222
    %3601 = vmatprep.subr.bf16.mxu0 %v3231
    %3602 = vmatpush1.bf16.msra.mxu0 %v3230
    %3603 = vmatprep.subr.bf16.mxu0 %v3239
    %3604 = vmatpush1.bf16.msra.mxu0 %v3238
    %3605 = vmatprep.mubr.bf16.mxu0 %v1952
    %3606 = vmatmul.mubr.bf16.gmra.mrb[0].mxu0 %v1951
    %v3607 = vpop.f32.mrb[0].mxu0
    %v3608 = vadd.f32 %v3537, %v3607
    %v3609 = vpop.f32.mrb[0].mxu0
    %v3610 = vadd.f32 %v3539, %v3609
    %v3611 = vpop.f32.mrb[0].mxu0
    %v3612 = vadd.f32 %v3541, %v3611
    %v3613 = vpop.f32.mrb[0].mxu0
    %v3614 = vadd.f32 %v3543, %v3613
    %3615 = vmatprep.mubr.bf16.mxu0 %v1956
    %3616 = vmatmul.mubr.bf16.gmra.mrb[0].mxu0 %v1955
    %v3617 = vpop.f32.mrb[0].mxu0
    %v3618 = vadd.f32 %v3547, %v3617
    %v3619 = vpop.f32.mrb[0].mxu0
    %v3620 = vadd.f32 %v3549, %v3619
    %v3621 = vpop.f32.mrb[0].mxu0
    %v3622 = vadd.f32 %v3551, %v3621
    %v3623 = vpop.f32.mrb[0].mxu0
    %v3624 = vadd.f32 %v3553, %v3623
    %3625 = vmatprep.mubr.bf16.mxu0 %v1960
    %3626 = vmatmul.mubr.bf16.gmra.mrb[0].mxu0 %v1959
    %v3627 = vpop.f32.mrb[0].mxu0
    %v3628 = vadd.f32 %v3557, %v3627
    %v3629 = vpop.f32.mrb[0].mxu0
    %v3630 = vadd.f32 %v3559, %v3629
    %v3631 = vpop.f32.mrb[0].mxu0
    %v3632 = vadd.f32 %v3561, %v3631
    %v3633 = vpop.f32.mrb[0].mxu0
    %v3634 = vadd.f32 %v3563, %v3633
    %3635 = vmatprep.mubr.bf16.mxu0 %v1964
    %3636 = vmatmul.mubr.bf16.gmra.mrb[0].mxu0 %v1963
    %v3637 = vpop.f32.mrb[0].mxu0
    %v3638 = vadd.f32 %v3567, %v3637
    %v3639 = vpop.f32.mrb[0].mxu0
    %v3640 = vadd.f32 %v3569, %v3639
    %v3641 = vpop.f32.mrb[0].mxu0
    %v3642 = vpop.f32.mrb[0].mxu0
    %3643 = vdwg.mxu0
    %3644 = vmatprep.subr.bf16.mxu0 %v2993
    %3645 = vmatpush1.bf16.msra.mxu0 %v2992
    %3646 = vmatprep.subr.bf16.mxu0 %v3001
    %3647 = vmatpush1.bf16.msra.mxu0 %v3000
    %3648 = vmatprep.subr.bf16.mxu0 %v3009
    %3649 = vmatpush1.bf16.msra.mxu0 %v3008
    %3650 = vmatprep.subr.bf16.mxu0 %v3017
    %3651 = vmatpush1.bf16.msra.mxu0 %v3016
    %3652 = vmatprep.subr.bf16.mxu0 %v3025
    %3653 = vmatpush1.bf16.msra.mxu0 %v3024
    %3654 = vmatprep.subr.bf16.mxu0 %v3033
    %3655 = vmatpush1.bf16.msra.mxu0 %v3032
    %3656 = vmatprep.subr.bf16.mxu0 %v3041
    %3657 = vmatpush1.bf16.msra.mxu0 %v3040
    %3658 = vmatprep.subr.bf16.mxu0 %v3049
    %3659 = vmatpush1.bf16.msra.mxu0 %v3048
    %3660 = vmatprep.subr.bf16.mxu0 %v3057
    %3661 = vmatpush1.bf16.msra.mxu0 %v3056
    %3662 = vmatprep.subr.bf16.mxu0 %v3065
    %3663 = vmatpush1.bf16.msra.mxu0 %v3064
    %3664 = vmatprep.subr.bf16.mxu0 %v3073
    %3665 = vmatpush1.bf16.msra.mxu0 %v3072
    %3666 = vmatprep.subr.bf16.mxu0 %v3081
    %3667 = vmatpush1.bf16.msra.mxu0 %v3080
    %3668 = vmatprep.subr.bf16.mxu0 %v3089
    %3669 = vmatpush1.bf16.msra.mxu0 %v3088
    %3670 = vmatprep.subr.bf16.mxu0 %v3097
    %3671 = vmatpush1.bf16.msra.mxu0 %v3096
    %3672 = vmatprep.subr.bf16.mxu0 %v3105
    %3673 = vmatpush1.bf16.msra.mxu0 %v3104
    %3674 = vmatprep.subr.bf16.mxu0 %v3113
    %3675 = vmatpush1.bf16.msra.mxu0 %v3112
    %3676 = vmatprep.mubr.bf16.mxu0 %v1950
    %3677 = vmatmul.mubr.bf16.gmra.mrb[0].mxu0 %v1949
    %v3678 = vpop.f32.mrb[0].mxu0
    %v3679 = vadd.f32 0.0, %v3678
    %v3680 = vpop.f32.mrb[0].mxu0
    %v3681 = vadd.f32 0.0, %v3680
    %v3682 = vpop.f32.mrb[0].mxu0
    %v3683 = vadd.f32 0.0, %v3682
    %v3684 = vpop.f32.mrb[0].mxu0
    %v3685 = vadd.f32 0.0, %v3684
    %3686 = vmatprep.mubr.bf16.mxu0 %v1954
    %3687 = vmatmul.mubr.bf16.gmra.mrb[0].mxu0 %v1953
    %v3688 = vpop.f32.mrb[0].mxu0
    %v3689 = vadd.f32 0.0, %v3688
    %v3690 = vpop.f32.mrb[0].mxu0
    %v3691 = vadd.f32 0.0, %v3690
    %v3692 = vpop.f32.mrb[0].mxu0
    %v3693 = vadd.f32 0.0, %v3692
    %v3694 = vpop.f32.mrb[0].mxu0
    %v3695 = vadd.f32 0.0, %v3694
    %3696 = vmatprep.mubr.bf16.mxu0 %v1958
    %3697 = vmatmul.mubr.bf16.gmra.mrb[0].mxu0 %v1957
    %v3698 = vpop.f32.mrb[0].mxu0
    %v3699 = vadd.f32 0.0, %v3698
    %v3700 = vpop.f32.mrb[0].mxu0
    %v3701 = vadd.f32 0.0, %v3700
    %v3702 = vpop.f32.mrb[0].mxu0
    %v3703 = vadd.f32 0.0, %v3702
    %v3704 = vpop.f32.mrb[0].mxu0
    %v3705 = vadd.f32 0.0, %v3704
    %3706 = vmatprep.mubr.bf16.mxu0 %v1962
    %3707 = vmatmul.mubr.bf16.gmra.mrb[0].mxu0 %v1961
    %v3708 = vpop.f32.mrb[0].mxu0
    %v3709 = vadd.f32 0.0, %v3708
    %v3710 = vpop.f32.mrb[0].mxu0
    %v3711 = vadd.f32 0.0, %v3710
    %v3712 = vpop.f32.mrb[0].mxu0
    %v3713 = vpop.f32.mrb[0].mxu0
    %3714 = vdwg.mxu0
    %3715 = vmatprep.subr.bf16.mxu0 %v3121
    %3716 = vmatpush1.bf16.msra.mxu0 %v3120
    %3717 = vmatprep.subr.bf16.mxu0 %v3129
    %3718 = vmatpush1.bf16.msra.mxu0 %v3128
    %3719 = vmatprep.subr.bf16.mxu0 %v3137
    %3720 = vmatpush1.bf16.msra.mxu0 %v3136
    %3721 = vmatprep.subr.bf16.mxu0 %v3145
    %3722 = vmatpush1.bf16.msra.mxu0 %v3144
    %3723 = vmatprep.subr.bf16.mxu0 %v3153
    %3724 = vmatpush1.bf16.msra.mxu0 %v3152
    %3725 = vmatprep.subr.bf16.mxu0 %v3161
    %3726 = vmatpush1.bf16.msra.mxu0 %v3160
    %3727 = vmatprep.subr.bf16.mxu0 %v3169
    %3728 = vmatpush1.bf16.msra.mxu0 %v3168
    %3729 = vmatprep.subr.bf16.mxu0 %v3177
    %3730 = vmatpush1.bf16.msra.mxu0 %v3176
    %3731 = vmatprep.subr.bf16.mxu0 %v3185
    %3732 = vmatpush1.bf16.msra.mxu0 %v3184
    %3733 = vmatprep.subr.bf16.mxu0 %v3193
    %3734 = vmatpush1.bf16.msra.mxu0 %v3192
    %3735 = vmatprep.subr.bf16.mxu0 %v3201
    %3736 = vmatpush1.bf16.msra.mxu0 %v3200
    %3737 = vmatprep.subr.bf16.mxu0 %v3209
    %3738 = vmatpush1.bf16.msra.mxu0 %v3208
    %3739 = vmatprep.subr.bf16.mxu0 %v3217
    %3740 = vmatpush1.bf16.msra.mxu0 %v3216
    %3741 = vmatprep.subr.bf16.mxu0 %v3225
    %3742 = vmatpush1.bf16.msra.mxu0 %v3224
    %3743 = vmatprep.subr.bf16.mxu0 %v3233
    %3744 = vmatpush1.bf16.msra.mxu0 %v3232
    %3745 = vmatprep.subr.bf16.mxu0 %v3241
    %3746 = vmatpush1.bf16.msra.mxu0 %v3240
    %3747 = vmatprep.mubr.bf16.mxu0 %v1952
    %3748 = vmatmul.mubr.bf16.gmra.mrb[0].mxu0 %v1951
    %v3749 = vpop.f32.mrb[0].mxu0
    %v3750 = vadd.f32 %v3679, %v3749
    %v3751 = vpop.f32.mrb[0].mxu0
    %v3752 = vadd.f32 %v3681, %v3751
    %v3753 = vpop.f32.mrb[0].mxu0
    %v3754 = vadd.f32 %v3683, %v3753
    %v3755 = vpop.f32.mrb[0].mxu0
    %v3756 = vadd.f32 %v3685, %v3755
    %3757 = vmatprep.mubr.bf16.mxu0 %v1956
    %3758 = vmatmul.mubr.bf16.gmra.mrb[0].mxu0 %v1955
    %v3759 = vpop.f32.mrb[0].mxu0
    %v3760 = vadd.f32 %v3689, %v3759
    %v3761 = vpop.f32.mrb[0].mxu0
    %v3762 = vadd.f32 %v3691, %v3761
    %v3763 = vpop.f32.mrb[0].mxu0
    %v3764 = vadd.f32 %v3693, %v3763
    %v3765 = vpop.f32.mrb[0].mxu0
    %v3766 = vadd.f32 %v3695, %v3765
    %3767 = vmatprep.mubr.bf16.mxu0 %v1960
    %3768 = vmatmul.mubr.bf16.gmra.mrb[0].mxu0 %v1959
    %v3769 = vpop.f32.mrb[0].mxu0
    %v3770 = vadd.f32 %v3699, %v3769
    %v3771 = vpop.f32.mrb[0].mxu0
    %v3772 = vadd.f32 %v3701, %v3771
    %v3773 = vpop.f32.mrb[0].mxu0
    %v3774 = vadd.f32 %v3703, %v3773
    %v3775 = vpop.f32.mrb[0].mxu0
    %v3776 = vadd.f32 %v3705, %v3775
    %3777 = vmatprep.mubr.bf16.mxu0 %v1964
    %3778 = vmatmul.mubr.bf16.gmra.mrb[0].mxu0 %v1963
    %v3779 = vpop.f32.mrb[0].mxu0
    %v3780 = vadd.f32 %v3709, %v3779
    %v3781 = vpop.f32.mrb[0].mxu0
    %v3782 = vadd.f32 %v3711, %v3781
    %v3783 = vpop.f32.mrb[0].mxu0
    %v3784 = vpop.f32.mrb[0].mxu0
    %3785 = vdwg.mxu0
    %3786 = vmatprep.subr.bf16.mxu0 %v2995
    %3787 = vmatpush1.bf16.msra.mxu0 %v2994
    %3788 = vmatprep.subr.bf16.mxu0 %v3003
    %3789 = vmatpush1.bf16.msra.mxu0 %v3002
    %3790 = vmatprep.subr.bf16.mxu0 %v3011
    %3791 = vmatpush1.bf16.msra.mxu0 %v3010
    %3792 = vmatprep.subr.bf16.mxu0 %v3019
    %3793 = vmatpush1.bf16.msra.mxu0 %v3018
    %3794 = vmatprep.subr.bf16.mxu0 %v3027
    %3795 = vmatpush1.bf16.msra.mxu0 %v3026
    %3796 = vmatprep.subr.bf16.mxu0 %v3035
    %3797 = vmatpush1.bf16.msra.mxu0 %v3034
    %3798 = vmatprep.subr.bf16.mxu0 %v3043
    %3799 = vmatpush1.bf16.msra.mxu0 %v3042
    %3800 = vmatprep.subr.bf16.mxu0 %v3051
    %3801 = vmatpush1.bf16.msra.mxu0 %v3050
    %3802 = vmatprep.subr.bf16.mxu0 %v3059
    %3803 = vmatpush1.bf16.msra.mxu0 %v3058
    %3804 = vmatprep.subr.bf16.mxu0 %v3067
    %3805 = vmatpush1.bf16.msra.mxu0 %v3066
    %3806 = vmatprep.subr.bf16.mxu0 %v3075
    %3807 = vmatpush1.bf16.msra.mxu0 %v3074
    %3808 = vmatprep.subr.bf16.mxu0 %v3083
    %3809 = vmatpush1.bf16.msra.mxu0 %v3082
    %3810 = vmatprep.subr.bf16.mxu0 %v3091
    %3811 = vmatpush1.bf16.msra.mxu0 %v3090
    %3812 = vmatprep.subr.bf16.mxu0 %v3099
    %3813 = vmatpush1.bf16.msra.mxu0 %v3098
    %3814 = vmatprep.subr.bf16.mxu0 %v3107
    %3815 = vmatpush1.bf16.msra.mxu0 %v3106
    %3816 = vmatprep.subr.bf16.mxu0 %v3115
    %3817 = vmatpush1.bf16.msra.mxu0 %v3114
    %3818 = vmatprep.mubr.bf16.mxu0 %v1950
    %3819 = vmatmul.mubr.bf16.gmra.mrb[0].mxu0 %v1949
    %v3820 = vpop.f32.mrb[0].mxu0
    %v3821 = vadd.f32 0.0, %v3820
    %v3822 = vpop.f32.mrb[0].mxu0
    %v3823 = vadd.f32 0.0, %v3822
    %v3824 = vpop.f32.mrb[0].mxu0
    %v3825 = vadd.f32 0.0, %v3824
    %v3826 = vpop.f32.mrb[0].mxu0
    %v3827 = vadd.f32 0.0, %v3826
    %3828 = vmatprep.mubr.bf16.mxu0 %v1954
    %3829 = vmatmul.mubr.bf16.gmra.mrb[0].mxu0 %v1953
    %v3830 = vpop.f32.mrb[0].mxu0
    %v3831 = vadd.f32 0.0, %v3830
    %v3832 = vpop.f32.mrb[0].mxu0
    %v3833 = vadd.f32 0.0, %v3832
    %v3834 = vpop.f32.mrb[0].mxu0
    %v3835 = vadd.f32 0.0, %v3834
    %v3836 = vpop.f32.mrb[0].mxu0
    %v3837 = vadd.f32 0.0, %v3836
    %3838 = vmatprep.mubr.bf16.mxu0 %v1958
    %3839 = vmatmul.mubr.bf16.gmra.mrb[0].mxu0 %v1957
    %v3840 = vpop.f32.mrb[0].mxu0
    %v3841 = vadd.f32 0.0, %v3840
    %v3842 = vpop.f32.mrb[0].mxu0
    %v3843 = vadd.f32 0.0, %v3842
    %v3844 = vpop.f32.mrb[0].mxu0
    %v3845 = vadd.f32 0.0, %v3844
    %v3846 = vpop.f32.mrb[0].mxu0
    %v3847 = vadd.f32 0.0, %v3846
    %3848 = vmatprep.mubr.bf16.mxu0 %v1962
    %3849 = vmatmul.mubr.bf16.gmra.mrb[0].mxu0 %v1961
    %v3850 = vpop.f32.mrb[0].mxu0
    %v3851 = vadd.f32 0.0, %v3850
    %v3852 = vpop.f32.mrb[0].mxu0
    %v3853 = vadd.f32 0.0, %v3852
    %v3854 = vpop.f32.mrb[0].mxu0
    %v3855 = vpop.f32.mrb[0].mxu0
    %3856 = vdwg.mxu0
    %3857 = vmatprep.subr.bf16.mxu0 %v3123
    %3858 = vmatpush1.bf16.msra.mxu0 %v3122
    %3859 = vmatprep.subr.bf16.mxu0 %v3131
    %3860 = vmatpush1.bf16.msra.mxu0 %v3130
    %3861 = vmatprep.subr.bf16.mxu0 %v3139
    %3862 = vmatpush1.bf16.msra.mxu0 %v3138
    %3863 = vmatprep.subr.bf16.mxu0 %v3147
    %3864 = vmatpush1.bf16.msra.mxu0 %v3146
    %3865 = vmatprep.subr.bf16.mxu0 %v3155
    %3866 = vmatpush1.bf16.msra.mxu0 %v3154
    %3867 = vmatprep.subr.bf16.mxu0 %v3163
    %3868 = vmatpush1.bf16.msra.mxu0 %v3162
    %3869 = vmatprep.subr.bf16.mxu0 %v3171
    %3870 = vmatpush1.bf16.msra.mxu0 %v3170
    %3871 = vmatprep.subr.bf16.mxu0 %v3179
    %3872 = vmatpush1.bf16.msra.mxu0 %v3178
    %3873 = vmatprep.subr.bf16.mxu0 %v3187
    %3874 = vmatpush1.bf16.msra.mxu0 %v3186
    %3875 = vmatprep.subr.bf16.mxu0 %v3195
    %3876 = vmatpush1.bf16.msra.mxu0 %v3194
    %3877 = vmatprep.subr.bf16.mxu0 %v3203
    %3878 = vmatpush1.bf16.msra.mxu0 %v3202
    %3879 = vmatprep.subr.bf16.mxu0 %v3211
    %3880 = vmatpush1.bf16.msra.mxu0 %v3210
    %3881 = vmatprep.subr.bf16.mxu0 %v3219
    %3882 = vmatpush1.bf16.msra.mxu0 %v3218
    %3883 = vmatprep.subr.bf16.mxu0 %v3227
    %3884 = vmatpush1.bf16.msra.mxu0 %v3226
    %3885 = vmatprep.subr.bf16.mxu0 %v3235
    %3886 = vmatpush1.bf16.msra.mxu0 %v3234
    %3887 = vmatprep.subr.bf16.mxu0 %v3243
    %3888 = vmatpush1.bf16.msra.mxu0 %v3242
    %3889 = vmatprep.mubr.bf16.mxu0 %v1952
    %3890 = vmatmul.mubr.bf16.gmra.mrb[0].mxu0 %v1951
    %v3891 = vpop.f32.mrb[0].mxu0
    %v3892 = vadd.f32 %v3821, %v3891
    %v3893 = vpop.f32.mrb[0].mxu0
    %v3894 = vadd.f32 %v3823, %v3893
    %v3895 = vpop.f32.mrb[0].mxu0
    %v3896 = vadd.f32 %v3825, %v3895
    %v3897 = vpop.f32.mrb[0].mxu0
    %v3898 = vadd.f32 %v3827, %v3897
    %3899 = vmatprep.mubr.bf16.mxu0 %v1956
    %3900 = vmatmul.mubr.bf16.gmra.mrb[0].mxu0 %v1955
    %v3901 = vpop.f32.mrb[0].mxu0
    %v3902 = vadd.f32 %v3831, %v3901
    %v3903 = vpop.f32.mrb[0].mxu0
    %v3904 = vadd.f32 %v3833, %v3903
    %v3905 = vpop.f32.mrb[0].mxu0
    %v3906 = vadd.f32 %v3835, %v3905
    %v3907 = vpop.f32.mrb[0].mxu0
    %v3908 = vadd.f32 %v3837, %v3907
    %3909 = vmatprep.mubr.bf16.mxu0 %v1960
    %3910 = vmatmul.mubr.bf16.gmra.mrb[0].mxu0 %v1959
    %v3911 = vpop.f32.mrb[0].mxu0
    %v3912 = vadd.f32 %v3841, %v3911
    %v3913 = vpop.f32.mrb[0].mxu0
    %v3914 = vadd.f32 %v3843, %v3913
    %v3915 = vpop.f32.mrb[0].mxu0
    %v3916 = vadd.f32 %v3845, %v3915
    %v3917 = vpop.f32.mrb[0].mxu0
    %v3918 = vadd.f32 %v3847, %v3917
    %3919 = vmatprep.mubr.bf16.mxu0 %v1964
    %3920 = vmatmul.mubr.bf16.gmra.mrb[0].mxu0 %v1963
    %v3921 = vpop.f32.mrb[0].mxu0
    %v3922 = vadd.f32 %v3851, %v3921
    %v3923 = vpop.f32.mrb[0].mxu0
    %v3924 = vadd.f32 %v3853, %v3923
    %v3925 = vpop.f32.mrb[0].mxu0
    %v3926 = vpop.f32.mrb[0].mxu0
    %3927 = vdwg.mxu0
    %3928 = vmatprep.subr.bf16.mxu0 %v2997
    %3929 = vmatpush1.bf16.msra.mxu0 %v2996
    %3930 = vmatprep.subr.bf16.mxu0 %v3005
    %3931 = vmatpush1.bf16.msra.mxu0 %v3004
    %3932 = vmatprep.subr.bf16.mxu0 %v3013
    %3933 = vmatpush1.bf16.msra.mxu0 %v3012
    %3934 = vmatprep.subr.bf16.mxu0 %v3021
    %3935 = vmatpush1.bf16.msra.mxu0 %v3020
    %3936 = vmatprep.subr.bf16.mxu0 %v3029
    %3937 = vmatpush1.bf16.msra.mxu0 %v3028
    %3938 = vmatprep.subr.bf16.mxu0 %v3037
    %3939 = vmatpush1.bf16.msra.mxu0 %v3036
    %3940 = vmatprep.subr.bf16.mxu0 %v3045
    %3941 = vmatpush1.bf16.msra.mxu0 %v3044
    %3942 = vmatprep.subr.bf16.mxu0 %v3053
    %3943 = vmatpush1.bf16.msra.mxu0 %v3052
    %3944 = vmatprep.subr.bf16.mxu0 %v3061
    %3945 = vmatpush1.bf16.msra.mxu0 %v3060
    %3946 = vmatprep.subr.bf16.mxu0 %v3069
    %3947 = vmatpush1.bf16.msra.mxu0 %v3068
    %3948 = vmatprep.subr.bf16.mxu0 %v3077
    %3949 = vmatpush1.bf16.msra.mxu0 %v3076
    %3950 = vmatprep.subr.bf16.mxu0 %v3085
    %3951 = vmatpush1.bf16.msra.mxu0 %v3084
    %3952 = vmatprep.subr.bf16.mxu0 %v3093
    %3953 = vmatpush1.bf16.msra.mxu0 %v3092
    %3954 = vmatprep.subr.bf16.mxu0 %v3101
    %3955 = vmatpush1.bf16.msra.mxu0 %v3100
    %3956 = vmatprep.subr.bf16.mxu0 %v3109
    %3957 = vmatpush1.bf16.msra.mxu0 %v3108
    %3958 = vmatprep.subr.bf16.mxu0 %v3117
    %3959 = vmatpush1.bf16.msra.mxu0 %v3116
    %3960 = vmatprep.mubr.bf16.mxu0 %v1950
    %3961 = vmatmul.mubr.bf16.gmra.mrb[0].mxu0 %v1949
    %v3962 = vpop.f32.mrb[0].mxu0
    %v3963 = vadd.f32 0.0, %v3962
    %v3964 = vpop.f32.mrb[0].mxu0
    %v3965 = vadd.f32 0.0, %v3964
    %v3966 = vpop.f32.mrb[0].mxu0
    %v3967 = vadd.f32 0.0, %v3966
    %v3968 = vpop.f32.mrb[0].mxu0
    %v3969 = vadd.f32 0.0, %v3968
    %3970 = vmatprep.mubr.bf16.mxu0 %v1954
    %3971 = vmatmul.mubr.bf16.gmra.mrb[0].mxu0 %v1953
    %v3972 = vpop.f32.mrb[0].mxu0
    %v3973 = vadd.f32 0.0, %v3972
    %v3974 = vpop.f32.mrb[0].mxu0
    %v3975 = vadd.f32 0.0, %v3974
    %v3976 = vpop.f32.mrb[0].mxu0
    %v3977 = vadd.f32 0.0, %v3976
    %v3978 = vpop.f32.mrb[0].mxu0
    %v3979 = vadd.f32 0.0, %v3978
    %3980 = vmatprep.mubr.bf16.mxu0 %v1958
    %3981 = vmatmul.mubr.bf16.gmra.mrb[0].mxu0 %v1957
    %v3982 = vpop.f32.mrb[0].mxu0
    %v3983 = vadd.f32 0.0, %v3982
    %v3984 = vpop.f32.mrb[0].mxu0
    %v3985 = vadd.f32 0.0, %v3984
    %v3986 = vpop.f32.mrb[0].mxu0
    %v3987 = vadd.f32 0.0, %v3986
    %v3988 = vpop.f32.mrb[0].mxu0
    %v3989 = vadd.f32 0.0, %v3988
    %3990 = vmatprep.mubr.bf16.mxu0 %v1962
    %3991 = vmatmul.mubr.bf16.gmra.mrb[0].mxu0 %v1961
    %v3992 = vpop.f32.mrb[0].mxu0
    %v3993 = vadd.f32 0.0, %v3992
    %v3994 = vpop.f32.mrb[0].mxu0
    %v3995 = vadd.f32 0.0, %v3994
    %v3996 = vpop.f32.mrb[0].mxu0
    %v3997 = vpop.f32.mrb[0].mxu0
    %3998 = vdwg.mxu0
    %3999 = vmatprep.subr.bf16.mxu0 %v3125
    %4000 = vmatpush1.bf16.msra.mxu0 %v3124
    %4001 = vmatprep.subr.bf16.mxu0 %v3133
    %4002 = vmatpush1.bf16.msra.mxu0 %v3132
    %4003 = vmatprep.subr.bf16.mxu0 %v3141
    %4004 = vmatpush1.bf16.msra.mxu0 %v3140
    %4005 = vmatprep.subr.bf16.mxu0 %v3149
    %4006 = vmatpush1.bf16.msra.mxu0 %v3148
    %4007 = vmatprep.subr.bf16.mxu0 %v3157
    %4008 = vmatpush1.bf16.msra.mxu0 %v3156
    %4009 = vmatprep.subr.bf16.mxu0 %v3165
    %4010 = vmatpush1.bf16.msra.mxu0 %v3164
    %4011 = vmatprep.subr.bf16.mxu0 %v3173
    %4012 = vmatpush1.bf16.msra.mxu0 %v3172
    %4013 = vmatprep.subr.bf16.mxu0 %v3181
    %4014 = vmatpush1.bf16.msra.mxu0 %v3180
    %4015 = vmatprep.subr.bf16.mxu0 %v3189
    %4016 = vmatpush1.bf16.msra.mxu0 %v3188
    %4017 = vmatprep.subr.bf16.mxu0 %v3197
    %4018 = vmatpush1.bf16.msra.mxu0 %v3196
    %4019 = vmatprep.subr.bf16.mxu0 %v3205
    %4020 = vmatpush1.bf16.msra.mxu0 %v3204
    %4021 = vmatprep.subr.bf16.mxu0 %v3213
    %4022 = vmatpush1.bf16.msra.mxu0 %v3212
    %4023 = vmatprep.subr.bf16.mxu0 %v3221
    %4024 = vmatpush1.bf16.msra.mxu0 %v3220
    %4025 = vmatprep.subr.bf16.mxu0 %v3229
    %4026 = vmatpush1.bf16.msra.mxu0 %v3228
    %4027 = vmatprep.subr.bf16.mxu0 %v3237
    %4028 = vmatpush1.bf16.msra.mxu0 %v3236
    %4029 = vmatprep.subr.bf16.mxu0 %v3245
    %4030 = vmatpush1.bf16.msra.mxu0 %v3244
    %4031 = vmatprep.mubr.bf16.mxu0 %v1952
    %4032 = vmatmul.mubr.bf16.gmra.mrb[0].mxu0 %v1951
    %v4033 = vpop.f32.mrb[0].mxu0
    %v4034 = vadd.f32 %v3963, %v4033
    %v4035 = vpop.f32.mrb[0].mxu0
    %v4036 = vadd.f32 %v3965, %v4035
    %v4037 = vpop.f32.mrb[0].mxu0
    %v4038 = vadd.f32 %v3967, %v4037
    %v4039 = vpop.f32.mrb[0].mxu0
    %v4040 = vadd.f32 %v3969, %v4039
    %4041 = vmatprep.mubr.bf16.mxu0 %v1956
    %4042 = vmatmul.mubr.bf16.gmra.mrb[0].mxu0 %v1955
    %v4043 = vpop.f32.mrb[0].mxu0
    %v4044 = vadd.f32 %v3973, %v4043
    %v4045 = vpop.f32.mrb[0].mxu0
    %v4046 = vadd.f32 %v3975, %v4045
    %v4047 = vpop.f32.mrb[0].mxu0
    %v4048 = vadd.f32 %v3977, %v4047
    %v4049 = vpop.f32.mrb[0].mxu0
    %v4050 = vadd.f32 %v3979, %v4049
    %4051 = vmatprep.mubr.bf16.mxu0 %v1960
    %4052 = vmatmul.mubr.bf16.gmra.mrb[0].mxu0 %v1959
    %v4053 = vpop.f32.mrb[0].mxu0
    %v4054 = vadd.f32 %v3983, %v4053
    %v4055 = vpop.f32.mrb[0].mxu0
    %v4056 = vadd.f32 %v3985, %v4055
    %v4057 = vpop.f32.mrb[0].mxu0
    %v4058 = vadd.f32 %v3987, %v4057
    %v4059 = vpop.f32.mrb[0].mxu0
    %v4060 = vadd.f32 %v3989, %v4059
    %4061 = vmatprep.mubr.bf16.mxu0 %v1964
    %4062 = vmatmul.mubr.bf16.gmra.mrb[0].mxu0 %v1963
    %v4063 = vpop.f32.mrb[0].mxu0
    %v4064 = vadd.f32 %v3993, %v4063
    %v4065 = vpop.f32.mrb[0].mxu0
    %v4066 = vadd.f32 %v3995, %v4065
    %v4067 = vpop.f32.mrb[0].mxu0
    %v4068 = vpop.f32.mrb[0].mxu0
    %4069 = vdwg.mxu0
    %v4326 = vunpack.c.l.b16 %v1665
    %v4327 = vunpack.c.h.b16 %v1665
    %v4328 = vunpack.c.l.b16 %v1666
    %v4329 = vunpack.c.h.b16 %v1666
    %v4330 = vunpack.c.l.b16 %v1667
    %v4331 = vunpack.c.h.b16 %v1667
    %v4332 = vunpack.c.l.b16 %v1668
    %v4333 = vunpack.c.h.b16 %v1668
    %v4334 = vunpack.c.l.b16 %v1669
    %v4335 = vunpack.c.h.b16 %v1669
    %v4336 = vunpack.c.l.b16 %v1670
    %v4337 = vunpack.c.h.b16 %v1670
    %v4338 = vunpack.c.l.b16 %v1671
    %v4339 = vunpack.c.h.b16 %v1671
    %v4340 = vunpack.c.l.b16 %v1672
    %v4341 = vunpack.c.h.b16 %v1672
    %v4342 = vunpack.c.l.b16 %v1673
    %v4343 = vunpack.c.h.b16 %v1673
    %v4344 = vunpack.c.l.b16 %v1674
    %v4345 = vunpack.c.h.b16 %v1674
    %v4346 = vunpack.c.l.b16 %v1675
    %v4347 = vunpack.c.h.b16 %v1675
    %v4348 = vunpack.c.l.b16 %v1676
    %v4349 = vunpack.c.h.b16 %v1676
    %v4350 = vunpack.c.l.b16 %v1677
    %v4351 = vunpack.c.h.b16 %v1677
    %v4352 = vunpack.c.l.b16 %v1678
    %v4353 = vunpack.c.h.b16 %v1678
    %v4354 = vunpack.c.l.b16 %v1679
    %v4355 = vunpack.c.h.b16 %v1679
    %v4356 = vunpack.c.l.b16 %v1680
    %v4357 = vunpack.c.h.b16 %v1680
    %v4358 = vunpack.c.l.b16 %v1681
    %v4359 = vunpack.c.h.b16 %v1681
    %v4360 = vunpack.c.l.b16 %v1682
    %v4361 = vunpack.c.h.b16 %v1682
    %v4362 = vunpack.c.l.b16 %v1683
    %v4363 = vunpack.c.h.b16 %v1683
    %v4364 = vunpack.c.l.b16 %v1684
    %v4365 = vunpack.c.h.b16 %v1684
    %v4366 = vunpack.c.l.b16 %v1685
    %v4367 = vunpack.c.h.b16 %v1685
    %v4368 = vunpack.c.l.b16 %v1686
    %v4369 = vunpack.c.h.b16 %v1686
    %v4370 = vunpack.c.l.b16 %v1687
    %v4371 = vunpack.c.h.b16 %v1687
    %v4372 = vunpack.c.l.b16 %v1688
    %v4373 = vunpack.c.h.b16 %v1688
    %v4374 = vunpack.c.l.b16 %v1689
    %v4375 = vunpack.c.h.b16 %v1689
    %v4376 = vunpack.c.l.b16 %v1690
    %v4377 = vunpack.c.h.b16 %v1690
    %v4378 = vunpack.c.l.b16 %v1691
    %v4379 = vunpack.c.h.b16 %v1691
    %v4380 = vunpack.c.l.b16 %v1692
    %v4381 = vunpack.c.h.b16 %v1692
    %v4382 = vunpack.c.l.b16 %v1693
    %v4383 = vunpack.c.h.b16 %v1693
    %v4384 = vunpack.c.l.b16 %v1694
    %v4385 = vunpack.c.h.b16 %v1694
    %v4386 = vunpack.c.l.b16 %v1695
    %v4387 = vunpack.c.h.b16 %v1695
    %v4388 = vunpack.c.l.b16 %v1696
    %v4389 = vunpack.c.h.b16 %v1696
    %v4390 = vunpack.c.l.b16 %v1697
    %v4391 = vunpack.c.h.b16 %v1697
    %v4392 = vunpack.c.l.b16 %v1698
    %v4393 = vunpack.c.h.b16 %v1698
    %v4394 = vunpack.c.l.b16 %v1699
    %v4395 = vunpack.c.h.b16 %v1699
    %v4396 = vunpack.c.l.b16 %v1700
    %v4397 = vunpack.c.h.b16 %v1700
    %v4398 = vunpack.c.l.b16 %v1701
    %v4399 = vunpack.c.h.b16 %v1701
    %v4400 = vunpack.c.l.b16 %v1702
    %v4401 = vunpack.c.h.b16 %v1702
    %v4402 = vunpack.c.l.b16 %v1703
    %v4403 = vunpack.c.h.b16 %v1703
    %v4404 = vunpack.c.l.b16 %v1704
    %v4405 = vunpack.c.h.b16 %v1704
    %v4406 = vunpack.c.l.b16 %v1705
    %v4407 = vunpack.c.h.b16 %v1705
    %v4408 = vunpack.c.l.b16 %v1706
    %v4409 = vunpack.c.h.b16 %v1706
    %v4410 = vunpack.c.l.b16 %v1707
    %v4411 = vunpack.c.h.b16 %v1707
    %v4412 = vunpack.c.l.b16 %v1708
    %v4413 = vunpack.c.h.b16 %v1708
    %v4414 = vunpack.c.l.b16 %v1709
    %v4415 = vunpack.c.h.b16 %v1709
    %v4416 = vunpack.c.l.b16 %v1710
    %v4417 = vunpack.c.h.b16 %v1710
    %v4418 = vunpack.c.l.b16 %v1711
    %v4419 = vunpack.c.h.b16 %v1711
    %v4420 = vunpack.c.l.b16 %v1712
    %v4421 = vunpack.c.h.b16 %v1712
    %v4422 = vunpack.c.l.b16 %v1713
    %v4423 = vunpack.c.h.b16 %v1713
    %v4424 = vunpack.c.l.b16 %v1714
    %v4425 = vunpack.c.h.b16 %v1714
    %v4426 = vunpack.c.l.b16 %v1715
    %v4427 = vunpack.c.h.b16 %v1715
    %v4428 = vunpack.c.l.b16 %v1716
    %v4429 = vunpack.c.h.b16 %v1716
    %v4430 = vunpack.c.l.b16 %v1717
    %v4431 = vunpack.c.h.b16 %v1717
    %v4432 = vunpack.c.l.b16 %v1718
    %v4433 = vunpack.c.h.b16 %v1718
    %v4434 = vunpack.c.l.b16 %v1719
    %v4435 = vunpack.c.h.b16 %v1719
    %v4436 = vunpack.c.l.b16 %v1720
    %v4437 = vunpack.c.h.b16 %v1720
    %v4438 = vunpack.c.l.b16 %v1721
    %v4439 = vunpack.c.h.b16 %v1721
    %v4440 = vunpack.c.l.b16 %v1722
    %v4441 = vunpack.c.h.b16 %v1722
    %v4442 = vunpack.c.l.b16 %v1723
    %v4443 = vunpack.c.h.b16 %v1723
    %v4444 = vunpack.c.l.b16 %v1724
    %v4445 = vunpack.c.h.b16 %v1724
    %v4446 = vunpack.c.l.b16 %v1725
    %v4447 = vunpack.c.h.b16 %v1725
    %v4448 = vunpack.c.l.b16 %v1726
    %v4449 = vunpack.c.h.b16 %v1726
    %v4450 = vunpack.c.l.b16 %v1727
    %v4451 = vunpack.c.h.b16 %v1727
    %v4452 = vunpack.c.l.b16 %v1728
    %v4453 = vunpack.c.h.b16 %v1728
    %v4454 = vunpack.c.l.b16 %v1729
    %v4455 = vunpack.c.h.b16 %v1729
    %v4456 = vunpack.c.l.b16 %v1730
    %v4457 = vunpack.c.h.b16 %v1730
    %v4458 = vunpack.c.l.b16 %v1731
    %v4459 = vunpack.c.h.b16 %v1731
    %v4460 = vunpack.c.l.b16 %v1732
    %v4461 = vunpack.c.h.b16 %v1732
    %v4462 = vunpack.c.l.b16 %v1733
    %v4463 = vunpack.c.h.b16 %v1733
    %v4464 = vunpack.c.l.b16 %v1734
    %v4465 = vunpack.c.h.b16 %v1734
    %v4466 = vunpack.c.l.b16 %v1735
    %v4467 = vunpack.c.h.b16 %v1735
    %v4468 = vunpack.c.l.b16 %v1736
    %v4469 = vunpack.c.h.b16 %v1736
    %v4470 = vunpack.c.l.b16 %v1737
    %v4471 = vunpack.c.h.b16 %v1737
    %v4472 = vunpack.c.l.b16 %v1738
    %v4473 = vunpack.c.h.b16 %v1738
    %v4474 = vunpack.c.l.b16 %v1739
    %v4475 = vunpack.c.h.b16 %v1739
    %v4476 = vunpack.c.l.b16 %v1740
    %v4477 = vunpack.c.h.b16 %v1740
    %v4478 = vunpack.c.l.b16 %v1741
    %v4479 = vunpack.c.h.b16 %v1741
    %v4480 = vunpack.c.l.b16 %v1742
    %v4481 = vunpack.c.h.b16 %v1742
    %v4482 = vunpack.c.l.b16 %v1743
    %v4483 = vunpack.c.h.b16 %v1743
    %v4484 = vunpack.c.l.b16 %v1744
    %v4485 = vunpack.c.h.b16 %v1744
    %v4486 = vunpack.c.l.b16 %v1745
    %v4487 = vunpack.c.h.b16 %v1745
    %v4488 = vunpack.c.l.b16 %v1746
    %v4489 = vunpack.c.h.b16 %v1746
    %v4490 = vunpack.c.l.b16 %v1747
    %v4491 = vunpack.c.h.b16 %v1747
    %v4492 = vunpack.c.l.b16 %v1748
    %v4493 = vunpack.c.h.b16 %v1748
    %v4494 = vunpack.c.l.b16 %v1749
    %v4495 = vunpack.c.h.b16 %v1749
    %v4496 = vunpack.c.l.b16 %v1750
    %v4497 = vunpack.c.h.b16 %v1750
    %v4498 = vunpack.c.l.b16 %v1751
    %v4499 = vunpack.c.h.b16 %v1751
    %v4500 = vunpack.c.l.b16 %v1752
    %v4501 = vunpack.c.h.b16 %v1752
    %v4502 = vunpack.c.l.b16 %v1753
    %v4503 = vunpack.c.h.b16 %v1753
    %v4504 = vunpack.c.l.b16 %v1754
    %v4505 = vunpack.c.h.b16 %v1754
    %v4506 = vunpack.c.l.b16 %v1755
    %v4507 = vunpack.c.h.b16 %v1755
    %v4508 = vunpack.c.l.b16 %v1756
    %v4509 = vunpack.c.h.b16 %v1756
    %v4510 = vunpack.c.l.b16 %v1757
    %v4511 = vunpack.c.h.b16 %v1757
    %v4512 = vunpack.c.l.b16 %v1758
    %v4513 = vunpack.c.h.b16 %v1758
    %v4514 = vunpack.c.l.b16 %v1759
    %v4515 = vunpack.c.h.b16 %v1759
    %v4516 = vunpack.c.l.b16 %v1760
    %v4517 = vunpack.c.h.b16 %v1760
    %v4518 = vunpack.c.l.b16 %v1761
    %v4519 = vunpack.c.h.b16 %v1761
    %v4520 = vunpack.c.l.b16 %v1762
    %v4521 = vunpack.c.h.b16 %v1762
    %v4522 = vunpack.c.l.b16 %v1763
    %v4523 = vunpack.c.h.b16 %v1763
    %v4524 = vunpack.c.l.b16 %v1764
    %v4525 = vunpack.c.h.b16 %v1764
    %v4526 = vunpack.c.l.b16 %v1765
    %v4527 = vunpack.c.h.b16 %v1765
    %v4528 = vunpack.c.l.b16 %v1766
    %v4529 = vunpack.c.h.b16 %v1766
    %v4530 = vunpack.c.l.b16 %v1767
    %v4531 = vunpack.c.h.b16 %v1767
    %v4532 = vunpack.c.l.b16 %v1768
    %v4533 = vunpack.c.h.b16 %v1768
    %v4534 = vunpack.c.l.b16 %v1769
    %v4535 = vunpack.c.h.b16 %v1769
    %v4536 = vunpack.c.l.b16 %v1770
    %v4537 = vunpack.c.h.b16 %v1770
    %v4538 = vunpack.c.l.b16 %v1771
    %v4539 = vunpack.c.h.b16 %v1771
    %v4540 = vunpack.c.l.b16 %v1772
    %v4541 = vunpack.c.h.b16 %v1772
    %v4542 = vunpack.c.l.b16 %v1773
    %v4543 = vunpack.c.h.b16 %v1773
    %v4544 = vunpack.c.l.b16 %v1774
    %v4545 = vunpack.c.h.b16 %v1774
    %v4546 = vunpack.c.l.b16 %v1775
    %v4547 = vunpack.c.h.b16 %v1775
    %v4548 = vunpack.c.l.b16 %v1776
    %v4549 = vunpack.c.h.b16 %v1776
    %v4550 = vunpack.c.l.b16 %v1777
    %v4551 = vunpack.c.h.b16 %v1777
    %v4552 = vunpack.c.l.b16 %v1778
    %v4553 = vunpack.c.h.b16 %v1778
    %v4554 = vunpack.c.l.b16 %v1779
    %v4555 = vunpack.c.h.b16 %v1779
    %v4556 = vunpack.c.l.b16 %v1780
    %v4557 = vunpack.c.h.b16 %v1780
    %v4558 = vunpack.c.l.b16 %v1781
    %v4559 = vunpack.c.h.b16 %v1781
    %v4560 = vunpack.c.l.b16 %v1782
    %v4561 = vunpack.c.h.b16 %v1782
    %v4562 = vunpack.c.l.b16 %v1783
    %v4563 = vunpack.c.h.b16 %v1783
    %v4564 = vunpack.c.l.b16 %v1784
    %v4565 = vunpack.c.h.b16 %v1784
    %v4566 = vunpack.c.l.b16 %v1785
    %v4567 = vunpack.c.h.b16 %v1785
    %v4568 = vunpack.c.l.b16 %v1786
    %v4569 = vunpack.c.h.b16 %v1786
    %v4570 = vunpack.c.l.b16 %v1787
    %v4571 = vunpack.c.h.b16 %v1787
    %v4572 = vunpack.c.l.b16 %v1788
    %v4573 = vunpack.c.h.b16 %v1788
    %v4574 = vunpack.c.l.b16 %v1789
    %v4575 = vunpack.c.h.b16 %v1789
    %v4576 = vunpack.c.l.b16 %v1790
    %v4577 = vunpack.c.h.b16 %v1790
    %v4578 = vunpack.c.l.b16 %v1791
    %v4579 = vunpack.c.h.b16 %v1791
    %v4580 = vunpack.c.l.b16 %v1792
    %v4581 = vunpack.c.h.b16 %v1792
    %v4582 = vunpack.c.l.b16 %v1793
    %v4583 = vunpack.c.h.b16 %v1793
    %v4584 = vunpack.c.l.b16 %v1794
    %v4585 = vunpack.c.h.b16 %v1794
    %v4586 = vunpack.c.l.b16 %v1795
    %v4587 = vunpack.c.h.b16 %v1795
    %v4588 = vunpack.c.l.b16 %v1796
    %v4589 = vunpack.c.h.b16 %v1796
    %v4590 = vunpack.c.l.b16 %v1797
    %v4591 = vunpack.c.h.b16 %v1797
    %v4592 = vunpack.c.l.b16 %v1798
    %v4593 = vunpack.c.h.b16 %v1798
    %v4594 = vunpack.c.l.b16 %v1799
    %v4595 = vunpack.c.h.b16 %v1799
    %v4596 = vunpack.c.l.b16 %v1800
    %v4597 = vunpack.c.h.b16 %v1800
    %v4598 = vunpack.c.l.b16 %v1801
    %v4599 = vunpack.c.h.b16 %v1801
    %v4600 = vunpack.c.l.b16 %v1802
    %v4601 = vunpack.c.h.b16 %v1802
    %v4602 = vunpack.c.l.b16 %v1803
    %v4603 = vunpack.c.h.b16 %v1803
    %v4604 = vunpack.c.l.b16 %v1804
    %v4605 = vunpack.c.h.b16 %v1804
    %v4606 = vunpack.c.l.b16 %v1805
    %v4607 = vunpack.c.h.b16 %v1805
    %v4608 = vunpack.c.l.b16 %v1806
    %v4609 = vunpack.c.h.b16 %v1806
    %v4610 = vunpack.c.l.b16 %v1807
    %v4611 = vunpack.c.h.b16 %v1807
    %v4612 = vunpack.c.l.b16 %v1808
    %v4613 = vunpack.c.h.b16 %v1808
    %v4614 = vunpack.c.l.b16 %v1809
    %v4615 = vunpack.c.h.b16 %v1809
    %v4616 = vunpack.c.l.b16 %v1810
    %v4617 = vunpack.c.h.b16 %v1810
    %v4618 = vunpack.c.l.b16 %v1811
    %v4619 = vunpack.c.h.b16 %v1811
    %v4620 = vunpack.c.l.b16 %v1812
    %v4621 = vunpack.c.h.b16 %v1812
    %v4622 = vunpack.c.l.b16 %v1813
    %v4623 = vunpack.c.h.b16 %v1813
    %v4624 = vunpack.c.l.b16 %v1814
    %v4625 = vunpack.c.h.b16 %v1814
    %v4626 = vunpack.c.l.b16 %v1815
    %v4627 = vunpack.c.h.b16 %v1815
    %v4628 = vunpack.c.l.b16 %v1816
    %v4629 = vunpack.c.h.b16 %v1816
    %v4630 = vunpack.c.l.b16 %v1817
    %v4631 = vunpack.c.h.b16 %v1817
    %v4632 = vunpack.c.l.b16 %v1818
    %v4633 = vunpack.c.h.b16 %v1818
    %v4634 = vunpack.c.l.b16 %v1819
    %v4635 = vunpack.c.h.b16 %v1819
    %v4636 = vunpack.c.l.b16 %v1820
    %v4637 = vunpack.c.h.b16 %v1820
    %v4638 = vunpack.c.l.b16 %v1821
    %v4639 = vunpack.c.h.b16 %v1821
    %v4640 = vunpack.c.l.b16 %v1822
    %v4641 = vunpack.c.h.b16 %v1822
    %v4642 = vunpack.c.l.b16 %v1823
    %v4643 = vunpack.c.h.b16 %v1823
    %v4644 = vunpack.c.l.b16 %v1824
    %v4645 = vunpack.c.h.b16 %v1824
    %v4646 = vunpack.c.l.b16 %v1825
    %v4647 = vunpack.c.h.b16 %v1825
    %v4648 = vunpack.c.l.b16 %v1826
    %v4649 = vunpack.c.h.b16 %v1826
    %v4650 = vunpack.c.l.b16 %v1827
    %v4651 = vunpack.c.h.b16 %v1827
    %v4652 = vunpack.c.l.b16 %v1828
    %v4653 = vunpack.c.h.b16 %v1828
    %v4654 = vunpack.c.l.b16 %v1829
    %v4655 = vunpack.c.h.b16 %v1829
    %v4656 = vunpack.c.l.b16 %v1830
    %v4657 = vunpack.c.h.b16 %v1830
    %v4658 = vunpack.c.l.b16 %v1831
    %v4659 = vunpack.c.h.b16 %v1831
    %v4660 = vunpack.c.l.b16 %v1832
    %v4661 = vunpack.c.h.b16 %v1832
    %v4662 = vunpack.c.l.b16 %v1833
    %v4663 = vunpack.c.h.b16 %v1833
    %v4664 = vunpack.c.l.b16 %v1834
    %v4665 = vunpack.c.h.b16 %v1834
    %v4666 = vunpack.c.l.b16 %v1835
    %v4667 = vunpack.c.h.b16 %v1835
    %v4668 = vunpack.c.l.b16 %v1836
    %v4669 = vunpack.c.h.b16 %v1836
    %v4670 = vunpack.c.l.b16 %v1837
    %v4671 = vunpack.c.h.b16 %v1837
    %v4672 = vunpack.c.l.b16 %v1838
    %v4673 = vunpack.c.h.b16 %v1838
    %v4674 = vunpack.c.l.b16 %v1839
    %v4675 = vunpack.c.h.b16 %v1839
    %v4676 = vunpack.c.l.b16 %v1840
    %v4677 = vunpack.c.h.b16 %v1840
    %v4678 = vunpack.c.l.b16 %v1841
    %v4679 = vunpack.c.h.b16 %v1841
    %v4680 = vunpack.c.l.b16 %v1842
    %v4681 = vunpack.c.h.b16 %v1842
    %v4682 = vunpack.c.l.b16 %v1843
    %v4683 = vunpack.c.h.b16 %v1843
    %v4684 = vunpack.c.l.b16 %v1844
    %v4685 = vunpack.c.h.b16 %v1844
    %v4686 = vunpack.c.l.b16 %v1845
    %v4687 = vunpack.c.h.b16 %v1845
    %v4688 = vunpack.c.l.b16 %v1846
    %v4689 = vunpack.c.h.b16 %v1846
    %v4690 = vunpack.c.l.b16 %v1847
    %v4691 = vunpack.c.h.b16 %v1847
    %v4692 = vunpack.c.l.b16 %v1848
    %v4693 = vunpack.c.h.b16 %v1848
    %v4694 = vunpack.c.l.b16 %v1849
    %v4695 = vunpack.c.h.b16 %v1849
    %v4696 = vunpack.c.l.b16 %v1850
    %v4697 = vunpack.c.h.b16 %v1850
    %v4698 = vunpack.c.l.b16 %v1851
    %v4699 = vunpack.c.h.b16 %v1851
    %v4700 = vunpack.c.l.b16 %v1852
    %v4701 = vunpack.c.h.b16 %v1852
    %v4702 = vunpack.c.l.b16 %v1853
    %v4703 = vunpack.c.h.b16 %v1853
    %v4704 = vunpack.c.l.b16 %v1854
    %v4705 = vunpack.c.h.b16 %v1854
    %v4706 = vunpack.c.l.b16 %v1855
    %v4707 = vunpack.c.h.b16 %v1855
    %v4708 = vunpack.c.l.b16 %v1856
    %v4709 = vunpack.c.h.b16 %v1856
    %v4710 = vunpack.c.l.b16 %v1857
    %v4711 = vunpack.c.h.b16 %v1857
    %v4712 = vunpack.c.l.b16 %v1858
    %v4713 = vunpack.c.h.b16 %v1858
    %v4714 = vunpack.c.l.b16 %v1859
    %v4715 = vunpack.c.h.b16 %v1859
    %v4716 = vunpack.c.l.b16 %v1860
    %v4717 = vunpack.c.h.b16 %v1860
    %v4718 = vunpack.c.l.b16 %v1861
    %v4719 = vunpack.c.h.b16 %v1861
    %v4720 = vunpack.c.l.b16 %v1862
    %v4721 = vunpack.c.h.b16 %v1862
    %v4722 = vunpack.c.l.b16 %v1863
    %v4723 = vunpack.c.h.b16 %v1863
    %v4724 = vunpack.c.l.b16 %v1864
    %v4725 = vunpack.c.h.b16 %v1864
    %v4726 = vunpack.c.l.b16 %v1865
    %v4727 = vunpack.c.h.b16 %v1865
    %v4728 = vunpack.c.l.b16 %v1866
    %v4729 = vunpack.c.h.b16 %v1866
    %v4730 = vunpack.c.l.b16 %v1867
    %v4731 = vunpack.c.h.b16 %v1867
    %v4732 = vunpack.c.l.b16 %v1868
    %v4733 = vunpack.c.h.b16 %v1868
    %v4734 = vunpack.c.l.b16 %v1869
    %v4735 = vunpack.c.h.b16 %v1869
    %v4736 = vunpack.c.l.b16 %v1870
    %v4737 = vunpack.c.h.b16 %v1870
    %v4738 = vunpack.c.l.b16 %v1871
    %v4739 = vunpack.c.h.b16 %v1871
    %v4740 = vunpack.c.l.b16 %v1872
    %v4741 = vunpack.c.h.b16 %v1872
    %v4742 = vunpack.c.l.b16 %v1873
    %v4743 = vunpack.c.h.b16 %v1873
    %v4744 = vunpack.c.l.b16 %v1874
    %v4745 = vunpack.c.h.b16 %v1874
    %v4746 = vunpack.c.l.b16 %v1875
    %v4747 = vunpack.c.h.b16 %v1875
    %v4748 = vunpack.c.l.b16 %v1876
    %v4749 = vunpack.c.h.b16 %v1876
    %v4750 = vunpack.c.l.b16 %v1877
    %v4751 = vunpack.c.h.b16 %v1877
    %v4752 = vunpack.c.l.b16 %v1878
    %v4753 = vunpack.c.h.b16 %v1878
    %v4754 = vunpack.c.l.b16 %v1879
    %v4755 = vunpack.c.h.b16 %v1879
    %v4756 = vunpack.c.l.b16 %v1880
    %v4757 = vunpack.c.h.b16 %v1880
    %v4758 = vunpack.c.l.b16 %v1881
    %v4759 = vunpack.c.h.b16 %v1881
    %v4760 = vunpack.c.l.b16 %v1882
    %v4761 = vunpack.c.h.b16 %v1882
    %v4762 = vunpack.c.l.b16 %v1883
    %v4763 = vunpack.c.h.b16 %v1883
    %v4764 = vunpack.c.l.b16 %v1884
    %v4765 = vunpack.c.h.b16 %v1884
    %v4766 = vunpack.c.l.b16 %v1885
    %v4767 = vunpack.c.h.b16 %v1885
    %v4768 = vunpack.c.l.b16 %v1886
    %v4769 = vunpack.c.h.b16 %v1886
    %v4770 = vunpack.c.l.b16 %v1887
    %v4771 = vunpack.c.h.b16 %v1887
    %v4772 = vunpack.c.l.b16 %v1888
    %v4773 = vunpack.c.h.b16 %v1888
    %v4774 = vunpack.c.l.b16 %v1889
    %v4775 = vunpack.c.h.b16 %v1889
    %v4776 = vunpack.c.l.b16 %v1890
    %v4777 = vunpack.c.h.b16 %v1890
    %v4778 = vunpack.c.l.b16 %v1891
    %v4779 = vunpack.c.h.b16 %v1891
    %v4780 = vunpack.c.l.b16 %v1892
    %v4781 = vunpack.c.h.b16 %v1892
    %v4782 = vunpack.c.l.b16 %v1893
    %v4783 = vunpack.c.h.b16 %v1893
    %v4784 = vunpack.c.l.b16 %v1894
    %v4785 = vunpack.c.h.b16 %v1894
    %v4786 = vunpack.c.l.b16 %v1895
    %v4787 = vunpack.c.h.b16 %v1895
    %v4788 = vunpack.c.l.b16 %v1896
    %v4789 = vunpack.c.h.b16 %v1896
    %v4790 = vunpack.c.l.b16 %v1897
    %v4791 = vunpack.c.h.b16 %v1897
    %v4792 = vunpack.c.l.b16 %v1898
    %v4793 = vunpack.c.h.b16 %v1898
    %v4794 = vunpack.c.l.b16 %v1899
    %v4795 = vunpack.c.h.b16 %v1899
    %v4796 = vunpack.c.l.b16 %v1900
    %v4797 = vunpack.c.h.b16 %v1900
    %v4798 = vunpack.c.l.b16 %v1901
    %v4799 = vunpack.c.h.b16 %v1901
    %v4800 = vunpack.c.l.b16 %v1902
    %v4801 = vunpack.c.h.b16 %v1902
    %v4802 = vunpack.c.l.b16 %v1903
    %v4803 = vunpack.c.h.b16 %v1903
    %v4804 = vunpack.c.l.b16 %v1904
    %v4805 = vunpack.c.h.b16 %v1904
    %v4806 = vunpack.c.l.b16 %v1905
    %v4807 = vunpack.c.h.b16 %v1905
    %v4808 = vunpack.c.l.b16 %v1906
    %v4809 = vunpack.c.h.b16 %v1906
    %v4810 = vunpack.c.l.b16 %v1907
    %v4811 = vunpack.c.h.b16 %v1907
    %v4812 = vunpack.c.l.b16 %v1908
    %v4813 = vunpack.c.h.b16 %v1908
    %v4814 = vunpack.c.l.b16 %v1909
    %v4815 = vunpack.c.h.b16 %v1909
    %v4816 = vunpack.c.l.b16 %v1910
    %v4817 = vunpack.c.h.b16 %v1910
    %v4818 = vunpack.c.l.b16 %v1911
    %v4819 = vunpack.c.h.b16 %v1911
    %v4820 = vunpack.c.l.b16 %v1912
    %v4821 = vunpack.c.h.b16 %v1912
    %v4822 = vunpack.c.l.b16 %v1913
    %v4823 = vunpack.c.h.b16 %v1913
    %v4824 = vunpack.c.l.b16 %v1914
    %v4825 = vunpack.c.h.b16 %v1914
    %v4826 = vunpack.c.l.b16 %v1915
    %v4827 = vunpack.c.h.b16 %v1915
    %v4828 = vunpack.c.l.b16 %v1916
    %v4829 = vunpack.c.h.b16 %v1916
    %v4830 = vunpack.c.l.b16 %v1917
    %v4831 = vunpack.c.h.b16 %v1917
    %v4832 = vunpack.c.l.b16 %v1918
    %v4833 = vunpack.c.h.b16 %v1918
    %v4834 = vunpack.c.l.b16 %v1919
    %v4835 = vunpack.c.h.b16 %v1919
    %v4836 = vunpack.c.l.b16 %v1920
    %v4837 = vunpack.c.h.b16 %v1920
    %v4838 = vpack.c.b16 %v4334, %v4326
    %v4839 = vpack.c.b16 %v4335, %v4327
    %v4840 = vpack.c.b16 %v4336, %v4328
    %v4841 = vpack.c.b16 %v4337, %v4329
    %v4842 = vpack.c.b16 %v4338, %v4330
    %v4843 = vpack.c.b16 %v4339, %v4331
    %v4844 = vpack.c.b16 %v4340, %v4332
    %v4845 = vpack.c.b16 %v4341, %v4333
    %v4846 = vpack.c.b16 %v4350, %v4342
    %v4847 = vpack.c.b16 %v4351, %v4343
    %v4848 = vpack.c.b16 %v4352, %v4344
    %v4849 = vpack.c.b16 %v4353, %v4345
    %v4850 = vpack.c.b16 %v4354, %v4346
    %v4851 = vpack.c.b16 %v4355, %v4347
    %v4852 = vpack.c.b16 %v4356, %v4348
    %v4853 = vpack.c.b16 %v4357, %v4349
    %v4854 = vpack.c.b16 %v4366, %v4358
    %v4855 = vpack.c.b16 %v4367, %v4359
    %v4856 = vpack.c.b16 %v4368, %v4360
    %v4857 = vpack.c.b16 %v4369, %v4361
    %v4858 = vpack.c.b16 %v4370, %v4362
    %v4859 = vpack.c.b16 %v4371, %v4363
    %v4860 = vpack.c.b16 %v4372, %v4364
    %v4861 = vpack.c.b16 %v4373, %v4365
    %v4862 = vpack.c.b16 %v4382, %v4374
    %v4863 = vpack.c.b16 %v4383, %v4375
    %v4864 = vpack.c.b16 %v4384, %v4376
    %v4865 = vpack.c.b16 %v4385, %v4377
    %v4866 = vpack.c.b16 %v4386, %v4378
    %v4867 = vpack.c.b16 %v4387, %v4379
    %v4868 = vpack.c.b16 %v4388, %v4380
    %v4869 = vpack.c.b16 %v4389, %v4381
    %v4870 = vpack.c.b16 %v4398, %v4390
    %v4871 = vpack.c.b16 %v4399, %v4391
    %v4872 = vpack.c.b16 %v4400, %v4392
    %v4873 = vpack.c.b16 %v4401, %v4393
    %v4874 = vpack.c.b16 %v4402, %v4394
    %v4875 = vpack.c.b16 %v4403, %v4395
    %v4876 = vpack.c.b16 %v4404, %v4396
    %v4877 = vpack.c.b16 %v4405, %v4397
    %v4878 = vpack.c.b16 %v4414, %v4406
    %v4879 = vpack.c.b16 %v4415, %v4407
    %v4880 = vpack.c.b16 %v4416, %v4408
    %v4881 = vpack.c.b16 %v4417, %v4409
    %v4882 = vpack.c.b16 %v4418, %v4410
    %v4883 = vpack.c.b16 %v4419, %v4411
    %v4884 = vpack.c.b16 %v4420, %v4412
    %v4885 = vpack.c.b16 %v4421, %v4413
    %v4886 = vpack.c.b16 %v4430, %v4422
    %v4887 = vpack.c.b16 %v4431, %v4423
    %v4888 = vpack.c.b16 %v4432, %v4424
    %v4889 = vpack.c.b16 %v4433, %v4425
    %v4890 = vpack.c.b16 %v4434, %v4426
    %v4891 = vpack.c.b16 %v4435, %v4427
    %v4892 = vpack.c.b16 %v4436, %v4428
    %v4893 = vpack.c.b16 %v4437, %v4429
    %v4894 = vpack.c.b16 %v4446, %v4438
    %v4895 = vpack.c.b16 %v4447, %v4439
    %v4896 = vpack.c.b16 %v4448, %v4440
    %v4897 = vpack.c.b16 %v4449, %v4441
    %v4898 = vpack.c.b16 %v4450, %v4442
    %v4899 = vpack.c.b16 %v4451, %v4443
    %v4900 = vpack.c.b16 %v4452, %v4444
    %v4901 = vpack.c.b16 %v4453, %v4445
    %v4902 = vpack.c.b16 %v4462, %v4454
    %v4903 = vpack.c.b16 %v4463, %v4455
    %v4904 = vpack.c.b16 %v4464, %v4456
    %v4905 = vpack.c.b16 %v4465, %v4457
    %v4906 = vpack.c.b16 %v4466, %v4458
    %v4907 = vpack.c.b16 %v4467, %v4459
    %v4908 = vpack.c.b16 %v4468, %v4460
    %v4909 = vpack.c.b16 %v4469, %v4461
    %v4910 = vpack.c.b16 %v4478, %v4470
    %v4911 = vpack.c.b16 %v4479, %v4471
    %v4912 = vpack.c.b16 %v4480, %v4472
    %v4913 = vpack.c.b16 %v4481, %v4473
    %v4914 = vpack.c.b16 %v4482, %v4474
    %v4915 = vpack.c.b16 %v4483, %v4475
    %v4916 = vpack.c.b16 %v4484, %v4476
    %v4917 = vpack.c.b16 %v4485, %v4477
    %v4918 = vpack.c.b16 %v4494, %v4486
    %v4919 = vpack.c.b16 %v4495, %v4487
    %v4920 = vpack.c.b16 %v4496, %v4488
    %v4921 = vpack.c.b16 %v4497, %v4489
    %v4922 = vpack.c.b16 %v4498, %v4490
    %v4923 = vpack.c.b16 %v4499, %v4491
    %v4924 = vpack.c.b16 %v4500, %v4492
    %v4925 = vpack.c.b16 %v4501, %v4493
    %v4926 = vpack.c.b16 %v4510, %v4502
    %v4927 = vpack.c.b16 %v4511, %v4503
    %v4928 = vpack.c.b16 %v4512, %v4504
    %v4929 = vpack.c.b16 %v4513, %v4505
    %v4930 = vpack.c.b16 %v4514, %v4506
    %v4931 = vpack.c.b16 %v4515, %v4507
    %v4932 = vpack.c.b16 %v4516, %v4508
    %v4933 = vpack.c.b16 %v4517, %v4509
    %v4934 = vpack.c.b16 %v4526, %v4518
    %v4935 = vpack.c.b16 %v4527, %v4519
    %v4936 = vpack.c.b16 %v4528, %v4520
    %v4937 = vpack.c.b16 %v4529, %v4521
    %v4938 = vpack.c.b16 %v4530, %v4522
    %v4939 = vpack.c.b16 %v4531, %v4523
    %v4940 = vpack.c.b16 %v4532, %v4524
    %v4941 = vpack.c.b16 %v4533, %v4525
    %v4942 = vpack.c.b16 %v4542, %v4534
    %v4943 = vpack.c.b16 %v4543, %v4535
    %v4944 = vpack.c.b16 %v4544, %v4536
    %v4945 = vpack.c.b16 %v4545, %v4537
    %v4946 = vpack.c.b16 %v4546, %v4538
    %v4947 = vpack.c.b16 %v4547, %v4539
    %v4948 = vpack.c.b16 %v4548, %v4540
    %v4949 = vpack.c.b16 %v4549, %v4541
    %v4950 = vpack.c.b16 %v4558, %v4550
    %v4951 = vpack.c.b16 %v4559, %v4551
    %v4952 = vpack.c.b16 %v4560, %v4552
    %v4953 = vpack.c.b16 %v4561, %v4553
    %v4954 = vpack.c.b16 %v4562, %v4554
    %v4955 = vpack.c.b16 %v4563, %v4555
    %v4956 = vpack.c.b16 %v4564, %v4556
    %v4957 = vpack.c.b16 %v4565, %v4557
    %v4958 = vpack.c.b16 %v4574, %v4566
    %v4959 = vpack.c.b16 %v4575, %v4567
    %v4960 = vpack.c.b16 %v4576, %v4568
    %v4961 = vpack.c.b16 %v4577, %v4569
    %v4962 = vpack.c.b16 %v4578, %v4570
    %v4963 = vpack.c.b16 %v4579, %v4571
    %v4964 = vpack.c.b16 %v4580, %v4572
    %v4965 = vpack.c.b16 %v4581, %v4573
    %v4966 = vpack.c.b16 %v4590, %v4582
    %v4967 = vpack.c.b16 %v4591, %v4583
    %v4968 = vpack.c.b16 %v4592, %v4584
    %v4969 = vpack.c.b16 %v4593, %v4585
    %v4970 = vpack.c.b16 %v4594, %v4586
    %v4971 = vpack.c.b16 %v4595, %v4587
    %v4972 = vpack.c.b16 %v4596, %v4588
    %v4973 = vpack.c.b16 %v4597, %v4589
    %v4974 = vpack.c.b16 %v4606, %v4598
    %v4975 = vpack.c.b16 %v4607, %v4599
    %v4976 = vpack.c.b16 %v4608, %v4600
    %v4977 = vpack.c.b16 %v4609, %v4601
    %v4978 = vpack.c.b16 %v4610, %v4602
    %v4979 = vpack.c.b16 %v4611, %v4603
    %v4980 = vpack.c.b16 %v4612, %v4604
    %v4981 = vpack.c.b16 %v4613, %v4605
    %v4982 = vpack.c.b16 %v4622, %v4614
    %v4983 = vpack.c.b16 %v4623, %v4615
    %v4984 = vpack.c.b16 %v4624, %v4616
    %v4985 = vpack.c.b16 %v4625, %v4617
    %v4986 = vpack.c.b16 %v4626, %v4618
    %v4987 = vpack.c.b16 %v4627, %v4619
    %v4988 = vpack.c.b16 %v4628, %v4620
    %v4989 = vpack.c.b16 %v4629, %v4621
    %v4990 = vpack.c.b16 %v4638, %v4630
    %v4991 = vpack.c.b16 %v4639, %v4631
    %v4992 = vpack.c.b16 %v4640, %v4632
    %v4993 = vpack.c.b16 %v4641, %v4633
    %v4994 = vpack.c.b16 %v4642, %v4634
    %v4995 = vpack.c.b16 %v4643, %v4635
    %v4996 = vpack.c.b16 %v4644, %v4636
    %v4997 = vpack.c.b16 %v4645, %v4637
    %v4998 = vpack.c.b16 %v4654, %v4646
    %v4999 = vpack.c.b16 %v4655, %v4647
    %v5000 = vpack.c.b16 %v4656, %v4648
    %v5001 = vpack.c.b16 %v4657, %v4649
    %v5002 = vpack.c.b16 %v4658, %v4650
    %v5003 = vpack.c.b16 %v4659, %v4651
    %v5004 = vpack.c.b16 %v4660, %v4652
    %v5005 = vpack.c.b16 %v4661, %v4653
    %v5006 = vpack.c.b16 %v4670, %v4662
    %v5007 = vpack.c.b16 %v4671, %v4663
    %v5008 = vpack.c.b16 %v4672, %v4664
    %v5009 = vpack.c.b16 %v4673, %v4665
    %v5010 = vpack.c.b16 %v4674, %v4666
    %v5011 = vpack.c.b16 %v4675, %v4667
    %v5012 = vpack.c.b16 %v4676, %v4668
    %v5013 = vpack.c.b16 %v4677, %v4669
    %v5014 = vpack.c.b16 %v4686, %v4678
    %v5015 = vpack.c.b16 %v4687, %v4679
    %v5016 = vpack.c.b16 %v4688, %v4680
    %v5017 = vpack.c.b16 %v4689, %v4681
    %v5018 = vpack.c.b16 %v4690, %v4682
    %v5019 = vpack.c.b16 %v4691, %v4683
    %v5020 = vpack.c.b16 %v4692, %v4684
    %v5021 = vpack.c.b16 %v4693, %v4685
    %v5022 = vpack.c.b16 %v4702, %v4694
    %v5023 = vpack.c.b16 %v4703, %v4695
    %v5024 = vpack.c.b16 %v4704, %v4696
    %v5025 = vpack.c.b16 %v4705, %v4697
    %v5026 = vpack.c.b16 %v4706, %v4698
    %v5027 = vpack.c.b16 %v4707, %v4699
    %v5028 = vpack.c.b16 %v4708, %v4700
    %v5029 = vpack.c.b16 %v4709, %v4701
    %v5030 = vpack.c.b16 %v4718, %v4710
    %v5031 = vpack.c.b16 %v4719, %v4711
    %v5032 = vpack.c.b16 %v4720, %v4712
    %v5033 = vpack.c.b16 %v4721, %v4713
    %v5034 = vpack.c.b16 %v4722, %v4714
    %v5035 = vpack.c.b16 %v4723, %v4715
    %v5036 = vpack.c.b16 %v4724, %v4716
    %v5037 = vpack.c.b16 %v4725, %v4717
    %v5038 = vpack.c.b16 %v4734, %v4726
    %v5039 = vpack.c.b16 %v4735, %v4727
    %v5040 = vpack.c.b16 %v4736, %v4728
    %v5041 = vpack.c.b16 %v4737, %v4729
    %v5042 = vpack.c.b16 %v4738, %v4730
    %v5043 = vpack.c.b16 %v4739, %v4731
    %v5044 = vpack.c.b16 %v4740, %v4732
    %v5045 = vpack.c.b16 %v4741, %v4733
    %v5046 = vpack.c.b16 %v4750, %v4742
    %v5047 = vpack.c.b16 %v4751, %v4743
    %v5048 = vpack.c.b16 %v4752, %v4744
    %v5049 = vpack.c.b16 %v4753, %v4745
    %v5050 = vpack.c.b16 %v4754, %v4746
    %v5051 = vpack.c.b16 %v4755, %v4747
    %v5052 = vpack.c.b16 %v4756, %v4748
    %v5053 = vpack.c.b16 %v4757, %v4749
    %v5054 = vpack.c.b16 %v4766, %v4758
    %v5055 = vpack.c.b16 %v4767, %v4759
    %v5056 = vpack.c.b16 %v4768, %v4760
    %v5057 = vpack.c.b16 %v4769, %v4761
    %v5058 = vpack.c.b16 %v4770, %v4762
    %v5059 = vpack.c.b16 %v4771, %v4763
    %v5060 = vpack.c.b16 %v4772, %v4764
    %v5061 = vpack.c.b16 %v4773, %v4765
    %v5062 = vpack.c.b16 %v4782, %v4774
    %v5063 = vpack.c.b16 %v4783, %v4775
    %v5064 = vpack.c.b16 %v4784, %v4776
    %v5065 = vpack.c.b16 %v4785, %v4777
    %v5066 = vpack.c.b16 %v4786, %v4778
    %v5067 = vpack.c.b16 %v4787, %v4779
    %v5068 = vpack.c.b16 %v4788, %v4780
    %v5069 = vpack.c.b16 %v4789, %v4781
    %v5070 = vpack.c.b16 %v4798, %v4790
    %v5071 = vpack.c.b16 %v4799, %v4791
    %v5072 = vpack.c.b16 %v4800, %v4792
    %v5073 = vpack.c.b16 %v4801, %v4793
    %v5074 = vpack.c.b16 %v4802, %v4794
    %v5075 = vpack.c.b16 %v4803, %v4795
    %v5076 = vpack.c.b16 %v4804, %v4796
    %v5077 = vpack.c.b16 %v4805, %v4797
    %v5078 = vpack.c.b16 %v4814, %v4806
    %v5079 = vpack.c.b16 %v4815, %v4807
    %v5080 = vpack.c.b16 %v4816, %v4808
    %v5081 = vpack.c.b16 %v4817, %v4809
    %v5082 = vpack.c.b16 %v4818, %v4810
    %v5083 = vpack.c.b16 %v4819, %v4811
    %v5084 = vpack.c.b16 %v4820, %v4812
    %v5085 = vpack.c.b16 %v4821, %v4813
    %v5086 = vpack.c.b16 %v4830, %v4822
    %v5087 = vpack.c.b16 %v4831, %v4823
    %v5088 = vpack.c.b16 %v4832, %v4824
    %v5089 = vpack.c.b16 %v4833, %v4825
    %v5090 = vpack.c.b16 %v4834, %v4826
    %v5091 = vpack.c.b16 %v4835, %v4827
    %v5092 = vpack.c.b16 %v4836, %v4828
    %v5093 = vpack.c.b16 %v4837, %v4829
    %5350 = vmatprep.subr.bf16.mxu0 %v4839
    %5351 = vmatpush1.bf16.msra.mxu0 %v4838
    %5352 = vmatprep.subr.bf16.mxu0 %v4847
    %5353 = vmatpush1.bf16.msra.mxu0 %v4846
    %5354 = vmatprep.subr.bf16.mxu0 %v4855
    %5355 = vmatpush1.bf16.msra.mxu0 %v4854
    %5356 = vmatprep.subr.bf16.mxu0 %v4863
    %5357 = vmatpush1.bf16.msra.mxu0 %v4862
    %5358 = vmatprep.subr.bf16.mxu0 %v4871
    %5359 = vmatpush1.bf16.msra.mxu0 %v4870
    %5360 = vmatprep.subr.bf16.mxu0 %v4879
    %5361 = vmatpush1.bf16.msra.mxu0 %v4878
    %5362 = vmatprep.subr.bf16.mxu0 %v4887
    %5363 = vmatpush1.bf16.msra.mxu0 %v4886
    %5364 = vmatprep.subr.bf16.mxu0 %v4895
    %5365 = vmatpush1.bf16.msra.mxu0 %v4894
    %5366 = vmatprep.subr.bf16.mxu0 %v4903
    %5367 = vmatpush1.bf16.msra.mxu0 %v4902
    %5368 = vmatprep.subr.bf16.mxu0 %v4911
    %5369 = vmatpush1.bf16.msra.mxu0 %v4910
    %5370 = vmatprep.subr.bf16.mxu0 %v4919
    %5371 = vmatpush1.bf16.msra.mxu0 %v4918
    %5372 = vmatprep.subr.bf16.mxu0 %v4927
    %5373 = vmatpush1.bf16.msra.mxu0 %v4926
    %5374 = vmatprep.subr.bf16.mxu0 %v4935
    %5375 = vmatpush1.bf16.msra.mxu0 %v4934
    %5376 = vmatprep.subr.bf16.mxu0 %v4943
    %5377 = vmatpush1.bf16.msra.mxu0 %v4942
    %5378 = vmatprep.subr.bf16.mxu0 %v4951
    %5379 = vmatpush1.bf16.msra.mxu0 %v4950
    %5380 = vmatprep.subr.bf16.mxu0 %v4959
    %5381 = vmatpush1.bf16.msra.mxu0 %v4958
    %5382 = vmatprep.mubr.bf16.mxu0 %v1650
    %5383 = vmatmul.mubr.bf16.gmra.mrb[0].mxu0 %v1649
    %v5384 = vpop.f32.mrb[0].mxu0
    %v5385 = vadd.f32 %v3608, %v5384
    %v5386 = vpop.f32.mrb[0].mxu0
    %v5387 = vadd.f32 %v3610, %v5386
    %v5388 = vpop.f32.mrb[0].mxu0
    %v5389 = vadd.f32 %v3612, %v5388
    %v5390 = vpop.f32.mrb[0].mxu0
    %v5391 = vadd.f32 %v3614, %v5390
    %5392 = vmatprep.mubr.bf16.mxu0 %v1654
    %5393 = vmatmul.mubr.bf16.gmra.mrb[0].mxu0 %v1653
    %v5394 = vpop.f32.mrb[0].mxu0
    %v5395 = vadd.f32 %v3618, %v5394
    %v5396 = vpop.f32.mrb[0].mxu0
    %v5397 = vadd.f32 %v3620, %v5396
    %v5398 = vpop.f32.mrb[0].mxu0
    %v5399 = vadd.f32 %v3622, %v5398
    %v5400 = vpop.f32.mrb[0].mxu0
    %v5401 = vadd.f32 %v3624, %v5400
    %5402 = vmatprep.mubr.bf16.mxu0 %v1658
    %5403 = vmatmul.mubr.bf16.gmra.mrb[0].mxu0 %v1657
    %v5404 = vpop.f32.mrb[0].mxu0
    %v5405 = vadd.f32 %v3628, %v5404
    %v5406 = vpop.f32.mrb[0].mxu0
    %v5407 = vadd.f32 %v3630, %v5406
    %v5408 = vpop.f32.mrb[0].mxu0
    %v5409 = vadd.f32 %v3632, %v5408
    %v5410 = vpop.f32.mrb[0].mxu0
    %v5411 = vadd.f32 %v3634, %v5410
    %5412 = vmatprep.mubr.bf16.mxu0 %v1662
    %5413 = vmatmul.mubr.bf16.gmra.mrb[0].mxu0 %v1661
    %v5414 = vpop.f32.mrb[0].mxu0
    %v5415 = vadd.f32 %v3638, %v5414
    %v5416 = vpop.f32.mrb[0].mxu0
    %v5417 = vadd.f32 %v3640, %v5416
    %v5418 = vpop.f32.mrb[0].mxu0
    %v5419 = vpop.f32.mrb[0].mxu0
    %5420 = vdwg.mxu0
    %5421 = vmatprep.subr.bf16.mxu0 %v4967
    %5422 = vmatpush1.bf16.msra.mxu0 %v4966
    %5423 = vmatprep.subr.bf16.mxu0 %v4975
    %5424 = vmatpush1.bf16.msra.mxu0 %v4974
    %5425 = vmatprep.subr.bf16.mxu0 %v4983
    %5426 = vmatpush1.bf16.msra.mxu0 %v4982
    %5427 = vmatprep.subr.bf16.mxu0 %v4991
    %5428 = vmatpush1.bf16.msra.mxu0 %v4990
    %5429 = vmatprep.subr.bf16.mxu0 %v4999
    %5430 = vmatpush1.bf16.msra.mxu0 %v4998
    %5431 = vmatprep.subr.bf16.mxu0 %v5007
    %5432 = vmatpush1.bf16.msra.mxu0 %v5006
    %5433 = vmatprep.subr.bf16.mxu0 %v5015
    %5434 = vmatpush1.bf16.msra.mxu0 %v5014
    %5435 = vmatprep.subr.bf16.mxu0 %v5023
    %5436 = vmatpush1.bf16.msra.mxu0 %v5022
    %5437 = vmatprep.subr.bf16.mxu0 %v5031
    %5438 = vmatpush1.bf16.msra.mxu0 %v5030
    %5439 = vmatprep.subr.bf16.mxu0 %v5039
    %5440 = vmatpush1.bf16.msra.mxu0 %v5038
    %5441 = vmatprep.subr.bf16.mxu0 %v5047
    %5442 = vmatpush1.bf16.msra.mxu0 %v5046
    %5443 = vmatprep.subr.bf16.mxu0 %v5055
    %5444 = vmatpush1.bf16.msra.mxu0 %v5054
    %5445 = vmatprep.subr.bf16.mxu0 %v5063
    %5446 = vmatpush1.bf16.msra.mxu0 %v5062
    %5447 = vmatprep.subr.bf16.mxu0 %v5071
    %5448 = vmatpush1.bf16.msra.mxu0 %v5070
    %5449 = vmatprep.subr.bf16.mxu0 %v5079
    %5450 = vmatpush1.bf16.msra.mxu0 %v5078
    %5451 = vmatprep.subr.bf16.mxu0 %v5087
    %5452 = vmatpush1.bf16.msra.mxu0 %v5086
    %5453 = vmatprep.mubr.bf16.mxu0 %v1652
    %5454 = vmatmul.mubr.bf16.gmra.mrb[0].mxu0 %v1651
    %v5455 = vpop.f32.mrb[0].mxu0
    %v5456 = vadd.f32 %v5385, %v5455
    %v5457 = vpop.f32.mrb[0].mxu0
    %v5458 = vadd.f32 %v5387, %v5457
    %v5459 = vpop.f32.mrb[0].mxu0
    %v5460 = vadd.f32 %v5389, %v5459
    %v5461 = vpop.f32.mrb[0].mxu0
    %v5462 = vadd.f32 %v5391, %v5461
    %5463 = vmatprep.mubr.bf16.mxu0 %v1656
    %5464 = vmatmul.mubr.bf16.gmra.mrb[0].mxu0 %v1655
    %v5465 = vpop.f32.mrb[0].mxu0
    %v5466 = vadd.f32 %v5395, %v5465
    %v5467 = vpop.f32.mrb[0].mxu0
    %v5468 = vadd.f32 %v5397, %v5467
    %v5469 = vpop.f32.mrb[0].mxu0
    %v5470 = vadd.f32 %v5399, %v5469
    %v5471 = vpop.f32.mrb[0].mxu0
    %v5472 = vadd.f32 %v5401, %v5471
    %5473 = vmatprep.mubr.bf16.mxu0 %v1660
    %5474 = vmatmul.mubr.bf16.gmra.mrb[0].mxu0 %v1659
    %v5475 = vpop.f32.mrb[0].mxu0
    %v5476 = vadd.f32 %v5405, %v5475
    %v5477 = vpop.f32.mrb[0].mxu0
    %v5478 = vadd.f32 %v5407, %v5477
    %v5479 = vpop.f32.mrb[0].mxu0
    %v5480 = vadd.f32 %v5409, %v5479
    %v5481 = vpop.f32.mrb[0].mxu0
    %v5482 = vadd.f32 %v5411, %v5481
    %5483 = vmatprep.mubr.bf16.mxu0 %v1664
    %5484 = vmatmul.mubr.bf16.gmra.mrb[0].mxu0 %v1663
    %v5485 = vpop.f32.mrb[0].mxu0
    %v5486 = vadd.f32 %v5415, %v5485
    %v5487 = vpop.f32.mrb[0].mxu0
    %v5488 = vadd.f32 %v5417, %v5487
    %v5489 = vpop.f32.mrb[0].mxu0
    %v5490 = vpop.f32.mrb[0].mxu0
    %5491 = vdwg.mxu0
    %5492 = vmatprep.subr.bf16.mxu0 %v4841
    %5493 = vmatpush1.bf16.msra.mxu0 %v4840
    %5494 = vmatprep.subr.bf16.mxu0 %v4849
    %5495 = vmatpush1.bf16.msra.mxu0 %v4848
    %5496 = vmatprep.subr.bf16.mxu0 %v4857
    %5497 = vmatpush1.bf16.msra.mxu0 %v4856
    %5498 = vmatprep.subr.bf16.mxu0 %v4865
    %5499 = vmatpush1.bf16.msra.mxu0 %v4864
    %5500 = vmatprep.subr.bf16.mxu0 %v4873
    %5501 = vmatpush1.bf16.msra.mxu0 %v4872
    %5502 = vmatprep.subr.bf16.mxu0 %v4881
    %5503 = vmatpush1.bf16.msra.mxu0 %v4880
    %5504 = vmatprep.subr.bf16.mxu0 %v4889
    %5505 = vmatpush1.bf16.msra.mxu0 %v4888
    %5506 = vmatprep.subr.bf16.mxu0 %v4897
    %5507 = vmatpush1.bf16.msra.mxu0 %v4896
    %5508 = vmatprep.subr.bf16.mxu0 %v4905
    %5509 = vmatpush1.bf16.msra.mxu0 %v4904
    %5510 = vmatprep.subr.bf16.mxu0 %v4913
    %5511 = vmatpush1.bf16.msra.mxu0 %v4912
    %5512 = vmatprep.subr.bf16.mxu0 %v4921
    %5513 = vmatpush1.bf16.msra.mxu0 %v4920
    %5514 = vmatprep.subr.bf16.mxu0 %v4929
    %5515 = vmatpush1.bf16.msra.mxu0 %v4928
    %5516 = vmatprep.subr.bf16.mxu0 %v4937
    %5517 = vmatpush1.bf16.msra.mxu0 %v4936
    %5518 = vmatprep.subr.bf16.mxu0 %v4945
    %5519 = vmatpush1.bf16.msra.mxu0 %v4944
    %5520 = vmatprep.subr.bf16.mxu0 %v4953
    %5521 = vmatpush1.bf16.msra.mxu0 %v4952
    %5522 = vmatprep.subr.bf16.mxu0 %v4961
    %5523 = vmatpush1.bf16.msra.mxu0 %v4960
    %5524 = vmatprep.mubr.bf16.mxu0 %v1650
    %5525 = vmatmul.mubr.bf16.gmra.mrb[0].mxu0 %v1649
    %v5526 = vpop.f32.mrb[0].mxu0
    %v5527 = vadd.f32 %v3750, %v5526
    %v5528 = vpop.f32.mrb[0].mxu0
    %v5529 = vadd.f32 %v3752, %v5528
    %v5530 = vpop.f32.mrb[0].mxu0
    %v5531 = vadd.f32 %v3754, %v5530
    %v5532 = vpop.f32.mrb[0].mxu0
    %v5533 = vadd.f32 %v3756, %v5532
    %5534 = vmatprep.mubr.bf16.mxu0 %v1654
    %5535 = vmatmul.mubr.bf16.gmra.mrb[0].mxu0 %v1653
    %v5536 = vpop.f32.mrb[0].mxu0
    %v5537 = vadd.f32 %v3760, %v5536
    %v5538 = vpop.f32.mrb[0].mxu0
    %v5539 = vadd.f32 %v3762, %v5538
    %v5540 = vpop.f32.mrb[0].mxu0
    %v5541 = vadd.f32 %v3764, %v5540
    %v5542 = vpop.f32.mrb[0].mxu0
    %v5543 = vadd.f32 %v3766, %v5542
    %5544 = vmatprep.mubr.bf16.mxu0 %v1658
    %5545 = vmatmul.mubr.bf16.gmra.mrb[0].mxu0 %v1657
    %v5546 = vpop.f32.mrb[0].mxu0
    %v5547 = vadd.f32 %v3770, %v5546
    %v5548 = vpop.f32.mrb[0].mxu0
    %v5549 = vadd.f32 %v3772, %v5548
    %v5550 = vpop.f32.mrb[0].mxu0
    %v5551 = vadd.f32 %v3774, %v5550
    %v5552 = vpop.f32.mrb[0].mxu0
    %v5553 = vadd.f32 %v3776, %v5552
    %5554 = vmatprep.mubr.bf16.mxu0 %v1662
    %5555 = vmatmul.mubr.bf16.gmra.mrb[0].mxu0 %v1661
    %v5556 = vpop.f32.mrb[0].mxu0
    %v5557 = vadd.f32 %v3780, %v5556
    %v5558 = vpop.f32.mrb[0].mxu0
    %v5559 = vadd.f32 %v3782, %v5558
    %v5560 = vpop.f32.mrb[0].mxu0
    %v5561 = vpop.f32.mrb[0].mxu0
    %5562 = vdwg.mxu0
    %5563 = vmatprep.subr.bf16.mxu0 %v4969
    %5564 = vmatpush1.bf16.msra.mxu0 %v4968
    %5565 = vmatprep.subr.bf16.mxu0 %v4977
    %5566 = vmatpush1.bf16.msra.mxu0 %v4976
    %5567 = vmatprep.subr.bf16.mxu0 %v4985
    %5568 = vmatpush1.bf16.msra.mxu0 %v4984
    %5569 = vmatprep.subr.bf16.mxu0 %v4993
    %5570 = vmatpush1.bf16.msra.mxu0 %v4992
    %5571 = vmatprep.subr.bf16.mxu0 %v5001
    %5572 = vmatpush1.bf16.msra.mxu0 %v5000
    %5573 = vmatprep.subr.bf16.mxu0 %v5009
    %5574 = vmatpush1.bf16.msra.mxu0 %v5008
    %5575 = vmatprep.subr.bf16.mxu0 %v5017
    %5576 = vmatpush1.bf16.msra.mxu0 %v5016
    %5577 = vmatprep.subr.bf16.mxu0 %v5025
    %5578 = vmatpush1.bf16.msra.mxu0 %v5024
    %5579 = vmatprep.subr.bf16.mxu0 %v5033
    %5580 = vmatpush1.bf16.msra.mxu0 %v5032
    %5581 = vmatprep.subr.bf16.mxu0 %v5041
    %5582 = vmatpush1.bf16.msra.mxu0 %v5040
    %5583 = vmatprep.subr.bf16.mxu0 %v5049
    %5584 = vmatpush1.bf16.msra.mxu0 %v5048
    %5585 = vmatprep.subr.bf16.mxu0 %v5057
    %5586 = vmatpush1.bf16.msra.mxu0 %v5056
    %5587 = vmatprep.subr.bf16.mxu0 %v5065
    %5588 = vmatpush1.bf16.msra.mxu0 %v5064
    %5589 = vmatprep.subr.bf16.mxu0 %v5073
    %5590 = vmatpush1.bf16.msra.mxu0 %v5072
    %5591 = vmatprep.subr.bf16.mxu0 %v5081
    %5592 = vmatpush1.bf16.msra.mxu0 %v5080
    %5593 = vmatprep.subr.bf16.mxu0 %v5089
    %5594 = vmatpush1.bf16.msra.mxu0 %v5088
    %5595 = vmatprep.mubr.bf16.mxu0 %v1652
    %5596 = vmatmul.mubr.bf16.gmra.mrb[0].mxu0 %v1651
    %v5597 = vpop.f32.mrb[0].mxu0
    %v5598 = vadd.f32 %v5527, %v5597
    %v5599 = vpop.f32.mrb[0].mxu0
    %v5600 = vadd.f32 %v5529, %v5599
    %v5601 = vpop.f32.mrb[0].mxu0
    %v5602 = vadd.f32 %v5531, %v5601
    %v5603 = vpop.f32.mrb[0].mxu0
    %v5604 = vadd.f32 %v5533, %v5603
    %5605 = vmatprep.mubr.bf16.mxu0 %v1656
    %5606 = vmatmul.mubr.bf16.gmra.mrb[0].mxu0 %v1655
    %v5607 = vpop.f32.mrb[0].mxu0
    %v5608 = vadd.f32 %v5537, %v5607
    %v5609 = vpop.f32.mrb[0].mxu0
    %v5610 = vadd.f32 %v5539, %v5609
    %v5611 = vpop.f32.mrb[0].mxu0
    %v5612 = vadd.f32 %v5541, %v5611
    %v5613 = vpop.f32.mrb[0].mxu0
    %v5614 = vadd.f32 %v5543, %v5613
    %5615 = vmatprep.mubr.bf16.mxu0 %v1660
    %5616 = vmatmul.mubr.bf16.gmra.mrb[0].mxu0 %v1659
    %v5617 = vpop.f32.mrb[0].mxu0
    %v5618 = vadd.f32 %v5547, %v5617
    %v5619 = vpop.f32.mrb[0].mxu0
    %v5620 = vadd.f32 %v5549, %v5619
    %v5621 = vpop.f32.mrb[0].mxu0
    %v5622 = vadd.f32 %v5551, %v5621
    %v5623 = vpop.f32.mrb[0].mxu0
    %v5624 = vadd.f32 %v5553, %v5623
    %5625 = vmatprep.mubr.bf16.mxu0 %v1664
    %5626 = vmatmul.mubr.bf16.gmra.mrb[0].mxu0 %v1663
    %v5627 = vpop.f32.mrb[0].mxu0
    %v5628 = vadd.f32 %v5557, %v5627
    %v5629 = vpop.f32.mrb[0].mxu0
    %v5630 = vadd.f32 %v5559, %v5629
    %v5631 = vpop.f32.mrb[0].mxu0
    %v5632 = vpop.f32.mrb[0].mxu0
    %5633 = vdwg.mxu0
    %5634 = vmatprep.subr.bf16.mxu0 %v4843
    %5635 = vmatpush1.bf16.msra.mxu0 %v4842
    %5636 = vmatprep.subr.bf16.mxu0 %v4851
    %5637 = vmatpush1.bf16.msra.mxu0 %v4850
    %5638 = vmatprep.subr.bf16.mxu0 %v4859
    %5639 = vmatpush1.bf16.msra.mxu0 %v4858
    %5640 = vmatprep.subr.bf16.mxu0 %v4867
    %5641 = vmatpush1.bf16.msra.mxu0 %v4866
    %5642 = vmatprep.subr.bf16.mxu0 %v4875
    %5643 = vmatpush1.bf16.msra.mxu0 %v4874
    %5644 = vmatprep.subr.bf16.mxu0 %v4883
    %5645 = vmatpush1.bf16.msra.mxu0 %v4882
    %5646 = vmatprep.subr.bf16.mxu0 %v4891
    %5647 = vmatpush1.bf16.msra.mxu0 %v4890
    %5648 = vmatprep.subr.bf16.mxu0 %v4899
    %5649 = vmatpush1.bf16.msra.mxu0 %v4898
    %5650 = vmatprep.subr.bf16.mxu0 %v4907
    %5651 = vmatpush1.bf16.msra.mxu0 %v4906
    %5652 = vmatprep.subr.bf16.mxu0 %v4915
    %5653 = vmatpush1.bf16.msra.mxu0 %v4914
    %5654 = vmatprep.subr.bf16.mxu0 %v4923
    %5655 = vmatpush1.bf16.msra.mxu0 %v4922
    %5656 = vmatprep.subr.bf16.mxu0 %v4931
    %5657 = vmatpush1.bf16.msra.mxu0 %v4930
    %5658 = vmatprep.subr.bf16.mxu0 %v4939
    %5659 = vmatpush1.bf16.msra.mxu0 %v4938
    %5660 = vmatprep.subr.bf16.mxu0 %v4947
    %5661 = vmatpush1.bf16.msra.mxu0 %v4946
    %5662 = vmatprep.subr.bf16.mxu0 %v4955
    %5663 = vmatpush1.bf16.msra.mxu0 %v4954
    %5664 = vmatprep.subr.bf16.mxu0 %v4963
    %5665 = vmatpush1.bf16.msra.mxu0 %v4962
    %5666 = vmatprep.mubr.bf16.mxu0 %v1650
    %5667 = vmatmul.mubr.bf16.gmra.mrb[0].mxu0 %v1649
    %v5668 = vpop.f32.mrb[0].mxu0
    %v5669 = vadd.f32 %v3892, %v5668
    %v5670 = vpop.f32.mrb[0].mxu0
    %v5671 = vadd.f32 %v3894, %v5670
    %v5672 = vpop.f32.mrb[0].mxu0
    %v5673 = vadd.f32 %v3896, %v5672
    %v5674 = vpop.f32.mrb[0].mxu0
    %v5675 = vadd.f32 %v3898, %v5674
    %5676 = vmatprep.mubr.bf16.mxu0 %v1654
    %5677 = vmatmul.mubr.bf16.gmra.mrb[0].mxu0 %v1653
    %v5678 = vpop.f32.mrb[0].mxu0
    %v5679 = vadd.f32 %v3902, %v5678
    %v5680 = vpop.f32.mrb[0].mxu0
    %v5681 = vadd.f32 %v3904, %v5680
    %v5682 = vpop.f32.mrb[0].mxu0
    %v5683 = vadd.f32 %v3906, %v5682
    %v5684 = vpop.f32.mrb[0].mxu0
    %v5685 = vadd.f32 %v3908, %v5684
    %5686 = vmatprep.mubr.bf16.mxu0 %v1658
    %5687 = vmatmul.mubr.bf16.gmra.mrb[0].mxu0 %v1657
    %v5688 = vpop.f32.mrb[0].mxu0
    %v5689 = vadd.f32 %v3912, %v5688
    %v5690 = vpop.f32.mrb[0].mxu0
    %v5691 = vadd.f32 %v3914, %v5690
    %v5692 = vpop.f32.mrb[0].mxu0
    %v5693 = vadd.f32 %v3916, %v5692
    %v5694 = vpop.f32.mrb[0].mxu0
    %v5695 = vadd.f32 %v3918, %v5694
    %5696 = vmatprep.mubr.bf16.mxu0 %v1662
    %5697 = vmatmul.mubr.bf16.gmra.mrb[0].mxu0 %v1661
    %v5698 = vpop.f32.mrb[0].mxu0
    %v5699 = vadd.f32 %v3922, %v5698
    %v5700 = vpop.f32.mrb[0].mxu0
    %v5701 = vadd.f32 %v3924, %v5700
    %v5702 = vpop.f32.mrb[0].mxu0
    %v5703 = vpop.f32.mrb[0].mxu0
    %5704 = vdwg.mxu0
    %5705 = vmatprep.subr.bf16.mxu0 %v4971
    %5706 = vmatpush1.bf16.msra.mxu0 %v4970
    %5707 = vmatprep.subr.bf16.mxu0 %v4979
    %5708 = vmatpush1.bf16.msra.mxu0 %v4978
    %5709 = vmatprep.subr.bf16.mxu0 %v4987
    %5710 = vmatpush1.bf16.msra.mxu0 %v4986
    %5711 = vmatprep.subr.bf16.mxu0 %v4995
    %5712 = vmatpush1.bf16.msra.mxu0 %v4994
    %5713 = vmatprep.subr.bf16.mxu0 %v5003
    %5714 = vmatpush1.bf16.msra.mxu0 %v5002
    %5715 = vmatprep.subr.bf16.mxu0 %v5011
    %5716 = vmatpush1.bf16.msra.mxu0 %v5010
    %5717 = vmatprep.subr.bf16.mxu0 %v5019
    %5718 = vmatpush1.bf16.msra.mxu0 %v5018
    %5719 = vmatprep.subr.bf16.mxu0 %v5027
    %5720 = vmatpush1.bf16.msra.mxu0 %v5026
    %5721 = vmatprep.subr.bf16.mxu0 %v5035
    %5722 = vmatpush1.bf16.msra.mxu0 %v5034
    %5723 = vmatprep.subr.bf16.mxu0 %v5043
    %5724 = vmatpush1.bf16.msra.mxu0 %v5042
    %5725 = vmatprep.subr.bf16.mxu0 %v5051
    %5726 = vmatpush1.bf16.msra.mxu0 %v5050
    %5727 = vmatprep.subr.bf16.mxu0 %v5059
    %5728 = vmatpush1.bf16.msra.mxu0 %v5058
    %5729 = vmatprep.subr.bf16.mxu0 %v5067
    %5730 = vmatpush1.bf16.msra.mxu0 %v5066
    %5731 = vmatprep.subr.bf16.mxu0 %v5075
    %5732 = vmatpush1.bf16.msra.mxu0 %v5074
    %5733 = vmatprep.subr.bf16.mxu0 %v5083
    %5734 = vmatpush1.bf16.msra.mxu0 %v5082
    %5735 = vmatprep.subr.bf16.mxu0 %v5091
    %5736 = vmatpush1.bf16.msra.mxu0 %v5090
    %5737 = vmatprep.mubr.bf16.mxu0 %v1652
    %5738 = vmatmul.mubr.bf16.gmra.mrb[0].mxu0 %v1651
    %v5739 = vpop.f32.mrb[0].mxu0
    %v5740 = vadd.f32 %v5669, %v5739
    %v5741 = vpop.f32.mrb[0].mxu0
    %v5742 = vadd.f32 %v5671, %v5741
    %v5743 = vpop.f32.mrb[0].mxu0
    %v5744 = vadd.f32 %v5673, %v5743
    %v5745 = vpop.f32.mrb[0].mxu0
    %v5746 = vadd.f32 %v5675, %v5745
    %5747 = vmatprep.mubr.bf16.mxu0 %v1656
    %5748 = vmatmul.mubr.bf16.gmra.mrb[0].mxu0 %v1655
    %v5749 = vpop.f32.mrb[0].mxu0
    %v5750 = vadd.f32 %v5679, %v5749
    %v5751 = vpop.f32.mrb[0].mxu0
    %v5752 = vadd.f32 %v5681, %v5751
    %v5753 = vpop.f32.mrb[0].mxu0
    %v5754 = vadd.f32 %v5683, %v5753
    %v5755 = vpop.f32.mrb[0].mxu0
    %v5756 = vadd.f32 %v5685, %v5755
    %5757 = vmatprep.mubr.bf16.mxu0 %v1660
    %5758 = vmatmul.mubr.bf16.gmra.mrb[0].mxu0 %v1659
    %v5759 = vpop.f32.mrb[0].mxu0
    %v5760 = vadd.f32 %v5689, %v5759
    %v5761 = vpop.f32.mrb[0].mxu0
    %v5762 = vadd.f32 %v5691, %v5761
    %v5763 = vpop.f32.mrb[0].mxu0
    %v5764 = vadd.f32 %v5693, %v5763
    %v5765 = vpop.f32.mrb[0].mxu0
    %v5766 = vadd.f32 %v5695, %v5765
    %5767 = vmatprep.mubr.bf16.mxu0 %v1664
    %5768 = vmatmul.mubr.bf16.gmra.mrb[0].mxu0 %v1663
    %v5769 = vpop.f32.mrb[0].mxu0
    %v5770 = vadd.f32 %v5699, %v5769
    %v5771 = vpop.f32.mrb[0].mxu0
    %v5772 = vadd.f32 %v5701, %v5771
    %v5773 = vpop.f32.mrb[0].mxu0
    %v5774 = vpop.f32.mrb[0].mxu0
    %5775 = vdwg.mxu0
    %5776 = vmatprep.subr.bf16.mxu0 %v4845
    %5777 = vmatpush1.bf16.msra.mxu0 %v4844
    %5778 = vmatprep.subr.bf16.mxu0 %v4853
    %5779 = vmatpush1.bf16.msra.mxu0 %v4852
    %5780 = vmatprep.subr.bf16.mxu0 %v4861
    %5781 = vmatpush1.bf16.msra.mxu0 %v4860
    %5782 = vmatprep.subr.bf16.mxu0 %v4869
    %5783 = vmatpush1.bf16.msra.mxu0 %v4868
    %5784 = vmatprep.subr.bf16.mxu0 %v4877
    %5785 = vmatpush1.bf16.msra.mxu0 %v4876
    %5786 = vmatprep.subr.bf16.mxu0 %v4885
    %5787 = vmatpush1.bf16.msra.mxu0 %v4884
    %5788 = vmatprep.subr.bf16.mxu0 %v4893
    %5789 = vmatpush1.bf16.msra.mxu0 %v4892
    %5790 = vmatprep.subr.bf16.mxu0 %v4901
    %5791 = vmatpush1.bf16.msra.mxu0 %v4900
    %5792 = vmatprep.subr.bf16.mxu0 %v4909
    %5793 = vmatpush1.bf16.msra.mxu0 %v4908
    %5794 = vmatprep.subr.bf16.mxu0 %v4917
    %5795 = vmatpush1.bf16.msra.mxu0 %v4916
    %5796 = vmatprep.subr.bf16.mxu0 %v4925
    %5797 = vmatpush1.bf16.msra.mxu0 %v4924
    %5798 = vmatprep.subr.bf16.mxu0 %v4933
    %5799 = vmatpush1.bf16.msra.mxu0 %v4932
    %5800 = vmatprep.subr.bf16.mxu0 %v4941
    %5801 = vmatpush1.bf16.msra.mxu0 %v4940
    %5802 = vmatprep.subr.bf16.mxu0 %v4949
    %5803 = vmatpush1.bf16.msra.mxu0 %v4948
    %5804 = vmatprep.subr.bf16.mxu0 %v4957
    %5805 = vmatpush1.bf16.msra.mxu0 %v4956
    %5806 = vmatprep.subr.bf16.mxu0 %v4965
    %5807 = vmatpush1.bf16.msra.mxu0 %v4964
    %5808 = vmatprep.mubr.bf16.mxu0 %v1650
    %5809 = vmatmul.mubr.bf16.gmra.mrb[0].mxu0 %v1649
    %v5810 = vpop.f32.mrb[0].mxu0
    %v5811 = vadd.f32 %v4034, %v5810
    %v5812 = vpop.f32.mrb[0].mxu0
    %v5813 = vadd.f32 %v4036, %v5812
    %v5814 = vpop.f32.mrb[0].mxu0
    %v5815 = vadd.f32 %v4038, %v5814
    %v5816 = vpop.f32.mrb[0].mxu0
    %v5817 = vadd.f32 %v4040, %v5816
    %5818 = vmatprep.mubr.bf16.mxu0 %v1654
    %5819 = vmatmul.mubr.bf16.gmra.mrb[0].mxu0 %v1653
    %v5820 = vpop.f32.mrb[0].mxu0
    %v5821 = vadd.f32 %v4044, %v5820
    %v5822 = vpop.f32.mrb[0].mxu0
    %v5823 = vadd.f32 %v4046, %v5822
    %v5824 = vpop.f32.mrb[0].mxu0
    %v5825 = vadd.f32 %v4048, %v5824
    %v5826 = vpop.f32.mrb[0].mxu0
    %v5827 = vadd.f32 %v4050, %v5826
    %5828 = vmatprep.mubr.bf16.mxu0 %v1658
    %5829 = vmatmul.mubr.bf16.gmra.mrb[0].mxu0 %v1657
    %v5830 = vpop.f32.mrb[0].mxu0
    %v5831 = vadd.f32 %v4054, %v5830
    %v5832 = vpop.f32.mrb[0].mxu0
    %v5833 = vadd.f32 %v4056, %v5832
    %v5834 = vpop.f32.mrb[0].mxu0
    %v5835 = vadd.f32 %v4058, %v5834
    %v5836 = vpop.f32.mrb[0].mxu0
    %v5837 = vadd.f32 %v4060, %v5836
    %5838 = vmatprep.mubr.bf16.mxu0 %v1662
    %5839 = vmatmul.mubr.bf16.gmra.mrb[0].mxu0 %v1661
    %v5840 = vpop.f32.mrb[0].mxu0
    %v5841 = vadd.f32 %v4064, %v5840
    %v5842 = vpop.f32.mrb[0].mxu0
    %v5843 = vadd.f32 %v4066, %v5842
    %v5844 = vpop.f32.mrb[0].mxu0
    %v5845 = vpop.f32.mrb[0].mxu0
    %5846 = vdwg.mxu0
    %5847 = vmatprep.subr.bf16.mxu0 %v4973
    %5848 = vmatpush1.bf16.msra.mxu0 %v4972
    %5849 = vmatprep.subr.bf16.mxu0 %v4981
    %5850 = vmatpush1.bf16.msra.mxu0 %v4980
    %5851 = vmatprep.subr.bf16.mxu0 %v4989
    %5852 = vmatpush1.bf16.msra.mxu0 %v4988
    %5853 = vmatprep.subr.bf16.mxu0 %v4997
    %5854 = vmatpush1.bf16.msra.mxu0 %v4996
    %5855 = vmatprep.subr.bf16.mxu0 %v5005
    %5856 = vmatpush1.bf16.msra.mxu0 %v5004
    %5857 = vmatprep.subr.bf16.mxu0 %v5013
    %5858 = vmatpush1.bf16.msra.mxu0 %v5012
    %5859 = vmatprep.subr.bf16.mxu0 %v5021
    %5860 = vmatpush1.bf16.msra.mxu0 %v5020
    %5861 = vmatprep.subr.bf16.mxu0 %v5029
    %5862 = vmatpush1.bf16.msra.mxu0 %v5028
    %5863 = vmatprep.subr.bf16.mxu0 %v5037
    %5864 = vmatpush1.bf16.msra.mxu0 %v5036
    %5865 = vmatprep.subr.bf16.mxu0 %v5045
    %5866 = vmatpush1.bf16.msra.mxu0 %v5044
    %5867 = vmatprep.subr.bf16.mxu0 %v5053
    %5868 = vmatpush1.bf16.msra.mxu0 %v5052
    %5869 = vmatprep.subr.bf16.mxu0 %v5061
    %5870 = vmatpush1.bf16.msra.mxu0 %v5060
    %5871 = vmatprep.subr.bf16.mxu0 %v5069
    %5872 = vmatpush1.bf16.msra.mxu0 %v5068
    %5873 = vmatprep.subr.bf16.mxu0 %v5077
    %5874 = vmatpush1.bf16.msra.mxu0 %v5076
    %5875 = vmatprep.subr.bf16.mxu0 %v5085
    %5876 = vmatpush1.bf16.msra.mxu0 %v5084
    %5877 = vmatprep.subr.bf16.mxu0 %v5093
    %5878 = vmatpush1.bf16.msra.mxu0 %v5092
    %5879 = vmatprep.mubr.bf16.mxu0 %v1652
    %5880 = vmatmul.mubr.bf16.gmra.mrb[0].mxu0 %v1651
    %v5881 = vpop.f32.mrb[0].mxu0
    %v5882 = vadd.f32 %v5811, %v5881
    %v5883 = vpop.f32.mrb[0].mxu0
    %v5884 = vadd.f32 %v5813, %v5883
    %v5885 = vpop.f32.mrb[0].mxu0
    %v5886 = vadd.f32 %v5815, %v5885
    %v5887 = vpop.f32.mrb[0].mxu0
    %v5888 = vadd.f32 %v5817, %v5887
    %5889 = vmatprep.mubr.bf16.mxu0 %v1656
    %5890 = vmatmul.mubr.bf16.gmra.mrb[0].mxu0 %v1655
    %v5891 = vpop.f32.mrb[0].mxu0
    %v5892 = vadd.f32 %v5821, %v5891
    %v5893 = vpop.f32.mrb[0].mxu0
    %v5894 = vadd.f32 %v5823, %v5893
    %v5895 = vpop.f32.mrb[0].mxu0
    %v5896 = vadd.f32 %v5825, %v5895
    %v5897 = vpop.f32.mrb[0].mxu0
    %v5898 = vadd.f32 %v5827, %v5897
    %5899 = vmatprep.mubr.bf16.mxu0 %v1660
    %5900 = vmatmul.mubr.bf16.gmra.mrb[0].mxu0 %v1659
    %v5901 = vpop.f32.mrb[0].mxu0
    %v5902 = vadd.f32 %v5831, %v5901
    %v5903 = vpop.f32.mrb[0].mxu0
    %v5904 = vadd.f32 %v5833, %v5903
    %v5905 = vpop.f32.mrb[0].mxu0
    %v5906 = vadd.f32 %v5835, %v5905
    %v5907 = vpop.f32.mrb[0].mxu0
    %v5908 = vadd.f32 %v5837, %v5907
    %5909 = vmatprep.mubr.bf16.mxu0 %v1664
    %5910 = vmatmul.mubr.bf16.gmra.mrb[0].mxu0 %v1663
    %v5911 = vpop.f32.mrb[0].mxu0
    %v5912 = vadd.f32 %v5841, %v5911
    %v5913 = vpop.f32.mrb[0].mxu0
    %v5914 = vadd.f32 %v5843, %v5913
    %v5915 = vpop.f32.mrb[0].mxu0
    %v5916 = vpop.f32.mrb[0].mxu0
    %5917 = vdwg.mxu0
    %v5918 = vld [vmem:[#allocation2 + $0x20] sm:$0xff]
    %v5919 = vld [vmem:[#allocation2 + $0x28] sm:$0xff]
    %v5920 = vld [vmem:[#allocation2 + $0x30] sm:$0xff]
    %v5921 = vld [vmem:[#allocation2 + $0x38] sm:$0xff]
    %v5922 = vld [vmem:[#allocation2 + $0x40] sm:$0xff]
    %v5923 = vld [vmem:[#allocation2 + $0x48] sm:$0xff]
    %v5924 = vld [vmem:[#allocation2 + $0x50] sm:$0xff]
    %v5925 = vld [vmem:[#allocation2 + $0x58] sm:$0xff]
    %v5926 = vld [vmem:[#allocation2 + $0x60] sm:$0xff]
    %v5927 = vld [vmem:[#allocation2 + $0x68] sm:$0xff]
    %v5928 = vld [vmem:[#allocation2 + $0x70] sm:$0xff]
    %v5929 = vld [vmem:[#allocation2 + $0x78] sm:$0xff]
    %v5930 = vld [vmem:[#allocation2 + $0x80] sm:$0xff]
    %v5931 = vld [vmem:[#allocation2 + $0x88] sm:$0xff]
    %v5932 = vld [vmem:[#allocation2 + $0x90] sm:$0xff]
    %v5933 = vld [vmem:[#allocation2 + $0x98] sm:$0xff]
    %v5934 = vld [vmem:[#allocation2 + $0xa0] sm:$0xff]
    %v5935 = vld [vmem:[#allocation2 + $0xa8] sm:$0xff]
    %v5936 = vld [vmem:[#allocation2 + $0xb0] sm:$0xff]
    %v5937 = vld [vmem:[#allocation2 + $0xb8] sm:$0xff]
    %v5938 = vld [vmem:[#allocation2 + $0xc0] sm:$0xff]
    %v5939 = vld [vmem:[#allocation2 + $0xc8] sm:$0xff]
    %v5940 = vld [vmem:[#allocation2 + $0xd0] sm:$0xff]
    %v5941 = vld [vmem:[#allocation2 + $0xd8] sm:$0xff]
    %v5942 = vld [vmem:[#allocation2 + $0xe0] sm:$0xff]
    %v5943 = vld [vmem:[#allocation2 + $0xe8] sm:$0xff]
    %v5944 = vld [vmem:[#allocation2 + $0xf0] sm:$0xff]
    %v5945 = vld [vmem:[#allocation2 + $0xf8] sm:$0xff]
    %v5946 = vpack.c.bf16 %v5922, %v5918
    %v5947 = vpack.c.bf16 %v5923, %v5919
    %v5948 = vpack.c.bf16 %v5924, %v5920
    %v5949 = vpack.c.bf16 %v5925, %v5921
    %v5950 = vpack.c.bf16 %v5930, %v5926
    %v5951 = vpack.c.bf16 %v5931, %v5927
    %v5952 = vpack.c.bf16 %v5932, %v5928
    %v5953 = vpack.c.bf16 %v5933, %v5929
    %v5954 = vpack.c.bf16 %v5938, %v5934
    %v5955 = vpack.c.bf16 %v5939, %v5935
    %v5956 = vpack.c.bf16 %v5940, %v5936
    %v5957 = vpack.c.bf16 %v5941, %v5937
    %v5958 = vpack.c.bf16 %v5942, %v5942
    %v5959 = vpack.c.bf16 %v5943, %v5943
    %v5960 = vpack.c.bf16 %v5944, %v5944
    %v5961 = vpack.c.bf16 %v5945, %v5945
    %s5962 = scalar_lea.vmem [#allocation7], 4096
    %v5963 = vld [vmem:[%s5962] sm:$0xff]
    %v5964 = vld [vmem:[%s5962 + $0x8] sm:$0xff]
    %v5965 = vld [vmem:[%s5962 + $0x10] sm:$0xff]
    %v5966 = vld [vmem:[%s5962 + $0x18] sm:$0xff]
    %v5967 = vld [vmem:[%s5962 + $0x20] sm:$0xff]
    %v5968 = vld [vmem:[%s5962 + $0x28] sm:$0xff]
    %v5969 = vld [vmem:[%s5962 + $0x30] sm:$0xff]
    %v5970 = vld [vmem:[%s5962 + $0x38] sm:$0xff]
    %v5971 = vld [vmem:[%s5962 + $0x40] sm:$0xff]
    %v5972 = vld [vmem:[%s5962 + $0x48] sm:$0xff]
    %v5973 = vld [vmem:[%s5962 + $0x50] sm:$0xff]
    %v5974 = vld [vmem:[%s5962 + $0x58] sm:$0xff]
    %v5975 = vld [vmem:[%s5962 + $0x60] sm:$0xff]
    %v5976 = vld [vmem:[%s5962 + $0x68] sm:$0xff]
    %v5977 = vld [vmem:[%s5962 + $0x70] sm:$0xff]
    %v5978 = vld [vmem:[%s5962 + $0x78] sm:$0xff]
    %v5979 = vld [vmem:[%s5962 + $0x80] sm:$0xff]
    %v5980 = vld [vmem:[%s5962 + $0x88] sm:$0xff]
    %v5981 = vld [vmem:[%s5962 + $0x90] sm:$0xff]
    %v5982 = vld [vmem:[%s5962 + $0x98] sm:$0xff]
    %v5983 = vld [vmem:[%s5962 + $0xa0] sm:$0xff]
    %v5984 = vld [vmem:[%s5962 + $0xa8] sm:$0xff]
    %v5985 = vld [vmem:[%s5962 + $0xb0] sm:$0xff]
    %v5986 = vld [vmem:[%s5962 + $0xb8] sm:$0xff]
    %v5987 = vld [vmem:[%s5962 + $0xc0] sm:$0xff]
    %v5988 = vld [vmem:[%s5962 + $0xc8] sm:$0xff]
    %v5989 = vld [vmem:[%s5962 + $0xd0] sm:$0xff]
    %v5990 = vld [vmem:[%s5962 + $0xd8] sm:$0xff]
    %v5991 = vld [vmem:[%s5962 + $0xe0] sm:$0xff]
    %v5992 = vld [vmem:[%s5962 + $0xe8] sm:$0xff]
    %v5993 = vld [vmem:[%s5962 + $0xf0] sm:$0xff]
    %v5994 = vld [vmem:[%s5962 + $0xf8] sm:$0xff]
    %v5995 = vld [vmem:[%s5962 + $0x100] sm:$0xff]
    %v5996 = vld [vmem:[%s5962 + $0x108] sm:$0xff]
    %v5997 = vld [vmem:[%s5962 + $0x110] sm:$0xff]
    %v5998 = vld [vmem:[%s5962 + $0x118] sm:$0xff]
    %v5999 = vld [vmem:[%s5962 + $0x120] sm:$0xff]
    %v6000 = vld [vmem:[%s5962 + $0x128] sm:$0xff]
    %v6001 = vld [vmem:[%s5962 + $0x130] sm:$0xff]
    %v6002 = vld [vmem:[%s5962 + $0x138] sm:$0xff]
    %v6003 = vld [vmem:[%s5962 + $0x140] sm:$0xff]
    %v6004 = vld [vmem:[%s5962 + $0x148] sm:$0xff]
    %v6005 = vld [vmem:[%s5962 + $0x150] sm:$0xff]
    %v6006 = vld [vmem:[%s5962 + $0x158] sm:$0xff]
    %v6007 = vld [vmem:[%s5962 + $0x160] sm:$0xff]
    %v6008 = vld [vmem:[%s5962 + $0x168] sm:$0xff]
    %v6009 = vld [vmem:[%s5962 + $0x170] sm:$0xff]
    %v6010 = vld [vmem:[%s5962 + $0x178] sm:$0xff]
    %v6011 = vld [vmem:[%s5962 + $0x180] sm:$0xff]
    %v6012 = vld [vmem:[%s5962 + $0x188] sm:$0xff]
    %v6013 = vld [vmem:[%s5962 + $0x190] sm:$0xff]
    %v6014 = vld [vmem:[%s5962 + $0x198] sm:$0xff]
    %v6015 = vld [vmem:[%s5962 + $0x1a0] sm:$0xff]
    %v6016 = vld [vmem:[%s5962 + $0x1a8] sm:$0xff]
    %v6017 = vld [vmem:[%s5962 + $0x1b0] sm:$0xff]
    %v6018 = vld [vmem:[%s5962 + $0x1b8] sm:$0xff]
    %v6019 = vld [vmem:[%s5962 + $0x1c0] sm:$0xff]
    %v6020 = vld [vmem:[%s5962 + $0x1c8] sm:$0xff]
    %v6021 = vld [vmem:[%s5962 + $0x1d0] sm:$0xff]
    %v6022 = vld [vmem:[%s5962 + $0x1d8] sm:$0xff]
    %v6023 = vld [vmem:[%s5962 + $0x1e0] sm:$0xff]
    %v6024 = vld [vmem:[%s5962 + $0x1e8] sm:$0xff]
    %v6025 = vld [vmem:[%s5962 + $0x1f0] sm:$0xff]
    %v6026 = vld [vmem:[%s5962 + $0x1f8] sm:$0xff]
    %v6027 = vld [vmem:[%s5962 + $0x200] sm:$0xff]
    %v6028 = vld [vmem:[%s5962 + $0x208] sm:$0xff]
    %v6029 = vld [vmem:[%s5962 + $0x210] sm:$0xff]
    %v6030 = vld [vmem:[%s5962 + $0x218] sm:$0xff]
    %v6031 = vld [vmem:[%s5962 + $0x220] sm:$0xff]
    %v6032 = vld [vmem:[%s5962 + $0x228] sm:$0xff]
    %v6033 = vld [vmem:[%s5962 + $0x230] sm:$0xff]
    %v6034 = vld [vmem:[%s5962 + $0x238] sm:$0xff]
    %v6035 = vld [vmem:[%s5962 + $0x240] sm:$0xff]
    %v6036 = vld [vmem:[%s5962 + $0x248] sm:$0xff]
    %v6037 = vld [vmem:[%s5962 + $0x250] sm:$0xff]
    %v6038 = vld [vmem:[%s5962 + $0x258] sm:$0xff]
    %v6039 = vld [vmem:[%s5962 + $0x260] sm:$0xff]
    %v6040 = vld [vmem:[%s5962 + $0x268] sm:$0xff]
    %v6041 = vld [vmem:[%s5962 + $0x270] sm:$0xff]
    %v6042 = vld [vmem:[%s5962 + $0x278] sm:$0xff]
    %v6043 = vld [vmem:[%s5962 + $0x280] sm:$0xff]
    %v6044 = vld [vmem:[%s5962 + $0x288] sm:$0xff]
    %v6045 = vld [vmem:[%s5962 + $0x290] sm:$0xff]
    %v6046 = vld [vmem:[%s5962 + $0x298] sm:$0xff]
    %v6047 = vld [vmem:[%s5962 + $0x2a0] sm:$0xff]
    %v6048 = vld [vmem:[%s5962 + $0x2a8] sm:$0xff]
    %v6049 = vld [vmem:[%s5962 + $0x2b0] sm:$0xff]
    %v6050 = vld [vmem:[%s5962 + $0x2b8] sm:$0xff]
    %v6051 = vld [vmem:[%s5962 + $0x2c0] sm:$0xff]
    %v6052 = vld [vmem:[%s5962 + $0x2c8] sm:$0xff]
    %v6053 = vld [vmem:[%s5962 + $0x2d0] sm:$0xff]
    %v6054 = vld [vmem:[%s5962 + $0x2d8] sm:$0xff]
    %v6055 = vld [vmem:[%s5962 + $0x2e0] sm:$0xff]
    %v6056 = vld [vmem:[%s5962 + $0x2e8] sm:$0xff]
    %v6057 = vld [vmem:[%s5962 + $0x2f0] sm:$0xff]
    %v6058 = vld [vmem:[%s5962 + $0x2f8] sm:$0xff]
    %v6059 = vld [vmem:[%s5962 + $0x300] sm:$0xff]
    %v6060 = vld [vmem:[%s5962 + $0x308] sm:$0xff]
    %v6061 = vld [vmem:[%s5962 + $0x310] sm:$0xff]
    %v6062 = vld [vmem:[%s5962 + $0x318] sm:$0xff]
    %v6063 = vld [vmem:[%s5962 + $0x320] sm:$0xff]
    %v6064 = vld [vmem:[%s5962 + $0x328] sm:$0xff]
    %v6065 = vld [vmem:[%s5962 + $0x330] sm:$0xff]
    %v6066 = vld [vmem:[%s5962 + $0x338] sm:$0xff]
    %v6067 = vld [vmem:[%s5962 + $0x340] sm:$0xff]
    %v6068 = vld [vmem:[%s5962 + $0x348] sm:$0xff]
    %v6069 = vld [vmem:[%s5962 + $0x350] sm:$0xff]
    %v6070 = vld [vmem:[%s5962 + $0x358] sm:$0xff]
    %v6071 = vld [vmem:[%s5962 + $0x360] sm:$0xff]
    %v6072 = vld [vmem:[%s5962 + $0x368] sm:$0xff]
    %v6073 = vld [vmem:[%s5962 + $0x370] sm:$0xff]
    %v6074 = vld [vmem:[%s5962 + $0x378] sm:$0xff]
    %v6075 = vld [vmem:[%s5962 + $0x380] sm:$0xff]
    %v6076 = vld [vmem:[%s5962 + $0x388] sm:$0xff]
    %v6077 = vld [vmem:[%s5962 + $0x390] sm:$0xff]
    %v6078 = vld [vmem:[%s5962 + $0x398] sm:$0xff]
    %v6079 = vld [vmem:[%s5962 + $0x3a0] sm:$0xff]
    %v6080 = vld [vmem:[%s5962 + $0x3a8] sm:$0xff]
    %v6081 = vld [vmem:[%s5962 + $0x3b0] sm:$0xff]
    %v6082 = vld [vmem:[%s5962 + $0x3b8] sm:$0xff]
    %v6083 = vld [vmem:[%s5962 + $0x3c0] sm:$0xff]
    %v6084 = vld [vmem:[%s5962 + $0x3c8] sm:$0xff]
    %v6085 = vld [vmem:[%s5962 + $0x3d0] sm:$0xff]
    %v6086 = vld [vmem:[%s5962 + $0x3d8] sm:$0xff]
    %v6087 = vld [vmem:[%s5962 + $0x3e0] sm:$0xff]
    %v6088 = vld [vmem:[%s5962 + $0x3e8] sm:$0xff]
    %v6089 = vld [vmem:[%s5962 + $0x3f0] sm:$0xff]
    %v6090 = vld [vmem:[%s5962 + $0x3f8] sm:$0xff]
    %v6091 = vld [vmem:[%s5962 + $0x400] sm:$0xff]
    %v6092 = vld [vmem:[%s5962 + $0x408] sm:$0xff]
    %v6093 = vld [vmem:[%s5962 + $0x410] sm:$0xff]
    %v6094 = vld [vmem:[%s5962 + $0x418] sm:$0xff]
    %v6095 = vld [vmem:[%s5962 + $0x420] sm:$0xff]
    %v6096 = vld [vmem:[%s5962 + $0x428] sm:$0xff]
    %v6097 = vld [vmem:[%s5962 + $0x430] sm:$0xff]
    %v6098 = vld [vmem:[%s5962 + $0x438] sm:$0xff]
    %v6099 = vld [vmem:[%s5962 + $0x440] sm:$0xff]
    %v6100 = vld [vmem:[%s5962 + $0x448] sm:$0xff]
    %v6101 = vld [vmem:[%s5962 + $0x450] sm:$0xff]
    %v6102 = vld [vmem:[%s5962 + $0x458] sm:$0xff]
    %v6103 = vld [vmem:[%s5962 + $0x460] sm:$0xff]
    %v6104 = vld [vmem:[%s5962 + $0x468] sm:$0xff]
    %v6105 = vld [vmem:[%s5962 + $0x470] sm:$0xff]
    %v6106 = vld [vmem:[%s5962 + $0x478] sm:$0xff]
    %v6107 = vld [vmem:[%s5962 + $0x480] sm:$0xff]
    %v6108 = vld [vmem:[%s5962 + $0x488] sm:$0xff]
    %v6109 = vld [vmem:[%s5962 + $0x490] sm:$0xff]
    %v6110 = vld [vmem:[%s5962 + $0x498] sm:$0xff]
    %v6111 = vld [vmem:[%s5962 + $0x4a0] sm:$0xff]
    %v6112 = vld [vmem:[%s5962 + $0x4a8] sm:$0xff]
    %v6113 = vld [vmem:[%s5962 + $0x4b0] sm:$0xff]
    %v6114 = vld [vmem:[%s5962 + $0x4b8] sm:$0xff]
    %v6115 = vld [vmem:[%s5962 + $0x4c0] sm:$0xff]
    %v6116 = vld [vmem:[%s5962 + $0x4c8] sm:$0xff]
    %v6117 = vld [vmem:[%s5962 + $0x4d0] sm:$0xff]
    %v6118 = vld [vmem:[%s5962 + $0x4d8] sm:$0xff]
    %v6119 = vld [vmem:[%s5962 + $0x4e0] sm:$0xff]
    %v6120 = vld [vmem:[%s5962 + $0x4e8] sm:$0xff]
    %v6121 = vld [vmem:[%s5962 + $0x4f0] sm:$0xff]
    %v6122 = vld [vmem:[%s5962 + $0x4f8] sm:$0xff]
    %v6123 = vld [vmem:[%s5962 + $0x500] sm:$0xff]
    %v6124 = vld [vmem:[%s5962 + $0x508] sm:$0xff]
    %v6125 = vld [vmem:[%s5962 + $0x510] sm:$0xff]
    %v6126 = vld [vmem:[%s5962 + $0x518] sm:$0xff]
    %v6127 = vld [vmem:[%s5962 + $0x520] sm:$0xff]
    %v6128 = vld [vmem:[%s5962 + $0x528] sm:$0xff]
    %v6129 = vld [vmem:[%s5962 + $0x530] sm:$0xff]
    %v6130 = vld [vmem:[%s5962 + $0x538] sm:$0xff]
    %v6131 = vld [vmem:[%s5962 + $0x540] sm:$0xff]
    %v6132 = vld [vmem:[%s5962 + $0x548] sm:$0xff]
    %v6133 = vld [vmem:[%s5962 + $0x550] sm:$0xff]
    %v6134 = vld [vmem:[%s5962 + $0x558] sm:$0xff]
    %v6135 = vld [vmem:[%s5962 + $0x560] sm:$0xff]
    %v6136 = vld [vmem:[%s5962 + $0x568] sm:$0xff]
    %v6137 = vld [vmem:[%s5962 + $0x570] sm:$0xff]
    %v6138 = vld [vmem:[%s5962 + $0x578] sm:$0xff]
    %v6139 = vld [vmem:[%s5962 + $0x580] sm:$0xff]
    %v6140 = vld [vmem:[%s5962 + $0x588] sm:$0xff]
    %v6141 = vld [vmem:[%s5962 + $0x590] sm:$0xff]
    %v6142 = vld [vmem:[%s5962 + $0x598] sm:$0xff]
    %v6143 = vld [vmem:[%s5962 + $0x5a0] sm:$0xff]
    %v6144 = vld [vmem:[%s5962 + $0x5a8] sm:$0xff]
    %v6145 = vld [vmem:[%s5962 + $0x5b0] sm:$0xff]
    %v6146 = vld [vmem:[%s5962 + $0x5b8] sm:$0xff]
    %v6147 = vld [vmem:[%s5962 + $0x5c0] sm:$0xff]
    %v6148 = vld [vmem:[%s5962 + $0x5c8] sm:$0xff]
    %v6149 = vld [vmem:[%s5962 + $0x5d0] sm:$0xff]
    %v6150 = vld [vmem:[%s5962 + $0x5d8] sm:$0xff]
    %v6151 = vld [vmem:[%s5962 + $0x5e0] sm:$0xff]
    %v6152 = vld [vmem:[%s5962 + $0x5e8] sm:$0xff]
    %v6153 = vld [vmem:[%s5962 + $0x5f0] sm:$0xff]
    %v6154 = vld [vmem:[%s5962 + $0x5f8] sm:$0xff]
    %v6155 = vld [vmem:[%s5962 + $0x600] sm:$0xff]
    %v6156 = vld [vmem:[%s5962 + $0x608] sm:$0xff]
    %v6157 = vld [vmem:[%s5962 + $0x610] sm:$0xff]
    %v6158 = vld [vmem:[%s5962 + $0x618] sm:$0xff]
    %v6159 = vld [vmem:[%s5962 + $0x620] sm:$0xff]
    %v6160 = vld [vmem:[%s5962 + $0x628] sm:$0xff]
    %v6161 = vld [vmem:[%s5962 + $0x630] sm:$0xff]
    %v6162 = vld [vmem:[%s5962 + $0x638] sm:$0xff]
    %v6163 = vld [vmem:[%s5962 + $0x640] sm:$0xff]
    %v6164 = vld [vmem:[%s5962 + $0x648] sm:$0xff]
    %v6165 = vld [vmem:[%s5962 + $0x650] sm:$0xff]
    %v6166 = vld [vmem:[%s5962 + $0x658] sm:$0xff]
    %v6167 = vld [vmem:[%s5962 + $0x660] sm:$0xff]
    %v6168 = vld [vmem:[%s5962 + $0x668] sm:$0xff]
    %v6169 = vld [vmem:[%s5962 + $0x670] sm:$0xff]
    %v6170 = vld [vmem:[%s5962 + $0x678] sm:$0xff]
    %v6171 = vld [vmem:[%s5962 + $0x680] sm:$0xff]
    %v6172 = vld [vmem:[%s5962 + $0x688] sm:$0xff]
    %v6173 = vld [vmem:[%s5962 + $0x690] sm:$0xff]
    %v6174 = vld [vmem:[%s5962 + $0x698] sm:$0xff]
    %v6175 = vld [vmem:[%s5962 + $0x6a0] sm:$0xff]
    %v6176 = vld [vmem:[%s5962 + $0x6a8] sm:$0xff]
    %v6177 = vld [vmem:[%s5962 + $0x6b0] sm:$0xff]
    %v6178 = vld [vmem:[%s5962 + $0x6b8] sm:$0xff]
    %v6179 = vld [vmem:[%s5962 + $0x6c0] sm:$0xff]
    %v6180 = vld [vmem:[%s5962 + $0x6c8] sm:$0xff]
    %v6181 = vld [vmem:[%s5962 + $0x6d0] sm:$0xff]
    %v6182 = vld [vmem:[%s5962 + $0x6d8] sm:$0xff]
    %v6183 = vld [vmem:[%s5962 + $0x6e0] sm:$0xff]
    %v6184 = vld [vmem:[%s5962 + $0x6e8] sm:$0xff]
    %v6185 = vld [vmem:[%s5962 + $0x6f0] sm:$0xff]
    %v6186 = vld [vmem:[%s5962 + $0x6f8] sm:$0xff]
    %v6187 = vld [vmem:[%s5962 + $0x700] sm:$0xff]
    %v6188 = vld [vmem:[%s5962 + $0x708] sm:$0xff]
    %v6189 = vld [vmem:[%s5962 + $0x710] sm:$0xff]
    %v6190 = vld [vmem:[%s5962 + $0x718] sm:$0xff]
    %v6191 = vld [vmem:[%s5962 + $0x720] sm:$0xff]
    %v6192 = vld [vmem:[%s5962 + $0x728] sm:$0xff]
    %v6193 = vld [vmem:[%s5962 + $0x730] sm:$0xff]
    %v6194 = vld [vmem:[%s5962 + $0x738] sm:$0xff]
    %v6195 = vld [vmem:[%s5962 + $0x740] sm:$0xff]
    %v6196 = vld [vmem:[%s5962 + $0x748] sm:$0xff]
    %v6197 = vld [vmem:[%s5962 + $0x750] sm:$0xff]
    %v6198 = vld [vmem:[%s5962 + $0x758] sm:$0xff]
    %v6199 = vld [vmem:[%s5962 + $0x760] sm:$0xff]
    %v6200 = vld [vmem:[%s5962 + $0x768] sm:$0xff]
    %v6201 = vld [vmem:[%s5962 + $0x770] sm:$0xff]
    %v6202 = vld [vmem:[%s5962 + $0x778] sm:$0xff]
    %v6203 = vld [vmem:[%s5962 + $0x780] sm:$0xff]
    %v6204 = vld [vmem:[%s5962 + $0x788] sm:$0xff]
    %v6205 = vld [vmem:[%s5962 + $0x790] sm:$0xff]
    %v6206 = vld [vmem:[%s5962 + $0x798] sm:$0xff]
    %v6207 = vld [vmem:[%s5962 + $0x7a0] sm:$0xff]
    %v6208 = vld [vmem:[%s5962 + $0x7a8] sm:$0xff]
    %v6209 = vld [vmem:[%s5962 + $0x7b0] sm:$0xff]
    %v6210 = vld [vmem:[%s5962 + $0x7b8] sm:$0xff]
    %v6211 = vld [vmem:[%s5962 + $0x7c0] sm:$0xff]
    %v6212 = vld [vmem:[%s5962 + $0x7c8] sm:$0xff]
    %v6213 = vld [vmem:[%s5962 + $0x7d0] sm:$0xff]
    %v6214 = vld [vmem:[%s5962 + $0x7d8] sm:$0xff]
    %v6215 = vld [vmem:[%s5962 + $0x7e0] sm:$0xff]
    %v6216 = vld [vmem:[%s5962 + $0x7e8] sm:$0xff]
    %v6217 = vld [vmem:[%s5962 + $0x7f0] sm:$0xff]
    %v6218 = vld [vmem:[%s5962 + $0x7f8] sm:$0xff]
    %v6475 = vunpack.c.l.b16 %v5963
    %v6476 = vunpack.c.h.b16 %v5963
    %v6477 = vunpack.c.l.b16 %v5964
    %v6478 = vunpack.c.h.b16 %v5964
    %v6479 = vunpack.c.l.b16 %v5965
    %v6480 = vunpack.c.h.b16 %v5965
    %v6481 = vunpack.c.l.b16 %v5966
    %v6482 = vunpack.c.h.b16 %v5966
    %v6483 = vunpack.c.l.b16 %v5967
    %v6484 = vunpack.c.h.b16 %v5967
    %v6485 = vunpack.c.l.b16 %v5968
    %v6486 = vunpack.c.h.b16 %v5968
    %v6487 = vunpack.c.l.b16 %v5969
    %v6488 = vunpack.c.h.b16 %v5969
    %v6489 = vunpack.c.l.b16 %v5970
    %v6490 = vunpack.c.h.b16 %v5970
    %v6491 = vunpack.c.l.b16 %v5971
    %v6492 = vunpack.c.h.b16 %v5971
    %v6493 = vunpack.c.l.b16 %v5972
    %v6494 = vunpack.c.h.b16 %v5972
    %v6495 = vunpack.c.l.b16 %v5973
    %v6496 = vunpack.c.h.b16 %v5973
    %v6497 = vunpack.c.l.b16 %v5974
    %v6498 = vunpack.c.h.b16 %v5974
    %v6499 = vunpack.c.l.b16 %v5975
    %v6500 = vunpack.c.h.b16 %v5975
    %v6501 = vunpack.c.l.b16 %v5976
    %v6502 = vunpack.c.h.b16 %v5976
    %v6503 = vunpack.c.l.b16 %v5977
    %v6504 = vunpack.c.h.b16 %v5977
    %v6505 = vunpack.c.l.b16 %v5978
    %v6506 = vunpack.c.h.b16 %v5978
    %v6507 = vunpack.c.l.b16 %v5979
    %v6508 = vunpack.c.h.b16 %v5979
    %v6509 = vunpack.c.l.b16 %v5980
    %v6510 = vunpack.c.h.b16 %v5980
    %v6511 = vunpack.c.l.b16 %v5981
    %v6512 = vunpack.c.h.b16 %v5981
    %v6513 = vunpack.c.l.b16 %v5982
    %v6514 = vunpack.c.h.b16 %v5982
    %v6515 = vunpack.c.l.b16 %v5983
    %v6516 = vunpack.c.h.b16 %v5983
    %v6517 = vunpack.c.l.b16 %v5984
    %v6518 = vunpack.c.h.b16 %v5984
    %v6519 = vunpack.c.l.b16 %v5985
    %v6520 = vunpack.c.h.b16 %v5985
    %v6521 = vunpack.c.l.b16 %v5986
    %v6522 = vunpack.c.h.b16 %v5986
    %v6523 = vunpack.c.l.b16 %v5987
    %v6524 = vunpack.c.h.b16 %v5987
    %v6525 = vunpack.c.l.b16 %v5988
    %v6526 = vunpack.c.h.b16 %v5988
    %v6527 = vunpack.c.l.b16 %v5989
    %v6528 = vunpack.c.h.b16 %v5989
    %v6529 = vunpack.c.l.b16 %v5990
    %v6530 = vunpack.c.h.b16 %v5990
    %v6531 = vunpack.c.l.b16 %v5991
    %v6532 = vunpack.c.h.b16 %v5991
    %v6533 = vunpack.c.l.b16 %v5992
    %v6534 = vunpack.c.h.b16 %v5992
    %v6535 = vunpack.c.l.b16 %v5993
    %v6536 = vunpack.c.h.b16 %v5993
    %v6537 = vunpack.c.l.b16 %v5994
    %v6538 = vunpack.c.h.b16 %v5994
    %v6539 = vunpack.c.l.b16 %v5995
    %v6540 = vunpack.c.h.b16 %v5995
    %v6541 = vunpack.c.l.b16 %v5996
    %v6542 = vunpack.c.h.b16 %v5996
    %v6543 = vunpack.c.l.b16 %v5997
    %v6544 = vunpack.c.h.b16 %v5997
    %v6545 = vunpack.c.l.b16 %v5998
    %v6546 = vunpack.c.h.b16 %v5998
    %v6547 = vunpack.c.l.b16 %v5999
    %v6548 = vunpack.c.h.b16 %v5999
    %v6549 = vunpack.c.l.b16 %v6000
    %v6550 = vunpack.c.h.b16 %v6000
    %v6551 = vunpack.c.l.b16 %v6001
    %v6552 = vunpack.c.h.b16 %v6001
    %v6553 = vunpack.c.l.b16 %v6002
    %v6554 = vunpack.c.h.b16 %v6002
    %v6555 = vunpack.c.l.b16 %v6003
    %v6556 = vunpack.c.h.b16 %v6003
    %v6557 = vunpack.c.l.b16 %v6004
    %v6558 = vunpack.c.h.b16 %v6004
    %v6559 = vunpack.c.l.b16 %v6005
    %v6560 = vunpack.c.h.b16 %v6005
    %v6561 = vunpack.c.l.b16 %v6006
    %v6562 = vunpack.c.h.b16 %v6006
    %v6563 = vunpack.c.l.b16 %v6007
    %v6564 = vunpack.c.h.b16 %v6007
    %v6565 = vunpack.c.l.b16 %v6008
    %v6566 = vunpack.c.h.b16 %v6008
    %v6567 = vunpack.c.l.b16 %v6009
    %v6568 = vunpack.c.h.b16 %v6009
    %v6569 = vunpack.c.l.b16 %v6010
    %v6570 = vunpack.c.h.b16 %v6010
    %v6571 = vunpack.c.l.b16 %v6011
    %v6572 = vunpack.c.h.b16 %v6011
    %v6573 = vunpack.c.l.b16 %v6012
    %v6574 = vunpack.c.h.b16 %v6012
    %v6575 = vunpack.c.l.b16 %v6013
    %v6576 = vunpack.c.h.b16 %v6013
    %v6577 = vunpack.c.l.b16 %v6014
    %v6578 = vunpack.c.h.b16 %v6014
    %v6579 = vunpack.c.l.b16 %v6015
    %v6580 = vunpack.c.h.b16 %v6015
    %v6581 = vunpack.c.l.b16 %v6016
    %v6582 = vunpack.c.h.b16 %v6016
    %v6583 = vunpack.c.l.b16 %v6017
    %v6584 = vunpack.c.h.b16 %v6017
    %v6585 = vunpack.c.l.b16 %v6018
    %v6586 = vunpack.c.h.b16 %v6018
    %v6587 = vunpack.c.l.b16 %v6019
    %v6588 = vunpack.c.h.b16 %v6019
    %v6589 = vunpack.c.l.b16 %v6020
    %v6590 = vunpack.c.h.b16 %v6020
    %v6591 = vunpack.c.l.b16 %v6021
    %v6592 = vunpack.c.h.b16 %v6021
    %v6593 = vunpack.c.l.b16 %v6022
    %v6594 = vunpack.c.h.b16 %v6022
    %v6595 = vunpack.c.l.b16 %v6023
    %v6596 = vunpack.c.h.b16 %v6023
    %v6597 = vunpack.c.l.b16 %v6024
    %v6598 = vunpack.c.h.b16 %v6024
    %v6599 = vunpack.c.l.b16 %v6025
    %v6600 = vunpack.c.h.b16 %v6025
    %v6601 = vunpack.c.l.b16 %v6026
    %v6602 = vunpack.c.h.b16 %v6026
    %v6603 = vunpack.c.l.b16 %v6027
    %v6604 = vunpack.c.h.b16 %v6027
    %v6605 = vunpack.c.l.b16 %v6028
    %v6606 = vunpack.c.h.b16 %v6028
    %v6607 = vunpack.c.l.b16 %v6029
    %v6608 = vunpack.c.h.b16 %v6029
    %v6609 = vunpack.c.l.b16 %v6030
    %v6610 = vunpack.c.h.b16 %v6030
    %v6611 = vunpack.c.l.b16 %v6031
    %v6612 = vunpack.c.h.b16 %v6031
    %v6613 = vunpack.c.l.b16 %v6032
    %v6614 = vunpack.c.h.b16 %v6032
    %v6615 = vunpack.c.l.b16 %v6033
    %v6616 = vunpack.c.h.b16 %v6033
    %v6617 = vunpack.c.l.b16 %v6034
    %v6618 = vunpack.c.h.b16 %v6034
    %v6619 = vunpack.c.l.b16 %v6035
    %v6620 = vunpack.c.h.b16 %v6035
    %v6621 = vunpack.c.l.b16 %v6036
    %v6622 = vunpack.c.h.b16 %v6036
    %v6623 = vunpack.c.l.b16 %v6037
    %v6624 = vunpack.c.h.b16 %v6037
    %v6625 = vunpack.c.l.b16 %v6038
    %v6626 = vunpack.c.h.b16 %v6038
    %v6627 = vunpack.c.l.b16 %v6039
    %v6628 = vunpack.c.h.b16 %v6039
    %v6629 = vunpack.c.l.b16 %v6040
    %v6630 = vunpack.c.h.b16 %v6040
    %v6631 = vunpack.c.l.b16 %v6041
    %v6632 = vunpack.c.h.b16 %v6041
    %v6633 = vunpack.c.l.b16 %v6042
    %v6634 = vunpack.c.h.b16 %v6042
    %v6635 = vunpack.c.l.b16 %v6043
    %v6636 = vunpack.c.h.b16 %v6043
    %v6637 = vunpack.c.l.b16 %v6044
    %v6638 = vunpack.c.h.b16 %v6044
    %v6639 = vunpack.c.l.b16 %v6045
    %v6640 = vunpack.c.h.b16 %v6045
    %v6641 = vunpack.c.l.b16 %v6046
    %v6642 = vunpack.c.h.b16 %v6046
    %v6643 = vunpack.c.l.b16 %v6047
    %v6644 = vunpack.c.h.b16 %v6047
    %v6645 = vunpack.c.l.b16 %v6048
    %v6646 = vunpack.c.h.b16 %v6048
    %v6647 = vunpack.c.l.b16 %v6049
    %v6648 = vunpack.c.h.b16 %v6049
    %v6649 = vunpack.c.l.b16 %v6050
    %v6650 = vunpack.c.h.b16 %v6050
    %v6651 = vunpack.c.l.b16 %v6051
    %v6652 = vunpack.c.h.b16 %v6051
    %v6653 = vunpack.c.l.b16 %v6052
    %v6654 = vunpack.c.h.b16 %v6052
    %v6655 = vunpack.c.l.b16 %v6053
    %v6656 = vunpack.c.h.b16 %v6053
    %v6657 = vunpack.c.l.b16 %v6054
    %v6658 = vunpack.c.h.b16 %v6054
    %v6659 = vunpack.c.l.b16 %v6055
    %v6660 = vunpack.c.h.b16 %v6055
    %v6661 = vunpack.c.l.b16 %v6056
    %v6662 = vunpack.c.h.b16 %v6056
    %v6663 = vunpack.c.l.b16 %v6057
    %v6664 = vunpack.c.h.b16 %v6057
    %v6665 = vunpack.c.l.b16 %v6058
    %v6666 = vunpack.c.h.b16 %v6058
    %v6667 = vunpack.c.l.b16 %v6059
    %v6668 = vunpack.c.h.b16 %v6059
    %v6669 = vunpack.c.l.b16 %v6060
    %v6670 = vunpack.c.h.b16 %v6060
    %v6671 = vunpack.c.l.b16 %v6061
    %v6672 = vunpack.c.h.b16 %v6061
    %v6673 = vunpack.c.l.b16 %v6062
    %v6674 = vunpack.c.h.b16 %v6062
    %v6675 = vunpack.c.l.b16 %v6063
    %v6676 = vunpack.c.h.b16 %v6063
    %v6677 = vunpack.c.l.b16 %v6064
    %v6678 = vunpack.c.h.b16 %v6064
    %v6679 = vunpack.c.l.b16 %v6065
    %v6680 = vunpack.c.h.b16 %v6065
    %v6681 = vunpack.c.l.b16 %v6066
    %v6682 = vunpack.c.h.b16 %v6066
    %v6683 = vunpack.c.l.b16 %v6067
    %v6684 = vunpack.c.h.b16 %v6067
    %v6685 = vunpack.c.l.b16 %v6068
    %v6686 = vunpack.c.h.b16 %v6068
    %v6687 = vunpack.c.l.b16 %v6069
    %v6688 = vunpack.c.h.b16 %v6069
    %v6689 = vunpack.c.l.b16 %v6070
    %v6690 = vunpack.c.h.b16 %v6070
    %v6691 = vunpack.c.l.b16 %v6071
    %v6692 = vunpack.c.h.b16 %v6071
    %v6693 = vunpack.c.l.b16 %v6072
    %v6694 = vunpack.c.h.b16 %v6072
    %v6695 = vunpack.c.l.b16 %v6073
    %v6696 = vunpack.c.h.b16 %v6073
    %v6697 = vunpack.c.l.b16 %v6074
    %v6698 = vunpack.c.h.b16 %v6074
    %v6699 = vunpack.c.l.b16 %v6075
    %v6700 = vunpack.c.h.b16 %v6075
    %v6701 = vunpack.c.l.b16 %v6076
    %v6702 = vunpack.c.h.b16 %v6076
    %v6703 = vunpack.c.l.b16 %v6077
    %v6704 = vunpack.c.h.b16 %v6077
    %v6705 = vunpack.c.l.b16 %v6078
    %v6706 = vunpack.c.h.b16 %v6078
    %v6707 = vunpack.c.l.b16 %v6079
    %v6708 = vunpack.c.h.b16 %v6079
    %v6709 = vunpack.c.l.b16 %v6080
    %v6710 = vunpack.c.h.b16 %v6080
    %v6711 = vunpack.c.l.b16 %v6081
    %v6712 = vunpack.c.h.b16 %v6081
    %v6713 = vunpack.c.l.b16 %v6082
    %v6714 = vunpack.c.h.b16 %v6082
    %v6715 = vunpack.c.l.b16 %v6083
    %v6716 = vunpack.c.h.b16 %v6083
    %v6717 = vunpack.c.l.b16 %v6084
    %v6718 = vunpack.c.h.b16 %v6084
    %v6719 = vunpack.c.l.b16 %v6085
    %v6720 = vunpack.c.h.b16 %v6085
    %v6721 = vunpack.c.l.b16 %v6086
    %v6722 = vunpack.c.h.b16 %v6086
    %v6723 = vunpack.c.l.b16 %v6087
    %v6724 = vunpack.c.h.b16 %v6087
    %v6725 = vunpack.c.l.b16 %v6088
    %v6726 = vunpack.c.h.b16 %v6088
    %v6727 = vunpack.c.l.b16 %v6089
    %v6728 = vunpack.c.h.b16 %v6089
    %v6729 = vunpack.c.l.b16 %v6090
    %v6730 = vunpack.c.h.b16 %v6090
    %v6731 = vunpack.c.l.b16 %v6091
    %v6732 = vunpack.c.h.b16 %v6091
    %v6733 = vunpack.c.l.b16 %v6092
    %v6734 = vunpack.c.h.b16 %v6092
    %v6735 = vunpack.c.l.b16 %v6093
    %v6736 = vunpack.c.h.b16 %v6093
    %v6737 = vunpack.c.l.b16 %v6094
    %v6738 = vunpack.c.h.b16 %v6094
    %v6739 = vunpack.c.l.b16 %v6095
    %v6740 = vunpack.c.h.b16 %v6095
    %v6741 = vunpack.c.l.b16 %v6096
    %v6742 = vunpack.c.h.b16 %v6096
    %v6743 = vunpack.c.l.b16 %v6097
    %v6744 = vunpack.c.h.b16 %v6097
    %v6745 = vunpack.c.l.b16 %v6098
    %v6746 = vunpack.c.h.b16 %v6098
    %v6747 = vunpack.c.l.b16 %v6099
    %v6748 = vunpack.c.h.b16 %v6099
    %v6749 = vunpack.c.l.b16 %v6100
    %v6750 = vunpack.c.h.b16 %v6100
    %v6751 = vunpack.c.l.b16 %v6101
    %v6752 = vunpack.c.h.b16 %v6101
    %v6753 = vunpack.c.l.b16 %v6102
    %v6754 = vunpack.c.h.b16 %v6102
    %v6755 = vunpack.c.l.b16 %v6103
    %v6756 = vunpack.c.h.b16 %v6103
    %v6757 = vunpack.c.l.b16 %v6104
    %v6758 = vunpack.c.h.b16 %v6104
    %v6759 = vunpack.c.l.b16 %v6105
    %v6760 = vunpack.c.h.b16 %v6105
    %v6761 = vunpack.c.l.b16 %v6106
    %v6762 = vunpack.c.h.b16 %v6106
    %v6763 = vunpack.c.l.b16 %v6107
    %v6764 = vunpack.c.h.b16 %v6107
    %v6765 = vunpack.c.l.b16 %v6108
    %v6766 = vunpack.c.h.b16 %v6108
    %v6767 = vunpack.c.l.b16 %v6109
    %v6768 = vunpack.c.h.b16 %v6109
    %v6769 = vunpack.c.l.b16 %v6110
    %v6770 = vunpack.c.h.b16 %v6110
    %v6771 = vunpack.c.l.b16 %v6111
    %v6772 = vunpack.c.h.b16 %v6111
    %v6773 = vunpack.c.l.b16 %v6112
    %v6774 = vunpack.c.h.b16 %v6112
    %v6775 = vunpack.c.l.b16 %v6113
    %v6776 = vunpack.c.h.b16 %v6113
    %v6777 = vunpack.c.l.b16 %v6114
    %v6778 = vunpack.c.h.b16 %v6114
    %v6779 = vunpack.c.l.b16 %v6115
    %v6780 = vunpack.c.h.b16 %v6115
    %v6781 = vunpack.c.l.b16 %v6116
    %v6782 = vunpack.c.h.b16 %v6116
    %v6783 = vunpack.c.l.b16 %v6117
    %v6784 = vunpack.c.h.b16 %v6117
    %v6785 = vunpack.c.l.b16 %v6118
    %v6786 = vunpack.c.h.b16 %v6118
    %v6787 = vunpack.c.l.b16 %v6119
    %v6788 = vunpack.c.h.b16 %v6119
    %v6789 = vunpack.c.l.b16 %v6120
    %v6790 = vunpack.c.h.b16 %v6120
    %v6791 = vunpack.c.l.b16 %v6121
    %v6792 = vunpack.c.h.b16 %v6121
    %v6793 = vunpack.c.l.b16 %v6122
    %v6794 = vunpack.c.h.b16 %v6122
    %v6795 = vunpack.c.l.b16 %v6123
    %v6796 = vunpack.c.h.b16 %v6123
    %v6797 = vunpack.c.l.b16 %v6124
    %v6798 = vunpack.c.h.b16 %v6124
    %v6799 = vunpack.c.l.b16 %v6125
    %v6800 = vunpack.c.h.b16 %v6125
    %v6801 = vunpack.c.l.b16 %v6126
    %v6802 = vunpack.c.h.b16 %v6126
    %v6803 = vunpack.c.l.b16 %v6127
    %v6804 = vunpack.c.h.b16 %v6127
    %v6805 = vunpack.c.l.b16 %v6128
    %v6806 = vunpack.c.h.b16 %v6128
    %v6807 = vunpack.c.l.b16 %v6129
    %v6808 = vunpack.c.h.b16 %v6129
    %v6809 = vunpack.c.l.b16 %v6130
    %v6810 = vunpack.c.h.b16 %v6130
    %v6811 = vunpack.c.l.b16 %v6131
    %v6812 = vunpack.c.h.b16 %v6131
    %v6813 = vunpack.c.l.b16 %v6132
    %v6814 = vunpack.c.h.b16 %v6132
    %v6815 = vunpack.c.l.b16 %v6133
    %v6816 = vunpack.c.h.b16 %v6133
    %v6817 = vunpack.c.l.b16 %v6134
    %v6818 = vunpack.c.h.b16 %v6134
    %v6819 = vunpack.c.l.b16 %v6135
    %v6820 = vunpack.c.h.b16 %v6135
    %v6821 = vunpack.c.l.b16 %v6136
    %v6822 = vunpack.c.h.b16 %v6136
    %v6823 = vunpack.c.l.b16 %v6137
    %v6824 = vunpack.c.h.b16 %v6137
    %v6825 = vunpack.c.l.b16 %v6138
    %v6826 = vunpack.c.h.b16 %v6138
    %v6827 = vunpack.c.l.b16 %v6139
    %v6828 = vunpack.c.h.b16 %v6139
    %v6829 = vunpack.c.l.b16 %v6140
    %v6830 = vunpack.c.h.b16 %v6140
    %v6831 = vunpack.c.l.b16 %v6141
    %v6832 = vunpack.c.h.b16 %v6141
    %v6833 = vunpack.c.l.b16 %v6142
    %v6834 = vunpack.c.h.b16 %v6142
    %v6835 = vunpack.c.l.b16 %v6143
    %v6836 = vunpack.c.h.b16 %v6143
    %v6837 = vunpack.c.l.b16 %v6144
    %v6838 = vunpack.c.h.b16 %v6144
    %v6839 = vunpack.c.l.b16 %v6145
    %v6840 = vunpack.c.h.b16 %v6145
    %v6841 = vunpack.c.l.b16 %v6146
    %v6842 = vunpack.c.h.b16 %v6146
    %v6843 = vunpack.c.l.b16 %v6147
    %v6844 = vunpack.c.h.b16 %v6147
    %v6845 = vunpack.c.l.b16 %v6148
    %v6846 = vunpack.c.h.b16 %v6148
    %v6847 = vunpack.c.l.b16 %v6149
    %v6848 = vunpack.c.h.b16 %v6149
    %v6849 = vunpack.c.l.b16 %v6150
    %v6850 = vunpack.c.h.b16 %v6150
    %v6851 = vunpack.c.l.b16 %v6151
    %v6852 = vunpack.c.h.b16 %v6151
    %v6853 = vunpack.c.l.b16 %v6152
    %v6854 = vunpack.c.h.b16 %v6152
    %v6855 = vunpack.c.l.b16 %v6153
    %v6856 = vunpack.c.h.b16 %v6153
    %v6857 = vunpack.c.l.b16 %v6154
    %v6858 = vunpack.c.h.b16 %v6154
    %v6859 = vunpack.c.l.b16 %v6155
    %v6860 = vunpack.c.h.b16 %v6155
    %v6861 = vunpack.c.l.b16 %v6156
    %v6862 = vunpack.c.h.b16 %v6156
    %v6863 = vunpack.c.l.b16 %v6157
    %v6864 = vunpack.c.h.b16 %v6157
    %v6865 = vunpack.c.l.b16 %v6158
    %v6866 = vunpack.c.h.b16 %v6158
    %v6867 = vunpack.c.l.b16 %v6159
    %v6868 = vunpack.c.h.b16 %v6159
    %v6869 = vunpack.c.l.b16 %v6160
    %v6870 = vunpack.c.h.b16 %v6160
    %v6871 = vunpack.c.l.b16 %v6161
    %v6872 = vunpack.c.h.b16 %v6161
    %v6873 = vunpack.c.l.b16 %v6162
    %v6874 = vunpack.c.h.b16 %v6162
    %v6875 = vunpack.c.l.b16 %v6163
    %v6876 = vunpack.c.h.b16 %v6163
    %v6877 = vunpack.c.l.b16 %v6164
    %v6878 = vunpack.c.h.b16 %v6164
    %v6879 = vunpack.c.l.b16 %v6165
    %v6880 = vunpack.c.h.b16 %v6165
    %v6881 = vunpack.c.l.b16 %v6166
    %v6882 = vunpack.c.h.b16 %v6166
    %v6883 = vunpack.c.l.b16 %v6167
    %v6884 = vunpack.c.h.b16 %v6167
    %v6885 = vunpack.c.l.b16 %v6168
    %v6886 = vunpack.c.h.b16 %v6168
    %v6887 = vunpack.c.l.b16 %v6169
    %v6888 = vunpack.c.h.b16 %v6169
    %v6889 = vunpack.c.l.b16 %v6170
    %v6890 = vunpack.c.h.b16 %v6170
    %v6891 = vunpack.c.l.b16 %v6171
    %v6892 = vunpack.c.h.b16 %v6171
    %v6893 = vunpack.c.l.b16 %v6172
    %v6894 = vunpack.c.h.b16 %v6172
    %v6895 = vunpack.c.l.b16 %v6173
    %v6896 = vunpack.c.h.b16 %v6173
    %v6897 = vunpack.c.l.b16 %v6174
    %v6898 = vunpack.c.h.b16 %v6174
    %v6899 = vunpack.c.l.b16 %v6175
    %v6900 = vunpack.c.h.b16 %v6175
    %v6901 = vunpack.c.l.b16 %v6176
    %v6902 = vunpack.c.h.b16 %v6176
    %v6903 = vunpack.c.l.b16 %v6177
    %v6904 = vunpack.c.h.b16 %v6177
    %v6905 = vunpack.c.l.b16 %v6178
    %v6906 = vunpack.c.h.b16 %v6178
    %v6907 = vunpack.c.l.b16 %v6179
    %v6908 = vunpack.c.h.b16 %v6179
    %v6909 = vunpack.c.l.b16 %v6180
    %v6910 = vunpack.c.h.b16 %v6180
    %v6911 = vunpack.c.l.b16 %v6181
    %v6912 = vunpack.c.h.b16 %v6181
    %v6913 = vunpack.c.l.b16 %v6182
    %v6914 = vunpack.c.h.b16 %v6182
    %v6915 = vunpack.c.l.b16 %v6183
    %v6916 = vunpack.c.h.b16 %v6183
    %v6917 = vunpack.c.l.b16 %v6184
    %v6918 = vunpack.c.h.b16 %v6184
    %v6919 = vunpack.c.l.b16 %v6185
    %v6920 = vunpack.c.h.b16 %v6185
    %v6921 = vunpack.c.l.b16 %v6186
    %v6922 = vunpack.c.h.b16 %v6186
    %v6923 = vunpack.c.l.b16 %v6187
    %v6924 = vunpack.c.h.b16 %v6187
    %v6925 = vunpack.c.l.b16 %v6188
    %v6926 = vunpack.c.h.b16 %v6188
    %v6927 = vunpack.c.l.b16 %v6189
    %v6928 = vunpack.c.h.b16 %v6189
    %v6929 = vunpack.c.l.b16 %v6190
    %v6930 = vunpack.c.h.b16 %v6190
    %v6931 = vunpack.c.l.b16 %v6191
    %v6932 = vunpack.c.h.b16 %v6191
    %v6933 = vunpack.c.l.b16 %v6192
    %v6934 = vunpack.c.h.b16 %v6192
    %v6935 = vunpack.c.l.b16 %v6193
    %v6936 = vunpack.c.h.b16 %v6193
    %v6937 = vunpack.c.l.b16 %v6194
    %v6938 = vunpack.c.h.b16 %v6194
    %v6939 = vunpack.c.l.b16 %v6195
    %v6940 = vunpack.c.h.b16 %v6195
    %v6941 = vunpack.c.l.b16 %v6196
    %v6942 = vunpack.c.h.b16 %v6196
    %v6943 = vunpack.c.l.b16 %v6197
    %v6944 = vunpack.c.h.b16 %v6197
    %v6945 = vunpack.c.l.b16 %v6198
    %v6946 = vunpack.c.h.b16 %v6198
    %v6947 = vunpack.c.l.b16 %v6199
    %v6948 = vunpack.c.h.b16 %v6199
    %v6949 = vunpack.c.l.b16 %v6200
    %v6950 = vunpack.c.h.b16 %v6200
    %v6951 = vunpack.c.l.b16 %v6201
    %v6952 = vunpack.c.h.b16 %v6201
    %v6953 = vunpack.c.l.b16 %v6202
    %v6954 = vunpack.c.h.b16 %v6202
    %v6955 = vunpack.c.l.b16 %v6203
    %v6956 = vunpack.c.h.b16 %v6203
    %v6957 = vunpack.c.l.b16 %v6204
    %v6958 = vunpack.c.h.b16 %v6204
    %v6959 = vunpack.c.l.b16 %v6205
    %v6960 = vunpack.c.h.b16 %v6205
    %v6961 = vunpack.c.l.b16 %v6206
    %v6962 = vunpack.c.h.b16 %v6206
    %v6963 = vunpack.c.l.b16 %v6207
    %v6964 = vunpack.c.h.b16 %v6207
    %v6965 = vunpack.c.l.b16 %v6208
    %v6966 = vunpack.c.h.b16 %v6208
    %v6967 = vunpack.c.l.b16 %v6209
    %v6968 = vunpack.c.h.b16 %v6209
    %v6969 = vunpack.c.l.b16 %v6210
    %v6970 = vunpack.c.h.b16 %v6210
    %v6971 = vunpack.c.l.b16 %v6211
    %v6972 = vunpack.c.h.b16 %v6211
    %v6973 = vunpack.c.l.b16 %v6212
    %v6974 = vunpack.c.h.b16 %v6212
    %v6975 = vunpack.c.l.b16 %v6213
    %v6976 = vunpack.c.h.b16 %v6213
    %v6977 = vunpack.c.l.b16 %v6214
    %v6978 = vunpack.c.h.b16 %v6214
    %v6979 = vunpack.c.l.b16 %v6215
    %v6980 = vunpack.c.h.b16 %v6215
    %v6981 = vunpack.c.l.b16 %v6216
    %v6982 = vunpack.c.h.b16 %v6216
    %v6983 = vunpack.c.l.b16 %v6217
    %v6984 = vunpack.c.h.b16 %v6217
    %v6985 = vunpack.c.l.b16 %v6218
    %v6986 = vunpack.c.h.b16 %v6218
    %v6987 = vpack.c.b16 %v6483, %v6475
    %v6988 = vpack.c.b16 %v6484, %v6476
    %v6989 = vpack.c.b16 %v6485, %v6477
    %v6990 = vpack.c.b16 %v6486, %v6478
    %v6991 = vpack.c.b16 %v6487, %v6479
    %v6992 = vpack.c.b16 %v6488, %v6480
    %v6993 = vpack.c.b16 %v6489, %v6481
    %v6994 = vpack.c.b16 %v6490, %v6482
    %v6995 = vpack.c.b16 %v6499, %v6491
    %v6996 = vpack.c.b16 %v6500, %v6492
    %v6997 = vpack.c.b16 %v6501, %v6493
    %v6998 = vpack.c.b16 %v6502, %v6494
    %v6999 = vpack.c.b16 %v6503, %v6495
    %v7000 = vpack.c.b16 %v6504, %v6496
    %v7001 = vpack.c.b16 %v6505, %v6497
    %v7002 = vpack.c.b16 %v6506, %v6498
    %v7003 = vpack.c.b16 %v6515, %v6507
    %v7004 = vpack.c.b16 %v6516, %v6508
    %v7005 = vpack.c.b16 %v6517, %v6509
    %v7006 = vpack.c.b16 %v6518, %v6510
    %v7007 = vpack.c.b16 %v6519, %v6511
    %v7008 = vpack.c.b16 %v6520, %v6512
    %v7009 = vpack.c.b16 %v6521, %v6513
    %v7010 = vpack.c.b16 %v6522, %v6514
    %v7011 = vpack.c.b16 %v6531, %v6523
    %v7012 = vpack.c.b16 %v6532, %v6524
    %v7013 = vpack.c.b16 %v6533, %v6525
    %v7014 = vpack.c.b16 %v6534, %v6526
    %v7015 = vpack.c.b16 %v6535, %v6527
    %v7016 = vpack.c.b16 %v6536, %v6528
    %v7017 = vpack.c.b16 %v6537, %v6529
    %v7018 = vpack.c.b16 %v6538, %v6530
    %v7019 = vpack.c.b16 %v6547, %v6539
    %v7020 = vpack.c.b16 %v6548, %v6540
    %v7021 = vpack.c.b16 %v6549, %v6541
    %v7022 = vpack.c.b16 %v6550, %v6542
    %v7023 = vpack.c.b16 %v6551, %v6543
    %v7024 = vpack.c.b16 %v6552, %v6544
    %v7025 = vpack.c.b16 %v6553, %v6545
    %v7026 = vpack.c.b16 %v6554, %v6546
    %v7027 = vpack.c.b16 %v6563, %v6555
    %v7028 = vpack.c.b16 %v6564, %v6556
    %v7029 = vpack.c.b16 %v6565, %v6557
    %v7030 = vpack.c.b16 %v6566, %v6558
    %v7031 = vpack.c.b16 %v6567, %v6559
    %v7032 = vpack.c.b16 %v6568, %v6560
    %v7033 = vpack.c.b16 %v6569, %v6561
    %v7034 = vpack.c.b16 %v6570, %v6562
    %v7035 = vpack.c.b16 %v6579, %v6571
    %v7036 = vpack.c.b16 %v6580, %v6572
    %v7037 = vpack.c.b16 %v6581, %v6573
    %v7038 = vpack.c.b16 %v6582, %v6574
    %v7039 = vpack.c.b16 %v6583, %v6575
    %v7040 = vpack.c.b16 %v6584, %v6576
    %v7041 = vpack.c.b16 %v6585, %v6577
    %v7042 = vpack.c.b16 %v6586, %v6578
    %v7043 = vpack.c.b16 %v6595, %v6587
    %v7044 = vpack.c.b16 %v6596, %v6588
    %v7045 = vpack.c.b16 %v6597, %v6589
    %v7046 = vpack.c.b16 %v6598, %v6590
    %v7047 = vpack.c.b16 %v6599, %v6591
    %v7048 = vpack.c.b16 %v6600, %v6592
    %v7049 = vpack.c.b16 %v6601, %v6593
    %v7050 = vpack.c.b16 %v6602, %v6594
    %v7051 = vpack.c.b16 %v6611, %v6603
    %v7052 = vpack.c.b16 %v6612, %v6604
    %v7053 = vpack.c.b16 %v6613, %v6605
    %v7054 = vpack.c.b16 %v6614, %v6606
    %v7055 = vpack.c.b16 %v6615, %v6607
    %v7056 = vpack.c.b16 %v6616, %v6608
    %v7057 = vpack.c.b16 %v6617, %v6609
    %v7058 = vpack.c.b16 %v6618, %v6610
    %v7059 = vpack.c.b16 %v6627, %v6619
    %v7060 = vpack.c.b16 %v6628, %v6620
    %v7061 = vpack.c.b16 %v6629, %v6621
    %v7062 = vpack.c.b16 %v6630, %v6622
    %v7063 = vpack.c.b16 %v6631, %v6623
    %v7064 = vpack.c.b16 %v6632, %v6624
    %v7065 = vpack.c.b16 %v6633, %v6625
    %v7066 = vpack.c.b16 %v6634, %v6626
    %v7067 = vpack.c.b16 %v6643, %v6635
    %v7068 = vpack.c.b16 %v6644, %v6636
    %v7069 = vpack.c.b16 %v6645, %v6637
    %v7070 = vpack.c.b16 %v6646, %v6638
    %v7071 = vpack.c.b16 %v6647, %v6639
    %v7072 = vpack.c.b16 %v6648, %v6640
    %v7073 = vpack.c.b16 %v6649, %v6641
    %v7074 = vpack.c.b16 %v6650, %v6642
    %v7075 = vpack.c.b16 %v6659, %v6651
    %v7076 = vpack.c.b16 %v6660, %v6652
    %v7077 = vpack.c.b16 %v6661, %v6653
    %v7078 = vpack.c.b16 %v6662, %v6654
    %v7079 = vpack.c.b16 %v6663, %v6655
    %v7080 = vpack.c.b16 %v6664, %v6656
    %v7081 = vpack.c.b16 %v6665, %v6657
    %v7082 = vpack.c.b16 %v6666, %v6658
    %v7083 = vpack.c.b16 %v6675, %v6667
    %v7084 = vpack.c.b16 %v6676, %v6668
    %v7085 = vpack.c.b16 %v6677, %v6669
    %v7086 = vpack.c.b16 %v6678, %v6670
    %v7087 = vpack.c.b16 %v6679, %v6671
    %v7088 = vpack.c.b16 %v6680, %v6672
    %v7089 = vpack.c.b16 %v6681, %v6673
    %v7090 = vpack.c.b16 %v6682, %v6674
    %v7091 = vpack.c.b16 %v6691, %v6683
    %v7092 = vpack.c.b16 %v6692, %v6684
    %v7093 = vpack.c.b16 %v6693, %v6685
    %v7094 = vpack.c.b16 %v6694, %v6686
    %v7095 = vpack.c.b16 %v6695, %v6687
    %v7096 = vpack.c.b16 %v6696, %v6688
    %v7097 = vpack.c.b16 %v6697, %v6689
    %v7098 = vpack.c.b16 %v6698, %v6690
    %v7099 = vpack.c.b16 %v6707, %v6699
    %v7100 = vpack.c.b16 %v6708, %v6700
    %v7101 = vpack.c.b16 %v6709, %v6701
    %v7102 = vpack.c.b16 %v6710, %v6702
    %v7103 = vpack.c.b16 %v6711, %v6703
    %v7104 = vpack.c.b16 %v6712, %v6704
    %v7105 = vpack.c.b16 %v6713, %v6705
    %v7106 = vpack.c.b16 %v6714, %v6706
    %v7107 = vpack.c.b16 %v6723, %v6715
    %v7108 = vpack.c.b16 %v6724, %v6716
    %v7109 = vpack.c.b16 %v6725, %v6717
    %v7110 = vpack.c.b16 %v6726, %v6718
    %v7111 = vpack.c.b16 %v6727, %v6719
    %v7112 = vpack.c.b16 %v6728, %v6720
    %v7113 = vpack.c.b16 %v6729, %v6721
    %v7114 = vpack.c.b16 %v6730, %v6722
    %v7115 = vpack.c.b16 %v6739, %v6731
    %v7116 = vpack.c.b16 %v6740, %v6732
    %v7117 = vpack.c.b16 %v6741, %v6733
    %v7118 = vpack.c.b16 %v6742, %v6734
    %v7119 = vpack.c.b16 %v6743, %v6735
    %v7120 = vpack.c.b16 %v6744, %v6736
    %v7121 = vpack.c.b16 %v6745, %v6737
    %v7122 = vpack.c.b16 %v6746, %v6738
    %v7123 = vpack.c.b16 %v6755, %v6747
    %v7124 = vpack.c.b16 %v6756, %v6748
    %v7125 = vpack.c.b16 %v6757, %v6749
    %v7126 = vpack.c.b16 %v6758, %v6750
    %v7127 = vpack.c.b16 %v6759, %v6751
    %v7128 = vpack.c.b16 %v6760, %v6752
    %v7129 = vpack.c.b16 %v6761, %v6753
    %v7130 = vpack.c.b16 %v6762, %v6754
    %v7131 = vpack.c.b16 %v6771, %v6763
    %v7132 = vpack.c.b16 %v6772, %v6764
    %v7133 = vpack.c.b16 %v6773, %v6765
    %v7134 = vpack.c.b16 %v6774, %v6766
    %v7135 = vpack.c.b16 %v6775, %v6767
    %v7136 = vpack.c.b16 %v6776, %v6768
    %v7137 = vpack.c.b16 %v6777, %v6769
    %v7138 = vpack.c.b16 %v6778, %v6770
    %v7139 = vpack.c.b16 %v6787, %v6779
    %v7140 = vpack.c.b16 %v6788, %v6780
    %v7141 = vpack.c.b16 %v6789, %v6781
    %v7142 = vpack.c.b16 %v6790, %v6782
    %v7143 = vpack.c.b16 %v6791, %v6783
    %v7144 = vpack.c.b16 %v6792, %v6784
    %v7145 = vpack.c.b16 %v6793, %v6785
    %v7146 = vpack.c.b16 %v6794, %v6786
    %v7147 = vpack.c.b16 %v6803, %v6795
    %v7148 = vpack.c.b16 %v6804, %v6796
    %v7149 = vpack.c.b16 %v6805, %v6797
    %v7150 = vpack.c.b16 %v6806, %v6798
    %v7151 = vpack.c.b16 %v6807, %v6799
    %v7152 = vpack.c.b16 %v6808, %v6800
    %v7153 = vpack.c.b16 %v6809, %v6801
    %v7154 = vpack.c.b16 %v6810, %v6802
    %v7155 = vpack.c.b16 %v6819, %v6811
    %v7156 = vpack.c.b16 %v6820, %v6812
    %v7157 = vpack.c.b16 %v6821, %v6813
    %v7158 = vpack.c.b16 %v6822, %v6814
    %v7159 = vpack.c.b16 %v6823, %v6815
    %v7160 = vpack.c.b16 %v6824, %v6816
    %v7161 = vpack.c.b16 %v6825, %v6817
    %v7162 = vpack.c.b16 %v6826, %v6818
    %v7163 = vpack.c.b16 %v6835, %v6827
    %v7164 = vpack.c.b16 %v6836, %v6828
    %v7165 = vpack.c.b16 %v6837, %v6829
    %v7166 = vpack.c.b16 %v6838, %v6830
    %v7167 = vpack.c.b16 %v6839, %v6831
    %v7168 = vpack.c.b16 %v6840, %v6832
    %v7169 = vpack.c.b16 %v6841, %v6833
    %v7170 = vpack.c.b16 %v6842, %v6834
    %v7171 = vpack.c.b16 %v6851, %v6843
    %v7172 = vpack.c.b16 %v6852, %v6844
    %v7173 = vpack.c.b16 %v6853, %v6845
    %v7174 = vpack.c.b16 %v6854, %v6846
    %v7175 = vpack.c.b16 %v6855, %v6847
    %v7176 = vpack.c.b16 %v6856, %v6848
    %v7177 = vpack.c.b16 %v6857, %v6849
    %v7178 = vpack.c.b16 %v6858, %v6850
    %v7179 = vpack.c.b16 %v6867, %v6859
    %v7180 = vpack.c.b16 %v6868, %v6860
    %v7181 = vpack.c.b16 %v6869, %v6861
    %v7182 = vpack.c.b16 %v6870, %v6862
    %v7183 = vpack.c.b16 %v6871, %v6863
    %v7184 = vpack.c.b16 %v6872, %v6864
    %v7185 = vpack.c.b16 %v6873, %v6865
    %v7186 = vpack.c.b16 %v6874, %v6866
    %v7187 = vpack.c.b16 %v6883, %v6875
    %v7188 = vpack.c.b16 %v6884, %v6876
    %v7189 = vpack.c.b16 %v6885, %v6877
    %v7190 = vpack.c.b16 %v6886, %v6878
    %v7191 = vpack.c.b16 %v6887, %v6879
    %v7192 = vpack.c.b16 %v6888, %v6880
    %v7193 = vpack.c.b16 %v6889, %v6881
    %v7194 = vpack.c.b16 %v6890, %v6882
    %v7195 = vpack.c.b16 %v6899, %v6891
    %v7196 = vpack.c.b16 %v6900, %v6892
    %v7197 = vpack.c.b16 %v6901, %v6893
    %v7198 = vpack.c.b16 %v6902, %v6894
    %v7199 = vpack.c.b16 %v6903, %v6895
    %v7200 = vpack.c.b16 %v6904, %v6896
    %v7201 = vpack.c.b16 %v6905, %v6897
    %v7202 = vpack.c.b16 %v6906, %v6898
    %v7203 = vpack.c.b16 %v6915, %v6907
    %v7204 = vpack.c.b16 %v6916, %v6908
    %v7205 = vpack.c.b16 %v6917, %v6909
    %v7206 = vpack.c.b16 %v6918, %v6910
    %v7207 = vpack.c.b16 %v6919, %v6911
    %v7208 = vpack.c.b16 %v6920, %v6912
    %v7209 = vpack.c.b16 %v6921, %v6913
    %v7210 = vpack.c.b16 %v6922, %v6914
    %v7211 = vpack.c.b16 %v6931, %v6923
    %v7212 = vpack.c.b16 %v6932, %v6924
    %v7213 = vpack.c.b16 %v6933, %v6925
    %v7214 = vpack.c.b16 %v6934, %v6926
    %v7215 = vpack.c.b16 %v6935, %v6927
    %v7216 = vpack.c.b16 %v6936, %v6928
    %v7217 = vpack.c.b16 %v6937, %v6929
    %v7218 = vpack.c.b16 %v6938, %v6930
    %v7219 = vpack.c.b16 %v6947, %v6939
    %v7220 = vpack.c.b16 %v6948, %v6940
    %v7221 = vpack.c.b16 %v6949, %v6941
    %v7222 = vpack.c.b16 %v6950, %v6942
    %v7223 = vpack.c.b16 %v6951, %v6943
    %v7224 = vpack.c.b16 %v6952, %v6944
    %v7225 = vpack.c.b16 %v6953, %v6945
    %v7226 = vpack.c.b16 %v6954, %v6946
    %v7227 = vpack.c.b16 %v6963, %v6955
    %v7228 = vpack.c.b16 %v6964, %v6956
    %v7229 = vpack.c.b16 %v6965, %v6957
    %v7230 = vpack.c.b16 %v6966, %v6958
    %v7231 = vpack.c.b16 %v6967, %v6959
    %v7232 = vpack.c.b16 %v6968, %v6960
    %v7233 = vpack.c.b16 %v6969, %v6961
    %v7234 = vpack.c.b16 %v6970, %v6962
    %v7235 = vpack.c.b16 %v6979, %v6971
    %v7236 = vpack.c.b16 %v6980, %v6972
    %v7237 = vpack.c.b16 %v6981, %v6973
    %v7238 = vpack.c.b16 %v6982, %v6974
    %v7239 = vpack.c.b16 %v6983, %v6975
    %v7240 = vpack.c.b16 %v6984, %v6976
    %v7241 = vpack.c.b16 %v6985, %v6977
    %v7242 = vpack.c.b16 %v6986, %v6978
    %7499 = vmatprep.subr.bf16.mxu0 %v6988
    %7500 = vmatpush1.bf16.msra.mxu0 %v6987
    %7501 = vmatprep.subr.bf16.mxu0 %v6996
    %7502 = vmatpush1.bf16.msra.mxu0 %v6995
    %7503 = vmatprep.subr.bf16.mxu0 %v7004
    %7504 = vmatpush1.bf16.msra.mxu0 %v7003
    %7505 = vmatprep.subr.bf16.mxu0 %v7012
    %7506 = vmatpush1.bf16.msra.mxu0 %v7011
    %7507 = vmatprep.subr.bf16.mxu0 %v7020
    %7508 = vmatpush1.bf16.msra.mxu0 %v7019
    %7509 = vmatprep.subr.bf16.mxu0 %v7028
    %7510 = vmatpush1.bf16.msra.mxu0 %v7027
    %7511 = vmatprep.subr.bf16.mxu0 %v7036
    %7512 = vmatpush1.bf16.msra.mxu0 %v7035
    %7513 = vmatprep.subr.bf16.mxu0 %v7044
    %7514 = vmatpush1.bf16.msra.mxu0 %v7043
    %7515 = vmatprep.subr.bf16.mxu0 %v7052
    %7516 = vmatpush1.bf16.msra.mxu0 %v7051
    %7517 = vmatprep.subr.bf16.mxu0 %v7060
    %7518 = vmatpush1.bf16.msra.mxu0 %v7059
    %7519 = vmatprep.subr.bf16.mxu0 %v7068
    %7520 = vmatpush1.bf16.msra.mxu0 %v7067
    %7521 = vmatprep.subr.bf16.mxu0 %v7076
    %7522 = vmatpush1.bf16.msra.mxu0 %v7075
    %7523 = vmatprep.subr.bf16.mxu0 %v7084
    %7524 = vmatpush1.bf16.msra.mxu0 %v7083
    %7525 = vmatprep.subr.bf16.mxu0 %v7092
    %7526 = vmatpush1.bf16.msra.mxu0 %v7091
    %7527 = vmatprep.subr.bf16.mxu0 %v7100
    %7528 = vmatpush1.bf16.msra.mxu0 %v7099
    %7529 = vmatprep.subr.bf16.mxu0 %v7108
    %7530 = vmatpush1.bf16.msra.mxu0 %v7107
    %7531 = vmatprep.mubr.bf16.mxu0 %v5947
    %7532 = vmatmul.mubr.bf16.gmra.mrb[0].mxu0 %v5946
    %v7533 = vpop.f32.mrb[0].mxu0
    %v7534 = vadd.f32 0.0, %v7533
    %v7535 = vpop.f32.mrb[0].mxu0
    %v7536 = vadd.f32 0.0, %v7535
    %v7537 = vpop.f32.mrb[0].mxu0
    %v7538 = vadd.f32 0.0, %v7537
    %v7539 = vpop.f32.mrb[0].mxu0
    %v7540 = vadd.f32 0.0, %v7539
    %7541 = vmatprep.mubr.bf16.mxu0 %v5951
    %7542 = vmatmul.mubr.bf16.gmra.mrb[0].mxu0 %v5950
    %v7543 = vpop.f32.mrb[0].mxu0
    %v7544 = vadd.f32 0.0, %v7543
    %v7545 = vpop.f32.mrb[0].mxu0
    %v7546 = vadd.f32 0.0, %v7545
    %v7547 = vpop.f32.mrb[0].mxu0
    %v7548 = vadd.f32 0.0, %v7547
    %v7549 = vpop.f32.mrb[0].mxu0
    %v7550 = vadd.f32 0.0, %v7549
    %7551 = vmatprep.mubr.bf16.mxu0 %v5955
    %7552 = vmatmul.mubr.bf16.gmra.mrb[0].mxu0 %v5954
    %v7553 = vpop.f32.mrb[0].mxu0
    %v7554 = vadd.f32 0.0, %v7553
    %v7555 = vpop.f32.mrb[0].mxu0
    %v7556 = vadd.f32 0.0, %v7555
    %v7557 = vpop.f32.mrb[0].mxu0
    %v7558 = vadd.f32 0.0, %v7557
    %v7559 = vpop.f32.mrb[0].mxu0
    %v7560 = vadd.f32 0.0, %v7559
    %7561 = vmatprep.mubr.bf16.mxu0 %v5959
    %7562 = vmatmul.mubr.bf16.gmra.mrb[0].mxu0 %v5958
    %v7563 = vpop.f32.mrb[0].mxu0
    %v7564 = vadd.f32 0.0, %v7563
    %v7565 = vpop.f32.mrb[0].mxu0
    %v7566 = vadd.f32 0.0, %v7565
    %v7567 = vpop.f32.mrb[0].mxu0
    %v7568 = vpop.f32.mrb[0].mxu0
    %7569 = vdwg.mxu0
    %7570 = vmatprep.subr.bf16.mxu0 %v7116
    %7571 = vmatpush1.bf16.msra.mxu0 %v7115
    %7572 = vmatprep.subr.bf16.mxu0 %v7124
    %7573 = vmatpush1.bf16.msra.mxu0 %v7123
    %7574 = vmatprep.subr.bf16.mxu0 %v7132
    %7575 = vmatpush1.bf16.msra.mxu0 %v7131
    %7576 = vmatprep.subr.bf16.mxu0 %v7140
    %7577 = vmatpush1.bf16.msra.mxu0 %v7139
    %7578 = vmatprep.subr.bf16.mxu0 %v7148
    %7579 = vmatpush1.bf16.msra.mxu0 %v7147
    %7580 = vmatprep.subr.bf16.mxu0 %v7156
    %7581 = vmatpush1.bf16.msra.mxu0 %v7155
    %7582 = vmatprep.subr.bf16.mxu0 %v7164
    %7583 = vmatpush1.bf16.msra.mxu0 %v7163
    %7584 = vmatprep.subr.bf16.mxu0 %v7172
    %7585 = vmatpush1.bf16.msra.mxu0 %v7171
    %7586 = vmatprep.subr.bf16.mxu0 %v7180
    %7587 = vmatpush1.bf16.msra.mxu0 %v7179
    %7588 = vmatprep.subr.bf16.mxu0 %v7188
    %7589 = vmatpush1.bf16.msra.mxu0 %v7187
    %7590 = vmatprep.subr.bf16.mxu0 %v7196
    %7591 = vmatpush1.bf16.msra.mxu0 %v7195
    %7592 = vmatprep.subr.bf16.mxu0 %v7204
    %7593 = vmatpush1.bf16.msra.mxu0 %v7203
    %7594 = vmatprep.subr.bf16.mxu0 %v7212
    %7595 = vmatpush1.bf16.msra.mxu0 %v7211
    %7596 = vmatprep.subr.bf16.mxu0 %v7220
    %7597 = vmatpush1.bf16.msra.mxu0 %v7219
    %7598 = vmatprep.subr.bf16.mxu0 %v7228
    %7599 = vmatpush1.bf16.msra.mxu0 %v7227
    %7600 = vmatprep.subr.bf16.mxu0 %v7236
    %7601 = vmatpush1.bf16.msra.mxu0 %v7235
    %7602 = vmatprep.mubr.bf16.mxu0 %v5949
    %7603 = vmatmul.mubr.bf16.gmra.mrb[0].mxu0 %v5948
    %v7604 = vpop.f32.mrb[0].mxu0
    %v7605 = vadd.f32 %v7534, %v7604
    %v7606 = vpop.f32.mrb[0].mxu0
    %v7607 = vadd.f32 %v7536, %v7606
    %v7608 = vpop.f32.mrb[0].mxu0
    %v7609 = vadd.f32 %v7538, %v7608
    %v7610 = vpop.f32.mrb[0].mxu0
    %v7611 = vadd.f32 %v7540, %v7610
    %7612 = vmatprep.mubr.bf16.mxu0 %v5953
    %7613 = vmatmul.mubr.bf16.gmra.mrb[0].mxu0 %v5952
    %v7614 = vpop.f32.mrb[0].mxu0
    %v7615 = vadd.f32 %v7544, %v7614
    %v7616 = vpop.f32.mrb[0].mxu0
    %v7617 = vadd.f32 %v7546, %v7616
    %v7618 = vpop.f32.mrb[0].mxu0
    %v7619 = vadd.f32 %v7548, %v7618
    %v7620 = vpop.f32.mrb[0].mxu0
    %v7621 = vadd.f32 %v7550, %v7620
    %7622 = vmatprep.mubr.bf16.mxu0 %v5957
    %7623 = vmatmul.mubr.bf16.gmra.mrb[0].mxu0 %v5956
    %v7624 = vpop.f32.mrb[0].mxu0
    %v7625 = vadd.f32 %v7554, %v7624
    %v7626 = vpop.f32.mrb[0].mxu0
    %v7627 = vadd.f32 %v7556, %v7626
    %v7628 = vpop.f32.mrb[0].mxu0
    %v7629 = vadd.f32 %v7558, %v7628
    %v7630 = vpop.f32.mrb[0].mxu0
    %v7631 = vadd.f32 %v7560, %v7630
    %7632 = vmatprep.mubr.bf16.mxu0 %v5961
    %7633 = vmatmul.mubr.bf16.gmra.mrb[0].mxu0 %v5960
    %v7634 = vpop.f32.mrb[0].mxu0
    %v7635 = vadd.f32 %v7564, %v7634
    %v7636 = vpop.f32.mrb[0].mxu0
    %v7637 = vadd.f32 %v7566, %v7636
    %v7638 = vpop.f32.mrb[0].mxu0
    %v7639 = vpop.f32.mrb[0].mxu0
    %7640 = vdwg.mxu0
    %7641 = vmatprep.subr.bf16.mxu0 %v6990
    %7642 = vmatpush1.bf16.msra.mxu0 %v6989
    %7643 = vmatprep.subr.bf16.mxu0 %v6998
    %7644 = vmatpush1.bf16.msra.mxu0 %v6997
    %7645 = vmatprep.subr.bf16.mxu0 %v7006
    %7646 = vmatpush1.bf16.msra.mxu0 %v7005
    %7647 = vmatprep.subr.bf16.mxu0 %v7014
    %7648 = vmatpush1.bf16.msra.mxu0 %v7013
    %7649 = vmatprep.subr.bf16.mxu0 %v7022
    %7650 = vmatpush1.bf16.msra.mxu0 %v7021
    %7651 = vmatprep.subr.bf16.mxu0 %v7030
    %7652 = vmatpush1.bf16.msra.mxu0 %v7029
    %7653 = vmatprep.subr.bf16.mxu0 %v7038
    %7654 = vmatpush1.bf16.msra.mxu0 %v7037
    %7655 = vmatprep.subr.bf16.mxu0 %v7046
    %7656 = vmatpush1.bf16.msra.mxu0 %v7045
    %7657 = vmatprep.subr.bf16.mxu0 %v7054
    %7658 = vmatpush1.bf16.msra.mxu0 %v7053
    %7659 = vmatprep.subr.bf16.mxu0 %v7062
    %7660 = vmatpush1.bf16.msra.mxu0 %v7061
    %7661 = vmatprep.subr.bf16.mxu0 %v7070
    %7662 = vmatpush1.bf16.msra.mxu0 %v7069
    %7663 = vmatprep.subr.bf16.mxu0 %v7078
    %7664 = vmatpush1.bf16.msra.mxu0 %v7077
    %7665 = vmatprep.subr.bf16.mxu0 %v7086
    %7666 = vmatpush1.bf16.msra.mxu0 %v7085
    %7667 = vmatprep.subr.bf16.mxu0 %v7094
    %7668 = vmatpush1.bf16.msra.mxu0 %v7093
    %7669 = vmatprep.subr.bf16.mxu0 %v7102
    %7670 = vmatpush1.bf16.msra.mxu0 %v7101
    %7671 = vmatprep.subr.bf16.mxu0 %v7110
    %7672 = vmatpush1.bf16.msra.mxu0 %v7109
    %7673 = vmatprep.mubr.bf16.mxu0 %v5947
    %7674 = vmatmul.mubr.bf16.gmra.mrb[0].mxu0 %v5946
    %v7675 = vpop.f32.mrb[0].mxu0
    %v7676 = vadd.f32 0.0, %v7675
    %v7677 = vpop.f32.mrb[0].mxu0
    %v7678 = vadd.f32 0.0, %v7677
    %v7679 = vpop.f32.mrb[0].mxu0
    %v7680 = vadd.f32 0.0, %v7679
    %v7681 = vpop.f32.mrb[0].mxu0
    %v7682 = vadd.f32 0.0, %v7681
    %7683 = vmatprep.mubr.bf16.mxu0 %v5951
    %7684 = vmatmul.mubr.bf16.gmra.mrb[0].mxu0 %v5950
    %v7685 = vpop.f32.mrb[0].mxu0
    %v7686 = vadd.f32 0.0, %v7685
    %v7687 = vpop.f32.mrb[0].mxu0
    %v7688 = vadd.f32 0.0, %v7687
    %v7689 = vpop.f32.mrb[0].mxu0
    %v7690 = vadd.f32 0.0, %v7689
    %v7691 = vpop.f32.mrb[0].mxu0
    %v7692 = vadd.f32 0.0, %v7691
    %7693 = vmatprep.mubr.bf16.mxu0 %v5955
    %7694 = vmatmul.mubr.bf16.gmra.mrb[0].mxu0 %v5954
    %v7695 = vpop.f32.mrb[0].mxu0
    %v7696 = vadd.f32 0.0, %v7695
    %v7697 = vpop.f32.mrb[0].mxu0
    %v7698 = vadd.f32 0.0, %v7697
    %v7699 = vpop.f32.mrb[0].mxu0
    %v7700 = vadd.f32 0.0, %v7699
    %v7701 = vpop.f32.mrb[0].mxu0
    %v7702 = vadd.f32 0.0, %v7701
    %7703 = vmatprep.mubr.bf16.mxu0 %v5959
    %7704 = vmatmul.mubr.bf16.gmra.mrb[0].mxu0 %v5958
    %v7705 = vpop.f32.mrb[0].mxu0
    %v7706 = vadd.f32 0.0, %v7705
    %v7707 = vpop.f32.mrb[0].mxu0
    %v7708 = vadd.f32 0.0, %v7707
    %v7709 = vpop.f32.mrb[0].mxu0
    %v7710 = vpop.f32.mrb[0].mxu0
    %7711 = vdwg.mxu0
    %7712 = vmatprep.subr.bf16.mxu0 %v7118
    %7713 = vmatpush1.bf16.msra.mxu0 %v7117
    %7714 = vmatprep.subr.bf16.mxu0 %v7126
    %7715 = vmatpush1.bf16.msra.mxu0 %v7125
    %7716 = vmatprep.subr.bf16.mxu0 %v7134
    %7717 = vmatpush1.bf16.msra.mxu0 %v7133
    %7718 = vmatprep.subr.bf16.mxu0 %v7142
    %7719 = vmatpush1.bf16.msra.mxu0 %v7141
    %7720 = vmatprep.subr.bf16.mxu0 %v7150
    %7721 = vmatpush1.bf16.msra.mxu0 %v7149
    %7722 = vmatprep.subr.bf16.mxu0 %v7158
    %7723 = vmatpush1.bf16.msra.mxu0 %v7157
    %7724 = vmatprep.subr.bf16.mxu0 %v7166
    %7725 = vmatpush1.bf16.msra.mxu0 %v7165
    %7726 = vmatprep.subr.bf16.mxu0 %v7174
    %7727 = vmatpush1.bf16.msra.mxu0 %v7173
    %7728 = vmatprep.subr.bf16.mxu0 %v7182
    %7729 = vmatpush1.bf16.msra.mxu0 %v7181
    %7730 = vmatprep.subr.bf16.mxu0 %v7190
    %7731 = vmatpush1.bf16.msra.mxu0 %v7189
    %7732 = vmatprep.subr.bf16.mxu0 %v7198
    %7733 = vmatpush1.bf16.msra.mxu0 %v7197
    %7734 = vmatprep.subr.bf16.mxu0 %v7206
    %7735 = vmatpush1.bf16.msra.mxu0 %v7205
    %7736 = vmatprep.subr.bf16.mxu0 %v7214
    %7737 = vmatpush1.bf16.msra.mxu0 %v7213
    %7738 = vmatprep.subr.bf16.mxu0 %v7222
    %7739 = vmatpush1.bf16.msra.mxu0 %v7221
    %7740 = vmatprep.subr.bf16.mxu0 %v7230
    %7741 = vmatpush1.bf16.msra.mxu0 %v7229
    %7742 = vmatprep.subr.bf16.mxu0 %v7238
    %7743 = vmatpush1.bf16.msra.mxu0 %v7237
    %7744 = vmatprep.mubr.bf16.mxu0 %v5949
    %7745 = vmatmul.mubr.bf16.gmra.mrb[0].mxu0 %v5948
    %v7746 = vpop.f32.mrb[0].mxu0
    %v7747 = vadd.f32 %v7676, %v7746
    %v7748 = vpop.f32.mrb[0].mxu0
    %v7749 = vadd.f32 %v7678, %v7748
    %v7750 = vpop.f32.mrb[0].mxu0
    %v7751 = vadd.f32 %v7680, %v7750
    %v7752 = vpop.f32.mrb[0].mxu0
    %v7753 = vadd.f32 %v7682, %v7752
    %7754 = vmatprep.mubr.bf16.mxu0 %v5953
    %7755 = vmatmul.mubr.bf16.gmra.mrb[0].mxu0 %v5952
    %v7756 = vpop.f32.mrb[0].mxu0
    %v7757 = vadd.f32 %v7686, %v7756
    %v7758 = vpop.f32.mrb[0].mxu0
    %v7759 = vadd.f32 %v7688, %v7758
    %v7760 = vpop.f32.mrb[0].mxu0
    %v7761 = vadd.f32 %v7690, %v7760
    %v7762 = vpop.f32.mrb[0].mxu0
    %v7763 = vadd.f32 %v7692, %v7762
    %7764 = vmatprep.mubr.bf16.mxu0 %v5957
    %7765 = vmatmul.mubr.bf16.gmra.mrb[0].mxu0 %v5956
    %v7766 = vpop.f32.mrb[0].mxu0
    %v7767 = vadd.f32 %v7696, %v7766
    %v7768 = vpop.f32.mrb[0].mxu0
    %v7769 = vadd.f32 %v7698, %v7768
    %v7770 = vpop.f32.mrb[0].mxu0
    %v7771 = vadd.f32 %v7700, %v7770
    %v7772 = vpop.f32.mrb[0].mxu0
    %v7773 = vadd.f32 %v7702, %v7772
    %7774 = vmatprep.mubr.bf16.mxu0 %v5961
    %7775 = vmatmul.mubr.bf16.gmra.mrb[0].mxu0 %v5960
    %v7776 = vpop.f32.mrb[0].mxu0
    %v7777 = vadd.f32 %v7706, %v7776
    %v7778 = vpop.f32.mrb[0].mxu0
    %v7779 = vadd.f32 %v7708, %v7778
    %v7780 = vpop.f32.mrb[0].mxu0
    %v7781 = vpop.f32.mrb[0].mxu0
    %7782 = vdwg.mxu0
    %7783 = vmatprep.subr.bf16.mxu0 %v6992
    %7784 = vmatpush1.bf16.msra.mxu0 %v6991
    %7785 = vmatprep.subr.bf16.mxu0 %v7000
    %7786 = vmatpush1.bf16.msra.mxu0 %v6999
    %7787 = vmatprep.subr.bf16.mxu0 %v7008
    %7788 = vmatpush1.bf16.msra.mxu0 %v7007
    %7789 = vmatprep.subr.bf16.mxu0 %v7016
    %7790 = vmatpush1.bf16.msra.mxu0 %v7015
    %7791 = vmatprep.subr.bf16.mxu0 %v7024
    %7792 = vmatpush1.bf16.msra.mxu0 %v7023
    %7793 = vmatprep.subr.bf16.mxu0 %v7032
    %7794 = vmatpush1.bf16.msra.mxu0 %v7031
    %7795 = vmatprep.subr.bf16.mxu0 %v7040
    %7796 = vmatpush1.bf16.msra.mxu0 %v7039
    %7797 = vmatprep.subr.bf16.mxu0 %v7048
    %7798 = vmatpush1.bf16.msra.mxu0 %v7047
    %7799 = vmatprep.subr.bf16.mxu0 %v7056
    %7800 = vmatpush1.bf16.msra.mxu0 %v7055
    %7801 = vmatprep.subr.bf16.mxu0 %v7064
    %7802 = vmatpush1.bf16.msra.mxu0 %v7063
    %7803 = vmatprep.subr.bf16.mxu0 %v7072
    %7804 = vmatpush1.bf16.msra.mxu0 %v7071
    %7805 = vmatprep.subr.bf16.mxu0 %v7080
    %7806 = vmatpush1.bf16.msra.mxu0 %v7079
    %7807 = vmatprep.subr.bf16.mxu0 %v7088
    %7808 = vmatpush1.bf16.msra.mxu0 %v7087
    %7809 = vmatprep.subr.bf16.mxu0 %v7096
    %7810 = vmatpush1.bf16.msra.mxu0 %v7095
    %7811 = vmatprep.subr.bf16.mxu0 %v7104
    %7812 = vmatpush1.bf16.msra.mxu0 %v7103
    %7813 = vmatprep.subr.bf16.mxu0 %v7112
    %7814 = vmatpush1.bf16.msra.mxu0 %v7111
    %7815 = vmatprep.mubr.bf16.mxu0 %v5947
    %7816 = vmatmul.mubr.bf16.gmra.mrb[0].mxu0 %v5946
    %v7817 = vpop.f32.mrb[0].mxu0
    %v7818 = vadd.f32 0.0, %v7817
    %v7819 = vpop.f32.mrb[0].mxu0
    %v7820 = vadd.f32 0.0, %v7819
    %v7821 = vpop.f32.mrb[0].mxu0
    %v7822 = vadd.f32 0.0, %v7821
    %v7823 = vpop.f32.mrb[0].mxu0
    %v7824 = vadd.f32 0.0, %v7823
    %7825 = vmatprep.mubr.bf16.mxu0 %v5951
    %7826 = vmatmul.mubr.bf16.gmra.mrb[0].mxu0 %v5950
    %v7827 = vpop.f32.mrb[0].mxu0
    %v7828 = vadd.f32 0.0, %v7827
    %v7829 = vpop.f32.mrb[0].mxu0
    %v7830 = vadd.f32 0.0, %v7829
    %v7831 = vpop.f32.mrb[0].mxu0
    %v7832 = vadd.f32 0.0, %v7831
    %v7833 = vpop.f32.mrb[0].mxu0
    %v7834 = vadd.f32 0.0, %v7833
    %7835 = vmatprep.mubr.bf16.mxu0 %v5955
    %7836 = vmatmul.mubr.bf16.gmra.mrb[0].mxu0 %v5954
    %v7837 = vpop.f32.mrb[0].mxu0
    %v7838 = vadd.f32 0.0, %v7837
    %v7839 = vpop.f32.mrb[0].mxu0
    %v7840 = vadd.f32 0.0, %v7839
    %v7841 = vpop.f32.mrb[0].mxu0
    %v7842 = vadd.f32 0.0, %v7841
    %v7843 = vpop.f32.mrb[0].mxu0
    %v7844 = vadd.f32 0.0, %v7843
    %7845 = vmatprep.mubr.bf16.mxu0 %v5959
    %7846 = vmatmul.mubr.bf16.gmra.mrb[0].mxu0 %v5958
    %v7847 = vpop.f32.mrb[0].mxu0
    %v7848 = vadd.f32 0.0, %v7847
    %v7849 = vpop.f32.mrb[0].mxu0
    %v7850 = vadd.f32 0.0, %v7849
    %v7851 = vpop.f32.mrb[0].mxu0
    %v7852 = vpop.f32.mrb[0].mxu0
    %7853 = vdwg.mxu0
    %7854 = vmatprep.subr.bf16.mxu0 %v7120
    %7855 = vmatpush1.bf16.msra.mxu0 %v7119
    %7856 = vmatprep.subr.bf16.mxu0 %v7128
    %7857 = vmatpush1.bf16.msra.mxu0 %v7127
    %7858 = vmatprep.subr.bf16.mxu0 %v7136
    %7859 = vmatpush1.bf16.msra.mxu0 %v7135
    %7860 = vmatprep.subr.bf16.mxu0 %v7144
    %7861 = vmatpush1.bf16.msra.mxu0 %v7143
    %7862 = vmatprep.subr.bf16.mxu0 %v7152
    %7863 = vmatpush1.bf16.msra.mxu0 %v7151
    %7864 = vmatprep.subr.bf16.mxu0 %v7160
    %7865 = vmatpush1.bf16.msra.mxu0 %v7159
    %7866 = vmatprep.subr.bf16.mxu0 %v7168
    %7867 = vmatpush1.bf16.msra.mxu0 %v7167
    %7868 = vmatprep.subr.bf16.mxu0 %v7176
    %7869 = vmatpush1.bf16.msra.mxu0 %v7175
    %7870 = vmatprep.subr.bf16.mxu0 %v7184
    %7871 = vmatpush1.bf16.msra.mxu0 %v7183
    %7872 = vmatprep.subr.bf16.mxu0 %v7192
    %7873 = vmatpush1.bf16.msra.mxu0 %v7191
    %7874 = vmatprep.subr.bf16.mxu0 %v7200
    %7875 = vmatpush1.bf16.msra.mxu0 %v7199
    %7876 = vmatprep.subr.bf16.mxu0 %v7208
    %7877 = vmatpush1.bf16.msra.mxu0 %v7207
    %7878 = vmatprep.subr.bf16.mxu0 %v7216
    %7879 = vmatpush1.bf16.msra.mxu0 %v7215
    %7880 = vmatprep.subr.bf16.mxu0 %v7224
    %7881 = vmatpush1.bf16.msra.mxu0 %v7223
    %7882 = vmatprep.subr.bf16.mxu0 %v7232
    %7883 = vmatpush1.bf16.msra.mxu0 %v7231
    %7884 = vmatprep.subr.bf16.mxu0 %v7240
    %7885 = vmatpush1.bf16.msra.mxu0 %v7239
    %7886 = vmatprep.mubr.bf16.mxu0 %v5949
    %7887 = vmatmul.mubr.bf16.gmra.mrb[0].mxu0 %v5948
    %v7888 = vpop.f32.mrb[0].mxu0
    %v7889 = vadd.f32 %v7818, %v7888
    %v7890 = vpop.f32.mrb[0].mxu0
    %v7891 = vadd.f32 %v7820, %v7890
    %v7892 = vpop.f32.mrb[0].mxu0
    %v7893 = vadd.f32 %v7822, %v7892
    %v7894 = vpop.f32.mrb[0].mxu0
    %v7895 = vadd.f32 %v7824, %v7894
    %7896 = vmatprep.mubr.bf16.mxu0 %v5953
    %7897 = vmatmul.mubr.bf16.gmra.mrb[0].mxu0 %v5952
    %v7898 = vpop.f32.mrb[0].mxu0
    %v7899 = vadd.f32 %v7828, %v7898
    %v7900 = vpop.f32.mrb[0].mxu0
    %v7901 = vadd.f32 %v7830, %v7900
    %v7902 = vpop.f32.mrb[0].mxu0
    %v7903 = vadd.f32 %v7832, %v7902
    %v7904 = vpop.f32.mrb[0].mxu0
    %v7905 = vadd.f32 %v7834, %v7904
    %7906 = vmatprep.mubr.bf16.mxu0 %v5957
    %7907 = vmatmul.mubr.bf16.gmra.mrb[0].mxu0 %v5956
    %v7908 = vpop.f32.mrb[0].mxu0
    %v7909 = vadd.f32 %v7838, %v7908
    %v7910 = vpop.f32.mrb[0].mxu0
    %v7911 = vadd.f32 %v7840, %v7910
    %v7912 = vpop.f32.mrb[0].mxu0
    %v7913 = vadd.f32 %v7842, %v7912
    %v7914 = vpop.f32.mrb[0].mxu0
    %v7915 = vadd.f32 %v7844, %v7914
    %7916 = vmatprep.mubr.bf16.mxu0 %v5961
    %7917 = vmatmul.mubr.bf16.gmra.mrb[0].mxu0 %v5960
    %v7918 = vpop.f32.mrb[0].mxu0
    %v7919 = vadd.f32 %v7848, %v7918
    %v7920 = vpop.f32.mrb[0].mxu0
    %v7921 = vadd.f32 %v7850, %v7920
    %v7922 = vpop.f32.mrb[0].mxu0
    %v7923 = vpop.f32.mrb[0].mxu0
    %7924 = vdwg.mxu0
    %7925 = vmatprep.subr.bf16.mxu0 %v6994
    %7926 = vmatpush1.bf16.msra.mxu0 %v6993
    %7927 = vmatprep.subr.bf16.mxu0 %v7002
    %7928 = vmatpush1.bf16.msra.mxu0 %v7001
    %7929 = vmatprep.subr.bf16.mxu0 %v7010
    %7930 = vmatpush1.bf16.msra.mxu0 %v7009
    %7931 = vmatprep.subr.bf16.mxu0 %v7018
    %7932 = vmatpush1.bf16.msra.mxu0 %v7017
    %7933 = vmatprep.subr.bf16.mxu0 %v7026
    %7934 = vmatpush1.bf16.msra.mxu0 %v7025
    %7935 = vmatprep.subr.bf16.mxu0 %v7034
    %7936 = vmatpush1.bf16.msra.mxu0 %v7033
    %7937 = vmatprep.subr.bf16.mxu0 %v7042
    %7938 = vmatpush1.bf16.msra.mxu0 %v7041
    %7939 = vmatprep.subr.bf16.mxu0 %v7050
    %7940 = vmatpush1.bf16.msra.mxu0 %v7049
    %7941 = vmatprep.subr.bf16.mxu0 %v7058
    %7942 = vmatpush1.bf16.msra.mxu0 %v7057
    %7943 = vmatprep.subr.bf16.mxu0 %v7066
    %7944 = vmatpush1.bf16.msra.mxu0 %v7065
    %7945 = vmatprep.subr.bf16.mxu0 %v7074
    %7946 = vmatpush1.bf16.msra.mxu0 %v7073
    %7947 = vmatprep.subr.bf16.mxu0 %v7082
    %7948 = vmatpush1.bf16.msra.mxu0 %v7081
    %7949 = vmatprep.subr.bf16.mxu0 %v7090
    %7950 = vmatpush1.bf16.msra.mxu0 %v7089
    %7951 = vmatprep.subr.bf16.mxu0 %v7098
    %7952 = vmatpush1.bf16.msra.mxu0 %v7097
    %7953 = vmatprep.subr.bf16.mxu0 %v7106
    %7954 = vmatpush1.bf16.msra.mxu0 %v7105
    %7955 = vmatprep.subr.bf16.mxu0 %v7114
    %7956 = vmatpush1.bf16.msra.mxu0 %v7113
    %7957 = vmatprep.mubr.bf16.mxu0 %v5947
    %7958 = vmatmul.mubr.bf16.gmra.mrb[0].mxu0 %v5946
    %v7959 = vpop.f32.mrb[0].mxu0
    %v7960 = vadd.f32 0.0, %v7959
    %v7961 = vpop.f32.mrb[0].mxu0
    %v7962 = vadd.f32 0.0, %v7961
    %v7963 = vpop.f32.mrb[0].mxu0
    %v7964 = vadd.f32 0.0, %v7963
    %v7965 = vpop.f32.mrb[0].mxu0
    %v7966 = vadd.f32 0.0, %v7965
    %7967 = vmatprep.mubr.bf16.mxu0 %v5951
    %7968 = vmatmul.mubr.bf16.gmra.mrb[0].mxu0 %v5950
    %v7969 = vpop.f32.mrb[0].mxu0
    %v7970 = vadd.f32 0.0, %v7969
    %v7971 = vpop.f32.mrb[0].mxu0
    %v7972 = vadd.f32 0.0, %v7971
    %v7973 = vpop.f32.mrb[0].mxu0
    %v7974 = vadd.f32 0.0, %v7973
    %v7975 = vpop.f32.mrb[0].mxu0
    %v7976 = vadd.f32 0.0, %v7975
    %7977 = vmatprep.mubr.bf16.mxu0 %v5955
    %7978 = vmatmul.mubr.bf16.gmra.mrb[0].mxu0 %v5954
    %v7979 = vpop.f32.mrb[0].mxu0
    %v7980 = vadd.f32 0.0, %v7979
    %v7981 = vpop.f32.mrb[0].mxu0
    %v7982 = vadd.f32 0.0, %v7981
    %v7983 = vpop.f32.mrb[0].mxu0
    %v7984 = vadd.f32 0.0, %v7983
    %v7985 = vpop.f32.mrb[0].mxu0
    %v7986 = vadd.f32 0.0, %v7985
    %7987 = vmatprep.mubr.bf16.mxu0 %v5959
    %7988 = vmatmul.mubr.bf16.gmra.mrb[0].mxu0 %v5958
    %v7989 = vpop.f32.mrb[0].mxu0
    %v7990 = vadd.f32 0.0, %v7989
    %v7991 = vpop.f32.mrb[0].mxu0
    %v7992 = vadd.f32 0.0, %v7991
    %v7993 = vpop.f32.mrb[0].mxu0
    %v7994 = vpop.f32.mrb[0].mxu0
    %7995 = vdwg.mxu0
    %7996 = vmatprep.subr.bf16.mxu0 %v7122
    %7997 = vmatpush1.bf16.msra.mxu0 %v7121
    %7998 = vmatprep.subr.bf16.mxu0 %v7130
    %7999 = vmatpush1.bf16.msra.mxu0 %v7129
    %8000 = vmatprep.subr.bf16.mxu0 %v7138
    %8001 = vmatpush1.bf16.msra.mxu0 %v7137
    %8002 = vmatprep.subr.bf16.mxu0 %v7146
    %8003 = vmatpush1.bf16.msra.mxu0 %v7145
    %8004 = vmatprep.subr.bf16.mxu0 %v7154
    %8005 = vmatpush1.bf16.msra.mxu0 %v7153
    %8006 = vmatprep.subr.bf16.mxu0 %v7162
    %8007 = vmatpush1.bf16.msra.mxu0 %v7161
    %8008 = vmatprep.subr.bf16.mxu0 %v7170
    %8009 = vmatpush1.bf16.msra.mxu0 %v7169
    %8010 = vmatprep.subr.bf16.mxu0 %v7178
    %8011 = vmatpush1.bf16.msra.mxu0 %v7177
    %8012 = vmatprep.subr.bf16.mxu0 %v7186
    %8013 = vmatpush1.bf16.msra.mxu0 %v7185
    %8014 = vmatprep.subr.bf16.mxu0 %v7194
    %8015 = vmatpush1.bf16.msra.mxu0 %v7193
    %8016 = vmatprep.subr.bf16.mxu0 %v7202
    %8017 = vmatpush1.bf16.msra.mxu0 %v7201
    %8018 = vmatprep.subr.bf16.mxu0 %v7210
    %8019 = vmatpush1.bf16.msra.mxu0 %v7209
    %8020 = vmatprep.subr.bf16.mxu0 %v7218
    %8021 = vmatpush1.bf16.msra.mxu0 %v7217
    %8022 = vmatprep.subr.bf16.mxu0 %v7226
    %8023 = vmatpush1.bf16.msra.mxu0 %v7225
    %8024 = vmatprep.subr.bf16.mxu0 %v7234
    %8025 = vmatpush1.bf16.msra.mxu0 %v7233
    %8026 = vmatprep.subr.bf16.mxu0 %v7242
    %8027 = vmatpush1.bf16.msra.mxu0 %v7241
    %8028 = vmatprep.mubr.bf16.mxu0 %v5949
    %8029 = vmatmul.mubr.bf16.gmra.mrb[0].mxu0 %v5948
    %v8030 = vpop.f32.mrb[0].mxu0
    %v8031 = vadd.f32 %v7960, %v8030
    %v8032 = vpop.f32.mrb[0].mxu0
    %v8033 = vadd.f32 %v7962, %v8032
    %v8034 = vpop.f32.mrb[0].mxu0
    %v8035 = vadd.f32 %v7964, %v8034
    %v8036 = vpop.f32.mrb[0].mxu0
    %v8037 = vadd.f32 %v7966, %v8036
    %8038 = vmatprep.mubr.bf16.mxu0 %v5953
    %8039 = vmatmul.mubr.bf16.gmra.mrb[0].mxu0 %v5952
    %v8040 = vpop.f32.mrb[0].mxu0
    %v8041 = vadd.f32 %v7970, %v8040
    %v8042 = vpop.f32.mrb[0].mxu0
    %v8043 = vadd.f32 %v7972, %v8042
    %v8044 = vpop.f32.mrb[0].mxu0
    %v8045 = vadd.f32 %v7974, %v8044
    %v8046 = vpop.f32.mrb[0].mxu0
    %v8047 = vadd.f32 %v7976, %v8046
    %8048 = vmatprep.mubr.bf16.mxu0 %v5957
    %8049 = vmatmul.mubr.bf16.gmra.mrb[0].mxu0 %v5956
    %v8050 = vpop.f32.mrb[0].mxu0
    %v8051 = vadd.f32 %v7980, %v8050
    %v8052 = vpop.f32.mrb[0].mxu0
    %v8053 = vadd.f32 %v7982, %v8052
    %v8054 = vpop.f32.mrb[0].mxu0
    %v8055 = vadd.f32 %v7984, %v8054
    %v8056 = vpop.f32.mrb[0].mxu0
    %v8057 = vadd.f32 %v7986, %v8056
    %8058 = vmatprep.mubr.bf16.mxu0 %v5961
    %8059 = vmatmul.mubr.bf16.gmra.mrb[0].mxu0 %v5960
    %v8060 = vpop.f32.mrb[0].mxu0
    %v8061 = vadd.f32 %v7990, %v8060
    %v8062 = vpop.f32.mrb[0].mxu0
    %v8063 = vadd.f32 %v7992, %v8062
    %v8064 = vpop.f32.mrb[0].mxu0
    %v8065 = vpop.f32.mrb[0].mxu0
    %8066 = vdwg.mxu0
    %v8067 = vadd.f32 %v5456, %v7605
    %v8068 = vadd.f32 %v5458, %v7607
    %v8069 = vadd.f32 %v5598, %v7747
    %v8070 = vadd.f32 %v5600, %v7749
    %v8071 = vadd.f32 %v5740, %v7889
    %v8072 = vadd.f32 %v5742, %v7891
    %v8073 = vadd.f32 %v5882, %v8031
    %v8074 = vadd.f32 %v5884, %v8033
    %v8075 = vadd.f32 %v5460, %v7609
    %v8076 = vadd.f32 %v5462, %v7611
    %v8077 = vadd.f32 %v5602, %v7751
    %v8078 = vadd.f32 %v5604, %v7753
    %v8079 = vadd.f32 %v5744, %v7893
    %v8080 = vadd.f32 %v5746, %v7895
    %v8081 = vadd.f32 %v5886, %v8035
    %v8082 = vadd.f32 %v5888, %v8037
    %v8083 = vadd.f32 %v5466, %v7615
    %v8084 = vadd.f32 %v5468, %v7617
    %v8085 = vadd.f32 %v5608, %v7757
    %v8086 = vadd.f32 %v5610, %v7759
    %v8087 = vadd.f32 %v5750, %v7899
    %v8088 = vadd.f32 %v5752, %v7901
    %v8089 = vadd.f32 %v5892, %v8041
    %v8090 = vadd.f32 %v5894, %v8043
    %v8091 = vadd.f32 %v5470, %v7619
    %v8092 = vadd.f32 %v5472, %v7621
    %v8093 = vadd.f32 %v5612, %v7761
    %v8094 = vadd.f32 %v5614, %v7763
    %v8095 = vadd.f32 %v5754, %v7903
    %v8096 = vadd.f32 %v5756, %v7905
    %v8097 = vadd.f32 %v5896, %v8045
    %v8098 = vadd.f32 %v5898, %v8047
    %v8099 = vadd.f32 %v5476, %v7625
    %v8100 = vadd.f32 %v5478, %v7627
    %v8101 = vadd.f32 %v5618, %v7767
    %v8102 = vadd.f32 %v5620, %v7769
    %v8103 = vadd.f32 %v5760, %v7909
    %v8104 = vadd.f32 %v5762, %v7911
    %v8105 = vadd.f32 %v5902, %v8051
    %v8106 = vadd.f32 %v5904, %v8053
    %v8107 = vadd.f32 %v5480, %v7629
    %v8108 = vadd.f32 %v5482, %v7631
    %v8109 = vadd.f32 %v5622, %v7771
    %v8110 = vadd.f32 %v5624, %v7773
    %v8111 = vadd.f32 %v5764, %v7913
    %v8112 = vadd.f32 %v5766, %v7915
    %v8113 = vadd.f32 %v5906, %v8055
    %v8114 = vadd.f32 %v5908, %v8057
    %v8115 = vadd.f32 %v5486, %v7635
    %v8116 = vadd.f32 %v5488, %v7637
    %v8117 = vadd.f32 %v5628, %v7777
    %v8118 = vadd.f32 %v5630, %v7779
    %v8119 = vadd.f32 %v5770, %v7919
    %v8120 = vadd.f32 %v5772, %v7921
    %v8121 = vadd.f32 %v5912, %v8061
    %v8122 = vadd.f32 %v5914, %v8063
    %8123 = vmatprep.subr.bf16.mxu0 %v2991
    %8124 = vmatpush1.bf16.msra.mxu0 %v2990
    %8125 = vmatprep.subr.bf16.mxu0 %v2999
    %8126 = vmatpush1.bf16.msra.mxu0 %v2998
    %8127 = vmatprep.subr.bf16.mxu0 %v3007
    %8128 = vmatpush1.bf16.msra.mxu0 %v3006
    %8129 = vmatprep.subr.bf16.mxu0 %v3015
    %8130 = vmatpush1.bf16.msra.mxu0 %v3014
    %8131 = vmatprep.subr.bf16.mxu0 %v3023
    %8132 = vmatpush1.bf16.msra.mxu0 %v3022
    %8133 = vmatprep.subr.bf16.mxu0 %v3031
    %8134 = vmatpush1.bf16.msra.mxu0 %v3030
    %8135 = vmatprep.subr.bf16.mxu0 %v3039
    %8136 = vmatpush1.bf16.msra.mxu0 %v3038
    %8137 = vmatprep.subr.bf16.mxu0 %v3047
    %8138 = vmatpush1.bf16.msra.mxu0 %v3046
    %8139 = vmatprep.subr.bf16.mxu0 %v3055
    %8140 = vmatpush1.bf16.msra.mxu0 %v3054
    %8141 = vmatprep.subr.bf16.mxu0 %v3063
    %8142 = vmatpush1.bf16.msra.mxu0 %v3062
    %8143 = vmatprep.subr.bf16.mxu0 %v3071
    %8144 = vmatpush1.bf16.msra.mxu0 %v3070
    %8145 = vmatprep.subr.bf16.mxu0 %v3079
    %8146 = vmatpush1.bf16.msra.mxu0 %v3078
    %8147 = vmatprep.subr.bf16.mxu0 %v3087
    %8148 = vmatpush1.bf16.msra.mxu0 %v3086
    %8149 = vmatprep.subr.bf16.mxu0 %v3095
    %8150 = vmatpush1.bf16.msra.mxu0 %v3094
    %8151 = vmatprep.subr.bf16.mxu0 %v3103
    %8152 = vmatpush1.bf16.msra.mxu0 %v3102
    %8153 = vmatprep.subr.bf16.mxu0 %v3111
    %8154 = vmatpush1.bf16.msra.mxu0 %v3110
    %8155 = vmatprep.mubr.bf16.mxu0 %v5947
    %8156 = vmatmul.mubr.bf16.gmra.mrb[0].mxu0 %v5946
    %v8157 = vpop.f32.mrb[0].mxu0
    %v8158 = vadd.f32 0.0, %v8157
    %v8159 = vpop.f32.mrb[0].mxu0
    %v8160 = vadd.f32 0.0, %v8159
    %v8161 = vpop.f32.mrb[0].mxu0
    %v8162 = vadd.f32 0.0, %v8161
    %v8163 = vpop.f32.mrb[0].mxu0
    %v8164 = vadd.f32 0.0, %v8163
    %8165 = vmatprep.mubr.bf16.mxu0 %v5951
    %8166 = vmatmul.mubr.bf16.gmra.mrb[0].mxu0 %v5950
    %v8167 = vpop.f32.mrb[0].mxu0
    %v8168 = vadd.f32 0.0, %v8167
    %v8169 = vpop.f32.mrb[0].mxu0
    %v8170 = vadd.f32 0.0, %v8169
    %v8171 = vpop.f32.mrb[0].mxu0
    %v8172 = vadd.f32 0.0, %v8171
    %v8173 = vpop.f32.mrb[0].mxu0
    %v8174 = vadd.f32 0.0, %v8173
    %8175 = vmatprep.mubr.bf16.mxu0 %v5955
    %8176 = vmatmul.mubr.bf16.gmra.mrb[0].mxu0 %v5954
    %v8177 = vpop.f32.mrb[0].mxu0
    %v8178 = vadd.f32 0.0, %v8177
    %v8179 = vpop.f32.mrb[0].mxu0
    %v8180 = vadd.f32 0.0, %v8179
    %v8181 = vpop.f32.mrb[0].mxu0
    %v8182 = vadd.f32 0.0, %v8181
    %v8183 = vpop.f32.mrb[0].mxu0
    %v8184 = vadd.f32 0.0, %v8183
    %8185 = vmatprep.mubr.bf16.mxu0 %v5959
    %8186 = vmatmul.mubr.bf16.gmra.mrb[0].mxu0 %v5958
    %v8187 = vpop.f32.mrb[0].mxu0
    %v8188 = vadd.f32 0.0, %v8187
    %v8189 = vpop.f32.mrb[0].mxu0
    %v8190 = vadd.f32 0.0, %v8189
    %v8191 = vpop.f32.mrb[0].mxu0
    %v8192 = vpop.f32.mrb[0].mxu0
    %8193 = vdwg.mxu0
    %8194 = vmatprep.subr.bf16.mxu0 %v3119
    %8195 = vmatpush1.bf16.msra.mxu0 %v3118
    %8196 = vmatprep.subr.bf16.mxu0 %v3127
    %8197 = vmatpush1.bf16.msra.mxu0 %v3126
    %8198 = vmatprep.subr.bf16.mxu0 %v3135
    %8199 = vmatpush1.bf16.msra.mxu0 %v3134
    %8200 = vmatprep.subr.bf16.mxu0 %v3143
    %8201 = vmatpush1.bf16.msra.mxu0 %v3142
    %8202 = vmatprep.subr.bf16.mxu0 %v3151
    %8203 = vmatpush1.bf16.msra.mxu0 %v3150
    %8204 = vmatprep.subr.bf16.mxu0 %v3159
    %8205 = vmatpush1.bf16.msra.mxu0 %v3158
    %8206 = vmatprep.subr.bf16.mxu0 %v3167
    %8207 = vmatpush1.bf16.msra.mxu0 %v3166
    %8208 = vmatprep.subr.bf16.mxu0 %v3175
    %8209 = vmatpush1.bf16.msra.mxu0 %v3174
    %8210 = vmatprep.subr.bf16.mxu0 %v3183
    %8211 = vmatpush1.bf16.msra.mxu0 %v3182
    %8212 = vmatprep.subr.bf16.mxu0 %v3191
    %8213 = vmatpush1.bf16.msra.mxu0 %v3190
    %8214 = vmatprep.subr.bf16.mxu0 %v3199
    %8215 = vmatpush1.bf16.msra.mxu0 %v3198
    %8216 = vmatprep.subr.bf16.mxu0 %v3207
    %8217 = vmatpush1.bf16.msra.mxu0 %v3206
    %8218 = vmatprep.subr.bf16.mxu0 %v3215
    %8219 = vmatpush1.bf16.msra.mxu0 %v3214
    %8220 = vmatprep.subr.bf16.mxu0 %v3223
    %8221 = vmatpush1.bf16.msra.mxu0 %v3222
    %8222 = vmatprep.subr.bf16.mxu0 %v3231
    %8223 = vmatpush1.bf16.msra.mxu0 %v3230
    %8224 = vmatprep.subr.bf16.mxu0 %v3239
    %8225 = vmatpush1.bf16.msra.mxu0 %v3238
    %8226 = vmatprep.mubr.bf16.mxu0 %v5949
    %8227 = vmatmul.mubr.bf16.gmra.mrb[0].mxu0 %v5948
    %v8228 = vpop.f32.mrb[0].mxu0
    %v8229 = vadd.f32 %v8158, %v8228
    %v8230 = vpop.f32.mrb[0].mxu0
    %v8231 = vadd.f32 %v8160, %v8230
    %v8232 = vpop.f32.mrb[0].mxu0
    %v8233 = vadd.f32 %v8162, %v8232
    %v8234 = vpop.f32.mrb[0].mxu0
    %v8235 = vadd.f32 %v8164, %v8234
    %8236 = vmatprep.mubr.bf16.mxu0 %v5953
    %8237 = vmatmul.mubr.bf16.gmra.mrb[0].mxu0 %v5952
    %v8238 = vpop.f32.mrb[0].mxu0
    %v8239 = vadd.f32 %v8168, %v8238
    %v8240 = vpop.f32.mrb[0].mxu0
    %v8241 = vadd.f32 %v8170, %v8240
    %v8242 = vpop.f32.mrb[0].mxu0
    %v8243 = vadd.f32 %v8172, %v8242
    %v8244 = vpop.f32.mrb[0].mxu0
    %v8245 = vadd.f32 %v8174, %v8244
    %8246 = vmatprep.mubr.bf16.mxu0 %v5957
    %8247 = vmatmul.mubr.bf16.gmra.mrb[0].mxu0 %v5956
    %v8248 = vpop.f32.mrb[0].mxu0
    %v8249 = vadd.f32 %v8178, %v8248
    %v8250 = vpop.f32.mrb[0].mxu0
    %v8251 = vadd.f32 %v8180, %v8250
    %v8252 = vpop.f32.mrb[0].mxu0
    %v8253 = vadd.f32 %v8182, %v8252
    %v8254 = vpop.f32.mrb[0].mxu0
    %v8255 = vadd.f32 %v8184, %v8254
    %8256 = vmatprep.mubr.bf16.mxu0 %v5961
    %8257 = vmatmul.mubr.bf16.gmra.mrb[0].mxu0 %v5960
    %v8258 = vpop.f32.mrb[0].mxu0
    %v8259 = vadd.f32 %v8188, %v8258
    %v8260 = vpop.f32.mrb[0].mxu0
    %v8261 = vadd.f32 %v8190, %v8260
    %v8262 = vpop.f32.mrb[0].mxu0
    %v8263 = vpop.f32.mrb[0].mxu0
    %8264 = vdwg.mxu0
    %8265 = vmatprep.subr.bf16.mxu0 %v2993
    %8266 = vmatpush1.bf16.msra.mxu0 %v2992
    %8267 = vmatprep.subr.bf16.mxu0 %v3001
    %8268 = vmatpush1.bf16.msra.mxu0 %v3000
    %8269 = vmatprep.subr.bf16.mxu0 %v3009
    %8270 = vmatpush1.bf16.msra.mxu0 %v3008
    %8271 = vmatprep.subr.bf16.mxu0 %v3017
    %8272 = vmatpush1.bf16.msra.mxu0 %v3016
    %8273 = vmatprep.subr.bf16.mxu0 %v3025
    %8274 = vmatpush1.bf16.msra.mxu0 %v3024
    %8275 = vmatprep.subr.bf16.mxu0 %v3033
    %8276 = vmatpush1.bf16.msra.mxu0 %v3032
    %8277 = vmatprep.subr.bf16.mxu0 %v3041
    %8278 = vmatpush1.bf16.msra.mxu0 %v3040
    %8279 = vmatprep.subr.bf16.mxu0 %v3049
    %8280 = vmatpush1.bf16.msra.mxu0 %v3048
    %8281 = vmatprep.subr.bf16.mxu0 %v3057
    %8282 = vmatpush1.bf16.msra.mxu0 %v3056
    %8283 = vmatprep.subr.bf16.mxu0 %v3065
    %8284 = vmatpush1.bf16.msra.mxu0 %v3064
    %8285 = vmatprep.subr.bf16.mxu0 %v3073
    %8286 = vmatpush1.bf16.msra.mxu0 %v3072
    %8287 = vmatprep.subr.bf16.mxu0 %v3081
    %8288 = vmatpush1.bf16.msra.mxu0 %v3080
    %8289 = vmatprep.subr.bf16.mxu0 %v3089
    %8290 = vmatpush1.bf16.msra.mxu0 %v3088
    %8291 = vmatprep.subr.bf16.mxu0 %v3097
    %8292 = vmatpush1.bf16.msra.mxu0 %v3096
    %8293 = vmatprep.subr.bf16.mxu0 %v3105
    %8294 = vmatpush1.bf16.msra.mxu0 %v3104
    %8295 = vmatprep.subr.bf16.mxu0 %v3113
    %8296 = vmatpush1.bf16.msra.mxu0 %v3112
    %8297 = vmatprep.mubr.bf16.mxu0 %v5947
    %8298 = vmatmul.mubr.bf16.gmra.mrb[0].mxu0 %v5946
    %v8299 = vpop.f32.mrb[0].mxu0
    %v8300 = vadd.f32 0.0, %v8299
    %v8301 = vpop.f32.mrb[0].mxu0
    %v8302 = vadd.f32 0.0, %v8301
    %v8303 = vpop.f32.mrb[0].mxu0
    %v8304 = vadd.f32 0.0, %v8303
    %v8305 = vpop.f32.mrb[0].mxu0
    %v8306 = vadd.f32 0.0, %v8305
    %8307 = vmatprep.mubr.bf16.mxu0 %v5951
    %8308 = vmatmul.mubr.bf16.gmra.mrb[0].mxu0 %v5950
    %v8309 = vpop.f32.mrb[0].mxu0
    %v8310 = vadd.f32 0.0, %v8309
    %v8311 = vpop.f32.mrb[0].mxu0
    %v8312 = vadd.f32 0.0, %v8311
    %v8313 = vpop.f32.mrb[0].mxu0
    %v8314 = vadd.f32 0.0, %v8313
    %v8315 = vpop.f32.mrb[0].mxu0
    %v8316 = vadd.f32 0.0, %v8315
    %8317 = vmatprep.mubr.bf16.mxu0 %v5955
    %8318 = vmatmul.mubr.bf16.gmra.mrb[0].mxu0 %v5954
    %v8319 = vpop.f32.mrb[0].mxu0
    %v8320 = vadd.f32 0.0, %v8319
    %v8321 = vpop.f32.mrb[0].mxu0
    %v8322 = vadd.f32 0.0, %v8321
    %v8323 = vpop.f32.mrb[0].mxu0
    %v8324 = vadd.f32 0.0, %v8323
    %v8325 = vpop.f32.mrb[0].mxu0
    %v8326 = vadd.f32 0.0, %v8325
    %8327 = vmatprep.mubr.bf16.mxu0 %v5959
    %8328 = vmatmul.mubr.bf16.gmra.mrb[0].mxu0 %v5958
    %v8329 = vpop.f32.mrb[0].mxu0
    %v8330 = vadd.f32 0.0, %v8329
    %v8331 = vpop.f32.mrb[0].mxu0
    %v8332 = vadd.f32 0.0, %v8331
    %v8333 = vpop.f32.mrb[0].mxu0
    %v8334 = vpop.f32.mrb[0].mxu0
    %8335 = vdwg.mxu0
    %8336 = vmatprep.subr.bf16.mxu0 %v3121
    %8337 = vmatpush1.bf16.msra.mxu0 %v3120
    %8338 = vmatprep.subr.bf16.mxu0 %v3129
    %8339 = vmatpush1.bf16.msra.mxu0 %v3128
    %8340 = vmatprep.subr.bf16.mxu0 %v3137
    %8341 = vmatpush1.bf16.msra.mxu0 %v3136
    %8342 = vmatprep.subr.bf16.mxu0 %v3145
    %8343 = vmatpush1.bf16.msra.mxu0 %v3144
    %8344 = vmatprep.subr.bf16.mxu0 %v3153
    %8345 = vmatpush1.bf16.msra.mxu0 %v3152
    %8346 = vmatprep.subr.bf16.mxu0 %v3161
    %8347 = vmatpush1.bf16.msra.mxu0 %v3160
    %8348 = vmatprep.subr.bf16.mxu0 %v3169
    %8349 = vmatpush1.bf16.msra.mxu0 %v3168
    %8350 = vmatprep.subr.bf16.mxu0 %v3177
    %8351 = vmatpush1.bf16.msra.mxu0 %v3176
    %8352 = vmatprep.subr.bf16.mxu0 %v3185
    %8353 = vmatpush1.bf16.msra.mxu0 %v3184
    %8354 = vmatprep.subr.bf16.mxu0 %v3193
    %8355 = vmatpush1.bf16.msra.mxu0 %v3192
    %8356 = vmatprep.subr.bf16.mxu0 %v3201
    %8357 = vmatpush1.bf16.msra.mxu0 %v3200
    %8358 = vmatprep.subr.bf16.mxu0 %v3209
    %8359 = vmatpush1.bf16.msra.mxu0 %v3208
    %8360 = vmatprep.subr.bf16.mxu0 %v3217
    %8361 = vmatpush1.bf16.msra.mxu0 %v3216
    %8362 = vmatprep.subr.bf16.mxu0 %v3225
    %8363 = vmatpush1.bf16.msra.mxu0 %v3224
    %8364 = vmatprep.subr.bf16.mxu0 %v3233
    %8365 = vmatpush1.bf16.msra.mxu0 %v3232
    %8366 = vmatprep.subr.bf16.mxu0 %v3241
    %8367 = vmatpush1.bf16.msra.mxu0 %v3240
    %8368 = vmatprep.mubr.bf16.mxu0 %v5949
    %8369 = vmatmul.mubr.bf16.gmra.mrb[0].mxu0 %v5948
    %v8370 = vpop.f32.mrb[0].mxu0
    %v8371 = vadd.f32 %v8300, %v8370
    %v8372 = vpop.f32.mrb[0].mxu0
    %v8373 = vadd.f32 %v8302, %v8372
    %v8374 = vpop.f32.mrb[0].mxu0
    %v8375 = vadd.f32 %v8304, %v8374
    %v8376 = vpop.f32.mrb[0].mxu0
    %v8377 = vadd.f32 %v8306, %v8376
    %8378 = vmatprep.mubr.bf16.mxu0 %v5953
    %8379 = vmatmul.mubr.bf16.gmra.mrb[0].mxu0 %v5952
    %v8380 = vpop.f32.mrb[0].mxu0
    %v8381 = vadd.f32 %v8310, %v8380
    %v8382 = vpop.f32.mrb[0].mxu0
    %v8383 = vadd.f32 %v8312, %v8382
    %v8384 = vpop.f32.mrb[0].mxu0
    %v8385 = vadd.f32 %v8314, %v8384
    %v8386 = vpop.f32.mrb[0].mxu0
    %v8387 = vadd.f32 %v8316, %v8386
    %8388 = vmatprep.mubr.bf16.mxu0 %v5957
    %8389 = vmatmul.mubr.bf16.gmra.mrb[0].mxu0 %v5956
    %v8390 = vpop.f32.mrb[0].mxu0
    %v8391 = vadd.f32 %v8320, %v8390
    %v8392 = vpop.f32.mrb[0].mxu0
    %v8393 = vadd.f32 %v8322, %v8392
    %v8394 = vpop.f32.mrb[0].mxu0
    %v8395 = vadd.f32 %v8324, %v8394
    %v8396 = vpop.f32.mrb[0].mxu0
    %v8397 = vadd.f32 %v8326, %v8396
    %8398 = vmatprep.mubr.bf16.mxu0 %v5961
    %8399 = vmatmul.mubr.bf16.gmra.mrb[0].mxu0 %v5960
    %v8400 = vpop.f32.mrb[0].mxu0
    %v8401 = vadd.f32 %v8330, %v8400
    %v8402 = vpop.f32.mrb[0].mxu0
    %v8403 = vadd.f32 %v8332, %v8402
    %v8404 = vpop.f32.mrb[0].mxu0
    %v8405 = vpop.f32.mrb[0].mxu0
    %8406 = vdwg.mxu0
    %8407 = vmatprep.subr.bf16.mxu0 %v2995
    %8408 = vmatpush1.bf16.msra.mxu0 %v2994
    %8409 = vmatprep.subr.bf16.mxu0 %v3003
    %8410 = vmatpush1.bf16.msra.mxu0 %v3002
    %8411 = vmatprep.subr.bf16.mxu0 %v3011
    %8412 = vmatpush1.bf16.msra.mxu0 %v3010
    %8413 = vmatprep.subr.bf16.mxu0 %v3019
    %8414 = vmatpush1.bf16.msra.mxu0 %v3018
    %8415 = vmatprep.subr.bf16.mxu0 %v3027
    %8416 = vmatpush1.bf16.msra.mxu0 %v3026
    %8417 = vmatprep.subr.bf16.mxu0 %v3035
    %8418 = vmatpush1.bf16.msra.mxu0 %v3034
    %8419 = vmatprep.subr.bf16.mxu0 %v3043
    %8420 = vmatpush1.bf16.msra.mxu0 %v3042
    %8421 = vmatprep.subr.bf16.mxu0 %v3051
    %8422 = vmatpush1.bf16.msra.mxu0 %v3050
    %8423 = vmatprep.subr.bf16.mxu0 %v3059
    %8424 = vmatpush1.bf16.msra.mxu0 %v3058
    %8425 = vmatprep.subr.bf16.mxu0 %v3067
    %8426 = vmatpush1.bf16.msra.mxu0 %v3066
    %8427 = vmatprep.subr.bf16.mxu0 %v3075
    %8428 = vmatpush1.bf16.msra.mxu0 %v3074
    %8429 = vmatprep.subr.bf16.mxu0 %v3083
    %8430 = vmatpush1.bf16.msra.mxu0 %v3082
    %8431 = vmatprep.subr.bf16.mxu0 %v3091
    %8432 = vmatpush1.bf16.msra.mxu0 %v3090
    %8433 = vmatprep.subr.bf16.mxu0 %v3099
    %8434 = vmatpush1.bf16.msra.mxu0 %v3098
    %8435 = vmatprep.subr.bf16.mxu0 %v3107
    %8436 = vmatpush1.bf16.msra.mxu0 %v3106
    %8437 = vmatprep.subr.bf16.mxu0 %v3115
    %8438 = vmatpush1.bf16.msra.mxu0 %v3114
    %8439 = vmatprep.mubr.bf16.mxu0 %v5947
    %8440 = vmatmul.mubr.bf16.gmra.mrb[0].mxu0 %v5946
    %v8441 = vpop.f32.mrb[0].mxu0
    %v8442 = vadd.f32 0.0, %v8441
    %v8443 = vpop.f32.mrb[0].mxu0
    %v8444 = vadd.f32 0.0, %v8443
    %v8445 = vpop.f32.mrb[0].mxu0
    %v8446 = vadd.f32 0.0, %v8445
    %v8447 = vpop.f32.mrb[0].mxu0
    %v8448 = vadd.f32 0.0, %v8447
    %8449 = vmatprep.mubr.bf16.mxu0 %v5951
    %8450 = vmatmul.mubr.bf16.gmra.mrb[0].mxu0 %v5950
    %v8451 = vpop.f32.mrb[0].mxu0
    %v8452 = vadd.f32 0.0, %v8451
    %v8453 = vpop.f32.mrb[0].mxu0
    %v8454 = vadd.f32 0.0, %v8453
    %v8455 = vpop.f32.mrb[0].mxu0
    %v8456 = vadd.f32 0.0, %v8455
    %v8457 = vpop.f32.mrb[0].mxu0
    %v8458 = vadd.f32 0.0, %v8457
    %8459 = vmatprep.mubr.bf16.mxu0 %v5955
    %8460 = vmatmul.mubr.bf16.gmra.mrb[0].mxu0 %v5954
    %v8461 = vpop.f32.mrb[0].mxu0
    %v8462 = vadd.f32 0.0, %v8461
    %v8463 = vpop.f32.mrb[0].mxu0
    %v8464 = vadd.f32 0.0, %v8463
    %v8465 = vpop.f32.mrb[0].mxu0
    %v8466 = vadd.f32 0.0, %v8465
    %v8467 = vpop.f32.mrb[0].mxu0
    %v8468 = vadd.f32 0.0, %v8467
    %8469 = vmatprep.mubr.bf16.mxu0 %v5959
    %8470 = vmatmul.mubr.bf16.gmra.mrb[0].mxu0 %v5958
    %v8471 = vpop.f32.mrb[0].mxu0
    %v8472 = vadd.f32 0.0, %v8471
    %v8473 = vpop.f32.mrb[0].mxu0
    %v8474 = vadd.f32 0.0, %v8473
    %v8475 = vpop.f32.mrb[0].mxu0
    %v8476 = vpop.f32.mrb[0].mxu0
    %8477 = vdwg.mxu0
    %8478 = vmatprep.subr.bf16.mxu0 %v3123
    %8479 = vmatpush1.bf16.msra.mxu0 %v3122
    %8480 = vmatprep.subr.bf16.mxu0 %v3131
    %8481 = vmatpush1.bf16.msra.mxu0 %v3130
    %8482 = vmatprep.subr.bf16.mxu0 %v3139
    %8483 = vmatpush1.bf16.msra.mxu0 %v3138
    %8484 = vmatprep.subr.bf16.mxu0 %v3147
    %8485 = vmatpush1.bf16.msra.mxu0 %v3146
    %8486 = vmatprep.subr.bf16.mxu0 %v3155
    %8487 = vmatpush1.bf16.msra.mxu0 %v3154
    %8488 = vmatprep.subr.bf16.mxu0 %v3163
    %8489 = vmatpush1.bf16.msra.mxu0 %v3162
    %8490 = vmatprep.subr.bf16.mxu0 %v3171
    %8491 = vmatpush1.bf16.msra.mxu0 %v3170
    %8492 = vmatprep.subr.bf16.mxu0 %v3179
    %8493 = vmatpush1.bf16.msra.mxu0 %v3178
    %8494 = vmatprep.subr.bf16.mxu0 %v3187
    %8495 = vmatpush1.bf16.msra.mxu0 %v3186
    %8496 = vmatprep.subr.bf16.mxu0 %v3195
    %8497 = vmatpush1.bf16.msra.mxu0 %v3194
    %8498 = vmatprep.subr.bf16.mxu0 %v3203
    %8499 = vmatpush1.bf16.msra.mxu0 %v3202
    %8500 = vmatprep.subr.bf16.mxu0 %v3211
    %8501 = vmatpush1.bf16.msra.mxu0 %v3210
    %8502 = vmatprep.subr.bf16.mxu0 %v3219
    %8503 = vmatpush1.bf16.msra.mxu0 %v3218
    %8504 = vmatprep.subr.bf16.mxu0 %v3227
    %8505 = vmatpush1.bf16.msra.mxu0 %v3226
    %8506 = vmatprep.subr.bf16.mxu0 %v3235
    %8507 = vmatpush1.bf16.msra.mxu0 %v3234
    %8508 = vmatprep.subr.bf16.mxu0 %v3243
    %8509 = vmatpush1.bf16.msra.mxu0 %v3242
    %8510 = vmatprep.mubr.bf16.mxu0 %v5949
    %8511 = vmatmul.mubr.bf16.gmra.mrb[0].mxu0 %v5948
    %v8512 = vpop.f32.mrb[0].mxu0
    %v8513 = vadd.f32 %v8442, %v8512
    %v8514 = vpop.f32.mrb[0].mxu0
    %v8515 = vadd.f32 %v8444, %v8514
    %v8516 = vpop.f32.mrb[0].mxu0
    %v8517 = vadd.f32 %v8446, %v8516
    %v8518 = vpop.f32.mrb[0].mxu0
    %v8519 = vadd.f32 %v8448, %v8518
    %8520 = vmatprep.mubr.bf16.mxu0 %v5953
    %8521 = vmatmul.mubr.bf16.gmra.mrb[0].mxu0 %v5952
    %v8522 = vpop.f32.mrb[0].mxu0
    %v8523 = vadd.f32 %v8452, %v8522
    %v8524 = vpop.f32.mrb[0].mxu0
    %v8525 = vadd.f32 %v8454, %v8524
    %v8526 = vpop.f32.mrb[0].mxu0
    %v8527 = vadd.f32 %v8456, %v8526
    %v8528 = vpop.f32.mrb[0].mxu0
    %v8529 = vadd.f32 %v8458, %v8528
    %8530 = vmatprep.mubr.bf16.mxu0 %v5957
    %8531 = vmatmul.mubr.bf16.gmra.mrb[0].mxu0 %v5956
    %v8532 = vpop.f32.mrb[0].mxu0
    %v8533 = vadd.f32 %v8462, %v8532
    %v8534 = vpop.f32.mrb[0].mxu0
    %v8535 = vadd.f32 %v8464, %v8534
    %v8536 = vpop.f32.mrb[0].mxu0
    %v8537 = vadd.f32 %v8466, %v8536
    %v8538 = vpop.f32.mrb[0].mxu0
    %v8539 = vadd.f32 %v8468, %v8538
    %8540 = vmatprep.mubr.bf16.mxu0 %v5961
    %8541 = vmatmul.mubr.bf16.gmra.mrb[0].mxu0 %v5960
    %v8542 = vpop.f32.mrb[0].mxu0
    %v8543 = vadd.f32 %v8472, %v8542
    %v8544 = vpop.f32.mrb[0].mxu0
    %v8545 = vadd.f32 %v8474, %v8544
    %v8546 = vpop.f32.mrb[0].mxu0
    %v8547 = vpop.f32.mrb[0].mxu0
    %8548 = vdwg.mxu0
    %8549 = vmatprep.subr.bf16.mxu0 %v2997
    %8550 = vmatpush1.bf16.msra.mxu0 %v2996
    %8551 = vmatprep.subr.bf16.mxu0 %v3005
    %8552 = vmatpush1.bf16.msra.mxu0 %v3004
    %8553 = vmatprep.subr.bf16.mxu0 %v3013
    %8554 = vmatpush1.bf16.msra.mxu0 %v3012
    %8555 = vmatprep.subr.bf16.mxu0 %v3021
    %8556 = vmatpush1.bf16.msra.mxu0 %v3020
    %8557 = vmatprep.subr.bf16.mxu0 %v3029
    %8558 = vmatpush1.bf16.msra.mxu0 %v3028
    %8559 = vmatprep.subr.bf16.mxu0 %v3037
    %8560 = vmatpush1.bf16.msra.mxu0 %v3036
    %8561 = vmatprep.subr.bf16.mxu0 %v3045
    %8562 = vmatpush1.bf16.msra.mxu0 %v3044
    %8563 = vmatprep.subr.bf16.mxu0 %v3053
    %8564 = vmatpush1.bf16.msra.mxu0 %v3052
    %8565 = vmatprep.subr.bf16.mxu0 %v3061
    %8566 = vmatpush1.bf16.msra.mxu0 %v3060
    %8567 = vmatprep.subr.bf16.mxu0 %v3069
    %8568 = vmatpush1.bf16.msra.mxu0 %v3068
    %8569 = vmatprep.subr.bf16.mxu0 %v3077
    %8570 = vmatpush1.bf16.msra.mxu0 %v3076
    %8571 = vmatprep.subr.bf16.mxu0 %v3085
    %8572 = vmatpush1.bf16.msra.mxu0 %v3084
    %8573 = vmatprep.subr.bf16.mxu0 %v3093
    %8574 = vmatpush1.bf16.msra.mxu0 %v3092
    %8575 = vmatprep.subr.bf16.mxu0 %v3101
    %8576 = vmatpush1.bf16.msra.mxu0 %v3100
    %8577 = vmatprep.subr.bf16.mxu0 %v3109
    %8578 = vmatpush1.bf16.msra.mxu0 %v3108
    %8579 = vmatprep.subr.bf16.mxu0 %v3117
    %8580 = vmatpush1.bf16.msra.mxu0 %v3116
    %8581 = vmatprep.mubr.bf16.mxu0 %v5947
    %8582 = vmatmul.mubr.bf16.gmra.mrb[0].mxu0 %v5946
    %v8583 = vpop.f32.mrb[0].mxu0
    %v8584 = vadd.f32 0.0, %v8583
    %v8585 = vpop.f32.mrb[0].mxu0
    %v8586 = vadd.f32 0.0, %v8585
    %v8587 = vpop.f32.mrb[0].mxu0
    %v8588 = vadd.f32 0.0, %v8587
    %v8589 = vpop.f32.mrb[0].mxu0
    %v8590 = vadd.f32 0.0, %v8589
    %8591 = vmatprep.mubr.bf16.mxu0 %v5951
    %8592 = vmatmul.mubr.bf16.gmra.mrb[0].mxu0 %v5950
    %v8593 = vpop.f32.mrb[0].mxu0
    %v8594 = vadd.f32 0.0, %v8593
    %v8595 = vpop.f32.mrb[0].mxu0
    %v8596 = vadd.f32 0.0, %v8595
    %v8597 = vpop.f32.mrb[0].mxu0
    %v8598 = vadd.f32 0.0, %v8597
    %v8599 = vpop.f32.mrb[0].mxu0
    %v8600 = vadd.f32 0.0, %v8599
    %8601 = vmatprep.mubr.bf16.mxu0 %v5955
    %8602 = vmatmul.mubr.bf16.gmra.mrb[0].mxu0 %v5954
    %v8603 = vpop.f32.mrb[0].mxu0
    %v8604 = vadd.f32 0.0, %v8603
    %v8605 = vpop.f32.mrb[0].mxu0
    %v8606 = vadd.f32 0.0, %v8605
    %v8607 = vpop.f32.mrb[0].mxu0
    %v8608 = vadd.f32 0.0, %v8607
    %v8609 = vpop.f32.mrb[0].mxu0
    %v8610 = vadd.f32 0.0, %v8609
    %8611 = vmatprep.mubr.bf16.mxu0 %v5959
    %8612 = vmatmul.mubr.bf16.gmra.mrb[0].mxu0 %v5958
    %v8613 = vpop.f32.mrb[0].mxu0
    %v8614 = vadd.f32 0.0, %v8613
    %v8615 = vpop.f32.mrb[0].mxu0
    %v8616 = vadd.f32 0.0, %v8615
    %v8617 = vpop.f32.mrb[0].mxu0
    %v8618 = vpop.f32.mrb[0].mxu0
    %8619 = vdwg.mxu0
    %8620 = vmatprep.subr.bf16.mxu0 %v3125
    %8621 = vmatpush1.bf16.msra.mxu0 %v3124
    %8622 = vmatprep.subr.bf16.mxu0 %v3133
    %8623 = vmatpush1.bf16.msra.mxu0 %v3132
    %8624 = vmatprep.subr.bf16.mxu0 %v3141
    %8625 = vmatpush1.bf16.msra.mxu0 %v3140
    %8626 = vmatprep.subr.bf16.mxu0 %v3149
    %8627 = vmatpush1.bf16.msra.mxu0 %v3148
    %8628 = vmatprep.subr.bf16.mxu0 %v3157
    %8629 = vmatpush1.bf16.msra.mxu0 %v3156
    %8630 = vmatprep.subr.bf16.mxu0 %v3165
    %8631 = vmatpush1.bf16.msra.mxu0 %v3164
    %8632 = vmatprep.subr.bf16.mxu0 %v3173
    %8633 = vmatpush1.bf16.msra.mxu0 %v3172
    %8634 = vmatprep.subr.bf16.mxu0 %v3181
    %8635 = vmatpush1.bf16.msra.mxu0 %v3180
    %8636 = vmatprep.subr.bf16.mxu0 %v3189
    %8637 = vmatpush1.bf16.msra.mxu0 %v3188
    %8638 = vmatprep.subr.bf16.mxu0 %v3197
    %8639 = vmatpush1.bf16.msra.mxu0 %v3196
    %8640 = vmatprep.subr.bf16.mxu0 %v3205
    %8641 = vmatpush1.bf16.msra.mxu0 %v3204
    %8642 = vmatprep.subr.bf16.mxu0 %v3213
    %8643 = vmatpush1.bf16.msra.mxu0 %v3212
    %8644 = vmatprep.subr.bf16.mxu0 %v3221
    %8645 = vmatpush1.bf16.msra.mxu0 %v3220
    %8646 = vmatprep.subr.bf16.mxu0 %v3229
    %8647 = vmatpush1.bf16.msra.mxu0 %v3228
    %8648 = vmatprep.subr.bf16.mxu0 %v3237
    %8649 = vmatpush1.bf16.msra.mxu0 %v3236
    %8650 = vmatprep.subr.bf16.mxu0 %v3245
    %8651 = vmatpush1.bf16.msra.mxu0 %v3244
    %8652 = vmatprep.mubr.bf16.mxu0 %v5949
    %8653 = vmatmul.mubr.bf16.gmra.mrb[0].mxu0 %v5948
    %v8654 = vpop.f32.mrb[0].mxu0
    %v8655 = vadd.f32 %v8584, %v8654
    %v8656 = vpop.f32.mrb[0].mxu0
    %v8657 = vadd.f32 %v8586, %v8656
    %v8658 = vpop.f32.mrb[0].mxu0
    %v8659 = vadd.f32 %v8588, %v8658
    %v8660 = vpop.f32.mrb[0].mxu0
    %v8661 = vadd.f32 %v8590, %v8660
    %8662 = vmatprep.mubr.bf16.mxu0 %v5953
    %8663 = vmatmul.mubr.bf16.gmra.mrb[0].mxu0 %v5952
    %v8664 = vpop.f32.mrb[0].mxu0
    %v8665 = vadd.f32 %v8594, %v8664
    %v8666 = vpop.f32.mrb[0].mxu0
    %v8667 = vadd.f32 %v8596, %v8666
    %v8668 = vpop.f32.mrb[0].mxu0
    %v8669 = vadd.f32 %v8598, %v8668
    %v8670 = vpop.f32.mrb[0].mxu0
    %v8671 = vadd.f32 %v8600, %v8670
    %8672 = vmatprep.mubr.bf16.mxu0 %v5957
    %8673 = vmatmul.mubr.bf16.gmra.mrb[0].mxu0 %v5956
    %v8674 = vpop.f32.mrb[0].mxu0
    %v8675 = vadd.f32 %v8604, %v8674
    %v8676 = vpop.f32.mrb[0].mxu0
    %v8677 = vadd.f32 %v8606, %v8676
    %v8678 = vpop.f32.mrb[0].mxu0
    %v8679 = vadd.f32 %v8608, %v8678
    %v8680 = vpop.f32.mrb[0].mxu0
    %v8681 = vadd.f32 %v8610, %v8680
    %8682 = vmatprep.mubr.bf16.mxu0 %v5961
    %8683 = vmatmul.mubr.bf16.gmra.mrb[0].mxu0 %v5960
    %v8684 = vpop.f32.mrb[0].mxu0
    %v8685 = vadd.f32 %v8614, %v8684
    %v8686 = vpop.f32.mrb[0].mxu0
    %v8687 = vadd.f32 %v8616, %v8686
    %v8688 = vpop.f32.mrb[0].mxu0
    %v8689 = vpop.f32.mrb[0].mxu0
    %8690 = vdwg.mxu0
    %8691 = vmatprep.subr.bf16.mxu0 %v4839
    %8692 = vmatpush1.bf16.msra.mxu0 %v4838
    %8693 = vmatprep.subr.bf16.mxu0 %v4847
    %8694 = vmatpush1.bf16.msra.mxu0 %v4846
    %8695 = vmatprep.subr.bf16.mxu0 %v4855
    %8696 = vmatpush1.bf16.msra.mxu0 %v4854
    %8697 = vmatprep.subr.bf16.mxu0 %v4863
    %8698 = vmatpush1.bf16.msra.mxu0 %v4862
    %8699 = vmatprep.subr.bf16.mxu0 %v4871
    %8700 = vmatpush1.bf16.msra.mxu0 %v4870
    %8701 = vmatprep.subr.bf16.mxu0 %v4879
    %8702 = vmatpush1.bf16.msra.mxu0 %v4878
    %8703 = vmatprep.subr.bf16.mxu0 %v4887
    %8704 = vmatpush1.bf16.msra.mxu0 %v4886
    %8705 = vmatprep.subr.bf16.mxu0 %v4895
    %8706 = vmatpush1.bf16.msra.mxu0 %v4894
    %8707 = vmatprep.subr.bf16.mxu0 %v4903
    %8708 = vmatpush1.bf16.msra.mxu0 %v4902
    %8709 = vmatprep.subr.bf16.mxu0 %v4911
    %8710 = vmatpush1.bf16.msra.mxu0 %v4910
    %8711 = vmatprep.subr.bf16.mxu0 %v4919
    %8712 = vmatpush1.bf16.msra.mxu0 %v4918
    %8713 = vmatprep.subr.bf16.mxu0 %v4927
    %8714 = vmatpush1.bf16.msra.mxu0 %v4926
    %8715 = vmatprep.subr.bf16.mxu0 %v4935
    %8716 = vmatpush1.bf16.msra.mxu0 %v4934
    %8717 = vmatprep.subr.bf16.mxu0 %v4943
    %8718 = vmatpush1.bf16.msra.mxu0 %v4942
    %8719 = vmatprep.subr.bf16.mxu0 %v4951
    %8720 = vmatpush1.bf16.msra.mxu0 %v4950
    %8721 = vmatprep.subr.bf16.mxu0 %v4959
    %8722 = vmatpush1.bf16.msra.mxu0 %v4958
    %8723 = vmatprep.mubr.bf16.mxu0 %v1950
    %8724 = vmatmul.mubr.bf16.gmra.mrb[0].mxu0 %v1949
    %v8725 = vpop.f32.mrb[0].mxu0
    %v8726 = vadd.f32 %v8229, %v8725
    %v8727 = vpop.f32.mrb[0].mxu0
    %v8728 = vadd.f32 %v8231, %v8727
    %v8729 = vpop.f32.mrb[0].mxu0
    %v8730 = vadd.f32 %v8233, %v8729
    %v8731 = vpop.f32.mrb[0].mxu0
    %v8732 = vadd.f32 %v8235, %v8731
    %8733 = vmatprep.mubr.bf16.mxu0 %v1954
    %8734 = vmatmul.mubr.bf16.gmra.mrb[0].mxu0 %v1953
    %v8735 = vpop.f32.mrb[0].mxu0
    %v8736 = vadd.f32 %v8239, %v8735
    %v8737 = vpop.f32.mrb[0].mxu0
    %v8738 = vadd.f32 %v8241, %v8737
    %v8739 = vpop.f32.mrb[0].mxu0
    %v8740 = vadd.f32 %v8243, %v8739
    %v8741 = vpop.f32.mrb[0].mxu0
    %v8742 = vadd.f32 %v8245, %v8741
    %8743 = vmatprep.mubr.bf16.mxu0 %v1958
    %8744 = vmatmul.mubr.bf16.gmra.mrb[0].mxu0 %v1957
    %v8745 = vpop.f32.mrb[0].mxu0
    %v8746 = vadd.f32 %v8249, %v8745
    %v8747 = vpop.f32.mrb[0].mxu0
    %v8748 = vadd.f32 %v8251, %v8747
    %v8749 = vpop.f32.mrb[0].mxu0
    %v8750 = vadd.f32 %v8253, %v8749
    %v8751 = vpop.f32.mrb[0].mxu0
    %v8752 = vadd.f32 %v8255, %v8751
    %8753 = vmatprep.mubr.bf16.mxu0 %v1962
    %8754 = vmatmul.mubr.bf16.gmra.mrb[0].mxu0 %v1961
    %v8755 = vpop.f32.mrb[0].mxu0
    %v8756 = vadd.f32 %v8259, %v8755
    %v8757 = vpop.f32.mrb[0].mxu0
    %v8758 = vadd.f32 %v8261, %v8757
    %v8759 = vpop.f32.mrb[0].mxu0
    %v8760 = vpop.f32.mrb[0].mxu0
    %8761 = vdwg.mxu0
    %8762 = vmatprep.subr.bf16.mxu0 %v4967
    %8763 = vmatpush1.bf16.msra.mxu0 %v4966
    %8764 = vmatprep.subr.bf16.mxu0 %v4975
    %8765 = vmatpush1.bf16.msra.mxu0 %v4974
    %8766 = vmatprep.subr.bf16.mxu0 %v4983
    %8767 = vmatpush1.bf16.msra.mxu0 %v4982
    %8768 = vmatprep.subr.bf16.mxu0 %v4991
    %8769 = vmatpush1.bf16.msra.mxu0 %v4990
    %8770 = vmatprep.subr.bf16.mxu0 %v4999
    %8771 = vmatpush1.bf16.msra.mxu0 %v4998
    %8772 = vmatprep.subr.bf16.mxu0 %v5007
    %8773 = vmatpush1.bf16.msra.mxu0 %v5006
    %8774 = vmatprep.subr.bf16.mxu0 %v5015
    %8775 = vmatpush1.bf16.msra.mxu0 %v5014
    %8776 = vmatprep.subr.bf16.mxu0 %v5023
    %8777 = vmatpush1.bf16.msra.mxu0 %v5022
    %8778 = vmatprep.subr.bf16.mxu0 %v5031
    %8779 = vmatpush1.bf16.msra.mxu0 %v5030
    %8780 = vmatprep.subr.bf16.mxu0 %v5039
    %8781 = vmatpush1.bf16.msra.mxu0 %v5038
    %8782 = vmatprep.subr.bf16.mxu0 %v5047
    %8783 = vmatpush1.bf16.msra.mxu0 %v5046
    %8784 = vmatprep.subr.bf16.mxu0 %v5055
    %8785 = vmatpush1.bf16.msra.mxu0 %v5054
    %8786 = vmatprep.subr.bf16.mxu0 %v5063
    %8787 = vmatpush1.bf16.msra.mxu0 %v5062
    %8788 = vmatprep.subr.bf16.mxu0 %v5071
    %8789 = vmatpush1.bf16.msra.mxu0 %v5070
    %8790 = vmatprep.subr.bf16.mxu0 %v5079
    %8791 = vmatpush1.bf16.msra.mxu0 %v5078
    %8792 = vmatprep.subr.bf16.mxu0 %v5087
    %8793 = vmatpush1.bf16.msra.mxu0 %v5086
    %8794 = vmatprep.mubr.bf16.mxu0 %v1952
    %8795 = vmatmul.mubr.bf16.gmra.mrb[0].mxu0 %v1951
    %v8796 = vpop.f32.mrb[0].mxu0
    %v8797 = vadd.f32 %v8726, %v8796
    %v8798 = vpop.f32.mrb[0].mxu0
    %v8799 = vadd.f32 %v8728, %v8798
    %v8800 = vpop.f32.mrb[0].mxu0
    %v8801 = vadd.f32 %v8730, %v8800
    %v8802 = vpop.f32.mrb[0].mxu0
    %v8803 = vadd.f32 %v8732, %v8802
    %8804 = vmatprep.mubr.bf16.mxu0 %v1956
    %8805 = vmatmul.mubr.bf16.gmra.mrb[0].mxu0 %v1955
    %v8806 = vpop.f32.mrb[0].mxu0
    %v8807 = vadd.f32 %v8736, %v8806
    %v8808 = vpop.f32.mrb[0].mxu0
    %v8809 = vadd.f32 %v8738, %v8808
    %v8810 = vpop.f32.mrb[0].mxu0
    %v8811 = vadd.f32 %v8740, %v8810
    %v8812 = vpop.f32.mrb[0].mxu0
    %v8813 = vadd.f32 %v8742, %v8812
    %8814 = vmatprep.mubr.bf16.mxu0 %v1960
    %8815 = vmatmul.mubr.bf16.gmra.mrb[0].mxu0 %v1959
    %v8816 = vpop.f32.mrb[0].mxu0
    %v8817 = vadd.f32 %v8746, %v8816
    %v8818 = vpop.f32.mrb[0].mxu0
    %v8819 = vadd.f32 %v8748, %v8818
    %v8820 = vpop.f32.mrb[0].mxu0
    %v8821 = vadd.f32 %v8750, %v8820
    %v8822 = vpop.f32.mrb[0].mxu0
    %v8823 = vadd.f32 %v8752, %v8822
    %8824 = vmatprep.mubr.bf16.mxu0 %v1964
    %8825 = vmatmul.mubr.bf16.gmra.mrb[0].mxu0 %v1963
    %v8826 = vpop.f32.mrb[0].mxu0
    %v8827 = vadd.f32 %v8756, %v8826
    %v8828 = vpop.f32.mrb[0].mxu0
    %v8829 = vadd.f32 %v8758, %v8828
    %v8830 = vpop.f32.mrb[0].mxu0
    %v8831 = vpop.f32.mrb[0].mxu0
    %8832 = vdwg.mxu0
    %8833 = vmatprep.subr.bf16.mxu0 %v4841
    %8834 = vmatpush1.bf16.msra.mxu0 %v4840
    %8835 = vmatprep.subr.bf16.mxu0 %v4849
    %8836 = vmatpush1.bf16.msra.mxu0 %v4848
    %8837 = vmatprep.subr.bf16.mxu0 %v4857
    %8838 = vmatpush1.bf16.msra.mxu0 %v4856
    %8839 = vmatprep.subr.bf16.mxu0 %v4865
    %8840 = vmatpush1.bf16.msra.mxu0 %v4864
    %8841 = vmatprep.subr.bf16.mxu0 %v4873
    %8842 = vmatpush1.bf16.msra.mxu0 %v4872
    %8843 = vmatprep.subr.bf16.mxu0 %v4881
    %8844 = vmatpush1.bf16.msra.mxu0 %v4880
    %8845 = vmatprep.subr.bf16.mxu0 %v4889
    %8846 = vmatpush1.bf16.msra.mxu0 %v4888
    %8847 = vmatprep.subr.bf16.mxu0 %v4897
    %8848 = vmatpush1.bf16.msra.mxu0 %v4896
    %8849 = vmatprep.subr.bf16.mxu0 %v4905
    %8850 = vmatpush1.bf16.msra.mxu0 %v4904
    %8851 = vmatprep.subr.bf16.mxu0 %v4913
    %8852 = vmatpush1.bf16.msra.mxu0 %v4912
    %8853 = vmatprep.subr.bf16.mxu0 %v4921
    %8854 = vmatpush1.bf16.msra.mxu0 %v4920
    %8855 = vmatprep.subr.bf16.mxu0 %v4929
    %8856 = vmatpush1.bf16.msra.mxu0 %v4928
    %8857 = vmatprep.subr.bf16.mxu0 %v4937
    %8858 = vmatpush1.bf16.msra.mxu0 %v4936
    %8859 = vmatprep.subr.bf16.mxu0 %v4945
    %8860 = vmatpush1.bf16.msra.mxu0 %v4944
    %8861 = vmatprep.subr.bf16.mxu0 %v4953
    %8862 = vmatpush1.bf16.msra.mxu0 %v4952
    %8863 = vmatprep.subr.bf16.mxu0 %v4961
    %8864 = vmatpush1.bf16.msra.mxu0 %v4960
    %8865 = vmatprep.mubr.bf16.mxu0 %v1950
    %8866 = vmatmul.mubr.bf16.gmra.mrb[0].mxu0 %v1949
    %v8867 = vpop.f32.mrb[0].mxu0
    %v8868 = vadd.f32 %v8371, %v8867
    %v8869 = vpop.f32.mrb[0].mxu0
    %v8870 = vadd.f32 %v8373, %v8869
    %v8871 = vpop.f32.mrb[0].mxu0
    %v8872 = vadd.f32 %v8375, %v8871
    %v8873 = vpop.f32.mrb[0].mxu0
    %v8874 = vadd.f32 %v8377, %v8873
    %8875 = vmatprep.mubr.bf16.mxu0 %v1954
    %8876 = vmatmul.mubr.bf16.gmra.mrb[0].mxu0 %v1953
    %v8877 = vpop.f32.mrb[0].mxu0
    %v8878 = vadd.f32 %v8381, %v8877
    %v8879 = vpop.f32.mrb[0].mxu0
    %v8880 = vadd.f32 %v8383, %v8879
    %v8881 = vpop.f32.mrb[0].mxu0
    %v8882 = vadd.f32 %v8385, %v8881
    %v8883 = vpop.f32.mrb[0].mxu0
    %v8884 = vadd.f32 %v8387, %v8883
    %8885 = vmatprep.mubr.bf16.mxu0 %v1958
    %8886 = vmatmul.mubr.bf16.gmra.mrb[0].mxu0 %v1957
    %v8887 = vpop.f32.mrb[0].mxu0
    %v8888 = vadd.f32 %v8391, %v8887
    %v8889 = vpop.f32.mrb[0].mxu0
    %v8890 = vadd.f32 %v8393, %v8889
    %v8891 = vpop.f32.mrb[0].mxu0
    %v8892 = vadd.f32 %v8395, %v8891
    %v8893 = vpop.f32.mrb[0].mxu0
    %v8894 = vadd.f32 %v8397, %v8893
    %8895 = vmatprep.mubr.bf16.mxu0 %v1962
    %8896 = vmatmul.mubr.bf16.gmra.mrb[0].mxu0 %v1961
    %v8897 = vpop.f32.mrb[0].mxu0
    %v8898 = vadd.f32 %v8401, %v8897
    %v8899 = vpop.f32.mrb[0].mxu0
    %v8900 = vadd.f32 %v8403, %v8899
    %v8901 = vpop.f32.mrb[0].mxu0
    %v8902 = vpop.f32.mrb[0].mxu0
    %8903 = vdwg.mxu0
    %8904 = vmatprep.subr.bf16.mxu0 %v4969
    %8905 = vmatpush1.bf16.msra.mxu0 %v4968
    %8906 = vmatprep.subr.bf16.mxu0 %v4977
    %8907 = vmatpush1.bf16.msra.mxu0 %v4976
    %8908 = vmatprep.subr.bf16.mxu0 %v4985
    %8909 = vmatpush1.bf16.msra.mxu0 %v4984
    %8910 = vmatprep.subr.bf16.mxu0 %v4993
    %8911 = vmatpush1.bf16.msra.mxu0 %v4992
    %8912 = vmatprep.subr.bf16.mxu0 %v5001
    %8913 = vmatpush1.bf16.msra.mxu0 %v5000
    %8914 = vmatprep.subr.bf16.mxu0 %v5009
    %8915 = vmatpush1.bf16.msra.mxu0 %v5008
    %8916 = vmatprep.subr.bf16.mxu0 %v5017
    %8917 = vmatpush1.bf16.msra.mxu0 %v5016
    %8918 = vmatprep.subr.bf16.mxu0 %v5025
    %8919 = vmatpush1.bf16.msra.mxu0 %v5024
    %8920 = vmatprep.subr.bf16.mxu0 %v5033
    %8921 = vmatpush1.bf16.msra.mxu0 %v5032
    %8922 = vmatprep.subr.bf16.mxu0 %v5041
    %8923 = vmatpush1.bf16.msra.mxu0 %v5040
    %8924 = vmatprep.subr.bf16.mxu0 %v5049
    %8925 = vmatpush1.bf16.msra.mxu0 %v5048
    %8926 = vmatprep.subr.bf16.mxu0 %v5057
    %8927 = vmatpush1.bf16.msra.mxu0 %v5056
    %8928 = vmatprep.subr.bf16.mxu0 %v5065
    %8929 = vmatpush1.bf16.msra.mxu0 %v5064
    %8930 = vmatprep.subr.bf16.mxu0 %v5073
    %8931 = vmatpush1.bf16.msra.mxu0 %v5072
    %8932 = vmatprep.subr.bf16.mxu0 %v5081
    %8933 = vmatpush1.bf16.msra.mxu0 %v5080
    %8934 = vmatprep.subr.bf16.mxu0 %v5089
    %8935 = vmatpush1.bf16.msra.mxu0 %v5088
    %8936 = vmatprep.mubr.bf16.mxu0 %v1952
    %8937 = vmatmul.mubr.bf16.gmra.mrb[0].mxu0 %v1951
    %v8938 = vpop.f32.mrb[0].mxu0
    %v8939 = vadd.f32 %v8868, %v8938
    %v8940 = vpop.f32.mrb[0].mxu0
    %v8941 = vadd.f32 %v8870, %v8940
    %v8942 = vpop.f32.mrb[0].mxu0
    %v8943 = vadd.f32 %v8872, %v8942
    %v8944 = vpop.f32.mrb[0].mxu0
    %v8945 = vadd.f32 %v8874, %v8944
    %8946 = vmatprep.mubr.bf16.mxu0 %v1956
    %8947 = vmatmul.mubr.bf16.gmra.mrb[0].mxu0 %v1955
    %v8948 = vpop.f32.mrb[0].mxu0
    %v8949 = vadd.f32 %v8878, %v8948
    %v8950 = vpop.f32.mrb[0].mxu0
    %v8951 = vadd.f32 %v8880, %v8950
    %v8952 = vpop.f32.mrb[0].mxu0
    %v8953 = vadd.f32 %v8882, %v8952
    %v8954 = vpop.f32.mrb[0].mxu0
    %v8955 = vadd.f32 %v8884, %v8954
    %8956 = vmatprep.mubr.bf16.mxu0 %v1960
    %8957 = vmatmul.mubr.bf16.gmra.mrb[0].mxu0 %v1959
    %v8958 = vpop.f32.mrb[0].mxu0
    %v8959 = vadd.f32 %v8888, %v8958
    %v8960 = vpop.f32.mrb[0].mxu0
    %v8961 = vadd.f32 %v8890, %v8960
    %v8962 = vpop.f32.mrb[0].mxu0
    %v8963 = vadd.f32 %v8892, %v8962
    %v8964 = vpop.f32.mrb[0].mxu0
    %v8965 = vadd.f32 %v8894, %v8964
    %8966 = vmatprep.mubr.bf16.mxu0 %v1964
    %8967 = vmatmul.mubr.bf16.gmra.mrb[0].mxu0 %v1963
    %v8968 = vpop.f32.mrb[0].mxu0
    %v8969 = vadd.f32 %v8898, %v8968
    %v8970 = vpop.f32.mrb[0].mxu0
    %v8971 = vadd.f32 %v8900, %v8970
    %v8972 = vpop.f32.mrb[0].mxu0
    %v8973 = vpop.f32.mrb[0].mxu0
    %8974 = vdwg.mxu0
    %8975 = vmatprep.subr.bf16.mxu0 %v4843
    %8976 = vmatpush1.bf16.msra.mxu0 %v4842
    %8977 = vmatprep.subr.bf16.mxu0 %v4851
    %8978 = vmatpush1.bf16.msra.mxu0 %v4850
    %8979 = vmatprep.subr.bf16.mxu0 %v4859
    %8980 = vmatpush1.bf16.msra.mxu0 %v4858
    %8981 = vmatprep.subr.bf16.mxu0 %v4867
    %8982 = vmatpush1.bf16.msra.mxu0 %v4866
    %8983 = vmatprep.subr.bf16.mxu0 %v4875
    %8984 = vmatpush1.bf16.msra.mxu0 %v4874
    %8985 = vmatprep.subr.bf16.mxu0 %v4883
    %8986 = vmatpush1.bf16.msra.mxu0 %v4882
    %8987 = vmatprep.subr.bf16.mxu0 %v4891
    %8988 = vmatpush1.bf16.msra.mxu0 %v4890
    %8989 = vmatprep.subr.bf16.mxu0 %v4899
    %8990 = vmatpush1.bf16.msra.mxu0 %v4898
    %8991 = vmatprep.subr.bf16.mxu0 %v4907
    %8992 = vmatpush1.bf16.msra.mxu0 %v4906
    %8993 = vmatprep.subr.bf16.mxu0 %v4915
    %8994 = vmatpush1.bf16.msra.mxu0 %v4914
    %8995 = vmatprep.subr.bf16.mxu0 %v4923
    %8996 = vmatpush1.bf16.msra.mxu0 %v4922
    %8997 = vmatprep.subr.bf16.mxu0 %v4931
    %8998 = vmatpush1.bf16.msra.mxu0 %v4930
    %8999 = vmatprep.subr.bf16.mxu0 %v4939
    %9000 = vmatpush1.bf16.msra.mxu0 %v4938
    %9001 = vmatprep.subr.bf16.mxu0 %v4947
    %9002 = vmatpush1.bf16.msra.mxu0 %v4946
    %9003 = vmatprep.subr.bf16.mxu0 %v4955
    %9004 = vmatpush1.bf16.msra.mxu0 %v4954
    %9005 = vmatprep.subr.bf16.mxu0 %v4963
    %9006 = vmatpush1.bf16.msra.mxu0 %v4962
    %9007 = vmatprep.mubr.bf16.mxu0 %v1950
    %9008 = vmatmul.mubr.bf16.gmra.mrb[0].mxu0 %v1949
    %v9009 = vpop.f32.mrb[0].mxu0
    %v9010 = vadd.f32 %v8513, %v9009
    %v9011 = vpop.f32.mrb[0].mxu0
    %v9012 = vadd.f32 %v8515, %v9011
    %v9013 = vpop.f32.mrb[0].mxu0
    %v9014 = vadd.f32 %v8517, %v9013
    %v9015 = vpop.f32.mrb[0].mxu0
    %v9016 = vadd.f32 %v8519, %v9015
    %9017 = vmatprep.mubr.bf16.mxu0 %v1954
    %9018 = vmatmul.mubr.bf16.gmra.mrb[0].mxu0 %v1953
    %v9019 = vpop.f32.mrb[0].mxu0
    %v9020 = vadd.f32 %v8523, %v9019
    %v9021 = vpop.f32.mrb[0].mxu0
    %v9022 = vadd.f32 %v8525, %v9021
    %v9023 = vpop.f32.mrb[0].mxu0
    %v9024 = vadd.f32 %v8527, %v9023
    %v9025 = vpop.f32.mrb[0].mxu0
    %v9026 = vadd.f32 %v8529, %v9025
    %9027 = vmatprep.mubr.bf16.mxu0 %v1958
    %9028 = vmatmul.mubr.bf16.gmra.mrb[0].mxu0 %v1957
    %v9029 = vpop.f32.mrb[0].mxu0
    %v9030 = vadd.f32 %v8533, %v9029
    %v9031 = vpop.f32.mrb[0].mxu0
    %v9032 = vadd.f32 %v8535, %v9031
    %v9033 = vpop.f32.mrb[0].mxu0
    %v9034 = vadd.f32 %v8537, %v9033
    %v9035 = vpop.f32.mrb[0].mxu0
    %v9036 = vadd.f32 %v8539, %v9035
    %9037 = vmatprep.mubr.bf16.mxu0 %v1962
    %9038 = vmatmul.mubr.bf16.gmra.mrb[0].mxu0 %v1961
    %v9039 = vpop.f32.mrb[0].mxu0
    %v9040 = vadd.f32 %v8543, %v9039
    %v9041 = vpop.f32.mrb[0].mxu0
    %v9042 = vadd.f32 %v8545, %v9041
    %v9043 = vpop.f32.mrb[0].mxu0
    %v9044 = vpop.f32.mrb[0].mxu0
    %9045 = vdwg.mxu0
    %9046 = vmatprep.subr.bf16.mxu0 %v4971
    %9047 = vmatpush1.bf16.msra.mxu0 %v4970
    %9048 = vmatprep.subr.bf16.mxu0 %v4979
    %9049 = vmatpush1.bf16.msra.mxu0 %v4978
    %9050 = vmatprep.subr.bf16.mxu0 %v4987
    %9051 = vmatpush1.bf16.msra.mxu0 %v4986
    %9052 = vmatprep.subr.bf16.mxu0 %v4995
    %9053 = vmatpush1.bf16.msra.mxu0 %v4994
    %9054 = vmatprep.subr.bf16.mxu0 %v5003
    %9055 = vmatpush1.bf16.msra.mxu0 %v5002
    %9056 = vmatprep.subr.bf16.mxu0 %v5011
    %9057 = vmatpush1.bf16.msra.mxu0 %v5010
    %9058 = vmatprep.subr.bf16.mxu0 %v5019
    %9059 = vmatpush1.bf16.msra.mxu0 %v5018
    %9060 = vmatprep.subr.bf16.mxu0 %v5027
    %9061 = vmatpush1.bf16.msra.mxu0 %v5026
    %9062 = vmatprep.subr.bf16.mxu0 %v5035
    %9063 = vmatpush1.bf16.msra.mxu0 %v5034
    %9064 = vmatprep.subr.bf16.mxu0 %v5043
    %9065 = vmatpush1.bf16.msra.mxu0 %v5042
    %9066 = vmatprep.subr.bf16.mxu0 %v5051
    %9067 = vmatpush1.bf16.msra.mxu0 %v5050
    %9068 = vmatprep.subr.bf16.mxu0 %v5059
    %9069 = vmatpush1.bf16.msra.mxu0 %v5058
    %9070 = vmatprep.subr.bf16.mxu0 %v5067
    %9071 = vmatpush1.bf16.msra.mxu0 %v5066
    %9072 = vmatprep.subr.bf16.mxu0 %v5075
    %9073 = vmatpush1.bf16.msra.mxu0 %v5074
    %9074 = vmatprep.subr.bf16.mxu0 %v5083
    %9075 = vmatpush1.bf16.msra.mxu0 %v5082
    %9076 = vmatprep.subr.bf16.mxu0 %v5091
    %9077 = vmatpush1.bf16.msra.mxu0 %v5090
    %9078 = vmatprep.mubr.bf16.mxu0 %v1952
    %9079 = vmatmul.mubr.bf16.gmra.mrb[0].mxu0 %v1951
    %v9080 = vpop.f32.mrb[0].mxu0
    %v9081 = vadd.f32 %v9010, %v9080
    %v9082 = vpop.f32.mrb[0].mxu0
    %v9083 = vadd.f32 %v9012, %v9082
    %v9084 = vpop.f32.mrb[0].mxu0
    %v9085 = vadd.f32 %v9014, %v9084
    %v9086 = vpop.f32.mrb[0].mxu0
    %v9087 = vadd.f32 %v9016, %v9086
    %9088 = vmatprep.mubr.bf16.mxu0 %v1956
    %9089 = vmatmul.mubr.bf16.gmra.mrb[0].mxu0 %v1955
    %v9090 = vpop.f32.mrb[0].mxu0
    %v9091 = vadd.f32 %v9020, %v9090
    %v9092 = vpop.f32.mrb[0].mxu0
    %v9093 = vadd.f32 %v9022, %v9092
    %v9094 = vpop.f32.mrb[0].mxu0
    %v9095 = vadd.f32 %v9024, %v9094
    %v9096 = vpop.f32.mrb[0].mxu0
    %v9097 = vadd.f32 %v9026, %v9096
    %9098 = vmatprep.mubr.bf16.mxu0 %v1960
    %9099 = vmatmul.mubr.bf16.gmra.mrb[0].mxu0 %v1959
    %v9100 = vpop.f32.mrb[0].mxu0
    %v9101 = vadd.f32 %v9030, %v9100
    %v9102 = vpop.f32.mrb[0].mxu0
    %v9103 = vadd.f32 %v9032, %v9102
    %v9104 = vpop.f32.mrb[0].mxu0
    %v9105 = vadd.f32 %v9034, %v9104
    %v9106 = vpop.f32.mrb[0].mxu0
    %v9107 = vadd.f32 %v9036, %v9106
    %9108 = vmatprep.mubr.bf16.mxu0 %v1964
    %9109 = vmatmul.mubr.bf16.gmra.mrb[0].mxu0 %v1963
    %v9110 = vpop.f32.mrb[0].mxu0
    %v9111 = vadd.f32 %v9040, %v9110
    %v9112 = vpop.f32.mrb[0].mxu0
    %v9113 = vadd.f32 %v9042, %v9112
    %v9114 = vpop.f32.mrb[0].mxu0
    %v9115 = vpop.f32.mrb[0].mxu0
    %9116 = vdwg.mxu0
    %9117 = vmatprep.subr.bf16.mxu0 %v4845
    %9118 = vmatpush1.bf16.msra.mxu0 %v4844
    %9119 = vmatprep.subr.bf16.mxu0 %v4853
    %9120 = vmatpush1.bf16.msra.mxu0 %v4852
    %9121 = vmatprep.subr.bf16.mxu0 %v4861
    %9122 = vmatpush1.bf16.msra.mxu0 %v4860
    %9123 = vmatprep.subr.bf16.mxu0 %v4869
    %9124 = vmatpush1.bf16.msra.mxu0 %v4868
    %9125 = vmatprep.subr.bf16.mxu0 %v4877
    %9126 = vmatpush1.bf16.msra.mxu0 %v4876
    %9127 = vmatprep.subr.bf16.mxu0 %v4885
    %9128 = vmatpush1.bf16.msra.mxu0 %v4884
    %9129 = vmatprep.subr.bf16.mxu0 %v4893
    %9130 = vmatpush1.bf16.msra.mxu0 %v4892
    %9131 = vmatprep.subr.bf16.mxu0 %v4901
    %9132 = vmatpush1.bf16.msra.mxu0 %v4900
    %9133 = vmatprep.subr.bf16.mxu0 %v4909
    %9134 = vmatpush1.bf16.msra.mxu0 %v4908
    %9135 = vmatprep.subr.bf16.mxu0 %v4917
    %9136 = vmatpush1.bf16.msra.mxu0 %v4916
    %9137 = vmatprep.subr.bf16.mxu0 %v4925
    %9138 = vmatpush1.bf16.msra.mxu0 %v4924
    %9139 = vmatprep.subr.bf16.mxu0 %v4933
    %9140 = vmatpush1.bf16.msra.mxu0 %v4932
    %9141 = vmatprep.subr.bf16.mxu0 %v4941
    %9142 = vmatpush1.bf16.msra.mxu0 %v4940
    %9143 = vmatprep.subr.bf16.mxu0 %v4949
    %9144 = vmatpush1.bf16.msra.mxu0 %v4948
    %9145 = vmatprep.subr.bf16.mxu0 %v4957
    %9146 = vmatpush1.bf16.msra.mxu0 %v4956
    %9147 = vmatprep.subr.bf16.mxu0 %v4965
    %9148 = vmatpush1.bf16.msra.mxu0 %v4964
    %9149 = vmatprep.mubr.bf16.mxu0 %v1950
    %9150 = vmatmul.mubr.bf16.gmra.mrb[0].mxu0 %v1949
    %v9151 = vpop.f32.mrb[0].mxu0
    %v9152 = vadd.f32 %v8655, %v9151
    %v9153 = vpop.f32.mrb[0].mxu0
    %v9154 = vadd.f32 %v8657, %v9153
    %v9155 = vpop.f32.mrb[0].mxu0
    %v9156 = vadd.f32 %v8659, %v9155
    %v9157 = vpop.f32.mrb[0].mxu0
    %v9158 = vadd.f32 %v8661, %v9157
    %9159 = vmatprep.mubr.bf16.mxu0 %v1954
    %9160 = vmatmul.mubr.bf16.gmra.mrb[0].mxu0 %v1953
    %v9161 = vpop.f32.mrb[0].mxu0
    %v9162 = vadd.f32 %v8665, %v9161
    %v9163 = vpop.f32.mrb[0].mxu0
    %v9164 = vadd.f32 %v8667, %v9163
    %v9165 = vpop.f32.mrb[0].mxu0
    %v9166 = vadd.f32 %v8669, %v9165
    %v9167 = vpop.f32.mrb[0].mxu0
    %v9168 = vadd.f32 %v8671, %v9167
    %9169 = vmatprep.mubr.bf16.mxu0 %v1958
    %9170 = vmatmul.mubr.bf16.gmra.mrb[0].mxu0 %v1957
    %v9171 = vpop.f32.mrb[0].mxu0
    %v9172 = vadd.f32 %v8675, %v9171
    %v9173 = vpop.f32.mrb[0].mxu0
    %v9174 = vadd.f32 %v8677, %v9173
    %v9175 = vpop.f32.mrb[0].mxu0
    %v9176 = vadd.f32 %v8679, %v9175
    %v9177 = vpop.f32.mrb[0].mxu0
    %v9178 = vadd.f32 %v8681, %v9177
    %9179 = vmatprep.mubr.bf16.mxu0 %v1962
    %9180 = vmatmul.mubr.bf16.gmra.mrb[0].mxu0 %v1961
    %v9181 = vpop.f32.mrb[0].mxu0
    %v9182 = vadd.f32 %v8685, %v9181
    %v9183 = vpop.f32.mrb[0].mxu0
    %v9184 = vadd.f32 %v8687, %v9183
    %v9185 = vpop.f32.mrb[0].mxu0
    %v9186 = vpop.f32.mrb[0].mxu0
    %9187 = vdwg.mxu0
    %9188 = vmatprep.subr.bf16.mxu0 %v4973
    %9189 = vmatpush1.bf16.msra.mxu0 %v4972
    %9190 = vmatprep.subr.bf16.mxu0 %v4981
    %9191 = vmatpush1.bf16.msra.mxu0 %v4980
    %9192 = vmatprep.subr.bf16.mxu0 %v4989
    %9193 = vmatpush1.bf16.msra.mxu0 %v4988
    %9194 = vmatprep.subr.bf16.mxu0 %v4997
    %9195 = vmatpush1.bf16.msra.mxu0 %v4996
    %9196 = vmatprep.subr.bf16.mxu0 %v5005
    %9197 = vmatpush1.bf16.msra.mxu0 %v5004
    %9198 = vmatprep.subr.bf16.mxu0 %v5013
    %9199 = vmatpush1.bf16.msra.mxu0 %v5012
    %9200 = vmatprep.subr.bf16.mxu0 %v5021
    %9201 = vmatpush1.bf16.msra.mxu0 %v5020
    %9202 = vmatprep.subr.bf16.mxu0 %v5029
    %9203 = vmatpush1.bf16.msra.mxu0 %v5028
    %9204 = vmatprep.subr.bf16.mxu0 %v5037
    %9205 = vmatpush1.bf16.msra.mxu0 %v5036
    %9206 = vmatprep.subr.bf16.mxu0 %v5045
    %9207 = vmatpush1.bf16.msra.mxu0 %v5044
    %9208 = vmatprep.subr.bf16.mxu0 %v5053
    %9209 = vmatpush1.bf16.msra.mxu0 %v5052
    %9210 = vmatprep.subr.bf16.mxu0 %v5061
    %9211 = vmatpush1.bf16.msra.mxu0 %v5060
    %9212 = vmatprep.subr.bf16.mxu0 %v5069
    %9213 = vmatpush1.bf16.msra.mxu0 %v5068
    %9214 = vmatprep.subr.bf16.mxu0 %v5077
    %9215 = vmatpush1.bf16.msra.mxu0 %v5076
    %9216 = vmatprep.subr.bf16.mxu0 %v5085
    %9217 = vmatpush1.bf16.msra.mxu0 %v5084
    %9218 = vmatprep.subr.bf16.mxu0 %v5093
    %9219 = vmatpush1.bf16.msra.mxu0 %v5092
    %9220 = vmatprep.mubr.bf16.mxu0 %v1952
    %9221 = vmatmul.mubr.bf16.gmra.mrb[0].mxu0 %v1951
    %v9222 = vpop.f32.mrb[0].mxu0
    %v9223 = vadd.f32 %v9152, %v9222
    %v9224 = vpop.f32.mrb[0].mxu0
    %v9225 = vadd.f32 %v9154, %v9224
    %v9226 = vpop.f32.mrb[0].mxu0
    %v9227 = vadd.f32 %v9156, %v9226
    %v9228 = vpop.f32.mrb[0].mxu0
    %v9229 = vadd.f32 %v9158, %v9228
    %9230 = vmatprep.mubr.bf16.mxu0 %v1956
    %9231 = vmatmul.mubr.bf16.gmra.mrb[0].mxu0 %v1955
    %v9232 = vpop.f32.mrb[0].mxu0
    %v9233 = vadd.f32 %v9162, %v9232
    %v9234 = vpop.f32.mrb[0].mxu0
    %v9235 = vadd.f32 %v9164, %v9234
    %v9236 = vpop.f32.mrb[0].mxu0
    %v9237 = vadd.f32 %v9166, %v9236
    %v9238 = vpop.f32.mrb[0].mxu0
    %v9239 = vadd.f32 %v9168, %v9238
    %9240 = vmatprep.mubr.bf16.mxu0 %v1960
    %9241 = vmatmul.mubr.bf16.gmra.mrb[0].mxu0 %v1959
    %v9242 = vpop.f32.mrb[0].mxu0
    %v9243 = vadd.f32 %v9172, %v9242
    %v9244 = vpop.f32.mrb[0].mxu0
    %v9245 = vadd.f32 %v9174, %v9244
    %v9246 = vpop.f32.mrb[0].mxu0
    %v9247 = vadd.f32 %v9176, %v9246
    %v9248 = vpop.f32.mrb[0].mxu0
    %v9249 = vadd.f32 %v9178, %v9248
    %9250 = vmatprep.mubr.bf16.mxu0 %v1964
    %9251 = vmatmul.mubr.bf16.gmra.mrb[0].mxu0 %v1963
    %v9252 = vpop.f32.mrb[0].mxu0
    %v9253 = vadd.f32 %v9182, %v9252
    %v9254 = vpop.f32.mrb[0].mxu0
    %v9255 = vadd.f32 %v9184, %v9254
    %v9256 = vpop.f32.mrb[0].mxu0
    %v9257 = vpop.f32.mrb[0].mxu0
    %9258 = vdwg.mxu0
    %v9259 = vld [vmem:[#allocation2 + $0x120] sm:$0xff]
    %v9260 = vld [vmem:[#allocation2 + $0x128] sm:$0xff]
    %v9261 = vld [vmem:[#allocation2 + $0x130] sm:$0xff]
    %v9262 = vld [vmem:[#allocation2 + $0x138] sm:$0xff]
    %v9263 = vld [vmem:[#allocation2 + $0x140] sm:$0xff]
    %v9264 = vld [vmem:[#allocation2 + $0x148] sm:$0xff]
    %v9265 = vld [vmem:[#allocation2 + $0x150] sm:$0xff]
    %v9266 = vld [vmem:[#allocation2 + $0x158] sm:$0xff]
    %v9267 = vld [vmem:[#allocation2 + $0x160] sm:$0xff]
    %v9268 = vld [vmem:[#allocation2 + $0x168] sm:$0xff]
    %v9269 = vld [vmem:[#allocation2 + $0x170] sm:$0xff]
    %v9270 = vld [vmem:[#allocation2 + $0x178] sm:$0xff]
    %v9271 = vld [vmem:[#allocation2 + $0x180] sm:$0xff]
    %v9272 = vld [vmem:[#allocation2 + $0x188] sm:$0xff]
    %v9273 = vld [vmem:[#allocation2 + $0x190] sm:$0xff]
    %v9274 = vld [vmem:[#allocation2 + $0x198] sm:$0xff]
    %v9275 = vld [vmem:[#allocation2 + $0x1a0] sm:$0xff]
    %v9276 = vld [vmem:[#allocation2 + $0x1a8] sm:$0xff]
    %v9277 = vld [vmem:[#allocation2 + $0x1b0] sm:$0xff]
    %v9278 = vld [vmem:[#allocation2 + $0x1b8] sm:$0xff]
    %v9279 = vld [vmem:[#allocation2 + $0x1c0] sm:$0xff]
    %v9280 = vld [vmem:[#allocation2 + $0x1c8] sm:$0xff]
    %v9281 = vld [vmem:[#allocation2 + $0x1d0] sm:$0xff]
    %v9282 = vld [vmem:[#allocation2 + $0x1d8] sm:$0xff]
    %v9283 = vld [vmem:[#allocation2 + $0x1e0] sm:$0xff]
    %v9284 = vld [vmem:[#allocation2 + $0x1e8] sm:$0xff]
    %v9285 = vld [vmem:[#allocation2 + $0x1f0] sm:$0xff]
    %v9286 = vld [vmem:[#allocation2 + $0x1f8] sm:$0xff]
    %v9287 = vpack.c.bf16 %v9263, %v9259
    %v9288 = vpack.c.bf16 %v9264, %v9260
    %v9289 = vpack.c.bf16 %v9265, %v9261
    %v9290 = vpack.c.bf16 %v9266, %v9262
    %v9291 = vpack.c.bf16 %v9271, %v9267
    %v9292 = vpack.c.bf16 %v9272, %v9268
    %v9293 = vpack.c.bf16 %v9273, %v9269
    %v9294 = vpack.c.bf16 %v9274, %v9270
    %v9295 = vpack.c.bf16 %v9279, %v9275
    %v9296 = vpack.c.bf16 %v9280, %v9276
    %v9297 = vpack.c.bf16 %v9281, %v9277
    %v9298 = vpack.c.bf16 %v9282, %v9278
    %v9299 = vpack.c.bf16 %v9283, %v9283
    %v9300 = vpack.c.bf16 %v9284, %v9284
    %v9301 = vpack.c.bf16 %v9285, %v9285
    %v9302 = vpack.c.bf16 %v9286, %v9286
    %9303 = vmatprep.subr.bf16.mxu0 %v6988
    %9304 = vmatpush1.bf16.msra.mxu0 %v6987
    %9305 = vmatprep.subr.bf16.mxu0 %v6996
    %9306 = vmatpush1.bf16.msra.mxu0 %v6995
    %9307 = vmatprep.subr.bf16.mxu0 %v7004
    %9308 = vmatpush1.bf16.msra.mxu0 %v7003
    %9309 = vmatprep.subr.bf16.mxu0 %v7012
    %9310 = vmatpush1.bf16.msra.mxu0 %v7011
    %9311 = vmatprep.subr.bf16.mxu0 %v7020
    %9312 = vmatpush1.bf16.msra.mxu0 %v7019
    %9313 = vmatprep.subr.bf16.mxu0 %v7028
    %9314 = vmatpush1.bf16.msra.mxu0 %v7027
    %9315 = vmatprep.subr.bf16.mxu0 %v7036
    %9316 = vmatpush1.bf16.msra.mxu0 %v7035
    %9317 = vmatprep.subr.bf16.mxu0 %v7044
    %9318 = vmatpush1.bf16.msra.mxu0 %v7043
    %9319 = vmatprep.subr.bf16.mxu0 %v7052
    %9320 = vmatpush1.bf16.msra.mxu0 %v7051
    %9321 = vmatprep.subr.bf16.mxu0 %v7060
    %9322 = vmatpush1.bf16.msra.mxu0 %v7059
    %9323 = vmatprep.subr.bf16.mxu0 %v7068
    %9324 = vmatpush1.bf16.msra.mxu0 %v7067
    %9325 = vmatprep.subr.bf16.mxu0 %v7076
    %9326 = vmatpush1.bf16.msra.mxu0 %v7075
    %9327 = vmatprep.subr.bf16.mxu0 %v7084
    %9328 = vmatpush1.bf16.msra.mxu0 %v7083
    %9329 = vmatprep.subr.bf16.mxu0 %v7092
    %9330 = vmatpush1.bf16.msra.mxu0 %v7091
    %9331 = vmatprep.subr.bf16.mxu0 %v7100
    %9332 = vmatpush1.bf16.msra.mxu0 %v7099
    %9333 = vmatprep.subr.bf16.mxu0 %v7108
    %9334 = vmatpush1.bf16.msra.mxu0 %v7107
    %9335 = vmatprep.mubr.bf16.mxu0 %v9288
    %9336 = vmatmul.mubr.bf16.gmra.mrb[0].mxu0 %v9287
    %v9337 = vpop.f32.mrb[0].mxu0
    %v9338 = vadd.f32 0.0, %v9337
    %v9339 = vpop.f32.mrb[0].mxu0
    %v9340 = vadd.f32 0.0, %v9339
    %v9341 = vpop.f32.mrb[0].mxu0
    %v9342 = vadd.f32 0.0, %v9341
    %v9343 = vpop.f32.mrb[0].mxu0
    %v9344 = vadd.f32 0.0, %v9343
    %9345 = vmatprep.mubr.bf16.mxu0 %v9292
    %9346 = vmatmul.mubr.bf16.gmra.mrb[0].mxu0 %v9291
    %v9347 = vpop.f32.mrb[0].mxu0
    %v9348 = vadd.f32 0.0, %v9347
    %v9349 = vpop.f32.mrb[0].mxu0
    %v9350 = vadd.f32 0.0, %v9349
    %v9351 = vpop.f32.mrb[0].mxu0
    %v9352 = vadd.f32 0.0, %v9351
    %v9353 = vpop.f32.mrb[0].mxu0
    %v9354 = vadd.f32 0.0, %v9353
    %9355 = vmatprep.mubr.bf16.mxu0 %v9296
    %9356 = vmatmul.mubr.bf16.gmra.mrb[0].mxu0 %v9295
    %v9357 = vpop.f32.mrb[0].mxu0
    %v9358 = vadd.f32 0.0, %v9357
    %v9359 = vpop.f32.mrb[0].mxu0
    %v9360 = vadd.f32 0.0, %v9359
    %v9361 = vpop.f32.mrb[0].mxu0
    %v9362 = vadd.f32 0.0, %v9361
    %v9363 = vpop.f32.mrb[0].mxu0
    %v9364 = vadd.f32 0.0, %v9363
    %9365 = vmatprep.mubr.bf16.mxu0 %v9300
    %9366 = vmatmul.mubr.bf16.gmra.mrb[0].mxu0 %v9299
    %v9367 = vpop.f32.mrb[0].mxu0
    %v9368 = vadd.f32 0.0, %v9367
    %v9369 = vpop.f32.mrb[0].mxu0
    %v9370 = vadd.f32 0.0, %v9369
    %v9371 = vpop.f32.mrb[0].mxu0
    %v9372 = vpop.f32.mrb[0].mxu0
    %9373 = vdwg.mxu0
    %9374 = vmatprep.subr.bf16.mxu0 %v7116
    %9375 = vmatpush1.bf16.msra.mxu0 %v7115
    %9376 = vmatprep.subr.bf16.mxu0 %v7124
    %9377 = vmatpush1.bf16.msra.mxu0 %v7123
    %9378 = vmatprep.subr.bf16.mxu0 %v7132
    %9379 = vmatpush1.bf16.msra.mxu0 %v7131
    %9380 = vmatprep.subr.bf16.mxu0 %v7140
    %9381 = vmatpush1.bf16.msra.mxu0 %v7139
    %9382 = vmatprep.subr.bf16.mxu0 %v7148
    %9383 = vmatpush1.bf16.msra.mxu0 %v7147
    %9384 = vmatprep.subr.bf16.mxu0 %v7156
    %9385 = vmatpush1.bf16.msra.mxu0 %v7155
    %9386 = vmatprep.subr.bf16.mxu0 %v7164
    %9387 = vmatpush1.bf16.msra.mxu0 %v7163
    %9388 = vmatprep.subr.bf16.mxu0 %v7172
    %9389 = vmatpush1.bf16.msra.mxu0 %v7171
    %9390 = vmatprep.subr.bf16.mxu0 %v7180
    %9391 = vmatpush1.bf16.msra.mxu0 %v7179
    %9392 = vmatprep.subr.bf16.mxu0 %v7188
    %9393 = vmatpush1.bf16.msra.mxu0 %v7187
    %9394 = vmatprep.subr.bf16.mxu0 %v7196
    %9395 = vmatpush1.bf16.msra.mxu0 %v7195
    %9396 = vmatprep.subr.bf16.mxu0 %v7204
    %9397 = vmatpush1.bf16.msra.mxu0 %v7203
    %9398 = vmatprep.subr.bf16.mxu0 %v7212
    %9399 = vmatpush1.bf16.msra.mxu0 %v7211
    %9400 = vmatprep.subr.bf16.mxu0 %v7220
    %9401 = vmatpush1.bf16.msra.mxu0 %v7219
    %9402 = vmatprep.subr.bf16.mxu0 %v7228
    %9403 = vmatpush1.bf16.msra.mxu0 %v7227
    %9404 = vmatprep.subr.bf16.mxu0 %v7236
    %9405 = vmatpush1.bf16.msra.mxu0 %v7235
    %9406 = vmatprep.mubr.bf16.mxu0 %v9290
    %9407 = vmatmul.mubr.bf16.gmra.mrb[0].mxu0 %v9289
    %v9408 = vpop.f32.mrb[0].mxu0
    %v9409 = vadd.f32 %v9338, %v9408
    %v9410 = vpop.f32.mrb[0].mxu0
    %v9411 = vadd.f32 %v9340, %v9410
    %v9412 = vpop.f32.mrb[0].mxu0
    %v9413 = vadd.f32 %v9342, %v9412
    %v9414 = vpop.f32.mrb[0].mxu0
    %v9415 = vadd.f32 %v9344, %v9414
    %9416 = vmatprep.mubr.bf16.mxu0 %v9294
    %9417 = vmatmul.mubr.bf16.gmra.mrb[0].mxu0 %v9293
    %v9418 = vpop.f32.mrb[0].mxu0
    %v9419 = vadd.f32 %v9348, %v9418
    %v9420 = vpop.f32.mrb[0].mxu0
    %v9421 = vadd.f32 %v9350, %v9420
    %v9422 = vpop.f32.mrb[0].mxu0
    %v9423 = vadd.f32 %v9352, %v9422
    %v9424 = vpop.f32.mrb[0].mxu0
    %v9425 = vadd.f32 %v9354, %v9424
    %9426 = vmatprep.mubr.bf16.mxu0 %v9298
    %9427 = vmatmul.mubr.bf16.gmra.mrb[0].mxu0 %v9297
    %v9428 = vpop.f32.mrb[0].mxu0
    %v9429 = vadd.f32 %v9358, %v9428
    %v9430 = vpop.f32.mrb[0].mxu0
    %v9431 = vadd.f32 %v9360, %v9430
    %v9432 = vpop.f32.mrb[0].mxu0
    %v9433 = vadd.f32 %v9362, %v9432
    %v9434 = vpop.f32.mrb[0].mxu0
    %v9435 = vadd.f32 %v9364, %v9434
    %9436 = vmatprep.mubr.bf16.mxu0 %v9302
    %9437 = vmatmul.mubr.bf16.gmra.mrb[0].mxu0 %v9301
    %v9438 = vpop.f32.mrb[0].mxu0
    %v9439 = vadd.f32 %v9368, %v9438
    %v9440 = vpop.f32.mrb[0].mxu0
    %v9441 = vadd.f32 %v9370, %v9440
    %v9442 = vpop.f32.mrb[0].mxu0
    %v9443 = vpop.f32.mrb[0].mxu0
    %9444 = vdwg.mxu0
    %9445 = vmatprep.subr.bf16.mxu0 %v6990
    %9446 = vmatpush1.bf16.msra.mxu0 %v6989
    %9447 = vmatprep.subr.bf16.mxu0 %v6998
    %9448 = vmatpush1.bf16.msra.mxu0 %v6997
    %9449 = vmatprep.subr.bf16.mxu0 %v7006
    %9450 = vmatpush1.bf16.msra.mxu0 %v7005
    %9451 = vmatprep.subr.bf16.mxu0 %v7014
    %9452 = vmatpush1.bf16.msra.mxu0 %v7013
    %9453 = vmatprep.subr.bf16.mxu0 %v7022
    %9454 = vmatpush1.bf16.msra.mxu0 %v7021
    %9455 = vmatprep.subr.bf16.mxu0 %v7030
    %9456 = vmatpush1.bf16.msra.mxu0 %v7029
    %9457 = vmatprep.subr.bf16.mxu0 %v7038
    %9458 = vmatpush1.bf16.msra.mxu0 %v7037
    %9459 = vmatprep.subr.bf16.mxu0 %v7046
    %9460 = vmatpush1.bf16.msra.mxu0 %v7045
    %9461 = vmatprep.subr.bf16.mxu0 %v7054
    %9462 = vmatpush1.bf16.msra.mxu0 %v7053
    %9463 = vmatprep.subr.bf16.mxu0 %v7062
    %9464 = vmatpush1.bf16.msra.mxu0 %v7061
    %9465 = vmatprep.subr.bf16.mxu0 %v7070
    %9466 = vmatpush1.bf16.msra.mxu0 %v7069
    %9467 = vmatprep.subr.bf16.mxu0 %v7078
    %9468 = vmatpush1.bf16.msra.mxu0 %v7077
    %9469 = vmatprep.subr.bf16.mxu0 %v7086
    %9470 = vmatpush1.bf16.msra.mxu0 %v7085
    %9471 = vmatprep.subr.bf16.mxu0 %v7094
    %9472 = vmatpush1.bf16.msra.mxu0 %v7093
    %9473 = vmatprep.subr.bf16.mxu0 %v7102
    %9474 = vmatpush1.bf16.msra.mxu0 %v7101
    %9475 = vmatprep.subr.bf16.mxu0 %v7110
    %9476 = vmatpush1.bf16.msra.mxu0 %v7109
    %9477 = vmatprep.mubr.bf16.mxu0 %v9288
    %9478 = vmatmul.mubr.bf16.gmra.mrb[0].mxu0 %v9287
    %v9479 = vpop.f32.mrb[0].mxu0
    %v9480 = vadd.f32 0.0, %v9479
    %v9481 = vpop.f32.mrb[0].mxu0
    %v9482 = vadd.f32 0.0, %v9481
    %v9483 = vpop.f32.mrb[0].mxu0
    %v9484 = vadd.f32 0.0, %v9483
    %v9485 = vpop.f32.mrb[0].mxu0
    %v9486 = vadd.f32 0.0, %v9485
    %9487 = vmatprep.mubr.bf16.mxu0 %v9292
    %9488 = vmatmul.mubr.bf16.gmra.mrb[0].mxu0 %v9291
    %v9489 = vpop.f32.mrb[0].mxu0
    %v9490 = vadd.f32 0.0, %v9489
    %v9491 = vpop.f32.mrb[0].mxu0
    %v9492 = vadd.f32 0.0, %v9491
    %v9493 = vpop.f32.mrb[0].mxu0
    %v9494 = vadd.f32 0.0, %v9493
    %v9495 = vpop.f32.mrb[0].mxu0
    %v9496 = vadd.f32 0.0, %v9495
    %9497 = vmatprep.mubr.bf16.mxu0 %v9296
    %9498 = vmatmul.mubr.bf16.gmra.mrb[0].mxu0 %v9295
    %v9499 = vpop.f32.mrb[0].mxu0
    %v9500 = vadd.f32 0.0, %v9499
    %v9501 = vpop.f32.mrb[0].mxu0
    %v9502 = vadd.f32 0.0, %v9501
    %v9503 = vpop.f32.mrb[0].mxu0
    %v9504 = vadd.f32 0.0, %v9503
    %v9505 = vpop.f32.mrb[0].mxu0
    %v9506 = vadd.f32 0.0, %v9505
    %9507 = vmatprep.mubr.bf16.mxu0 %v9300
    %9508 = vmatmul.mubr.bf16.gmra.mrb[0].mxu0 %v9299
    %v9509 = vpop.f32.mrb[0].mxu0
    %v9510 = vadd.f32 0.0, %v9509
    %v9511 = vpop.f32.mrb[0].mxu0
    %v9512 = vadd.f32 0.0, %v9511
    %v9513 = vpop.f32.mrb[0].mxu0
    %v9514 = vpop.f32.mrb[0].mxu0
    %9515 = vdwg.mxu0
    %9516 = vmatprep.subr.bf16.mxu0 %v7118
    %9517 = vmatpush1.bf16.msra.mxu0 %v7117
    %9518 = vmatprep.subr.bf16.mxu0 %v7126
    %9519 = vmatpush1.bf16.msra.mxu0 %v7125
    %9520 = vmatprep.subr.bf16.mxu0 %v7134
    %9521 = vmatpush1.bf16.msra.mxu0 %v7133
    %9522 = vmatprep.subr.bf16.mxu0 %v7142
    %9523 = vmatpush1.bf16.msra.mxu0 %v7141
    %9524 = vmatprep.subr.bf16.mxu0 %v7150
    %9525 = vmatpush1.bf16.msra.mxu0 %v7149
    %9526 = vmatprep.subr.bf16.mxu0 %v7158
    %9527 = vmatpush1.bf16.msra.mxu0 %v7157
    %9528 = vmatprep.subr.bf16.mxu0 %v7166
    %9529 = vmatpush1.bf16.msra.mxu0 %v7165
    %9530 = vmatprep.subr.bf16.mxu0 %v7174
    %9531 = vmatpush1.bf16.msra.mxu0 %v7173
    %9532 = vmatprep.subr.bf16.mxu0 %v7182
    %9533 = vmatpush1.bf16.msra.mxu0 %v7181
    %9534 = vmatprep.subr.bf16.mxu0 %v7190
    %9535 = vmatpush1.bf16.msra.mxu0 %v7189
    %9536 = vmatprep.subr.bf16.mxu0 %v7198
    %9537 = vmatpush1.bf16.msra.mxu0 %v7197
    %9538 = vmatprep.subr.bf16.mxu0 %v7206
    %9539 = vmatpush1.bf16.msra.mxu0 %v7205
    %9540 = vmatprep.subr.bf16.mxu0 %v7214
    %9541 = vmatpush1.bf16.msra.mxu0 %v7213
    %9542 = vmatprep.subr.bf16.mxu0 %v7222
    %9543 = vmatpush1.bf16.msra.mxu0 %v7221
    %9544 = vmatprep.subr.bf16.mxu0 %v7230
    %9545 = vmatpush1.bf16.msra.mxu0 %v7229
    %9546 = vmatprep.subr.bf16.mxu0 %v7238
    %9547 = vmatpush1.bf16.msra.mxu0 %v7237
    %9548 = vmatprep.mubr.bf16.mxu0 %v9290
    %9549 = vmatmul.mubr.bf16.gmra.mrb[0].mxu0 %v9289
    %v9550 = vpop.f32.mrb[0].mxu0
    %v9551 = vadd.f32 %v9480, %v9550
    %v9552 = vpop.f32.mrb[0].mxu0
    %v9553 = vadd.f32 %v9482, %v9552
    %v9554 = vpop.f32.mrb[0].mxu0
    %v9555 = vadd.f32 %v9484, %v9554
    %v9556 = vpop.f32.mrb[0].mxu0
    %v9557 = vadd.f32 %v9486, %v9556
    %9558 = vmatprep.mubr.bf16.mxu0 %v9294
    %9559 = vmatmul.mubr.bf16.gmra.mrb[0].mxu0 %v9293
    %v9560 = vpop.f32.mrb[0].mxu0
    %v9561 = vadd.f32 %v9490, %v9560
    %v9562 = vpop.f32.mrb[0].mxu0
    %v9563 = vadd.f32 %v9492, %v9562
    %v9564 = vpop.f32.mrb[0].mxu0
    %v9565 = vadd.f32 %v9494, %v9564
    %v9566 = vpop.f32.mrb[0].mxu0
    %v9567 = vadd.f32 %v9496, %v9566
    %9568 = vmatprep.mubr.bf16.mxu0 %v9298
    %9569 = vmatmul.mubr.bf16.gmra.mrb[0].mxu0 %v9297
    %v9570 = vpop.f32.mrb[0].mxu0
    %v9571 = vadd.f32 %v9500, %v9570
    %v9572 = vpop.f32.mrb[0].mxu0
    %v9573 = vadd.f32 %v9502, %v9572
    %v9574 = vpop.f32.mrb[0].mxu0
    %v9575 = vadd.f32 %v9504, %v9574
    %v9576 = vpop.f32.mrb[0].mxu0
    %v9577 = vadd.f32 %v9506, %v9576
    %9578 = vmatprep.mubr.bf16.mxu0 %v9302
    %9579 = vmatmul.mubr.bf16.gmra.mrb[0].mxu0 %v9301
    %v9580 = vpop.f32.mrb[0].mxu0
    %v9581 = vadd.f32 %v9510, %v9580
    %v9582 = vpop.f32.mrb[0].mxu0
    %v9583 = vadd.f32 %v9512, %v9582
    %v9584 = vpop.f32.mrb[0].mxu0
    %v9585 = vpop.f32.mrb[0].mxu0
    %9586 = vdwg.mxu0
    %9587 = vmatprep.subr.bf16.mxu0 %v6992
    %9588 = vmatpush1.bf16.msra.mxu0 %v6991
    %9589 = vmatprep.subr.bf16.mxu0 %v7000
    %9590 = vmatpush1.bf16.msra.mxu0 %v6999
    %9591 = vmatprep.subr.bf16.mxu0 %v7008
    %9592 = vmatpush1.bf16.msra.mxu0 %v7007
    %9593 = vmatprep.subr.bf16.mxu0 %v7016
    %9594 = vmatpush1.bf16.msra.mxu0 %v7015
    %9595 = vmatprep.subr.bf16.mxu0 %v7024
    %9596 = vmatpush1.bf16.msra.mxu0 %v7023
    %9597 = vmatprep.subr.bf16.mxu0 %v7032
    %9598 = vmatpush1.bf16.msra.mxu0 %v7031
    %9599 = vmatprep.subr.bf16.mxu0 %v7040
    %9600 = vmatpush1.bf16.msra.mxu0 %v7039
    %9601 = vmatprep.subr.bf16.mxu0 %v7048
    %9602 = vmatpush1.bf16.msra.mxu0 %v7047
    %9603 = vmatprep.subr.bf16.mxu0 %v7056
    %9604 = vmatpush1.bf16.msra.mxu0 %v7055
    %9605 = vmatprep.subr.bf16.mxu0 %v7064
    %9606 = vmatpush1.bf16.msra.mxu0 %v7063
    %9607 = vmatprep.subr.bf16.mxu0 %v7072
    %9608 = vmatpush1.bf16.msra.mxu0 %v7071
    %9609 = vmatprep.subr.bf16.mxu0 %v7080
    %9610 = vmatpush1.bf16.msra.mxu0 %v7079
    %9611 = vmatprep.subr.bf16.mxu0 %v7088
    %9612 = vmatpush1.bf16.msra.mxu0 %v7087
    %9613 = vmatprep.subr.bf16.mxu0 %v7096
    %9614 = vmatpush1.bf16.msra.mxu0 %v7095
    %9615 = vmatprep.subr.bf16.mxu0 %v7104
    %9616 = vmatpush1.bf16.msra.mxu0 %v7103
    %9617 = vmatprep.subr.bf16.mxu0 %v7112
    %9618 = vmatpush1.bf16.msra.mxu0 %v7111
    %9619 = vmatprep.mubr.bf16.mxu0 %v9288
    %9620 = vmatmul.mubr.bf16.gmra.mrb[0].mxu0 %v9287
    %v9621 = vpop.f32.mrb[0].mxu0
    %v9622 = vadd.f32 0.0, %v9621
    %v9623 = vpop.f32.mrb[0].mxu0
    %v9624 = vadd.f32 0.0, %v9623
    %v9625 = vpop.f32.mrb[0].mxu0
    %v9626 = vadd.f32 0.0, %v9625
    %v9627 = vpop.f32.mrb[0].mxu0
    %v9628 = vadd.f32 0.0, %v9627
    %9629 = vmatprep.mubr.bf16.mxu0 %v9292
    %9630 = vmatmul.mubr.bf16.gmra.mrb[0].mxu0 %v9291
    %v9631 = vpop.f32.mrb[0].mxu0
    %v9632 = vadd.f32 0.0, %v9631
    %v9633 = vpop.f32.mrb[0].mxu0
    %v9634 = vadd.f32 0.0, %v9633
    %v9635 = vpop.f32.mrb[0].mxu0
    %v9636 = vadd.f32 0.0, %v9635
    %v9637 = vpop.f32.mrb[0].mxu0
    %v9638 = vadd.f32 0.0, %v9637
    %9639 = vmatprep.mubr.bf16.mxu0 %v9296
    %9640 = vmatmul.mubr.bf16.gmra.mrb[0].mxu0 %v9295
    %v9641 = vpop.f32.mrb[0].mxu0
    %v9642 = vadd.f32 0.0, %v9641
    %v9643 = vpop.f32.mrb[0].mxu0
    %v9644 = vadd.f32 0.0, %v9643
    %v9645 = vpop.f32.mrb[0].mxu0
    %v9646 = vadd.f32 0.0, %v9645
    %v9647 = vpop.f32.mrb[0].mxu0
    %v9648 = vadd.f32 0.0, %v9647
    %9649 = vmatprep.mubr.bf16.mxu0 %v9300
    %9650 = vmatmul.mubr.bf16.gmra.mrb[0].mxu0 %v9299
    %v9651 = vpop.f32.mrb[0].mxu0
    %v9652 = vadd.f32 0.0, %v9651
    %v9653 = vpop.f32.mrb[0].mxu0
    %v9654 = vadd.f32 0.0, %v9653
    %v9655 = vpop.f32.mrb[0].mxu0
    %v9656 = vpop.f32.mrb[0].mxu0
    %9657 = vdwg.mxu0
    %9658 = vmatprep.subr.bf16.mxu0 %v7120
    %9659 = vmatpush1.bf16.msra.mxu0 %v7119
    %9660 = vmatprep.subr.bf16.mxu0 %v7128
    %9661 = vmatpush1.bf16.msra.mxu0 %v7127
    %9662 = vmatprep.subr.bf16.mxu0 %v7136
    %9663 = vmatpush1.bf16.msra.mxu0 %v7135
    %9664 = vmatprep.subr.bf16.mxu0 %v7144
    %9665 = vmatpush1.bf16.msra.mxu0 %v7143
    %9666 = vmatprep.subr.bf16.mxu0 %v7152
    %9667 = vmatpush1.bf16.msra.mxu0 %v7151
    %9668 = vmatprep.subr.bf16.mxu0 %v7160
    %9669 = vmatpush1.bf16.msra.mxu0 %v7159
    %9670 = vmatprep.subr.bf16.mxu0 %v7168
    %9671 = vmatpush1.bf16.msra.mxu0 %v7167
    %9672 = vmatprep.subr.bf16.mxu0 %v7176
    %9673 = vmatpush1.bf16.msra.mxu0 %v7175
    %9674 = vmatprep.subr.bf16.mxu0 %v7184
    %9675 = vmatpush1.bf16.msra.mxu0 %v7183
    %9676 = vmatprep.subr.bf16.mxu0 %v7192
    %9677 = vmatpush1.bf16.msra.mxu0 %v7191
    %9678 = vmatprep.subr.bf16.mxu0 %v7200
    %9679 = vmatpush1.bf16.msra.mxu0 %v7199
    %9680 = vmatprep.subr.bf16.mxu0 %v7208
    %9681 = vmatpush1.bf16.msra.mxu0 %v7207
    %9682 = vmatprep.subr.bf16.mxu0 %v7216
    %9683 = vmatpush1.bf16.msra.mxu0 %v7215
    %9684 = vmatprep.subr.bf16.mxu0 %v7224
    %9685 = vmatpush1.bf16.msra.mxu0 %v7223
    %9686 = vmatprep.subr.bf16.mxu0 %v7232
    %9687 = vmatpush1.bf16.msra.mxu0 %v7231
    %9688 = vmatprep.subr.bf16.mxu0 %v7240
    %9689 = vmatpush1.bf16.msra.mxu0 %v7239
    %9690 = vmatprep.mubr.bf16.mxu0 %v9290
    %9691 = vmatmul.mubr.bf16.gmra.mrb[0].mxu0 %v9289
    %v9692 = vpop.f32.mrb[0].mxu0
    %v9693 = vadd.f32 %v9622, %v9692
    %v9694 = vpop.f32.mrb[0].mxu0
    %v9695 = vadd.f32 %v9624, %v9694
    %v9696 = vpop.f32.mrb[0].mxu0
    %v9697 = vadd.f32 %v9626, %v9696
    %v9698 = vpop.f32.mrb[0].mxu0
    %v9699 = vadd.f32 %v9628, %v9698
    %9700 = vmatprep.mubr.bf16.mxu0 %v9294
    %9701 = vmatmul.mubr.bf16.gmra.mrb[0].mxu0 %v9293
    %v9702 = vpop.f32.mrb[0].mxu0
    %v9703 = vadd.f32 %v9632, %v9702
    %v9704 = vpop.f32.mrb[0].mxu0
    %v9705 = vadd.f32 %v9634, %v9704
    %v9706 = vpop.f32.mrb[0].mxu0
    %v9707 = vadd.f32 %v9636, %v9706
    %v9708 = vpop.f32.mrb[0].mxu0
    %v9709 = vadd.f32 %v9638, %v9708
    %9710 = vmatprep.mubr.bf16.mxu0 %v9298
    %9711 = vmatmul.mubr.bf16.gmra.mrb[0].mxu0 %v9297
    %v9712 = vpop.f32.mrb[0].mxu0
    %v9713 = vadd.f32 %v9642, %v9712
    %v9714 = vpop.f32.mrb[0].mxu0
    %v9715 = vadd.f32 %v9644, %v9714
    %v9716 = vpop.f32.mrb[0].mxu0
    %v9717 = vadd.f32 %v9646, %v9716
    %v9718 = vpop.f32.mrb[0].mxu0
    %v9719 = vadd.f32 %v9648, %v9718
    %9720 = vmatprep.mubr.bf16.mxu0 %v9302
    %9721 = vmatmul.mubr.bf16.gmra.mrb[0].mxu0 %v9301
    %v9722 = vpop.f32.mrb[0].mxu0
    %v9723 = vadd.f32 %v9652, %v9722
    %v9724 = vpop.f32.mrb[0].mxu0
    %v9725 = vadd.f32 %v9654, %v9724
    %v9726 = vpop.f32.mrb[0].mxu0
    %v9727 = vpop.f32.mrb[0].mxu0
    %9728 = vdwg.mxu0
    %9729 = vmatprep.subr.bf16.mxu0 %v6994
    %9730 = vmatpush1.bf16.msra.mxu0 %v6993
    %9731 = vmatprep.subr.bf16.mxu0 %v7002
    %9732 = vmatpush1.bf16.msra.mxu0 %v7001
    %9733 = vmatprep.subr.bf16.mxu0 %v7010
    %9734 = vmatpush1.bf16.msra.mxu0 %v7009
    %9735 = vmatprep.subr.bf16.mxu0 %v7018
    %9736 = vmatpush1.bf16.msra.mxu0 %v7017
    %9737 = vmatprep.subr.bf16.mxu0 %v7026
    %9738 = vmatpush1.bf16.msra.mxu0 %v7025
    %9739 = vmatprep.subr.bf16.mxu0 %v7034
    %9740 = vmatpush1.bf16.msra.mxu0 %v7033
    %9741 = vmatprep.subr.bf16.mxu0 %v7042
    %9742 = vmatpush1.bf16.msra.mxu0 %v7041
    %9743 = vmatprep.subr.bf16.mxu0 %v7050
    %9744 = vmatpush1.bf16.msra.mxu0 %v7049
    %9745 = vmatprep.subr.bf16.mxu0 %v7058
    %9746 = vmatpush1.bf16.msra.mxu0 %v7057
    %9747 = vmatprep.subr.bf16.mxu0 %v7066
    %9748 = vmatpush1.bf16.msra.mxu0 %v7065
    %9749 = vmatprep.subr.bf16.mxu0 %v7074
    %9750 = vmatpush1.bf16.msra.mxu0 %v7073
    %9751 = vmatprep.subr.bf16.mxu0 %v7082
    %9752 = vmatpush1.bf16.msra.mxu0 %v7081
    %9753 = vmatprep.subr.bf16.mxu0 %v7090
    %9754 = vmatpush1.bf16.msra.mxu0 %v7089
    %9755 = vmatprep.subr.bf16.mxu0 %v7098
    %9756 = vmatpush1.bf16.msra.mxu0 %v7097
    %9757 = vmatprep.subr.bf16.mxu0 %v7106
    %9758 = vmatpush1.bf16.msra.mxu0 %v7105
    %9759 = vmatprep.subr.bf16.mxu0 %v7114
    %9760 = vmatpush1.bf16.msra.mxu0 %v7113
    %9761 = vmatprep.mubr.bf16.mxu0 %v9288
    %9762 = vmatmul.mubr.bf16.gmra.mrb[0].mxu0 %v9287
    %v9763 = vpop.f32.mrb[0].mxu0
    %v9764 = vadd.f32 0.0, %v9763
    %v9765 = vpop.f32.mrb[0].mxu0
    %v9766 = vadd.f32 0.0, %v9765
    %v9767 = vpop.f32.mrb[0].mxu0
    %v9768 = vadd.f32 0.0, %v9767
    %v9769 = vpop.f32.mrb[0].mxu0
    %v9770 = vadd.f32 0.0, %v9769
    %9771 = vmatprep.mubr.bf16.mxu0 %v9292
    %9772 = vmatmul.mubr.bf16.gmra.mrb[0].mxu0 %v9291
    %v9773 = vpop.f32.mrb[0].mxu0
    %v9774 = vadd.f32 0.0, %v9773
    %v9775 = vpop.f32.mrb[0].mxu0
    %v9776 = vadd.f32 0.0, %v9775
    %v9777 = vpop.f32.mrb[0].mxu0
    %v9778 = vadd.f32 0.0, %v9777
    %v9779 = vpop.f32.mrb[0].mxu0
    %v9780 = vadd.f32 0.0, %v9779
    %9781 = vmatprep.mubr.bf16.mxu0 %v9296
    %9782 = vmatmul.mubr.bf16.gmra.mrb[0].mxu0 %v9295
    %v9783 = vpop.f32.mrb[0].mxu0
    %v9784 = vadd.f32 0.0, %v9783
    %v9785 = vpop.f32.mrb[0].mxu0
    %v9786 = vadd.f32 0.0, %v9785
    %v9787 = vpop.f32.mrb[0].mxu0
    %v9788 = vadd.f32 0.0, %v9787
    %v9789 = vpop.f32.mrb[0].mxu0
    %v9790 = vadd.f32 0.0, %v9789
    %9791 = vmatprep.mubr.bf16.mxu0 %v9300
    %9792 = vmatmul.mubr.bf16.gmra.mrb[0].mxu0 %v9299
    %v9793 = vpop.f32.mrb[0].mxu0
    %v9794 = vadd.f32 0.0, %v9793
    %v9795 = vpop.f32.mrb[0].mxu0
    %v9796 = vadd.f32 0.0, %v9795
    %v9797 = vpop.f32.mrb[0].mxu0
    %v9798 = vpop.f32.mrb[0].mxu0
    %9799 = vdwg.mxu0
    %9800 = vmatprep.subr.bf16.mxu0 %v7122
    %9801 = vmatpush1.bf16.msra.mxu0 %v7121
    %9802 = vmatprep.subr.bf16.mxu0 %v7130
    %9803 = vmatpush1.bf16.msra.mxu0 %v7129
    %9804 = vmatprep.subr.bf16.mxu0 %v7138
    %9805 = vmatpush1.bf16.msra.mxu0 %v7137
    %9806 = vmatprep.subr.bf16.mxu0 %v7146
    %9807 = vmatpush1.bf16.msra.mxu0 %v7145
    %9808 = vmatprep.subr.bf16.mxu0 %v7154
    %9809 = vmatpush1.bf16.msra.mxu0 %v7153
    %9810 = vmatprep.subr.bf16.mxu0 %v7162
    %9811 = vmatpush1.bf16.msra.mxu0 %v7161
    %9812 = vmatprep.subr.bf16.mxu0 %v7170
    %9813 = vmatpush1.bf16.msra.mxu0 %v7169
    %9814 = vmatprep.subr.bf16.mxu0 %v7178
    %9815 = vmatpush1.bf16.msra.mxu0 %v7177
    %9816 = vmatprep.subr.bf16.mxu0 %v7186
    %9817 = vmatpush1.bf16.msra.mxu0 %v7185
    %9818 = vmatprep.subr.bf16.mxu0 %v7194
    %9819 = vmatpush1.bf16.msra.mxu0 %v7193
    %9820 = vmatprep.subr.bf16.mxu0 %v7202
    %9821 = vmatpush1.bf16.msra.mxu0 %v7201
    %9822 = vmatprep.subr.bf16.mxu0 %v7210
    %9823 = vmatpush1.bf16.msra.mxu0 %v7209
    %9824 = vmatprep.subr.bf16.mxu0 %v7218
    %9825 = vmatpush1.bf16.msra.mxu0 %v7217
    %9826 = vmatprep.subr.bf16.mxu0 %v7226
    %9827 = vmatpush1.bf16.msra.mxu0 %v7225
    %9828 = vmatprep.subr.bf16.mxu0 %v7234
    %9829 = vmatpush1.bf16.msra.mxu0 %v7233
    %9830 = vmatprep.subr.bf16.mxu0 %v7242
    %9831 = vmatpush1.bf16.msra.mxu0 %v7241
    %9832 = vmatprep.mubr.bf16.mxu0 %v9290
    %9833 = vmatmul.mubr.bf16.gmra.mrb[0].mxu0 %v9289
    %v9834 = vpop.f32.mrb[0].mxu0
    %v9835 = vadd.f32 %v9764, %v9834
    %v9836 = vpop.f32.mrb[0].mxu0
    %v9837 = vadd.f32 %v9766, %v9836
    %v9838 = vpop.f32.mrb[0].mxu0
    %v9839 = vadd.f32 %v9768, %v9838
    %v9840 = vpop.f32.mrb[0].mxu0
    %v9841 = vadd.f32 %v9770, %v9840
    %9842 = vmatprep.mubr.bf16.mxu0 %v9294
    %9843 = vmatmul.mubr.bf16.gmra.mrb[0].mxu0 %v9293
    %v9844 = vpop.f32.mrb[0].mxu0
    %v9845 = vadd.f32 %v9774, %v9844
    %v9846 = vpop.f32.mrb[0].mxu0
    %v9847 = vadd.f32 %v9776, %v9846
    %v9848 = vpop.f32.mrb[0].mxu0
    %v9849 = vadd.f32 %v9778, %v9848
    %v9850 = vpop.f32.mrb[0].mxu0
    %v9851 = vadd.f32 %v9780, %v9850
    %9852 = vmatprep.mubr.bf16.mxu0 %v9298
    %9853 = vmatmul.mubr.bf16.gmra.mrb[0].mxu0 %v9297
    %v9854 = vpop.f32.mrb[0].mxu0
    %v9855 = vadd.f32 %v9784, %v9854
    %v9856 = vpop.f32.mrb[0].mxu0
    %v9857 = vadd.f32 %v9786, %v9856
    %v9858 = vpop.f32.mrb[0].mxu0
    %v9859 = vadd.f32 %v9788, %v9858
    %v9860 = vpop.f32.mrb[0].mxu0
    %v9861 = vadd.f32 %v9790, %v9860
    %9862 = vmatprep.mubr.bf16.mxu0 %v9302
    %9863 = vmatmul.mubr.bf16.gmra.mrb[0].mxu0 %v9301
    %v9864 = vpop.f32.mrb[0].mxu0
    %v9865 = vadd.f32 %v9794, %v9864
    %v9866 = vpop.f32.mrb[0].mxu0
    %v9867 = vadd.f32 %v9796, %v9866
    %v9868 = vpop.f32.mrb[0].mxu0
    %v9869 = vpop.f32.mrb[0].mxu0
    %9870 = vdwg.mxu0
    %v9871 = vadd.f32 %v8797, %v9409
    %v9872 = vadd.f32 %v8799, %v9411
    %v9873 = vadd.f32 %v8939, %v9551
    %v9874 = vadd.f32 %v8941, %v9553
    %v9875 = vadd.f32 %v9081, %v9693
    %v9876 = vadd.f32 %v9083, %v9695
    %v9877 = vadd.f32 %v9223, %v9835
    %v9878 = vadd.f32 %v9225, %v9837
    %v9879 = vadd.f32 %v8801, %v9413
    %v9880 = vadd.f32 %v8803, %v9415
    %v9881 = vadd.f32 %v8943, %v9555
    %v9882 = vadd.f32 %v8945, %v9557
    %v9883 = vadd.f32 %v9085, %v9697
    %v9884 = vadd.f32 %v9087, %v9699
    %v9885 = vadd.f32 %v9227, %v9839
    %v9886 = vadd.f32 %v9229, %v9841
    %v9887 = vadd.f32 %v8807, %v9419
    %v9888 = vadd.f32 %v8809, %v9421
    %v9889 = vadd.f32 %v8949, %v9561
    %v9890 = vadd.f32 %v8951, %v9563
    %v9891 = vadd.f32 %v9091, %v9703
    %v9892 = vadd.f32 %v9093, %v9705
    %v9893 = vadd.f32 %v9233, %v9845
    %v9894 = vadd.f32 %v9235, %v9847
    %v9895 = vadd.f32 %v8811, %v9423
    %v9896 = vadd.f32 %v8813, %v9425
    %v9897 = vadd.f32 %v8953, %v9565
    %v9898 = vadd.f32 %v8955, %v9567
    %v9899 = vadd.f32 %v9095, %v9707
    %v9900 = vadd.f32 %v9097, %v9709
    %v9901 = vadd.f32 %v9237, %v9849
    %v9902 = vadd.f32 %v9239, %v9851
    %v9903 = vadd.f32 %v8817, %v9429
    %v9904 = vadd.f32 %v8819, %v9431
    %v9905 = vadd.f32 %v8959, %v9571
    %v9906 = vadd.f32 %v8961, %v9573
    %v9907 = vadd.f32 %v9101, %v9713
    %v9908 = vadd.f32 %v9103, %v9715
    %v9909 = vadd.f32 %v9243, %v9855
    %v9910 = vadd.f32 %v9245, %v9857
    %v9911 = vadd.f32 %v8821, %v9433
    %v9912 = vadd.f32 %v8823, %v9435
    %v9913 = vadd.f32 %v8963, %v9575
    %v9914 = vadd.f32 %v8965, %v9577
    %v9915 = vadd.f32 %v9105, %v9717
    %v9916 = vadd.f32 %v9107, %v9719
    %v9917 = vadd.f32 %v9247, %v9859
    %v9918 = vadd.f32 %v9249, %v9861
    %v9919 = vadd.f32 %v8827, %v9439
    %v9920 = vadd.f32 %v8829, %v9441
    %v9921 = vadd.f32 %v8969, %v9581
    %v9922 = vadd.f32 %v8971, %v9583
    %v9923 = vadd.f32 %v9111, %v9723
    %v9924 = vadd.f32 %v9113, %v9725
    %v9925 = vadd.f32 %v9253, %v9865
    %v9926 = vadd.f32 %v9255, %v9867
    %v9927 = vmax.f32 %v8067, %v9871
    %v9928 = vmax.f32 %v8068, %v9872
    %v9929 = vmax.f32 %v8069, %v9873
    %v9930 = vmax.f32 %v8070, %v9874
    %v9931 = vmax.f32 %v8071, %v9875
    %v9932 = vmax.f32 %v8072, %v9876
    %v9933 = vmax.f32 %v8073, %v9877
    %v9934 = vmax.f32 %v8074, %v9878
    %v9935 = vmax.f32 %v8075, %v9879
    %v9936 = vmax.f32 %v8076, %v9880
    %v9937 = vmax.f32 %v8077, %v9881
    %v9938 = vmax.f32 %v8078, %v9882
    %v9939 = vmax.f32 %v8079, %v9883
    %v9940 = vmax.f32 %v8080, %v9884
    %v9941 = vmax.f32 %v8081, %v9885
    %v9942 = vmax.f32 %v8082, %v9886
    %v9943 = vmax.f32 %v8083, %v9887
    %v9944 = vmax.f32 %v8084, %v9888
    %v9945 = vmax.f32 %v8085, %v9889
    %v9946 = vmax.f32 %v8086, %v9890
    %v9947 = vmax.f32 %v8087, %v9891
    %v9948 = vmax.f32 %v8088, %v9892
    %v9949 = vmax.f32 %v8089, %v9893
    %v9950 = vmax.f32 %v8090, %v9894
    %v9951 = vmax.f32 %v8091, %v9895
    %v9952 = vmax.f32 %v8092, %v9896
    %v9953 = vmax.f32 %v8093, %v9897
    %v9954 = vmax.f32 %v8094, %v9898
    %v9955 = vmax.f32 %v8095, %v9899
    %v9956 = vmax.f32 %v8096, %v9900
    %v9957 = vmax.f32 %v8097, %v9901
    %v9958 = vmax.f32 %v8098, %v9902
    %v9959 = vmax.f32 %v8099, %v9903
    %v9960 = vmax.f32 %v8100, %v9904
    %v9961 = vmax.f32 %v8101, %v9905
    %v9962 = vmax.f32 %v8102, %v9906
    %v9963 = vmax.f32 %v8103, %v9907
    %v9964 = vmax.f32 %v8104, %v9908
    %v9965 = vmax.f32 %v8105, %v9909
    %v9966 = vmax.f32 %v8106, %v9910
    %v9967 = vmax.f32 %v8107, %v9911
    %v9968 = vmax.f32 %v8108, %v9912
    %v9969 = vmax.f32 %v8109, %v9913
    %v9970 = vmax.f32 %v8110, %v9914
    %v9971 = vmax.f32 %v8111, %v9915
    %v9972 = vmax.f32 %v8112, %v9916
    %v9973 = vmax.f32 %v8113, %v9917
    %v9974 = vmax.f32 %v8114, %v9918
    %v9975 = vmax.f32 %v8115, %v9919
    %v9976 = vmax.f32 %v8116, %v9920
    %v9977 = vmax.f32 %v8117, %v9921
    %v9978 = vmax.f32 %v8118, %v9922
    %v9979 = vmax.f32 %v8119, %v9923
    %v9980 = vmax.f32 %v8120, %v9924
    %v9981 = vmax.f32 %v8121, %v9925
    %v9982 = vmax.f32 %v8122, %v9926
    %v9983 = vmax.f32 %v9927, %v9931
    %v9984 = vmax.f32 %v9928, %v9932
    %v9985 = vmax.f32 %v9929, %v9933
    %v9986 = vmax.f32 %v9930, %v9934
    %v9987 = vmax.f32 %v9935, %v9939
    %v9988 = vmax.f32 %v9936, %v9940
    %v9989 = vmax.f32 %v9937, %v9941
    %v9990 = vmax.f32 %v9938, %v9942
    %v9991 = vmax.f32 %v9943, %v9947
    %v9992 = vmax.f32 %v9944, %v9948
    %v9993 = vmax.f32 %v9945, %v9949
    %v9994 = vmax.f32 %v9946, %v9950
    %v9995 = vmax.f32 %v9951, %v9955
    %v9996 = vmax.f32 %v9952, %v9956
    %v9997 = vmax.f32 %v9953, %v9957
    %v9998 = vmax.f32 %v9954, %v9958
    %v9999 = vmax.f32 %v9959, %v9963
    %v10000 = vmax.f32 %v9960, %v9964
    %v10001 = vmax.f32 %v9961, %v9965
    %v10002 = vmax.f32 %v9962, %v9966
    %v10003 = vmax.f32 %v9967, %v9971
    %v10004 = vmax.f32 %v9968, %v9972
    %v10005 = vmax.f32 %v9969, %v9973
    %v10006 = vmax.f32 %v9970, %v9974
    %v10007 = vmax.f32 %v9975, %v9979
    %v10008 = vmax.f32 %v9976, %v9980
    %v10009 = vmax.f32 %v9977, %v9981
    %v10010 = vmax.f32 %v9978, %v9982
    %v10011 = vld [vmem:[#allocation8] sm:$0xf]
    %v10013 = vlaneseq
    %v10014 = vshrl.u32 %v10013, 7
    %v10015 = vsub.s32 0, %v10014
    %v10016 = vrot.slane %v10011, %v10015
    %v10017 = vlaneseq
    %v10018 = vshrl.u32 %v10017, 7
    %v10019 = vsub.s32 1, %v10018
    %v10020 = vrot.slane %v10011, %v10019
    %v10021 = vlaneseq
    %v10022 = vshrl.u32 %v10021, 7
    %v10023 = vsub.s32 2, %v10022
    %v10024 = vrot.slane %v10011, %v10023
    %v10025 = vlaneseq
    %v10026 = vshrl.u32 %v10025, 7
    %v10027 = vsub.s32 3, %v10026
    %v10028 = vrot.slane %v10011, %v10027
    %v10033 = vadd.f32 %v9983, %v10016
    %v10034 = vadd.f32 %v9984, %v10020
    %v10035 = vadd.f32 %v9985, %v10024
    %v10036 = vadd.f32 %v9986, %v10028
    %v10037 = vadd.f32 %v9987, %v10016
    %v10038 = vadd.f32 %v9988, %v10020
    %v10039 = vadd.f32 %v9989, %v10024
    %v10040 = vadd.f32 %v9990, %v10028
    %v10041 = vadd.f32 %v9991, %v10016
    %v10042 = vadd.f32 %v9992, %v10020
    %v10043 = vadd.f32 %v9993, %v10024
    %v10044 = vadd.f32 %v9994, %v10028
    %v10045 = vadd.f32 %v9995, %v10016
    %v10046 = vadd.f32 %v9996, %v10020
    %v10047 = vadd.f32 %v9997, %v10024
    %v10048 = vadd.f32 %v9998, %v10028
    %v10049 = vadd.f32 %v9999, %v10016
    %v10050 = vadd.f32 %v10000, %v10020
    %v10051 = vadd.f32 %v10001, %v10024
    %v10052 = vadd.f32 %v10002, %v10028
    %v10053 = vadd.f32 %v10003, %v10016
    %v10054 = vadd.f32 %v10004, %v10020
    %v10055 = vadd.f32 %v10005, %v10024
    %v10056 = vadd.f32 %v10006, %v10028
    %v10057 = vadd.f32 %v10007, %v10016
    %v10058 = vadd.f32 %v10008, %v10020
    %v10059 = vadd.f32 %v10009, %v10024
    %v10060 = vadd.f32 %v10010, %v10028
    %v10061 = vmax.f32 %v10033, 0.0
    %v10062 = vmax.f32 %v10034, 0.0
    %v10063 = vmax.f32 %v10035, 0.0
    %v10064 = vmax.f32 %v10036, 0.0
    %v10065 = vmax.f32 %v10037, 0.0
    %v10066 = vmax.f32 %v10038, 0.0
    %v10067 = vmax.f32 %v10039, 0.0
    %v10068 = vmax.f32 %v10040, 0.0
    %v10069 = vmax.f32 %v10041, 0.0
    %v10070 = vmax.f32 %v10042, 0.0
    %v10071 = vmax.f32 %v10043, 0.0
    %v10072 = vmax.f32 %v10044, 0.0
    %v10073 = vmax.f32 %v10045, 0.0
    %v10074 = vmax.f32 %v10046, 0.0
    %v10075 = vmax.f32 %v10047, 0.0
    %v10076 = vmax.f32 %v10048, 0.0
    %v10077 = vmax.f32 %v10049, 0.0
    %v10078 = vmax.f32 %v10050, 0.0
    %v10079 = vmax.f32 %v10051, 0.0
    %v10080 = vmax.f32 %v10052, 0.0
    %v10081 = vmax.f32 %v10053, 0.0
    %v10082 = vmax.f32 %v10054, 0.0
    %v10083 = vmax.f32 %v10055, 0.0
    %v10084 = vmax.f32 %v10056, 0.0
    %v10085 = vmax.f32 %v10057, 0.0
    %v10086 = vmax.f32 %v10058, 0.0
    %v10087 = vmax.f32 %v10059, 0.0
    %v10088 = vmax.f32 %v10060, 0.0
    %v10089 = vpack.c.bf16 %v10061, %v10061
    %v10090 = vpack.c.bf16 %v10062, %v10062
    %v10091 = vpack.c.bf16 %v10063, %v10063
    %v10092 = vpack.c.bf16 %v10064, %v10064
    %v10093 = vld [vmem:[#allocation10] sm:$0xff]
    %v10094 = vld [vmem:[#allocation10 + $0x8] sm:$0xff]
    %v10095 = vld [vmem:[#allocation10 + $0x10] sm:$0xff]
    %v10096 = vld [vmem:[#allocation10 + $0x18] sm:$0xff]
    %v10097 = vld [vmem:[#allocation10 + $0x20] sm:$0xff]
    %v10098 = vld [vmem:[#allocation10 + $0x28] sm:$0xff]
    %v10099 = vld [vmem:[#allocation10 + $0x30] sm:$0xff]
    %v10100 = vld [vmem:[#allocation10 + $0x38] sm:$0xff]
    %v10101 = vld [vmem:[#allocation10 + $0x40] sm:$0xff]
    %v10102 = vld [vmem:[#allocation10 + $0x48] sm:$0xff]
    %v10103 = vld [vmem:[#allocation10 + $0x50] sm:$0xff]
    %v10104 = vld [vmem:[#allocation10 + $0x58] sm:$0xff]
    %v10105 = vld [vmem:[#allocation10 + $0x60] sm:$0xff]
    %v10106 = vld [vmem:[#allocation10 + $0x68] sm:$0xff]
    %v10107 = vld [vmem:[#allocation10 + $0x70] sm:$0xff]
    %v10108 = vld [vmem:[#allocation10 + $0x78] sm:$0xff]
    %v10109 = vld [vmem:[#allocation10 + $0x80] sm:$0xff]
    %v10110 = vld [vmem:[#allocation10 + $0x88] sm:$0xff]
    %v10111 = vld [vmem:[#allocation10 + $0x90] sm:$0xff]
    %v10112 = vld [vmem:[#allocation10 + $0x98] sm:$0xff]
    %v10113 = vld [vmem:[#allocation10 + $0xa0] sm:$0xff]
    %v10114 = vld [vmem:[#allocation10 + $0xa8] sm:$0xff]
    %v10115 = vld [vmem:[#allocation10 + $0xb0] sm:$0xff]
    %v10116 = vld [vmem:[#allocation10 + $0xb8] sm:$0xff]
    %v10117 = vld [vmem:[#allocation10 + $0xc0] sm:$0xff]
    %v10118 = vld [vmem:[#allocation10 + $0xc8] sm:$0xff]
    %v10119 = vld [vmem:[#allocation10 + $0xd0] sm:$0xff]
    %v10120 = vld [vmem:[#allocation10 + $0xd8] sm:$0xff]
    %v10121 = vld [vmem:[#allocation10 + $0xe0] sm:$0xff]
    %v10122 = vld [vmem:[#allocation10 + $0xe8] sm:$0xff]
    %v10123 = vld [vmem:[#allocation10 + $0xf0] sm:$0xff]
    %v10124 = vld [vmem:[#allocation10 + $0xf8] sm:$0xff]
    %v10125 = vld [vmem:[#allocation10 + $0x100] sm:$0xff]
    %v10126 = vld [vmem:[#allocation10 + $0x108] sm:$0xff]
    %v10127 = vld [vmem:[#allocation10 + $0x110] sm:$0xff]
    %v10128 = vld [vmem:[#allocation10 + $0x118] sm:$0xff]
    %v10129 = vld [vmem:[#allocation10 + $0x120] sm:$0xff]
    %v10130 = vld [vmem:[#allocation10 + $0x128] sm:$0xff]
    %v10131 = vld [vmem:[#allocation10 + $0x130] sm:$0xff]
    %v10132 = vld [vmem:[#allocation10 + $0x138] sm:$0xff]
    %v10133 = vld [vmem:[#allocation10 + $0x140] sm:$0xff]
    %v10134 = vld [vmem:[#allocation10 + $0x148] sm:$0xff]
    %v10135 = vld [vmem:[#allocation10 + $0x150] sm:$0xff]
    %v10136 = vld [vmem:[#allocation10 + $0x158] sm:$0xff]
    %v10137 = vld [vmem:[#allocation10 + $0x160] sm:$0xff]
    %v10138 = vld [vmem:[#allocation10 + $0x168] sm:$0xff]
    %v10139 = vld [vmem:[#allocation10 + $0x170] sm:$0xff]
    %v10140 = vld [vmem:[#allocation10 + $0x178] sm:$0xff]
    %v10141 = vld [vmem:[#allocation10 + $0x180] sm:$0xff]
    %v10142 = vld [vmem:[#allocation10 + $0x188] sm:$0xff]
    %v10143 = vld [vmem:[#allocation10 + $0x190] sm:$0xff]
    %v10144 = vld [vmem:[#allocation10 + $0x198] sm:$0xff]
    %v10145 = vld [vmem:[#allocation10 + $0x1a0] sm:$0xff]
    %v10146 = vld [vmem:[#allocation10 + $0x1a8] sm:$0xff]
    %v10147 = vld [vmem:[#allocation10 + $0x1b0] sm:$0xff]
    %v10148 = vld [vmem:[#allocation10 + $0x1b8] sm:$0xff]
    %v10149 = vld [vmem:[#allocation10 + $0x1c0] sm:$0xff]
    %v10150 = vld [vmem:[#allocation10 + $0x1c8] sm:$0xff]
    %v10151 = vld [vmem:[#allocation10 + $0x1d0] sm:$0xff]
    %v10152 = vld [vmem:[#allocation10 + $0x1d8] sm:$0xff]
    %v10153 = vld [vmem:[#allocation10 + $0x1e0] sm:$0xff]
    %v10154 = vld [vmem:[#allocation10 + $0x1e8] sm:$0xff]
    %v10155 = vld [vmem:[#allocation10 + $0x1f0] sm:$0xff]
    %v10156 = vld [vmem:[#allocation10 + $0x1f8] sm:$0xff]
    %v10157 = vpack.c.bf16 %v10065, %v10065
    %v10158 = vpack.c.bf16 %v10066, %v10066
    %v10159 = vpack.c.bf16 %v10067, %v10067
    %v10160 = vpack.c.bf16 %v10068, %v10068
    %s10161 = scalar_lea.vmem [#allocation10], 512
    %v10162 = vld [vmem:[%s10161] sm:$0xff]
    %v10163 = vld [vmem:[%s10161 + $0x8] sm:$0xff]
    %v10164 = vld [vmem:[%s10161 + $0x10] sm:$0xff]
    %v10165 = vld [vmem:[%s10161 + $0x18] sm:$0xff]
    %v10166 = vld [vmem:[%s10161 + $0x20] sm:$0xff]
    %v10167 = vld [vmem:[%s10161 + $0x28] sm:$0xff]
    %v10168 = vld [vmem:[%s10161 + $0x30] sm:$0xff]
    %v10169 = vld [vmem:[%s10161 + $0x38] sm:$0xff]
    %v10170 = vld [vmem:[%s10161 + $0x40] sm:$0xff]
    %v10171 = vld [vmem:[%s10161 + $0x48] sm:$0xff]
    %v10172 = vld [vmem:[%s10161 + $0x50] sm:$0xff]
    %v10173 = vld [vmem:[%s10161 + $0x58] sm:$0xff]
    %v10174 = vld [vmem:[%s10161 + $0x60] sm:$0xff]
    %v10175 = vld [vmem:[%s10161 + $0x68] sm:$0xff]
    %v10176 = vld [vmem:[%s10161 + $0x70] sm:$0xff]
    %v10177 = vld [vmem:[%s10161 + $0x78] sm:$0xff]
    %v10178 = vld [vmem:[%s10161 + $0x80] sm:$0xff]
    %v10179 = vld [vmem:[%s10161 + $0x88] sm:$0xff]
    %v10180 = vld [vmem:[%s10161 + $0x90] sm:$0xff]
    %v10181 = vld [vmem:[%s10161 + $0x98] sm:$0xff]
    %v10182 = vld [vmem:[%s10161 + $0xa0] sm:$0xff]
    %v10183 = vld [vmem:[%s10161 + $0xa8] sm:$0xff]
    %v10184 = vld [vmem:[%s10161 + $0xb0] sm:$0xff]
    %v10185 = vld [vmem:[%s10161 + $0xb8] sm:$0xff]
    %v10186 = vld [vmem:[%s10161 + $0xc0] sm:$0xff]
    %v10187 = vld [vmem:[%s10161 + $0xc8] sm:$0xff]
    %v10188 = vld [vmem:[%s10161 + $0xd0] sm:$0xff]
    %v10189 = vld [vmem:[%s10161 + $0xd8] sm:$0xff]
    %v10190 = vld [vmem:[%s10161 + $0xe0] sm:$0xff]
    %v10191 = vld [vmem:[%s10161 + $0xe8] sm:$0xff]
    %v10192 = vld [vmem:[%s10161 + $0xf0] sm:$0xff]
    %v10193 = vld [vmem:[%s10161 + $0xf8] sm:$0xff]
    %v10194 = vld [vmem:[%s10161 + $0x100] sm:$0xff]
    %v10195 = vld [vmem:[%s10161 + $0x108] sm:$0xff]
    %v10196 = vld [vmem:[%s10161 + $0x110] sm:$0xff]
    %v10197 = vld [vmem:[%s10161 + $0x118] sm:$0xff]
    %v10198 = vld [vmem:[%s10161 + $0x120] sm:$0xff]
    %v10199 = vld [vmem:[%s10161 + $0x128] sm:$0xff]
    %v10200 = vld [vmem:[%s10161 + $0x130] sm:$0xff]
    %v10201 = vld [vmem:[%s10161 + $0x138] sm:$0xff]
    %v10202 = vld [vmem:[%s10161 + $0x140] sm:$0xff]
    %v10203 = vld [vmem:[%s10161 + $0x148] sm:$0xff]
    %v10204 = vld [vmem:[%s10161 + $0x150] sm:$0xff]
    %v10205 = vld [vmem:[%s10161 + $0x158] sm:$0xff]
    %v10206 = vld [vmem:[%s10161 + $0x160] sm:$0xff]
    %v10207 = vld [vmem:[%s10161 + $0x168] sm:$0xff]
    %v10208 = vld [vmem:[%s10161 + $0x170] sm:$0xff]
    %v10209 = vld [vmem:[%s10161 + $0x178] sm:$0xff]
    %v10210 = vld [vmem:[%s10161 + $0x180] sm:$0xff]
    %v10211 = vld [vmem:[%s10161 + $0x188] sm:$0xff]
    %v10212 = vld [vmem:[%s10161 + $0x190] sm:$0xff]
    %v10213 = vld [vmem:[%s10161 + $0x198] sm:$0xff]
    %v10214 = vld [vmem:[%s10161 + $0x1a0] sm:$0xff]
    %v10215 = vld [vmem:[%s10161 + $0x1a8] sm:$0xff]
    %v10216 = vld [vmem:[%s10161 + $0x1b0] sm:$0xff]
    %v10217 = vld [vmem:[%s10161 + $0x1b8] sm:$0xff]
    %v10218 = vld [vmem:[%s10161 + $0x1c0] sm:$0xff]
    %v10219 = vld [vmem:[%s10161 + $0x1c8] sm:$0xff]
    %v10220 = vld [vmem:[%s10161 + $0x1d0] sm:$0xff]
    %v10221 = vld [vmem:[%s10161 + $0x1d8] sm:$0xff]
    %v10222 = vld [vmem:[%s10161 + $0x1e0] sm:$0xff]
    %v10223 = vld [vmem:[%s10161 + $0x1e8] sm:$0xff]
    %v10224 = vld [vmem:[%s10161 + $0x1f0] sm:$0xff]
    %v10225 = vld [vmem:[%s10161 + $0x1f8] sm:$0xff]
    %v10290 = vunpack.c.l.b16 %v10162
    %v10291 = vunpack.c.h.b16 %v10162
    %v10292 = vunpack.c.l.b16 %v10163
    %v10293 = vunpack.c.h.b16 %v10163
    %v10294 = vunpack.c.l.b16 %v10164
    %v10295 = vunpack.c.h.b16 %v10164
    %v10296 = vunpack.c.l.b16 %v10165
    %v10297 = vunpack.c.h.b16 %v10165
    %v10298 = vunpack.c.l.b16 %v10166
    %v10299 = vunpack.c.h.b16 %v10166
    %v10300 = vunpack.c.l.b16 %v10167
    %v10301 = vunpack.c.h.b16 %v10167
    %v10302 = vunpack.c.l.b16 %v10168
    %v10303 = vunpack.c.h.b16 %v10168
    %v10304 = vunpack.c.l.b16 %v10169
    %v10305 = vunpack.c.h.b16 %v10169
    %v10306 = vunpack.c.l.b16 %v10170
    %v10307 = vunpack.c.h.b16 %v10170
    %v10308 = vunpack.c.l.b16 %v10171
    %v10309 = vunpack.c.h.b16 %v10171
    %v10310 = vunpack.c.l.b16 %v10172
    %v10311 = vunpack.c.h.b16 %v10172
    %v10312 = vunpack.c.l.b16 %v10173
    %v10313 = vunpack.c.h.b16 %v10173
    %v10314 = vunpack.c.l.b16 %v10174
    %v10315 = vunpack.c.h.b16 %v10174
    %v10316 = vunpack.c.l.b16 %v10175
    %v10317 = vunpack.c.h.b16 %v10175
    %v10318 = vunpack.c.l.b16 %v10176
    %v10319 = vunpack.c.h.b16 %v10176
    %v10320 = vunpack.c.l.b16 %v10177
    %v10321 = vunpack.c.h.b16 %v10177
    %v10322 = vunpack.c.l.b16 %v10178
    %v10323 = vunpack.c.h.b16 %v10178
    %v10324 = vunpack.c.l.b16 %v10179
    %v10325 = vunpack.c.h.b16 %v10179
    %v10326 = vunpack.c.l.b16 %v10180
    %v10327 = vunpack.c.h.b16 %v10180
    %v10328 = vunpack.c.l.b16 %v10181
    %v10329 = vunpack.c.h.b16 %v10181
    %v10330 = vunpack.c.l.b16 %v10182
    %v10331 = vunpack.c.h.b16 %v10182
    %v10332 = vunpack.c.l.b16 %v10183
    %v10333 = vunpack.c.h.b16 %v10183
    %v10334 = vunpack.c.l.b16 %v10184
    %v10335 = vunpack.c.h.b16 %v10184
    %v10336 = vunpack.c.l.b16 %v10185
    %v10337 = vunpack.c.h.b16 %v10185
    %v10338 = vunpack.c.l.b16 %v10186
    %v10339 = vunpack.c.h.b16 %v10186
    %v10340 = vunpack.c.l.b16 %v10187
    %v10341 = vunpack.c.h.b16 %v10187
    %v10342 = vunpack.c.l.b16 %v10188
    %v10343 = vunpack.c.h.b16 %v10188
    %v10344 = vunpack.c.l.b16 %v10189
    %v10345 = vunpack.c.h.b16 %v10189
    %v10346 = vunpack.c.l.b16 %v10190
    %v10347 = vunpack.c.h.b16 %v10190
    %v10348 = vunpack.c.l.b16 %v10191
    %v10349 = vunpack.c.h.b16 %v10191
    %v10350 = vunpack.c.l.b16 %v10192
    %v10351 = vunpack.c.h.b16 %v10192
    %v10352 = vunpack.c.l.b16 %v10193
    %v10353 = vunpack.c.h.b16 %v10193
    %v10354 = vunpack.c.l.b16 %v10194
    %v10355 = vunpack.c.h.b16 %v10194
    %v10356 = vunpack.c.l.b16 %v10195
    %v10357 = vunpack.c.h.b16 %v10195
    %v10358 = vunpack.c.l.b16 %v10196
    %v10359 = vunpack.c.h.b16 %v10196
    %v10360 = vunpack.c.l.b16 %v10197
    %v10361 = vunpack.c.h.b16 %v10197
    %v10362 = vunpack.c.l.b16 %v10198
    %v10363 = vunpack.c.h.b16 %v10198
    %v10364 = vunpack.c.l.b16 %v10199
    %v10365 = vunpack.c.h.b16 %v10199
    %v10366 = vunpack.c.l.b16 %v10200
    %v10367 = vunpack.c.h.b16 %v10200
    %v10368 = vunpack.c.l.b16 %v10201
    %v10369 = vunpack.c.h.b16 %v10201
    %v10370 = vunpack.c.l.b16 %v10202
    %v10371 = vunpack.c.h.b16 %v10202
    %v10372 = vunpack.c.l.b16 %v10203
    %v10373 = vunpack.c.h.b16 %v10203
    %v10374 = vunpack.c.l.b16 %v10204
    %v10375 = vunpack.c.h.b16 %v10204
    %v10376 = vunpack.c.l.b16 %v10205
    %v10377 = vunpack.c.h.b16 %v10205
    %v10378 = vunpack.c.l.b16 %v10206
    %v10379 = vunpack.c.h.b16 %v10206
    %v10380 = vunpack.c.l.b16 %v10207
    %v10381 = vunpack.c.h.b16 %v10207
    %v10382 = vunpack.c.l.b16 %v10208
    %v10383 = vunpack.c.h.b16 %v10208
    %v10384 = vunpack.c.l.b16 %v10209
    %v10385 = vunpack.c.h.b16 %v10209
    %v10386 = vunpack.c.l.b16 %v10210
    %v10387 = vunpack.c.h.b16 %v10210
    %v10388 = vunpack.c.l.b16 %v10211
    %v10389 = vunpack.c.h.b16 %v10211
    %v10390 = vunpack.c.l.b16 %v10212
    %v10391 = vunpack.c.h.b16 %v10212
    %v10392 = vunpack.c.l.b16 %v10213
    %v10393 = vunpack.c.h.b16 %v10213
    %v10394 = vunpack.c.l.b16 %v10214
    %v10395 = vunpack.c.h.b16 %v10214
    %v10396 = vunpack.c.l.b16 %v10215
    %v10397 = vunpack.c.h.b16 %v10215
    %v10398 = vunpack.c.l.b16 %v10216
    %v10399 = vunpack.c.h.b16 %v10216
    %v10400 = vunpack.c.l.b16 %v10217
    %v10401 = vunpack.c.h.b16 %v10217
    %v10402 = vunpack.c.l.b16 %v10218
    %v10403 = vunpack.c.h.b16 %v10218
    %v10404 = vunpack.c.l.b16 %v10219
    %v10405 = vunpack.c.h.b16 %v10219
    %v10406 = vunpack.c.l.b16 %v10220
    %v10407 = vunpack.c.h.b16 %v10220
    %v10408 = vunpack.c.l.b16 %v10221
    %v10409 = vunpack.c.h.b16 %v10221
    %v10410 = vunpack.c.l.b16 %v10222
    %v10411 = vunpack.c.h.b16 %v10222
    %v10412 = vunpack.c.l.b16 %v10223
    %v10413 = vunpack.c.h.b16 %v10223
    %v10414 = vunpack.c.l.b16 %v10224
    %v10415 = vunpack.c.h.b16 %v10224
    %v10416 = vunpack.c.l.b16 %v10225
    %v10417 = vunpack.c.h.b16 %v10225
    %v10418 = vpack.c.b16 %v10292, %v10290
    %v10419 = vpack.c.b16 %v10293, %v10291
    %v10420 = vpack.c.b16 %v10296, %v10294
    %v10421 = vpack.c.b16 %v10297, %v10295
    %v10422 = vpack.c.b16 %v10300, %v10298
    %v10423 = vpack.c.b16 %v10301, %v10299
    %v10424 = vpack.c.b16 %v10304, %v10302
    %v10425 = vpack.c.b16 %v10305, %v10303
    %v10426 = vpack.c.b16 %v10308, %v10306
    %v10427 = vpack.c.b16 %v10309, %v10307
    %v10428 = vpack.c.b16 %v10312, %v10310
    %v10429 = vpack.c.b16 %v10313, %v10311
    %v10430 = vpack.c.b16 %v10316, %v10314
    %v10431 = vpack.c.b16 %v10317, %v10315
    %v10432 = vpack.c.b16 %v10320, %v10318
    %v10433 = vpack.c.b16 %v10321, %v10319
    %v10434 = vpack.c.b16 %v10324, %v10322
    %v10435 = vpack.c.b16 %v10325, %v10323
    %v10436 = vpack.c.b16 %v10328, %v10326
    %v10437 = vpack.c.b16 %v10329, %v10327
    %v10438 = vpack.c.b16 %v10332, %v10330
    %v10439 = vpack.c.b16 %v10333, %v10331
    %v10440 = vpack.c.b16 %v10336, %v10334
    %v10441 = vpack.c.b16 %v10337, %v10335
    %v10442 = vpack.c.b16 %v10340, %v10338
    %v10443 = vpack.c.b16 %v10341, %v10339
    %v10444 = vpack.c.b16 %v10344, %v10342
    %v10445 = vpack.c.b16 %v10345, %v10343
    %v10446 = vpack.c.b16 %v10348, %v10346
    %v10447 = vpack.c.b16 %v10349, %v10347
    %v10448 = vpack.c.b16 %v10352, %v10350
    %v10449 = vpack.c.b16 %v10353, %v10351
    %v10450 = vpack.c.b16 %v10356, %v10354
    %v10451 = vpack.c.b16 %v10357, %v10355
    %v10452 = vpack.c.b16 %v10360, %v10358
    %v10453 = vpack.c.b16 %v10361, %v10359
    %v10454 = vpack.c.b16 %v10364, %v10362
    %v10455 = vpack.c.b16 %v10365, %v10363
    %v10456 = vpack.c.b16 %v10368, %v10366
    %v10457 = vpack.c.b16 %v10369, %v10367
    %v10458 = vpack.c.b16 %v10372, %v10370
    %v10459 = vpack.c.b16 %v10373, %v10371
    %v10460 = vpack.c.b16 %v10376, %v10374
    %v10461 = vpack.c.b16 %v10377, %v10375
    %v10462 = vpack.c.b16 %v10380, %v10378
    %v10463 = vpack.c.b16 %v10381, %v10379
    %v10464 = vpack.c.b16 %v10384, %v10382
    %v10465 = vpack.c.b16 %v10385, %v10383
    %v10466 = vpack.c.b16 %v10388, %v10386
    %v10467 = vpack.c.b16 %v10389, %v10387
    %v10468 = vpack.c.b16 %v10392, %v10390
    %v10469 = vpack.c.b16 %v10393, %v10391
    %v10470 = vpack.c.b16 %v10396, %v10394
    %v10471 = vpack.c.b16 %v10397, %v10395
    %v10472 = vpack.c.b16 %v10400, %v10398
    %v10473 = vpack.c.b16 %v10401, %v10399
    %v10474 = vpack.c.b16 %v10404, %v10402
    %v10475 = vpack.c.b16 %v10405, %v10403
    %v10476 = vpack.c.b16 %v10408, %v10406
    %v10477 = vpack.c.b16 %v10409, %v10407
    %v10478 = vpack.c.b16 %v10412, %v10410
    %v10479 = vpack.c.b16 %v10413, %v10411
    %v10480 = vpack.c.b16 %v10416, %v10414
    %v10481 = vpack.c.b16 %v10417, %v10415
    %10546 = vmatprep.subr.bf16.mxu0 %v10419
    %10547 = vmatpush1.bf16.msra.mxu0 %v10418
    %10548 = vmatprep.subr.bf16.mxu0 %v10421
    %10549 = vmatpush1.bf16.msra.mxu0 %v10420
    %10550 = vmatprep.subr.bf16.mxu0 %v10423
    %10551 = vmatpush1.bf16.msra.mxu0 %v10422
    %10552 = vmatprep.subr.bf16.mxu0 %v10425
    %10553 = vmatpush1.bf16.msra.mxu0 %v10424
    %10554 = vmatprep.subr.bf16.mxu0 %v10427
    %10555 = vmatpush1.bf16.msra.mxu0 %v10426
    %10556 = vmatprep.subr.bf16.mxu0 %v10429
    %10557 = vmatpush1.bf16.msra.mxu0 %v10428
    %10558 = vmatprep.subr.bf16.mxu0 %v10431
    %10559 = vmatpush1.bf16.msra.mxu0 %v10430
    %10560 = vmatprep.subr.bf16.mxu0 %v10433
    %10561 = vmatpush1.bf16.msra.mxu0 %v10432
    %10562 = vmatprep.subr.bf16.mxu0 %v10435
    %10563 = vmatpush1.bf16.msra.mxu0 %v10434
    %10564 = vmatprep.subr.bf16.mxu0 %v10437
    %10565 = vmatpush1.bf16.msra.mxu0 %v10436
    %10566 = vmatprep.subr.bf16.mxu0 %v10439
    %10567 = vmatpush1.bf16.msra.mxu0 %v10438
    %10568 = vmatprep.subr.bf16.mxu0 %v10441
    %10569 = vmatpush1.bf16.msra.mxu0 %v10440
    %10570 = vmatprep.subr.bf16.mxu0 %v10443
    %10571 = vmatpush1.bf16.msra.mxu0 %v10442
    %10572 = vmatprep.subr.bf16.mxu0 %v10445
    %10573 = vmatpush1.bf16.msra.mxu0 %v10444
    %10574 = vmatprep.subr.bf16.mxu0 %v10447
    %10575 = vmatpush1.bf16.msra.mxu0 %v10446
    %10576 = vmatprep.subr.bf16.mxu0 %v10449
    %10577 = vmatpush1.bf16.msra.mxu0 %v10448
    %10578 = vmatprep.mubr.bf16.mxu0 %v10158
    %10579 = vmatmul.mubr.bf16.gmra.mrb[0].mxu0 %v10157
    %v10580 = vpop.f32.mrb[0].mxu0
    %v10581 = vadd.f32 0.0, %v10580
    %v10582 = vpop.f32.mrb[0].mxu0
    %v10583 = vadd.f32 0.0, %v10582
    %v10584 = vpop.f32.mrb[0].mxu0
    %v10585 = vpop.f32.mrb[0].mxu0
    %10586 = vdwg.mxu0
    %10587 = vmatprep.subr.bf16.mxu0 %v10451
    %10588 = vmatpush1.bf16.msra.mxu0 %v10450
    %10589 = vmatprep.subr.bf16.mxu0 %v10453
    %10590 = vmatpush1.bf16.msra.mxu0 %v10452
    %10591 = vmatprep.subr.bf16.mxu0 %v10455
    %10592 = vmatpush1.bf16.msra.mxu0 %v10454
    %10593 = vmatprep.subr.bf16.mxu0 %v10457
    %10594 = vmatpush1.bf16.msra.mxu0 %v10456
    %10595 = vmatprep.subr.bf16.mxu0 %v10459
    %10596 = vmatpush1.bf16.msra.mxu0 %v10458
    %10597 = vmatprep.subr.bf16.mxu0 %v10461
    %10598 = vmatpush1.bf16.msra.mxu0 %v10460
    %10599 = vmatprep.subr.bf16.mxu0 %v10463
    %10600 = vmatpush1.bf16.msra.mxu0 %v10462
    %10601 = vmatprep.subr.bf16.mxu0 %v10465
    %10602 = vmatpush1.bf16.msra.mxu0 %v10464
    %10603 = vmatprep.subr.bf16.mxu0 %v10467
    %10604 = vmatpush1.bf16.msra.mxu0 %v10466
    %10605 = vmatprep.subr.bf16.mxu0 %v10469
    %10606 = vmatpush1.bf16.msra.mxu0 %v10468
    %10607 = vmatprep.subr.bf16.mxu0 %v10471
    %10608 = vmatpush1.bf16.msra.mxu0 %v10470
    %10609 = vmatprep.subr.bf16.mxu0 %v10473
    %10610 = vmatpush1.bf16.msra.mxu0 %v10472
    %10611 = vmatprep.subr.bf16.mxu0 %v10475
    %10612 = vmatpush1.bf16.msra.mxu0 %v10474
    %10613 = vmatprep.subr.bf16.mxu0 %v10477
    %10614 = vmatpush1.bf16.msra.mxu0 %v10476
    %10615 = vmatprep.subr.bf16.mxu0 %v10479
    %10616 = vmatpush1.bf16.msra.mxu0 %v10478
    %10617 = vmatprep.subr.bf16.mxu0 %v10481
    %10618 = vmatpush1.bf16.msra.mxu0 %v10480
    %10619 = vmatprep.mubr.bf16.mxu0 %v10160
    %10620 = vmatmul.mubr.bf16.gmra.mrb[0].mxu0 %v10159
    %v10621 = vpop.f32.mrb[0].mxu0
    %v10622 = vadd.f32 %v10581, %v10621
    %v10623 = vpop.f32.mrb[0].mxu0
    %v10624 = vadd.f32 %v10583, %v10623
    %v10625 = vpop.f32.mrb[0].mxu0
    %v10626 = vpop.f32.mrb[0].mxu0
    %10627 = vdwg.mxu0
    %v10692 = vunpack.c.l.b16 %v10093
    %v10693 = vunpack.c.h.b16 %v10093
    %v10694 = vunpack.c.l.b16 %v10094
    %v10695 = vunpack.c.h.b16 %v10094
    %v10696 = vunpack.c.l.b16 %v10095
    %v10697 = vunpack.c.h.b16 %v10095
    %v10698 = vunpack.c.l.b16 %v10096
    %v10699 = vunpack.c.h.b16 %v10096
    %v10700 = vunpack.c.l.b16 %v10097
    %v10701 = vunpack.c.h.b16 %v10097
    %v10702 = vunpack.c.l.b16 %v10098
    %v10703 = vunpack.c.h.b16 %v10098
    %v10704 = vunpack.c.l.b16 %v10099
    %v10705 = vunpack.c.h.b16 %v10099
    %v10706 = vunpack.c.l.b16 %v10100
    %v10707 = vunpack.c.h.b16 %v10100
    %v10708 = vunpack.c.l.b16 %v10101
    %v10709 = vunpack.c.h.b16 %v10101
    %v10710 = vunpack.c.l.b16 %v10102
    %v10711 = vunpack.c.h.b16 %v10102
    %v10712 = vunpack.c.l.b16 %v10103
    %v10713 = vunpack.c.h.b16 %v10103
    %v10714 = vunpack.c.l.b16 %v10104
    %v10715 = vunpack.c.h.b16 %v10104
    %v10716 = vunpack.c.l.b16 %v10105
    %v10717 = vunpack.c.h.b16 %v10105
    %v10718 = vunpack.c.l.b16 %v10106
    %v10719 = vunpack.c.h.b16 %v10106
    %v10720 = vunpack.c.l.b16 %v10107
    %v10721 = vunpack.c.h.b16 %v10107
    %v10722 = vunpack.c.l.b16 %v10108
    %v10723 = vunpack.c.h.b16 %v10108
    %v10724 = vunpack.c.l.b16 %v10109
    %v10725 = vunpack.c.h.b16 %v10109
    %v10726 = vunpack.c.l.b16 %v10110
    %v10727 = vunpack.c.h.b16 %v10110
    %v10728 = vunpack.c.l.b16 %v10111
    %v10729 = vunpack.c.h.b16 %v10111
    %v10730 = vunpack.c.l.b16 %v10112
    %v10731 = vunpack.c.h.b16 %v10112
    %v10732 = vunpack.c.l.b16 %v10113
    %v10733 = vunpack.c.h.b16 %v10113
    %v10734 = vunpack.c.l.b16 %v10114
    %v10735 = vunpack.c.h.b16 %v10114
    %v10736 = vunpack.c.l.b16 %v10115
    %v10737 = vunpack.c.h.b16 %v10115
    %v10738 = vunpack.c.l.b16 %v10116
    %v10739 = vunpack.c.h.b16 %v10116
    %v10740 = vunpack.c.l.b16 %v10117
    %v10741 = vunpack.c.h.b16 %v10117
    %v10742 = vunpack.c.l.b16 %v10118
    %v10743 = vunpack.c.h.b16 %v10118
    %v10744 = vunpack.c.l.b16 %v10119
    %v10745 = vunpack.c.h.b16 %v10119
    %v10746 = vunpack.c.l.b16 %v10120
    %v10747 = vunpack.c.h.b16 %v10120
    %v10748 = vunpack.c.l.b16 %v10121
    %v10749 = vunpack.c.h.b16 %v10121
    %v10750 = vunpack.c.l.b16 %v10122
    %v10751 = vunpack.c.h.b16 %v10122
    %v10752 = vunpack.c.l.b16 %v10123
    %v10753 = vunpack.c.h.b16 %v10123
    %v10754 = vunpack.c.l.b16 %v10124
    %v10755 = vunpack.c.h.b16 %v10124
    %v10756 = vunpack.c.l.b16 %v10125
    %v10757 = vunpack.c.h.b16 %v10125
    %v10758 = vunpack.c.l.b16 %v10126
    %v10759 = vunpack.c.h.b16 %v10126
    %v10760 = vunpack.c.l.b16 %v10127
    %v10761 = vunpack.c.h.b16 %v10127
    %v10762 = vunpack.c.l.b16 %v10128
    %v10763 = vunpack.c.h.b16 %v10128
    %v10764 = vunpack.c.l.b16 %v10129
    %v10765 = vunpack.c.h.b16 %v10129
    %v10766 = vunpack.c.l.b16 %v10130
    %v10767 = vunpack.c.h.b16 %v10130
    %v10768 = vunpack.c.l.b16 %v10131
    %v10769 = vunpack.c.h.b16 %v10131
    %v10770 = vunpack.c.l.b16 %v10132
    %v10771 = vunpack.c.h.b16 %v10132
    %v10772 = vunpack.c.l.b16 %v10133
    %v10773 = vunpack.c.h.b16 %v10133
    %v10774 = vunpack.c.l.b16 %v10134
    %v10775 = vunpack.c.h.b16 %v10134
    %v10776 = vunpack.c.l.b16 %v10135
    %v10777 = vunpack.c.h.b16 %v10135
    %v10778 = vunpack.c.l.b16 %v10136
    %v10779 = vunpack.c.h.b16 %v10136
    %v10780 = vunpack.c.l.b16 %v10137
    %v10781 = vunpack.c.h.b16 %v10137
    %v10782 = vunpack.c.l.b16 %v10138
    %v10783 = vunpack.c.h.b16 %v10138
    %v10784 = vunpack.c.l.b16 %v10139
    %v10785 = vunpack.c.h.b16 %v10139
    %v10786 = vunpack.c.l.b16 %v10140
    %v10787 = vunpack.c.h.b16 %v10140
    %v10788 = vunpack.c.l.b16 %v10141
    %v10789 = vunpack.c.h.b16 %v10141
    %v10790 = vunpack.c.l.b16 %v10142
    %v10791 = vunpack.c.h.b16 %v10142
    %v10792 = vunpack.c.l.b16 %v10143
    %v10793 = vunpack.c.h.b16 %v10143
    %v10794 = vunpack.c.l.b16 %v10144
    %v10795 = vunpack.c.h.b16 %v10144
    %v10796 = vunpack.c.l.b16 %v10145
    %v10797 = vunpack.c.h.b16 %v10145
    %v10798 = vunpack.c.l.b16 %v10146
    %v10799 = vunpack.c.h.b16 %v10146
    %v10800 = vunpack.c.l.b16 %v10147
    %v10801 = vunpack.c.h.b16 %v10147
    %v10802 = vunpack.c.l.b16 %v10148
    %v10803 = vunpack.c.h.b16 %v10148
    %v10804 = vunpack.c.l.b16 %v10149
    %v10805 = vunpack.c.h.b16 %v10149
    %v10806 = vunpack.c.l.b16 %v10150
    %v10807 = vunpack.c.h.b16 %v10150
    %v10808 = vunpack.c.l.b16 %v10151
    %v10809 = vunpack.c.h.b16 %v10151
    %v10810 = vunpack.c.l.b16 %v10152
    %v10811 = vunpack.c.h.b16 %v10152
    %v10812 = vunpack.c.l.b16 %v10153
    %v10813 = vunpack.c.h.b16 %v10153
    %v10814 = vunpack.c.l.b16 %v10154
    %v10815 = vunpack.c.h.b16 %v10154
    %v10816 = vunpack.c.l.b16 %v10155
    %v10817 = vunpack.c.h.b16 %v10155
    %v10818 = vunpack.c.l.b16 %v10156
    %v10819 = vunpack.c.h.b16 %v10156
    %v10820 = vpack.c.b16 %v10694, %v10692
    %v10821 = vpack.c.b16 %v10695, %v10693
    %v10822 = vpack.c.b16 %v10698, %v10696
    %v10823 = vpack.c.b16 %v10699, %v10697
    %v10824 = vpack.c.b16 %v10702, %v10700
    %v10825 = vpack.c.b16 %v10703, %v10701
    %v10826 = vpack.c.b16 %v10706, %v10704
    %v10827 = vpack.c.b16 %v10707, %v10705
    %v10828 = vpack.c.b16 %v10710, %v10708
    %v10829 = vpack.c.b16 %v10711, %v10709
    %v10830 = vpack.c.b16 %v10714, %v10712
    %v10831 = vpack.c.b16 %v10715, %v10713
    %v10832 = vpack.c.b16 %v10718, %v10716
    %v10833 = vpack.c.b16 %v10719, %v10717
    %v10834 = vpack.c.b16 %v10722, %v10720
    %v10835 = vpack.c.b16 %v10723, %v10721
    %v10836 = vpack.c.b16 %v10726, %v10724
    %v10837 = vpack.c.b16 %v10727, %v10725
    %v10838 = vpack.c.b16 %v10730, %v10728
    %v10839 = vpack.c.b16 %v10731, %v10729
    %v10840 = vpack.c.b16 %v10734, %v10732
    %v10841 = vpack.c.b16 %v10735, %v10733
    %v10842 = vpack.c.b16 %v10738, %v10736
    %v10843 = vpack.c.b16 %v10739, %v10737
    %v10844 = vpack.c.b16 %v10742, %v10740
    %v10845 = vpack.c.b16 %v10743, %v10741
    %v10846 = vpack.c.b16 %v10746, %v10744
    %v10847 = vpack.c.b16 %v10747, %v10745
    %v10848 = vpack.c.b16 %v10750, %v10748
    %v10849 = vpack.c.b16 %v10751, %v10749
    %v10850 = vpack.c.b16 %v10754, %v10752
    %v10851 = vpack.c.b16 %v10755, %v10753
    %v10852 = vpack.c.b16 %v10758, %v10756
    %v10853 = vpack.c.b16 %v10759, %v10757
    %v10854 = vpack.c.b16 %v10762, %v10760
    %v10855 = vpack.c.b16 %v10763, %v10761
    %v10856 = vpack.c.b16 %v10766, %v10764
    %v10857 = vpack.c.b16 %v10767, %v10765
    %v10858 = vpack.c.b16 %v10770, %v10768
    %v10859 = vpack.c.b16 %v10771, %v10769
    %v10860 = vpack.c.b16 %v10774, %v10772
    %v10861 = vpack.c.b16 %v10775, %v10773
    %v10862 = vpack.c.b16 %v10778, %v10776
    %v10863 = vpack.c.b16 %v10779, %v10777
    %v10864 = vpack.c.b16 %v10782, %v10780
    %v10865 = vpack.c.b16 %v10783, %v10781
    %v10866 = vpack.c.b16 %v10786, %v10784
    %v10867 = vpack.c.b16 %v10787, %v10785
    %v10868 = vpack.c.b16 %v10790, %v10788
    %v10869 = vpack.c.b16 %v10791, %v10789
    %v10870 = vpack.c.b16 %v10794, %v10792
    %v10871 = vpack.c.b16 %v10795, %v10793
    %v10872 = vpack.c.b16 %v10798, %v10796
    %v10873 = vpack.c.b16 %v10799, %v10797
    %v10874 = vpack.c.b16 %v10802, %v10800
    %v10875 = vpack.c.b16 %v10803, %v10801
    %v10876 = vpack.c.b16 %v10806, %v10804
    %v10877 = vpack.c.b16 %v10807, %v10805
    %v10878 = vpack.c.b16 %v10810, %v10808
    %v10879 = vpack.c.b16 %v10811, %v10809
    %v10880 = vpack.c.b16 %v10814, %v10812
    %v10881 = vpack.c.b16 %v10815, %v10813
    %v10882 = vpack.c.b16 %v10818, %v10816
    %v10883 = vpack.c.b16 %v10819, %v10817
    %10948 = vmatprep.subr.bf16.mxu0 %v10821
    %10949 = vmatpush1.bf16.msra.mxu0 %v10820
    %10950 = vmatprep.subr.bf16.mxu0 %v10823
    %10951 = vmatpush1.bf16.msra.mxu0 %v10822
    %10952 = vmatprep.subr.bf16.mxu0 %v10825
    %10953 = vmatpush1.bf16.msra.mxu0 %v10824
    %10954 = vmatprep.subr.bf16.mxu0 %v10827
    %10955 = vmatpush1.bf16.msra.mxu0 %v10826
    %10956 = vmatprep.subr.bf16.mxu0 %v10829
    %10957 = vmatpush1.bf16.msra.mxu0 %v10828
    %10958 = vmatprep.subr.bf16.mxu0 %v10831
    %10959 = vmatpush1.bf16.msra.mxu0 %v10830
    %10960 = vmatprep.subr.bf16.mxu0 %v10833
    %10961 = vmatpush1.bf16.msra.mxu0 %v10832
    %10962 = vmatprep.subr.bf16.mxu0 %v10835
    %10963 = vmatpush1.bf16.msra.mxu0 %v10834
    %10964 = vmatprep.subr.bf16.mxu0 %v10837
    %10965 = vmatpush1.bf16.msra.mxu0 %v10836
    %10966 = vmatprep.subr.bf16.mxu0 %v10839
    %10967 = vmatpush1.bf16.msra.mxu0 %v10838
    %10968 = vmatprep.subr.bf16.mxu0 %v10841
    %10969 = vmatpush1.bf16.msra.mxu0 %v10840
    %10970 = vmatprep.subr.bf16.mxu0 %v10843
    %10971 = vmatpush1.bf16.msra.mxu0 %v10842
    %10972 = vmatprep.subr.bf16.mxu0 %v10845
    %10973 = vmatpush1.bf16.msra.mxu0 %v10844
    %10974 = vmatprep.subr.bf16.mxu0 %v10847
    %10975 = vmatpush1.bf16.msra.mxu0 %v10846
    %10976 = vmatprep.subr.bf16.mxu0 %v10849
    %10977 = vmatpush1.bf16.msra.mxu0 %v10848
    %10978 = vmatprep.subr.bf16.mxu0 %v10851
    %10979 = vmatpush1.bf16.msra.mxu0 %v10850
    %10980 = vmatprep.mubr.bf16.mxu0 %v10090
    %10981 = vmatmul.mubr.bf16.gmra.mrb[0].mxu0 %v10089
    %v10982 = vpop.f32.mrb[0].mxu0
    %v10983 = vadd.f32 %v10622, %v10982
    %v10984 = vpop.f32.mrb[0].mxu0
    %v10985 = vadd.f32 %v10624, %v10984
    %v10986 = vpop.f32.mrb[0].mxu0
    %v10987 = vpop.f32.mrb[0].mxu0
    %10988 = vdwg.mxu0
    %10989 = vmatprep.subr.bf16.mxu0 %v10853
    %10990 = vmatpush1.bf16.msra.mxu0 %v10852
    %10991 = vmatprep.subr.bf16.mxu0 %v10855
    %10992 = vmatpush1.bf16.msra.mxu0 %v10854
    %10993 = vmatprep.subr.bf16.mxu0 %v10857
    %10994 = vmatpush1.bf16.msra.mxu0 %v10856
    %10995 = vmatprep.subr.bf16.mxu0 %v10859
    %10996 = vmatpush1.bf16.msra.mxu0 %v10858
    %10997 = vmatprep.subr.bf16.mxu0 %v10861
    %10998 = vmatpush1.bf16.msra.mxu0 %v10860
    %10999 = vmatprep.subr.bf16.mxu0 %v10863
    %11000 = vmatpush1.bf16.msra.mxu0 %v10862
    %11001 = vmatprep.subr.bf16.mxu0 %v10865
    %11002 = vmatpush1.bf16.msra.mxu0 %v10864
    %11003 = vmatprep.subr.bf16.mxu0 %v10867
    %11004 = vmatpush1.bf16.msra.mxu0 %v10866
    %11005 = vmatprep.subr.bf16.mxu0 %v10869
    %11006 = vmatpush1.bf16.msra.mxu0 %v10868
    %11007 = vmatprep.subr.bf16.mxu0 %v10871
    %11008 = vmatpush1.bf16.msra.mxu0 %v10870
    %11009 = vmatprep.subr.bf16.mxu0 %v10873
    %11010 = vmatpush1.bf16.msra.mxu0 %v10872
    %11011 = vmatprep.subr.bf16.mxu0 %v10875
    %11012 = vmatpush1.bf16.msra.mxu0 %v10874
    %11013 = vmatprep.subr.bf16.mxu0 %v10877
    %11014 = vmatpush1.bf16.msra.mxu0 %v10876
    %11015 = vmatprep.subr.bf16.mxu0 %v10879
    %11016 = vmatpush1.bf16.msra.mxu0 %v10878
    %11017 = vmatprep.subr.bf16.mxu0 %v10881
    %11018 = vmatpush1.bf16.msra.mxu0 %v10880
    %11019 = vmatprep.subr.bf16.mxu0 %v10883
    %11020 = vmatpush1.bf16.msra.mxu0 %v10882
    %11021 = vmatprep.mubr.bf16.mxu0 %v10092
    %11022 = vmatmul.mubr.bf16.gmra.mrb[0].mxu0 %v10091
    %v11023 = vpop.f32.mrb[0].mxu0
    %v11024 = vadd.f32 %v10983, %v11023
    %v11025 = vpop.f32.mrb[0].mxu0
    %v11026 = vadd.f32 %v10985, %v11025
    %v11027 = vpop.f32.mrb[0].mxu0
    %v11028 = vpop.f32.mrb[0].mxu0
    %11029 = vdwg.mxu0
    %v11030 = vpack.c.bf16 %v10069, %v10069
    %v11031 = vpack.c.bf16 %v10070, %v10070
    %v11032 = vpack.c.bf16 %v10071, %v10071
    %v11033 = vpack.c.bf16 %v10072, %v10072
    %s11034 = scalar_lea.vmem [#allocation10], 1024
    %v11035 = vld [vmem:[%s11034] sm:$0xff]
    %v11036 = vld [vmem:[%s11034 + $0x8] sm:$0xff]
    %v11037 = vld [vmem:[%s11034 + $0x10] sm:$0xff]
    %v11038 = vld [vmem:[%s11034 + $0x18] sm:$0xff]
    %v11039 = vld [vmem:[%s11034 + $0x20] sm:$0xff]
    %v11040 = vld [vmem:[%s11034 + $0x28] sm:$0xff]
    %v11041 = vld [vmem:[%s11034 + $0x30] sm:$0xff]
    %v11042 = vld [vmem:[%s11034 + $0x38] sm:$0xff]
    %v11043 = vld [vmem:[%s11034 + $0x40] sm:$0xff]
    %v11044 = vld [vmem:[%s11034 + $0x48] sm:$0xff]
    %v11045 = vld [vmem:[%s11034 + $0x50] sm:$0xff]
    %v11046 = vld [vmem:[%s11034 + $0x58] sm:$0xff]
    %v11047 = vld [vmem:[%s11034 + $0x60] sm:$0xff]
    %v11048 = vld [vmem:[%s11034 + $0x68] sm:$0xff]
    %v11049 = vld [vmem:[%s11034 + $0x70] sm:$0xff]
    %v11050 = vld [vmem:[%s11034 + $0x78] sm:$0xff]
    %v11051 = vld [vmem:[%s11034 + $0x80] sm:$0xff]
    %v11052 = vld [vmem:[%s11034 + $0x88] sm:$0xff]
    %v11053 = vld [vmem:[%s11034 + $0x90] sm:$0xff]
    %v11054 = vld [vmem:[%s11034 + $0x98] sm:$0xff]
    %v11055 = vld [vmem:[%s11034 + $0xa0] sm:$0xff]
    %v11056 = vld [vmem:[%s11034 + $0xa8] sm:$0xff]
    %v11057 = vld [vmem:[%s11034 + $0xb0] sm:$0xff]
    %v11058 = vld [vmem:[%s11034 + $0xb8] sm:$0xff]
    %v11059 = vld [vmem:[%s11034 + $0xc0] sm:$0xff]
    %v11060 = vld [vmem:[%s11034 + $0xc8] sm:$0xff]
    %v11061 = vld [vmem:[%s11034 + $0xd0] sm:$0xff]
    %v11062 = vld [vmem:[%s11034 + $0xd8] sm:$0xff]
    %v11063 = vld [vmem:[%s11034 + $0xe0] sm:$0xff]
    %v11064 = vld [vmem:[%s11034 + $0xe8] sm:$0xff]
    %v11065 = vld [vmem:[%s11034 + $0xf0] sm:$0xff]
    %v11066 = vld [vmem:[%s11034 + $0xf8] sm:$0xff]
    %v11067 = vld [vmem:[%s11034 + $0x100] sm:$0xff]
    %v11068 = vld [vmem:[%s11034 + $0x108] sm:$0xff]
    %v11069 = vld [vmem:[%s11034 + $0x110] sm:$0xff]
    %v11070 = vld [vmem:[%s11034 + $0x118] sm:$0xff]
    %v11071 = vld [vmem:[%s11034 + $0x120] sm:$0xff]
    %v11072 = vld [vmem:[%s11034 + $0x128] sm:$0xff]
    %v11073 = vld [vmem:[%s11034 + $0x130] sm:$0xff]
    %v11074 = vld [vmem:[%s11034 + $0x138] sm:$0xff]
    %v11075 = vld [vmem:[%s11034 + $0x140] sm:$0xff]
    %v11076 = vld [vmem:[%s11034 + $0x148] sm:$0xff]
    %v11077 = vld [vmem:[%s11034 + $0x150] sm:$0xff]
    %v11078 = vld [vmem:[%s11034 + $0x158] sm:$0xff]
    %v11079 = vld [vmem:[%s11034 + $0x160] sm:$0xff]
    %v11080 = vld [vmem:[%s11034 + $0x168] sm:$0xff]
    %v11081 = vld [vmem:[%s11034 + $0x170] sm:$0xff]
    %v11082 = vld [vmem:[%s11034 + $0x178] sm:$0xff]
    %v11083 = vld [vmem:[%s11034 + $0x180] sm:$0xff]
    %v11084 = vld [vmem:[%s11034 + $0x188] sm:$0xff]
    %v11085 = vld [vmem:[%s11034 + $0x190] sm:$0xff]
    %v11086 = vld [vmem:[%s11034 + $0x198] sm:$0xff]
    %v11087 = vld [vmem:[%s11034 + $0x1a0] sm:$0xff]
    %v11088 = vld [vmem:[%s11034 + $0x1a8] sm:$0xff]
    %v11089 = vld [vmem:[%s11034 + $0x1b0] sm:$0xff]
    %v11090 = vld [vmem:[%s11034 + $0x1b8] sm:$0xff]
    %v11091 = vld [vmem:[%s11034 + $0x1c0] sm:$0xff]
    %v11092 = vld [vmem:[%s11034 + $0x1c8] sm:$0xff]
    %v11093 = vld [vmem:[%s11034 + $0x1d0] sm:$0xff]
    %v11094 = vld [vmem:[%s11034 + $0x1d8] sm:$0xff]
    %v11095 = vld [vmem:[%s11034 + $0x1e0] sm:$0xff]
    %v11096 = vld [vmem:[%s11034 + $0x1e8] sm:$0xff]
    %v11097 = vld [vmem:[%s11034 + $0x1f0] sm:$0xff]
    %v11098 = vld [vmem:[%s11034 + $0x1f8] sm:$0xff]
    %v11163 = vunpack.c.l.b16 %v11035
    %v11164 = vunpack.c.h.b16 %v11035
    %v11165 = vunpack.c.l.b16 %v11036
    %v11166 = vunpack.c.h.b16 %v11036
    %v11167 = vunpack.c.l.b16 %v11037
    %v11168 = vunpack.c.h.b16 %v11037
    %v11169 = vunpack.c.l.b16 %v11038
    %v11170 = vunpack.c.h.b16 %v11038
    %v11171 = vunpack.c.l.b16 %v11039
    %v11172 = vunpack.c.h.b16 %v11039
    %v11173 = vunpack.c.l.b16 %v11040
    %v11174 = vunpack.c.h.b16 %v11040
    %v11175 = vunpack.c.l.b16 %v11041
    %v11176 = vunpack.c.h.b16 %v11041
    %v11177 = vunpack.c.l.b16 %v11042
    %v11178 = vunpack.c.h.b16 %v11042
    %v11179 = vunpack.c.l.b16 %v11043
    %v11180 = vunpack.c.h.b16 %v11043
    %v11181 = vunpack.c.l.b16 %v11044
    %v11182 = vunpack.c.h.b16 %v11044
    %v11183 = vunpack.c.l.b16 %v11045
    %v11184 = vunpack.c.h.b16 %v11045
    %v11185 = vunpack.c.l.b16 %v11046
    %v11186 = vunpack.c.h.b16 %v11046
    %v11187 = vunpack.c.l.b16 %v11047
    %v11188 = vunpack.c.h.b16 %v11047
    %v11189 = vunpack.c.l.b16 %v11048
    %v11190 = vunpack.c.h.b16 %v11048
    %v11191 = vunpack.c.l.b16 %v11049
    %v11192 = vunpack.c.h.b16 %v11049
    %v11193 = vunpack.c.l.b16 %v11050
    %v11194 = vunpack.c.h.b16 %v11050
    %v11195 = vunpack.c.l.b16 %v11051
    %v11196 = vunpack.c.h.b16 %v11051
    %v11197 = vunpack.c.l.b16 %v11052
    %v11198 = vunpack.c.h.b16 %v11052
    %v11199 = vunpack.c.l.b16 %v11053
    %v11200 = vunpack.c.h.b16 %v11053
    %v11201 = vunpack.c.l.b16 %v11054
    %v11202 = vunpack.c.h.b16 %v11054
    %v11203 = vunpack.c.l.b16 %v11055
    %v11204 = vunpack.c.h.b16 %v11055
    %v11205 = vunpack.c.l.b16 %v11056
    %v11206 = vunpack.c.h.b16 %v11056
    %v11207 = vunpack.c.l.b16 %v11057
    %v11208 = vunpack.c.h.b16 %v11057
    %v11209 = vunpack.c.l.b16 %v11058
    %v11210 = vunpack.c.h.b16 %v11058
    %v11211 = vunpack.c.l.b16 %v11059
    %v11212 = vunpack.c.h.b16 %v11059
    %v11213 = vunpack.c.l.b16 %v11060
    %v11214 = vunpack.c.h.b16 %v11060
    %v11215 = vunpack.c.l.b16 %v11061
    %v11216 = vunpack.c.h.b16 %v11061
    %v11217 = vunpack.c.l.b16 %v11062
    %v11218 = vunpack.c.h.b16 %v11062
    %v11219 = vunpack.c.l.b16 %v11063
    %v11220 = vunpack.c.h.b16 %v11063
    %v11221 = vunpack.c.l.b16 %v11064
    %v11222 = vunpack.c.h.b16 %v11064
    %v11223 = vunpack.c.l.b16 %v11065
    %v11224 = vunpack.c.h.b16 %v11065
    %v11225 = vunpack.c.l.b16 %v11066
    %v11226 = vunpack.c.h.b16 %v11066
    %v11227 = vunpack.c.l.b16 %v11067
    %v11228 = vunpack.c.h.b16 %v11067
    %v11229 = vunpack.c.l.b16 %v11068
    %v11230 = vunpack.c.h.b16 %v11068
    %v11231 = vunpack.c.l.b16 %v11069
    %v11232 = vunpack.c.h.b16 %v11069
    %v11233 = vunpack.c.l.b16 %v11070
    %v11234 = vunpack.c.h.b16 %v11070
    %v11235 = vunpack.c.l.b16 %v11071
    %v11236 = vunpack.c.h.b16 %v11071
    %v11237 = vunpack.c.l.b16 %v11072
    %v11238 = vunpack.c.h.b16 %v11072
    %v11239 = vunpack.c.l.b16 %v11073
    %v11240 = vunpack.c.h.b16 %v11073
    %v11241 = vunpack.c.l.b16 %v11074
    %v11242 = vunpack.c.h.b16 %v11074
    %v11243 = vunpack.c.l.b16 %v11075
    %v11244 = vunpack.c.h.b16 %v11075
    %v11245 = vunpack.c.l.b16 %v11076
    %v11246 = vunpack.c.h.b16 %v11076
    %v11247 = vunpack.c.l.b16 %v11077
    %v11248 = vunpack.c.h.b16 %v11077
    %v11249 = vunpack.c.l.b16 %v11078
    %v11250 = vunpack.c.h.b16 %v11078
    %v11251 = vunpack.c.l.b16 %v11079
    %v11252 = vunpack.c.h.b16 %v11079
    %v11253 = vunpack.c.l.b16 %v11080
    %v11254 = vunpack.c.h.b16 %v11080
    %v11255 = vunpack.c.l.b16 %v11081
    %v11256 = vunpack.c.h.b16 %v11081
    %v11257 = vunpack.c.l.b16 %v11082
    %v11258 = vunpack.c.h.b16 %v11082
    %v11259 = vunpack.c.l.b16 %v11083
    %v11260 = vunpack.c.h.b16 %v11083
    %v11261 = vunpack.c.l.b16 %v11084
    %v11262 = vunpack.c.h.b16 %v11084
    %v11263 = vunpack.c.l.b16 %v11085
    %v11264 = vunpack.c.h.b16 %v11085
    %v11265 = vunpack.c.l.b16 %v11086
    %v11266 = vunpack.c.h.b16 %v11086
    %v11267 = vunpack.c.l.b16 %v11087
    %v11268 = vunpack.c.h.b16 %v11087
    %v11269 = vunpack.c.l.b16 %v11088
    %v11270 = vunpack.c.h.b16 %v11088
    %v11271 = vunpack.c.l.b16 %v11089
    %v11272 = vunpack.c.h.b16 %v11089
    %v11273 = vunpack.c.l.b16 %v11090
    %v11274 = vunpack.c.h.b16 %v11090
    %v11275 = vunpack.c.l.b16 %v11091
    %v11276 = vunpack.c.h.b16 %v11091
    %v11277 = vunpack.c.l.b16 %v11092
    %v11278 = vunpack.c.h.b16 %v11092
    %v11279 = vunpack.c.l.b16 %v11093
    %v11280 = vunpack.c.h.b16 %v11093
    %v11281 = vunpack.c.l.b16 %v11094
    %v11282 = vunpack.c.h.b16 %v11094
    %v11283 = vunpack.c.l.b16 %v11095
    %v11284 = vunpack.c.h.b16 %v11095
    %v11285 = vunpack.c.l.b16 %v11096
    %v11286 = vunpack.c.h.b16 %v11096
    %v11287 = vunpack.c.l.b16 %v11097
    %v11288 = vunpack.c.h.b16 %v11097
    %v11289 = vunpack.c.l.b16 %v11098
    %v11290 = vunpack.c.h.b16 %v11098
    %v11291 = vpack.c.b16 %v11165, %v11163
    %v11292 = vpack.c.b16 %v11166, %v11164
    %v11293 = vpack.c.b16 %v11169, %v11167
    %v11294 = vpack.c.b16 %v11170, %v11168
    %v11295 = vpack.c.b16 %v11173, %v11171
    %v11296 = vpack.c.b16 %v11174, %v11172
    %v11297 = vpack.c.b16 %v11177, %v11175
    %v11298 = vpack.c.b16 %v11178, %v11176
    %v11299 = vpack.c.b16 %v11181, %v11179
    %v11300 = vpack.c.b16 %v11182, %v11180
    %v11301 = vpack.c.b16 %v11185, %v11183
    %v11302 = vpack.c.b16 %v11186, %v11184
    %v11303 = vpack.c.b16 %v11189, %v11187
    %v11304 = vpack.c.b16 %v11190, %v11188
    %v11305 = vpack.c.b16 %v11193, %v11191
    %v11306 = vpack.c.b16 %v11194, %v11192
    %v11307 = vpack.c.b16 %v11197, %v11195
    %v11308 = vpack.c.b16 %v11198, %v11196
    %v11309 = vpack.c.b16 %v11201, %v11199
    %v11310 = vpack.c.b16 %v11202, %v11200
    %v11311 = vpack.c.b16 %v11205, %v11203
    %v11312 = vpack.c.b16 %v11206, %v11204
    %v11313 = vpack.c.b16 %v11209, %v11207
    %v11314 = vpack.c.b16 %v11210, %v11208
    %v11315 = vpack.c.b16 %v11213, %v11211
    %v11316 = vpack.c.b16 %v11214, %v11212
    %v11317 = vpack.c.b16 %v11217, %v11215
    %v11318 = vpack.c.b16 %v11218, %v11216
    %v11319 = vpack.c.b16 %v11221, %v11219
    %v11320 = vpack.c.b16 %v11222, %v11220
    %v11321 = vpack.c.b16 %v11225, %v11223
    %v11322 = vpack.c.b16 %v11226, %v11224
    %v11323 = vpack.c.b16 %v11229, %v11227
    %v11324 = vpack.c.b16 %v11230, %v11228
    %v11325 = vpack.c.b16 %v11233, %v11231
    %v11326 = vpack.c.b16 %v11234, %v11232
    %v11327 = vpack.c.b16 %v11237, %v11235
    %v11328 = vpack.c.b16 %v11238, %v11236
    %v11329 = vpack.c.b16 %v11241, %v11239
    %v11330 = vpack.c.b16 %v11242, %v11240
    %v11331 = vpack.c.b16 %v11245, %v11243
    %v11332 = vpack.c.b16 %v11246, %v11244
    %v11333 = vpack.c.b16 %v11249, %v11247
    %v11334 = vpack.c.b16 %v11250, %v11248
    %v11335 = vpack.c.b16 %v11253, %v11251
    %v11336 = vpack.c.b16 %v11254, %v11252
    %v11337 = vpack.c.b16 %v11257, %v11255
    %v11338 = vpack.c.b16 %v11258, %v11256
    %v11339 = vpack.c.b16 %v11261, %v11259
    %v11340 = vpack.c.b16 %v11262, %v11260
    %v11341 = vpack.c.b16 %v11265, %v11263
    %v11342 = vpack.c.b16 %v11266, %v11264
    %v11343 = vpack.c.b16 %v11269, %v11267
    %v11344 = vpack.c.b16 %v11270, %v11268
    %v11345 = vpack.c.b16 %v11273, %v11271
    %v11346 = vpack.c.b16 %v11274, %v11272
    %v11347 = vpack.c.b16 %v11277, %v11275
    %v11348 = vpack.c.b16 %v11278, %v11276
    %v11349 = vpack.c.b16 %v11281, %v11279
    %v11350 = vpack.c.b16 %v11282, %v11280
    %v11351 = vpack.c.b16 %v11285, %v11283
    %v11352 = vpack.c.b16 %v11286, %v11284
    %v11353 = vpack.c.b16 %v11289, %v11287
    %v11354 = vpack.c.b16 %v11290, %v11288
    %11419 = vmatprep.subr.bf16.mxu0 %v11292
    %11420 = vmatpush1.bf16.msra.mxu0 %v11291
    %11421 = vmatprep.subr.bf16.mxu0 %v11294
    %11422 = vmatpush1.bf16.msra.mxu0 %v11293
    %11423 = vmatprep.subr.bf16.mxu0 %v11296
    %11424 = vmatpush1.bf16.msra.mxu0 %v11295
    %11425 = vmatprep.subr.bf16.mxu0 %v11298
    %11426 = vmatpush1.bf16.msra.mxu0 %v11297
    %11427 = vmatprep.subr.bf16.mxu0 %v11300
    %11428 = vmatpush1.bf16.msra.mxu0 %v11299
    %11429 = vmatprep.subr.bf16.mxu0 %v11302
    %11430 = vmatpush1.bf16.msra.mxu0 %v11301
    %11431 = vmatprep.subr.bf16.mxu0 %v11304
    %11432 = vmatpush1.bf16.msra.mxu0 %v11303
    %11433 = vmatprep.subr.bf16.mxu0 %v11306
    %11434 = vmatpush1.bf16.msra.mxu0 %v11305
    %11435 = vmatprep.subr.bf16.mxu0 %v11308
    %11436 = vmatpush1.bf16.msra.mxu0 %v11307
    %11437 = vmatprep.subr.bf16.mxu0 %v11310
    %11438 = vmatpush1.bf16.msra.mxu0 %v11309
    %11439 = vmatprep.subr.bf16.mxu0 %v11312
    %11440 = vmatpush1.bf16.msra.mxu0 %v11311
    %11441 = vmatprep.subr.bf16.mxu0 %v11314
    %11442 = vmatpush1.bf16.msra.mxu0 %v11313
    %11443 = vmatprep.subr.bf16.mxu0 %v11316
    %11444 = vmatpush1.bf16.msra.mxu0 %v11315
    %11445 = vmatprep.subr.bf16.mxu0 %v11318
    %11446 = vmatpush1.bf16.msra.mxu0 %v11317
    %11447 = vmatprep.subr.bf16.mxu0 %v11320
    %11448 = vmatpush1.bf16.msra.mxu0 %v11319
    %11449 = vmatprep.subr.bf16.mxu0 %v11322
    %11450 = vmatpush1.bf16.msra.mxu0 %v11321
    %11451 = vmatprep.mubr.bf16.mxu0 %v11031
    %11452 = vmatmul.mubr.bf16.gmra.mrb[0].mxu0 %v11030
    %v11453 = vpop.f32.mrb[0].mxu0
    %v11454 = vadd.f32 0.0, %v11453
    %v11455 = vpop.f32.mrb[0].mxu0
    %v11456 = vadd.f32 0.0, %v11455
    %v11457 = vpop.f32.mrb[0].mxu0
    %v11458 = vpop.f32.mrb[0].mxu0
    %11459 = vdwg.mxu0
    %11460 = vmatprep.subr.bf16.mxu0 %v11324
    %11461 = vmatpush1.bf16.msra.mxu0 %v11323
    %11462 = vmatprep.subr.bf16.mxu0 %v11326
    %11463 = vmatpush1.bf16.msra.mxu0 %v11325
    %11464 = vmatprep.subr.bf16.mxu0 %v11328
    %11465 = vmatpush1.bf16.msra.mxu0 %v11327
    %11466 = vmatprep.subr.bf16.mxu0 %v11330
    %11467 = vmatpush1.bf16.msra.mxu0 %v11329
    %11468 = vmatprep.subr.bf16.mxu0 %v11332
    %11469 = vmatpush1.bf16.msra.mxu0 %v11331
    %11470 = vmatprep.subr.bf16.mxu0 %v11334
    %11471 = vmatpush1.bf16.msra.mxu0 %v11333
    %11472 = vmatprep.subr.bf16.mxu0 %v11336
    %11473 = vmatpush1.bf16.msra.mxu0 %v11335
    %11474 = vmatprep.subr.bf16.mxu0 %v11338
    %11475 = vmatpush1.bf16.msra.mxu0 %v11337
    %11476 = vmatprep.subr.bf16.mxu0 %v11340
    %11477 = vmatpush1.bf16.msra.mxu0 %v11339
    %11478 = vmatprep.subr.bf16.mxu0 %v11342
    %11479 = vmatpush1.bf16.msra.mxu0 %v11341
    %11480 = vmatprep.subr.bf16.mxu0 %v11344
    %11481 = vmatpush1.bf16.msra.mxu0 %v11343
    %11482 = vmatprep.subr.bf16.mxu0 %v11346
    %11483 = vmatpush1.bf16.msra.mxu0 %v11345
    %11484 = vmatprep.subr.bf16.mxu0 %v11348
    %11485 = vmatpush1.bf16.msra.mxu0 %v11347
    %11486 = vmatprep.subr.bf16.mxu0 %v11350
    %11487 = vmatpush1.bf16.msra.mxu0 %v11349
    %11488 = vmatprep.subr.bf16.mxu0 %v11352
    %11489 = vmatpush1.bf16.msra.mxu0 %v11351
    %11490 = vmatprep.subr.bf16.mxu0 %v11354
    %11491 = vmatpush1.bf16.msra.mxu0 %v11353
    %11492 = vmatprep.mubr.bf16.mxu0 %v11033
    %11493 = vmatmul.mubr.bf16.gmra.mrb[0].mxu0 %v11032
    %v11494 = vpop.f32.mrb[0].mxu0
    %v11495 = vadd.f32 %v11454, %v11494
    %v11496 = vpop.f32.mrb[0].mxu0
    %v11497 = vadd.f32 %v11456, %v11496
    %v11498 = vpop.f32.mrb[0].mxu0
    %v11499 = vpop.f32.mrb[0].mxu0
    %11500 = vdwg.mxu0
    %v11501 = vadd.f32 %v11024, %v11495
    %v11502 = vadd.f32 %v11026, %v11497
    %v11503 = vpack.c.bf16 %v10073, %v10073
    %v11504 = vpack.c.bf16 %v10074, %v10074
    %v11505 = vpack.c.bf16 %v10075, %v10075
    %v11506 = vpack.c.bf16 %v10076, %v10076
    %s11507 = scalar_lea.vmem [#allocation10], 1536
    %v11508 = vld [vmem:[%s11507] sm:$0xff]
    %v11509 = vld [vmem:[%s11507 + $0x8] sm:$0xff]
    %v11510 = vld [vmem:[%s11507 + $0x10] sm:$0xff]
    %v11511 = vld [vmem:[%s11507 + $0x18] sm:$0xff]
    %v11512 = vld [vmem:[%s11507 + $0x20] sm:$0xff]
    %v11513 = vld [vmem:[%s11507 + $0x28] sm:$0xff]
    %v11514 = vld [vmem:[%s11507 + $0x30] sm:$0xff]
    %v11515 = vld [vmem:[%s11507 + $0x38] sm:$0xff]
    %v11516 = vld [vmem:[%s11507 + $0x40] sm:$0xff]
    %v11517 = vld [vmem:[%s11507 + $0x48] sm:$0xff]
    %v11518 = vld [vmem:[%s11507 + $0x50] sm:$0xff]
    %v11519 = vld [vmem:[%s11507 + $0x58] sm:$0xff]
    %v11520 = vld [vmem:[%s11507 + $0x60] sm:$0xff]
    %v11521 = vld [vmem:[%s11507 + $0x68] sm:$0xff]
    %v11522 = vld [vmem:[%s11507 + $0x70] sm:$0xff]
    %v11523 = vld [vmem:[%s11507 + $0x78] sm:$0xff]
    %v11524 = vld [vmem:[%s11507 + $0x80] sm:$0xff]
    %v11525 = vld [vmem:[%s11507 + $0x88] sm:$0xff]
    %v11526 = vld [vmem:[%s11507 + $0x90] sm:$0xff]
    %v11527 = vld [vmem:[%s11507 + $0x98] sm:$0xff]
    %v11528 = vld [vmem:[%s11507 + $0xa0] sm:$0xff]
    %v11529 = vld [vmem:[%s11507 + $0xa8] sm:$0xff]
    %v11530 = vld [vmem:[%s11507 + $0xb0] sm:$0xff]
    %v11531 = vld [vmem:[%s11507 + $0xb8] sm:$0xff]
    %v11532 = vld [vmem:[%s11507 + $0xc0] sm:$0xff]
    %v11533 = vld [vmem:[%s11507 + $0xc8] sm:$0xff]
    %v11534 = vld [vmem:[%s11507 + $0xd0] sm:$0xff]
    %v11535 = vld [vmem:[%s11507 + $0xd8] sm:$0xff]
    %v11536 = vld [vmem:[%s11507 + $0xe0] sm:$0xff]
    %v11537 = vld [vmem:[%s11507 + $0xe8] sm:$0xff]
    %v11538 = vld [vmem:[%s11507 + $0xf0] sm:$0xff]
    %v11539 = vld [vmem:[%s11507 + $0xf8] sm:$0xff]
    %v11540 = vld [vmem:[%s11507 + $0x100] sm:$0xff]
    %v11541 = vld [vmem:[%s11507 + $0x108] sm:$0xff]
    %v11542 = vld [vmem:[%s11507 + $0x110] sm:$0xff]
    %v11543 = vld [vmem:[%s11507 + $0x118] sm:$0xff]
    %v11544 = vld [vmem:[%s11507 + $0x120] sm:$0xff]
    %v11545 = vld [vmem:[%s11507 + $0x128] sm:$0xff]
    %v11546 = vld [vmem:[%s11507 + $0x130] sm:$0xff]
    %v11547 = vld [vmem:[%s11507 + $0x138] sm:$0xff]
    %v11548 = vld [vmem:[%s11507 + $0x140] sm:$0xff]
    %v11549 = vld [vmem:[%s11507 + $0x148] sm:$0xff]
    %v11550 = vld [vmem:[%s11507 + $0x150] sm:$0xff]
    %v11551 = vld [vmem:[%s11507 + $0x158] sm:$0xff]
    %v11552 = vld [vmem:[%s11507 + $0x160] sm:$0xff]
    %v11553 = vld [vmem:[%s11507 + $0x168] sm:$0xff]
    %v11554 = vld [vmem:[%s11507 + $0x170] sm:$0xff]
    %v11555 = vld [vmem:[%s11507 + $0x178] sm:$0xff]
    %v11556 = vld [vmem:[%s11507 + $0x180] sm:$0xff]
    %v11557 = vld [vmem:[%s11507 + $0x188] sm:$0xff]
    %v11558 = vld [vmem:[%s11507 + $0x190] sm:$0xff]
    %v11559 = vld [vmem:[%s11507 + $0x198] sm:$0xff]
    %v11560 = vld [vmem:[%s11507 + $0x1a0] sm:$0xff]
    %v11561 = vld [vmem:[%s11507 + $0x1a8] sm:$0xff]
    %v11562 = vld [vmem:[%s11507 + $0x1b0] sm:$0xff]
    %v11563 = vld [vmem:[%s11507 + $0x1b8] sm:$0xff]
    %v11564 = vld [vmem:[%s11507 + $0x1c0] sm:$0xff]
    %v11565 = vld [vmem:[%s11507 + $0x1c8] sm:$0xff]
    %v11566 = vld [vmem:[%s11507 + $0x1d0] sm:$0xff]
    %v11567 = vld [vmem:[%s11507 + $0x1d8] sm:$0xff]
    %v11568 = vld [vmem:[%s11507 + $0x1e0] sm:$0xff]
    %v11569 = vld [vmem:[%s11507 + $0x1e8] sm:$0xff]
    %v11570 = vld [vmem:[%s11507 + $0x1f0] sm:$0xff]
    %v11571 = vld [vmem:[%s11507 + $0x1f8] sm:$0xff]
    %v11636 = vunpack.c.l.b16 %v11508
    %v11637 = vunpack.c.h.b16 %v11508
    %v11638 = vunpack.c.l.b16 %v11509
    %v11639 = vunpack.c.h.b16 %v11509
    %v11640 = vunpack.c.l.b16 %v11510
    %v11641 = vunpack.c.h.b16 %v11510
    %v11642 = vunpack.c.l.b16 %v11511
    %v11643 = vunpack.c.h.b16 %v11511
    %v11644 = vunpack.c.l.b16 %v11512
    %v11645 = vunpack.c.h.b16 %v11512
    %v11646 = vunpack.c.l.b16 %v11513
    %v11647 = vunpack.c.h.b16 %v11513
    %v11648 = vunpack.c.l.b16 %v11514
    %v11649 = vunpack.c.h.b16 %v11514
    %v11650 = vunpack.c.l.b16 %v11515
    %v11651 = vunpack.c.h.b16 %v11515
    %v11652 = vunpack.c.l.b16 %v11516
    %v11653 = vunpack.c.h.b16 %v11516
    %v11654 = vunpack.c.l.b16 %v11517
    %v11655 = vunpack.c.h.b16 %v11517
    %v11656 = vunpack.c.l.b16 %v11518
    %v11657 = vunpack.c.h.b16 %v11518
    %v11658 = vunpack.c.l.b16 %v11519
    %v11659 = vunpack.c.h.b16 %v11519
    %v11660 = vunpack.c.l.b16 %v11520
    %v11661 = vunpack.c.h.b16 %v11520
    %v11662 = vunpack.c.l.b16 %v11521
    %v11663 = vunpack.c.h.b16 %v11521
    %v11664 = vunpack.c.l.b16 %v11522
    %v11665 = vunpack.c.h.b16 %v11522
    %v11666 = vunpack.c.l.b16 %v11523
    %v11667 = vunpack.c.h.b16 %v11523
    %v11668 = vunpack.c.l.b16 %v11524
    %v11669 = vunpack.c.h.b16 %v11524
    %v11670 = vunpack.c.l.b16 %v11525
    %v11671 = vunpack.c.h.b16 %v11525
    %v11672 = vunpack.c.l.b16 %v11526
    %v11673 = vunpack.c.h.b16 %v11526
    %v11674 = vunpack.c.l.b16 %v11527
    %v11675 = vunpack.c.h.b16 %v11527
    %v11676 = vunpack.c.l.b16 %v11528
    %v11677 = vunpack.c.h.b16 %v11528
    %v11678 = vunpack.c.l.b16 %v11529
    %v11679 = vunpack.c.h.b16 %v11529
    %v11680 = vunpack.c.l.b16 %v11530
    %v11681 = vunpack.c.h.b16 %v11530
    %v11682 = vunpack.c.l.b16 %v11531
    %v11683 = vunpack.c.h.b16 %v11531
    %v11684 = vunpack.c.l.b16 %v11532
    %v11685 = vunpack.c.h.b16 %v11532
    %v11686 = vunpack.c.l.b16 %v11533
    %v11687 = vunpack.c.h.b16 %v11533
    %v11688 = vunpack.c.l.b16 %v11534
    %v11689 = vunpack.c.h.b16 %v11534
    %v11690 = vunpack.c.l.b16 %v11535
    %v11691 = vunpack.c.h.b16 %v11535
    %v11692 = vunpack.c.l.b16 %v11536
    %v11693 = vunpack.c.h.b16 %v11536
    %v11694 = vunpack.c.l.b16 %v11537
    %v11695 = vunpack.c.h.b16 %v11537
    %v11696 = vunpack.c.l.b16 %v11538
    %v11697 = vunpack.c.h.b16 %v11538
    %v11698 = vunpack.c.l.b16 %v11539
    %v11699 = vunpack.c.h.b16 %v11539
    %v11700 = vunpack.c.l.b16 %v11540
    %v11701 = vunpack.c.h.b16 %v11540
    %v11702 = vunpack.c.l.b16 %v11541
    %v11703 = vunpack.c.h.b16 %v11541
    %v11704 = vunpack.c.l.b16 %v11542
    %v11705 = vunpack.c.h.b16 %v11542
    %v11706 = vunpack.c.l.b16 %v11543
    %v11707 = vunpack.c.h.b16 %v11543
    %v11708 = vunpack.c.l.b16 %v11544
    %v11709 = vunpack.c.h.b16 %v11544
    %v11710 = vunpack.c.l.b16 %v11545
    %v11711 = vunpack.c.h.b16 %v11545
    %v11712 = vunpack.c.l.b16 %v11546
    %v11713 = vunpack.c.h.b16 %v11546
    %v11714 = vunpack.c.l.b16 %v11547
    %v11715 = vunpack.c.h.b16 %v11547
    %v11716 = vunpack.c.l.b16 %v11548
    %v11717 = vunpack.c.h.b16 %v11548
    %v11718 = vunpack.c.l.b16 %v11549
    %v11719 = vunpack.c.h.b16 %v11549
    %v11720 = vunpack.c.l.b16 %v11550
    %v11721 = vunpack.c.h.b16 %v11550
    %v11722 = vunpack.c.l.b16 %v11551
    %v11723 = vunpack.c.h.b16 %v11551
    %v11724 = vunpack.c.l.b16 %v11552
    %v11725 = vunpack.c.h.b16 %v11552
    %v11726 = vunpack.c.l.b16 %v11553
    %v11727 = vunpack.c.h.b16 %v11553
    %v11728 = vunpack.c.l.b16 %v11554
    %v11729 = vunpack.c.h.b16 %v11554
    %v11730 = vunpack.c.l.b16 %v11555
    %v11731 = vunpack.c.h.b16 %v11555
    %v11732 = vunpack.c.l.b16 %v11556
    %v11733 = vunpack.c.h.b16 %v11556
    %v11734 = vunpack.c.l.b16 %v11557
    %v11735 = vunpack.c.h.b16 %v11557
    %v11736 = vunpack.c.l.b16 %v11558
    %v11737 = vunpack.c.h.b16 %v11558
    %v11738 = vunpack.c.l.b16 %v11559
    %v11739 = vunpack.c.h.b16 %v11559
    %v11740 = vunpack.c.l.b16 %v11560
    %v11741 = vunpack.c.h.b16 %v11560
    %v11742 = vunpack.c.l.b16 %v11561
    %v11743 = vunpack.c.h.b16 %v11561
    %v11744 = vunpack.c.l.b16 %v11562
    %v11745 = vunpack.c.h.b16 %v11562
    %v11746 = vunpack.c.l.b16 %v11563
    %v11747 = vunpack.c.h.b16 %v11563
    %v11748 = vunpack.c.l.b16 %v11564
    %v11749 = vunpack.c.h.b16 %v11564
    %v11750 = vunpack.c.l.b16 %v11565
    %v11751 = vunpack.c.h.b16 %v11565
    %v11752 = vunpack.c.l.b16 %v11566
    %v11753 = vunpack.c.h.b16 %v11566
    %v11754 = vunpack.c.l.b16 %v11567
    %v11755 = vunpack.c.h.b16 %v11567
    %v11756 = vunpack.c.l.b16 %v11568
    %v11757 = vunpack.c.h.b16 %v11568
    %v11758 = vunpack.c.l.b16 %v11569
    %v11759 = vunpack.c.h.b16 %v11569
    %v11760 = vunpack.c.l.b16 %v11570
    %v11761 = vunpack.c.h.b16 %v11570
    %v11762 = vunpack.c.l.b16 %v11571
    %v11763 = vunpack.c.h.b16 %v11571
    %v11764 = vpack.c.b16 %v11638, %v11636
    %v11765 = vpack.c.b16 %v11639, %v11637
    %v11766 = vpack.c.b16 %v11642, %v11640
    %v11767 = vpack.c.b16 %v11643, %v11641
    %v11768 = vpack.c.b16 %v11646, %v11644
    %v11769 = vpack.c.b16 %v11647, %v11645
    %v11770 = vpack.c.b16 %v11650, %v11648
    %v11771 = vpack.c.b16 %v11651, %v11649
    %v11772 = vpack.c.b16 %v11654, %v11652
    %v11773 = vpack.c.b16 %v11655, %v11653
    %v11774 = vpack.c.b16 %v11658, %v11656
    %v11775 = vpack.c.b16 %v11659, %v11657
    %v11776 = vpack.c.b16 %v11662, %v11660
    %v11777 = vpack.c.b16 %v11663, %v11661
    %v11778 = vpack.c.b16 %v11666, %v11664
    %v11779 = vpack.c.b16 %v11667, %v11665
    %v11780 = vpack.c.b16 %v11670, %v11668
    %v11781 = vpack.c.b16 %v11671, %v11669
    %v11782 = vpack.c.b16 %v11674, %v11672
    %v11783 = vpack.c.b16 %v11675, %v11673
    %v11784 = vpack.c.b16 %v11678, %v11676
    %v11785 = vpack.c.b16 %v11679, %v11677
    %v11786 = vpack.c.b16 %v11682, %v11680
    %v11787 = vpack.c.b16 %v11683, %v11681
    %v11788 = vpack.c.b16 %v11686, %v11684
    %v11789 = vpack.c.b16 %v11687, %v11685
    %v11790 = vpack.c.b16 %v11690, %v11688
    %v11791 = vpack.c.b16 %v11691, %v11689
    %v11792 = vpack.c.b16 %v11694, %v11692
    %v11793 = vpack.c.b16 %v11695, %v11693
    %v11794 = vpack.c.b16 %v11698, %v11696
    %v11795 = vpack.c.b16 %v11699, %v11697
    %v11796 = vpack.c.b16 %v11702, %v11700
    %v11797 = vpack.c.b16 %v11703, %v11701
    %v11798 = vpack.c.b16 %v11706, %v11704
    %v11799 = vpack.c.b16 %v11707, %v11705
    %v11800 = vpack.c.b16 %v11710, %v11708
    %v11801 = vpack.c.b16 %v11711, %v11709
    %v11802 = vpack.c.b16 %v11714, %v11712
    %v11803 = vpack.c.b16 %v11715, %v11713
    %v11804 = vpack.c.b16 %v11718, %v11716
    %v11805 = vpack.c.b16 %v11719, %v11717
    %v11806 = vpack.c.b16 %v11722, %v11720
    %v11807 = vpack.c.b16 %v11723, %v11721
    %v11808 = vpack.c.b16 %v11726, %v11724
    %v11809 = vpack.c.b16 %v11727, %v11725
    %v11810 = vpack.c.b16 %v11730, %v11728
    %v11811 = vpack.c.b16 %v11731, %v11729
    %v11812 = vpack.c.b16 %v11734, %v11732
    %v11813 = vpack.c.b16 %v11735, %v11733
    %v11814 = vpack.c.b16 %v11738, %v11736
    %v11815 = vpack.c.b16 %v11739, %v11737
    %v11816 = vpack.c.b16 %v11742, %v11740
    %v11817 = vpack.c.b16 %v11743, %v11741
    %v11818 = vpack.c.b16 %v11746, %v11744
    %v11819 = vpack.c.b16 %v11747, %v11745
    %v11820 = vpack.c.b16 %v11750, %v11748
    %v11821 = vpack.c.b16 %v11751, %v11749
    %v11822 = vpack.c.b16 %v11754, %v11752
    %v11823 = vpack.c.b16 %v11755, %v11753
    %v11824 = vpack.c.b16 %v11758, %v11756
    %v11825 = vpack.c.b16 %v11759, %v11757
    %v11826 = vpack.c.b16 %v11762, %v11760
    %v11827 = vpack.c.b16 %v11763, %v11761
    %11892 = vmatprep.subr.bf16.mxu0 %v11765
    %11893 = vmatpush1.bf16.msra.mxu0 %v11764
    %11894 = vmatprep.subr.bf16.mxu0 %v11767
    %11895 = vmatpush1.bf16.msra.mxu0 %v11766
    %11896 = vmatprep.subr.bf16.mxu0 %v11769
    %11897 = vmatpush1.bf16.msra.mxu0 %v11768
    %11898 = vmatprep.subr.bf16.mxu0 %v11771
    %11899 = vmatpush1.bf16.msra.mxu0 %v11770
    %11900 = vmatprep.subr.bf16.mxu0 %v11773
    %11901 = vmatpush1.bf16.msra.mxu0 %v11772
    %11902 = vmatprep.subr.bf16.mxu0 %v11775
    %11903 = vmatpush1.bf16.msra.mxu0 %v11774
    %11904 = vmatprep.subr.bf16.mxu0 %v11777
    %11905 = vmatpush1.bf16.msra.mxu0 %v11776
    %11906 = vmatprep.subr.bf16.mxu0 %v11779
    %11907 = vmatpush1.bf16.msra.mxu0 %v11778
    %11908 = vmatprep.subr.bf16.mxu0 %v11781
    %11909 = vmatpush1.bf16.msra.mxu0 %v11780
    %11910 = vmatprep.subr.bf16.mxu0 %v11783
    %11911 = vmatpush1.bf16.msra.mxu0 %v11782
    %11912 = vmatprep.subr.bf16.mxu0 %v11785
    %11913 = vmatpush1.bf16.msra.mxu0 %v11784
    %11914 = vmatprep.subr.bf16.mxu0 %v11787
    %11915 = vmatpush1.bf16.msra.mxu0 %v11786
    %11916 = vmatprep.subr.bf16.mxu0 %v11789
    %11917 = vmatpush1.bf16.msra.mxu0 %v11788
    %11918 = vmatprep.subr.bf16.mxu0 %v11791
    %11919 = vmatpush1.bf16.msra.mxu0 %v11790
    %11920 = vmatprep.subr.bf16.mxu0 %v11793
    %11921 = vmatpush1.bf16.msra.mxu0 %v11792
    %11922 = vmatprep.subr.bf16.mxu0 %v11795
    %11923 = vmatpush1.bf16.msra.mxu0 %v11794
    %11924 = vmatprep.mubr.bf16.mxu0 %v11504
    %11925 = vmatmul.mubr.bf16.gmra.mrb[0].mxu0 %v11503
    %v11926 = vpop.f32.mrb[0].mxu0
    %v11927 = vadd.f32 0.0, %v11926
    %v11928 = vpop.f32.mrb[0].mxu0
    %v11929 = vadd.f32 0.0, %v11928
    %v11930 = vpop.f32.mrb[0].mxu0
    %v11931 = vpop.f32.mrb[0].mxu0
    %11932 = vdwg.mxu0
    %11933 = vmatprep.subr.bf16.mxu0 %v11797
    %11934 = vmatpush1.bf16.msra.mxu0 %v11796
    %11935 = vmatprep.subr.bf16.mxu0 %v11799
    %11936 = vmatpush1.bf16.msra.mxu0 %v11798
    %11937 = vmatprep.subr.bf16.mxu0 %v11801
    %11938 = vmatpush1.bf16.msra.mxu0 %v11800
    %11939 = vmatprep.subr.bf16.mxu0 %v11803
    %11940 = vmatpush1.bf16.msra.mxu0 %v11802
    %11941 = vmatprep.subr.bf16.mxu0 %v11805
    %11942 = vmatpush1.bf16.msra.mxu0 %v11804
    %11943 = vmatprep.subr.bf16.mxu0 %v11807
    %11944 = vmatpush1.bf16.msra.mxu0 %v11806
    %11945 = vmatprep.subr.bf16.mxu0 %v11809
    %11946 = vmatpush1.bf16.msra.mxu0 %v11808
    %11947 = vmatprep.subr.bf16.mxu0 %v11811
    %11948 = vmatpush1.bf16.msra.mxu0 %v11810
    %11949 = vmatprep.subr.bf16.mxu0 %v11813
    %11950 = vmatpush1.bf16.msra.mxu0 %v11812
    %11951 = vmatprep.subr.bf16.mxu0 %v11815
    %11952 = vmatpush1.bf16.msra.mxu0 %v11814
    %11953 = vmatprep.subr.bf16.mxu0 %v11817
    %11954 = vmatpush1.bf16.msra.mxu0 %v11816
    %11955 = vmatprep.subr.bf16.mxu0 %v11819
    %11956 = vmatpush1.bf16.msra.mxu0 %v11818
    %11957 = vmatprep.subr.bf16.mxu0 %v11821
    %11958 = vmatpush1.bf16.msra.mxu0 %v11820
    %11959 = vmatprep.subr.bf16.mxu0 %v11823
    %11960 = vmatpush1.bf16.msra.mxu0 %v11822
    %11961 = vmatprep.subr.bf16.mxu0 %v11825
    %11962 = vmatpush1.bf16.msra.mxu0 %v11824
    %11963 = vmatprep.subr.bf16.mxu0 %v11827
    %11964 = vmatpush1.bf16.msra.mxu0 %v11826
    %11965 = vmatprep.mubr.bf16.mxu0 %v11506
    %11966 = vmatmul.mubr.bf16.gmra.mrb[0].mxu0 %v11505
    %v11967 = vpop.f32.mrb[0].mxu0
    %v11968 = vadd.f32 %v11927, %v11967
    %v11969 = vpop.f32.mrb[0].mxu0
    %v11970 = vadd.f32 %v11929, %v11969
    %v11971 = vpop.f32.mrb[0].mxu0
    %v11972 = vpop.f32.mrb[0].mxu0
    %11973 = vdwg.mxu0
    %v11974 = vadd.f32 %v11501, %v11968
    %v11975 = vadd.f32 %v11502, %v11970
    %v11976 = vpack.c.bf16 %v10077, %v10077
    %v11977 = vpack.c.bf16 %v10078, %v10078
    %v11978 = vpack.c.bf16 %v10079, %v10079
    %v11979 = vpack.c.bf16 %v10080, %v10080
    %s11980 = scalar_lea.vmem [#allocation10], 2048
    %v11981 = vld [vmem:[%s11980] sm:$0xff]
    %v11982 = vld [vmem:[%s11980 + $0x8] sm:$0xff]
    %v11983 = vld [vmem:[%s11980 + $0x10] sm:$0xff]
    %v11984 = vld [vmem:[%s11980 + $0x18] sm:$0xff]
    %v11985 = vld [vmem:[%s11980 + $0x20] sm:$0xff]
    %v11986 = vld [vmem:[%s11980 + $0x28] sm:$0xff]
    %v11987 = vld [vmem:[%s11980 + $0x30] sm:$0xff]
    %v11988 = vld [vmem:[%s11980 + $0x38] sm:$0xff]
    %v11989 = vld [vmem:[%s11980 + $0x40] sm:$0xff]
    %v11990 = vld [vmem:[%s11980 + $0x48] sm:$0xff]
    %v11991 = vld [vmem:[%s11980 + $0x50] sm:$0xff]
    %v11992 = vld [vmem:[%s11980 + $0x58] sm:$0xff]
    %v11993 = vld [vmem:[%s11980 + $0x60] sm:$0xff]
    %v11994 = vld [vmem:[%s11980 + $0x68] sm:$0xff]
    %v11995 = vld [vmem:[%s11980 + $0x70] sm:$0xff]
    %v11996 = vld [vmem:[%s11980 + $0x78] sm:$0xff]
    %v11997 = vld [vmem:[%s11980 + $0x80] sm:$0xff]
    %v11998 = vld [vmem:[%s11980 + $0x88] sm:$0xff]
    %v11999 = vld [vmem:[%s11980 + $0x90] sm:$0xff]
    %v12000 = vld [vmem:[%s11980 + $0x98] sm:$0xff]
    %v12001 = vld [vmem:[%s11980 + $0xa0] sm:$0xff]
    %v12002 = vld [vmem:[%s11980 + $0xa8] sm:$0xff]
    %v12003 = vld [vmem:[%s11980 + $0xb0] sm:$0xff]
    %v12004 = vld [vmem:[%s11980 + $0xb8] sm:$0xff]
    %v12005 = vld [vmem:[%s11980 + $0xc0] sm:$0xff]
    %v12006 = vld [vmem:[%s11980 + $0xc8] sm:$0xff]
    %v12007 = vld [vmem:[%s11980 + $0xd0] sm:$0xff]
    %v12008 = vld [vmem:[%s11980 + $0xd8] sm:$0xff]
    %v12009 = vld [vmem:[%s11980 + $0xe0] sm:$0xff]
    %v12010 = vld [vmem:[%s11980 + $0xe8] sm:$0xff]
    %v12011 = vld [vmem:[%s11980 + $0xf0] sm:$0xff]
    %v12012 = vld [vmem:[%s11980 + $0xf8] sm:$0xff]
    %v12013 = vld [vmem:[%s11980 + $0x100] sm:$0xff]
    %v12014 = vld [vmem:[%s11980 + $0x108] sm:$0xff]
    %v12015 = vld [vmem:[%s11980 + $0x110] sm:$0xff]
    %v12016 = vld [vmem:[%s11980 + $0x118] sm:$0xff]
    %v12017 = vld [vmem:[%s11980 + $0x120] sm:$0xff]
    %v12018 = vld [vmem:[%s11980 + $0x128] sm:$0xff]
    %v12019 = vld [vmem:[%s11980 + $0x130] sm:$0xff]
    %v12020 = vld [vmem:[%s11980 + $0x138] sm:$0xff]
    %v12021 = vld [vmem:[%s11980 + $0x140] sm:$0xff]
    %v12022 = vld [vmem:[%s11980 + $0x148] sm:$0xff]
    %v12023 = vld [vmem:[%s11980 + $0x150] sm:$0xff]
    %v12024 = vld [vmem:[%s11980 + $0x158] sm:$0xff]
    %v12025 = vld [vmem:[%s11980 + $0x160] sm:$0xff]
    %v12026 = vld [vmem:[%s11980 + $0x168] sm:$0xff]
    %v12027 = vld [vmem:[%s11980 + $0x170] sm:$0xff]
    %v12028 = vld [vmem:[%s11980 + $0x178] sm:$0xff]
    %v12029 = vld [vmem:[%s11980 + $0x180] sm:$0xff]
    %v12030 = vld [vmem:[%s11980 + $0x188] sm:$0xff]
    %v12031 = vld [vmem:[%s11980 + $0x190] sm:$0xff]
    %v12032 = vld [vmem:[%s11980 + $0x198] sm:$0xff]
    %v12033 = vld [vmem:[%s11980 + $0x1a0] sm:$0xff]
    %v12034 = vld [vmem:[%s11980 + $0x1a8] sm:$0xff]
    %v12035 = vld [vmem:[%s11980 + $0x1b0] sm:$0xff]
    %v12036 = vld [vmem:[%s11980 + $0x1b8] sm:$0xff]
    %v12037 = vld [vmem:[%s11980 + $0x1c0] sm:$0xff]
    %v12038 = vld [vmem:[%s11980 + $0x1c8] sm:$0xff]
    %v12039 = vld [vmem:[%s11980 + $0x1d0] sm:$0xff]
    %v12040 = vld [vmem:[%s11980 + $0x1d8] sm:$0xff]
    %v12041 = vld [vmem:[%s11980 + $0x1e0] sm:$0xff]
    %v12042 = vld [vmem:[%s11980 + $0x1e8] sm:$0xff]
    %v12043 = vld [vmem:[%s11980 + $0x1f0] sm:$0xff]
    %v12044 = vld [vmem:[%s11980 + $0x1f8] sm:$0xff]
    %v12109 = vunpack.c.l.b16 %v11981
    %v12110 = vunpack.c.h.b16 %v11981
    %v12111 = vunpack.c.l.b16 %v11982
    %v12112 = vunpack.c.h.b16 %v11982
    %v12113 = vunpack.c.l.b16 %v11983
    %v12114 = vunpack.c.h.b16 %v11983
    %v12115 = vunpack.c.l.b16 %v11984
    %v12116 = vunpack.c.h.b16 %v11984
    %v12117 = vunpack.c.l.b16 %v11985
    %v12118 = vunpack.c.h.b16 %v11985
    %v12119 = vunpack.c.l.b16 %v11986
    %v12120 = vunpack.c.h.b16 %v11986
    %v12121 = vunpack.c.l.b16 %v11987
    %v12122 = vunpack.c.h.b16 %v11987
    %v12123 = vunpack.c.l.b16 %v11988
    %v12124 = vunpack.c.h.b16 %v11988
    %v12125 = vunpack.c.l.b16 %v11989
    %v12126 = vunpack.c.h.b16 %v11989
    %v12127 = vunpack.c.l.b16 %v11990
    %v12128 = vunpack.c.h.b16 %v11990
    %v12129 = vunpack.c.l.b16 %v11991
    %v12130 = vunpack.c.h.b16 %v11991
    %v12131 = vunpack.c.l.b16 %v11992
    %v12132 = vunpack.c.h.b16 %v11992
    %v12133 = vunpack.c.l.b16 %v11993
    %v12134 = vunpack.c.h.b16 %v11993
    %v12135 = vunpack.c.l.b16 %v11994
    %v12136 = vunpack.c.h.b16 %v11994
    %v12137 = vunpack.c.l.b16 %v11995
    %v12138 = vunpack.c.h.b16 %v11995
    %v12139 = vunpack.c.l.b16 %v11996
    %v12140 = vunpack.c.h.b16 %v11996
    %v12141 = vunpack.c.l.b16 %v11997
    %v12142 = vunpack.c.h.b16 %v11997
    %v12143 = vunpack.c.l.b16 %v11998
    %v12144 = vunpack.c.h.b16 %v11998
    %v12145 = vunpack.c.l.b16 %v11999
    %v12146 = vunpack.c.h.b16 %v11999
    %v12147 = vunpack.c.l.b16 %v12000
    %v12148 = vunpack.c.h.b16 %v12000
    %v12149 = vunpack.c.l.b16 %v12001
    %v12150 = vunpack.c.h.b16 %v12001
    %v12151 = vunpack.c.l.b16 %v12002
    %v12152 = vunpack.c.h.b16 %v12002
    %v12153 = vunpack.c.l.b16 %v12003
    %v12154 = vunpack.c.h.b16 %v12003
    %v12155 = vunpack.c.l.b16 %v12004
    %v12156 = vunpack.c.h.b16 %v12004
    %v12157 = vunpack.c.l.b16 %v12005
    %v12158 = vunpack.c.h.b16 %v12005
    %v12159 = vunpack.c.l.b16 %v12006
    %v12160 = vunpack.c.h.b16 %v12006
    %v12161 = vunpack.c.l.b16 %v12007
    %v12162 = vunpack.c.h.b16 %v12007
    %v12163 = vunpack.c.l.b16 %v12008
    %v12164 = vunpack.c.h.b16 %v12008
    %v12165 = vunpack.c.l.b16 %v12009
    %v12166 = vunpack.c.h.b16 %v12009
    %v12167 = vunpack.c.l.b16 %v12010
    %v12168 = vunpack.c.h.b16 %v12010
    %v12169 = vunpack.c.l.b16 %v12011
    %v12170 = vunpack.c.h.b16 %v12011
    %v12171 = vunpack.c.l.b16 %v12012
    %v12172 = vunpack.c.h.b16 %v12012
    %v12173 = vunpack.c.l.b16 %v12013
    %v12174 = vunpack.c.h.b16 %v12013
    %v12175 = vunpack.c.l.b16 %v12014
    %v12176 = vunpack.c.h.b16 %v12014
    %v12177 = vunpack.c.l.b16 %v12015
    %v12178 = vunpack.c.h.b16 %v12015
    %v12179 = vunpack.c.l.b16 %v12016
    %v12180 = vunpack.c.h.b16 %v12016
    %v12181 = vunpack.c.l.b16 %v12017
    %v12182 = vunpack.c.h.b16 %v12017
    %v12183 = vunpack.c.l.b16 %v12018
    %v12184 = vunpack.c.h.b16 %v12018
    %v12185 = vunpack.c.l.b16 %v12019
    %v12186 = vunpack.c.h.b16 %v12019
    %v12187 = vunpack.c.l.b16 %v12020
    %v12188 = vunpack.c.h.b16 %v12020
    %v12189 = vunpack.c.l.b16 %v12021
    %v12190 = vunpack.c.h.b16 %v12021
    %v12191 = vunpack.c.l.b16 %v12022
    %v12192 = vunpack.c.h.b16 %v12022
    %v12193 = vunpack.c.l.b16 %v12023
    %v12194 = vunpack.c.h.b16 %v12023
    %v12195 = vunpack.c.l.b16 %v12024
    %v12196 = vunpack.c.h.b16 %v12024
    %v12197 = vunpack.c.l.b16 %v12025
    %v12198 = vunpack.c.h.b16 %v12025
    %v12199 = vunpack.c.l.b16 %v12026
    %v12200 = vunpack.c.h.b16 %v12026
    %v12201 = vunpack.c.l.b16 %v12027
    %v12202 = vunpack.c.h.b16 %v12027
    %v12203 = vunpack.c.l.b16 %v12028
    %v12204 = vunpack.c.h.b16 %v12028
    %v12205 = vunpack.c.l.b16 %v12029
    %v12206 = vunpack.c.h.b16 %v12029
    %v12207 = vunpack.c.l.b16 %v12030
    %v12208 = vunpack.c.h.b16 %v12030
    %v12209 = vunpack.c.l.b16 %v12031
    %v12210 = vunpack.c.h.b16 %v12031
    %v12211 = vunpack.c.l.b16 %v12032
    %v12212 = vunpack.c.h.b16 %v12032
    %v12213 = vunpack.c.l.b16 %v12033
    %v12214 = vunpack.c.h.b16 %v12033
    %v12215 = vunpack.c.l.b16 %v12034
    %v12216 = vunpack.c.h.b16 %v12034
    %v12217 = vunpack.c.l.b16 %v12035
    %v12218 = vunpack.c.h.b16 %v12035
    %v12219 = vunpack.c.l.b16 %v12036
    %v12220 = vunpack.c.h.b16 %v12036
    %v12221 = vunpack.c.l.b16 %v12037
    %v12222 = vunpack.c.h.b16 %v12037
    %v12223 = vunpack.c.l.b16 %v12038
    %v12224 = vunpack.c.h.b16 %v12038
    %v12225 = vunpack.c.l.b16 %v12039
    %v12226 = vunpack.c.h.b16 %v12039
    %v12227 = vunpack.c.l.b16 %v12040
    %v12228 = vunpack.c.h.b16 %v12040
    %v12229 = vunpack.c.l.b16 %v12041
    %v12230 = vunpack.c.h.b16 %v12041
    %v12231 = vunpack.c.l.b16 %v12042
    %v12232 = vunpack.c.h.b16 %v12042
    %v12233 = vunpack.c.l.b16 %v12043
    %v12234 = vunpack.c.h.b16 %v12043
    %v12235 = vunpack.c.l.b16 %v12044
    %v12236 = vunpack.c.h.b16 %v12044
    %v12237 = vpack.c.b16 %v12111, %v12109
    %v12238 = vpack.c.b16 %v12112, %v12110
    %v12239 = vpack.c.b16 %v12115, %v12113
    %v12240 = vpack.c.b16 %v12116, %v12114
    %v12241 = vpack.c.b16 %v12119, %v12117
    %v12242 = vpack.c.b16 %v12120, %v12118
    %v12243 = vpack.c.b16 %v12123, %v12121
    %v12244 = vpack.c.b16 %v12124, %v12122
    %v12245 = vpack.c.b16 %v12127, %v12125
    %v12246 = vpack.c.b16 %v12128, %v12126
    %v12247 = vpack.c.b16 %v12131, %v12129
    %v12248 = vpack.c.b16 %v12132, %v12130
    %v12249 = vpack.c.b16 %v12135, %v12133
    %v12250 = vpack.c.b16 %v12136, %v12134
    %v12251 = vpack.c.b16 %v12139, %v12137
    %v12252 = vpack.c.b16 %v12140, %v12138
    %v12253 = vpack.c.b16 %v12143, %v12141
    %v12254 = vpack.c.b16 %v12144, %v12142
    %v12255 = vpack.c.b16 %v12147, %v12145
    %v12256 = vpack.c.b16 %v12148, %v12146
    %v12257 = vpack.c.b16 %v12151, %v12149
    %v12258 = vpack.c.b16 %v12152, %v12150
    %v12259 = vpack.c.b16 %v12155, %v12153
    %v12260 = vpack.c.b16 %v12156, %v12154
    %v12261 = vpack.c.b16 %v12159, %v12157
    %v12262 = vpack.c.b16 %v12160, %v12158
    %v12263 = vpack.c.b16 %v12163, %v12161
    %v12264 = vpack.c.b16 %v12164, %v12162
    %v12265 = vpack.c.b16 %v12167, %v12165
    %v12266 = vpack.c.b16 %v12168, %v12166
    %v12267 = vpack.c.b16 %v12171, %v12169
    %v12268 = vpack.c.b16 %v12172, %v12170
    %v12269 = vpack.c.b16 %v12175, %v12173
    %v12270 = vpack.c.b16 %v12176, %v12174
    %v12271 = vpack.c.b16 %v12179, %v12177
    %v12272 = vpack.c.b16 %v12180, %v12178
    %v12273 = vpack.c.b16 %v12183, %v12181
    %v12274 = vpack.c.b16 %v12184, %v12182
    %v12275 = vpack.c.b16 %v12187, %v12185
    %v12276 = vpack.c.b16 %v12188, %v12186
    %v12277 = vpack.c.b16 %v12191, %v12189
    %v12278 = vpack.c.b16 %v12192, %v12190
    %v12279 = vpack.c.b16 %v12195, %v12193
    %v12280 = vpack.c.b16 %v12196, %v12194
    %v12281 = vpack.c.b16 %v12199, %v12197
    %v12282 = vpack.c.b16 %v12200, %v12198
    %v12283 = vpack.c.b16 %v12203, %v12201
    %v12284 = vpack.c.b16 %v12204, %v12202
    %v12285 = vpack.c.b16 %v12207, %v12205
    %v12286 = vpack.c.b16 %v12208, %v12206
    %v12287 = vpack.c.b16 %v12211, %v12209
    %v12288 = vpack.c.b16 %v12212, %v12210
    %v12289 = vpack.c.b16 %v12215, %v12213
    %v12290 = vpack.c.b16 %v12216, %v12214
    %v12291 = vpack.c.b16 %v12219, %v12217
    %v12292 = vpack.c.b16 %v12220, %v12218
    %v12293 = vpack.c.b16 %v12223, %v12221
    %v12294 = vpack.c.b16 %v12224, %v12222
    %v12295 = vpack.c.b16 %v12227, %v12225
    %v12296 = vpack.c.b16 %v12228, %v12226
    %v12297 = vpack.c.b16 %v12231, %v12229
    %v12298 = vpack.c.b16 %v12232, %v12230
    %v12299 = vpack.c.b16 %v12235, %v12233
    %v12300 = vpack.c.b16 %v12236, %v12234
    %12365 = vmatprep.subr.bf16.mxu0 %v12238
    %12366 = vmatpush1.bf16.msra.mxu0 %v12237
    %12367 = vmatprep.subr.bf16.mxu0 %v12240
    %12368 = vmatpush1.bf16.msra.mxu0 %v12239
    %12369 = vmatprep.subr.bf16.mxu0 %v12242
    %12370 = vmatpush1.bf16.msra.mxu0 %v12241
    %12371 = vmatprep.subr.bf16.mxu0 %v12244
    %12372 = vmatpush1.bf16.msra.mxu0 %v12243
    %12373 = vmatprep.subr.bf16.mxu0 %v12246
    %12374 = vmatpush1.bf16.msra.mxu0 %v12245
    %12375 = vmatprep.subr.bf16.mxu0 %v12248
    %12376 = vmatpush1.bf16.msra.mxu0 %v12247
    %12377 = vmatprep.subr.bf16.mxu0 %v12250
    %12378 = vmatpush1.bf16.msra.mxu0 %v12249
    %12379 = vmatprep.subr.bf16.mxu0 %v12252
    %12380 = vmatpush1.bf16.msra.mxu0 %v12251
    %12381 = vmatprep.subr.bf16.mxu0 %v12254
    %12382 = vmatpush1.bf16.msra.mxu0 %v12253
    %12383 = vmatprep.subr.bf16.mxu0 %v12256
    %12384 = vmatpush1.bf16.msra.mxu0 %v12255
    %12385 = vmatprep.subr.bf16.mxu0 %v12258
    %12386 = vmatpush1.bf16.msra.mxu0 %v12257
    %12387 = vmatprep.subr.bf16.mxu0 %v12260
    %12388 = vmatpush1.bf16.msra.mxu0 %v12259
    %12389 = vmatprep.subr.bf16.mxu0 %v12262
    %12390 = vmatpush1.bf16.msra.mxu0 %v12261
    %12391 = vmatprep.subr.bf16.mxu0 %v12264
    %12392 = vmatpush1.bf16.msra.mxu0 %v12263
    %12393 = vmatprep.subr.bf16.mxu0 %v12266
    %12394 = vmatpush1.bf16.msra.mxu0 %v12265
    %12395 = vmatprep.subr.bf16.mxu0 %v12268
    %12396 = vmatpush1.bf16.msra.mxu0 %v12267
    %12397 = vmatprep.mubr.bf16.mxu0 %v11977
    %12398 = vmatmul.mubr.bf16.gmra.mrb[0].mxu0 %v11976
    %v12399 = vpop.f32.mrb[0].mxu0
    %v12400 = vadd.f32 0.0, %v12399
    %v12401 = vpop.f32.mrb[0].mxu0
    %v12402 = vadd.f32 0.0, %v12401
    %v12403 = vpop.f32.mrb[0].mxu0
    %v12404 = vpop.f32.mrb[0].mxu0
    %12405 = vdwg.mxu0
    %12406 = vmatprep.subr.bf16.mxu0 %v12270
    %12407 = vmatpush1.bf16.msra.mxu0 %v12269
    %12408 = vmatprep.subr.bf16.mxu0 %v12272
    %12409 = vmatpush1.bf16.msra.mxu0 %v12271
    %12410 = vmatprep.subr.bf16.mxu0 %v12274
    %12411 = vmatpush1.bf16.msra.mxu0 %v12273
    %12412 = vmatprep.subr.bf16.mxu0 %v12276
    %12413 = vmatpush1.bf16.msra.mxu0 %v12275
    %12414 = vmatprep.subr.bf16.mxu0 %v12278
    %12415 = vmatpush1.bf16.msra.mxu0 %v12277
    %12416 = vmatprep.subr.bf16.mxu0 %v12280
    %12417 = vmatpush1.bf16.msra.mxu0 %v12279
    %12418 = vmatprep.subr.bf16.mxu0 %v12282
    %12419 = vmatpush1.bf16.msra.mxu0 %v12281
    %12420 = vmatprep.subr.bf16.mxu0 %v12284
    %12421 = vmatpush1.bf16.msra.mxu0 %v12283
    %12422 = vmatprep.subr.bf16.mxu0 %v12286
    %12423 = vmatpush1.bf16.msra.mxu0 %v12285
    %12424 = vmatprep.subr.bf16.mxu0 %v12288
    %12425 = vmatpush1.bf16.msra.mxu0 %v12287
    %12426 = vmatprep.subr.bf16.mxu0 %v12290
    %12427 = vmatpush1.bf16.msra.mxu0 %v12289
    %12428 = vmatprep.subr.bf16.mxu0 %v12292
    %12429 = vmatpush1.bf16.msra.mxu0 %v12291
    %12430 = vmatprep.subr.bf16.mxu0 %v12294
    %12431 = vmatpush1.bf16.msra.mxu0 %v12293
    %12432 = vmatprep.subr.bf16.mxu0 %v12296
    %12433 = vmatpush1.bf16.msra.mxu0 %v12295
    %12434 = vmatprep.subr.bf16.mxu0 %v12298
    %12435 = vmatpush1.bf16.msra.mxu0 %v12297
    %12436 = vmatprep.subr.bf16.mxu0 %v12300
    %12437 = vmatpush1.bf16.msra.mxu0 %v12299
    %12438 = vmatprep.mubr.bf16.mxu0 %v11979
    %12439 = vmatmul.mubr.bf16.gmra.mrb[0].mxu0 %v11978
    %v12440 = vpop.f32.mrb[0].mxu0
    %v12441 = vadd.f32 %v12400, %v12440
    %v12442 = vpop.f32.mrb[0].mxu0
    %v12443 = vadd.f32 %v12402, %v12442
    %v12444 = vpop.f32.mrb[0].mxu0
    %v12445 = vpop.f32.mrb[0].mxu0
    %12446 = vdwg.mxu0
    %v12447 = vadd.f32 %v11974, %v12441
    %v12448 = vadd.f32 %v11975, %v12443
    %v12449 = vpack.c.bf16 %v10081, %v10081
    %v12450 = vpack.c.bf16 %v10082, %v10082
    %v12451 = vpack.c.bf16 %v10083, %v10083
    %v12452 = vpack.c.bf16 %v10084, %v10084
    %s12453 = scalar_lea.vmem [#allocation10], 2560
    %v12454 = vld [vmem:[%s12453] sm:$0xff]
    %v12455 = vld [vmem:[%s12453 + $0x8] sm:$0xff]
    %v12456 = vld [vmem:[%s12453 + $0x10] sm:$0xff]
    %v12457 = vld [vmem:[%s12453 + $0x18] sm:$0xff]
    %v12458 = vld [vmem:[%s12453 + $0x20] sm:$0xff]
    %v12459 = vld [vmem:[%s12453 + $0x28] sm:$0xff]
    %v12460 = vld [vmem:[%s12453 + $0x30] sm:$0xff]
    %v12461 = vld [vmem:[%s12453 + $0x38] sm:$0xff]
    %v12462 = vld [vmem:[%s12453 + $0x40] sm:$0xff]
    %v12463 = vld [vmem:[%s12453 + $0x48] sm:$0xff]
    %v12464 = vld [vmem:[%s12453 + $0x50] sm:$0xff]
    %v12465 = vld [vmem:[%s12453 + $0x58] sm:$0xff]
    %v12466 = vld [vmem:[%s12453 + $0x60] sm:$0xff]
    %v12467 = vld [vmem:[%s12453 + $0x68] sm:$0xff]
    %v12468 = vld [vmem:[%s12453 + $0x70] sm:$0xff]
    %v12469 = vld [vmem:[%s12453 + $0x78] sm:$0xff]
    %v12470 = vld [vmem:[%s12453 + $0x80] sm:$0xff]
    %v12471 = vld [vmem:[%s12453 + $0x88] sm:$0xff]
    %v12472 = vld [vmem:[%s12453 + $0x90] sm:$0xff]
    %v12473 = vld [vmem:[%s12453 + $0x98] sm:$0xff]
    %v12474 = vld [vmem:[%s12453 + $0xa0] sm:$0xff]
    %v12475 = vld [vmem:[%s12453 + $0xa8] sm:$0xff]
    %v12476 = vld [vmem:[%s12453 + $0xb0] sm:$0xff]
    %v12477 = vld [vmem:[%s12453 + $0xb8] sm:$0xff]
    %v12478 = vld [vmem:[%s12453 + $0xc0] sm:$0xff]
    %v12479 = vld [vmem:[%s12453 + $0xc8] sm:$0xff]
    %v12480 = vld [vmem:[%s12453 + $0xd0] sm:$0xff]
    %v12481 = vld [vmem:[%s12453 + $0xd8] sm:$0xff]
    %v12482 = vld [vmem:[%s12453 + $0xe0] sm:$0xff]
    %v12483 = vld [vmem:[%s12453 + $0xe8] sm:$0xff]
    %v12484 = vld [vmem:[%s12453 + $0xf0] sm:$0xff]
    %v12485 = vld [vmem:[%s12453 + $0xf8] sm:$0xff]
    %v12486 = vld [vmem:[%s12453 + $0x100] sm:$0xff]
    %v12487 = vld [vmem:[%s12453 + $0x108] sm:$0xff]
    %v12488 = vld [vmem:[%s12453 + $0x110] sm:$0xff]
    %v12489 = vld [vmem:[%s12453 + $0x118] sm:$0xff]
    %v12490 = vld [vmem:[%s12453 + $0x120] sm:$0xff]
    %v12491 = vld [vmem:[%s12453 + $0x128] sm:$0xff]
    %v12492 = vld [vmem:[%s12453 + $0x130] sm:$0xff]
    %v12493 = vld [vmem:[%s12453 + $0x138] sm:$0xff]
    %v12494 = vld [vmem:[%s12453 + $0x140] sm:$0xff]
    %v12495 = vld [vmem:[%s12453 + $0x148] sm:$0xff]
    %v12496 = vld [vmem:[%s12453 + $0x150] sm:$0xff]
    %v12497 = vld [vmem:[%s12453 + $0x158] sm:$0xff]
    %v12498 = vld [vmem:[%s12453 + $0x160] sm:$0xff]
    %v12499 = vld [vmem:[%s12453 + $0x168] sm:$0xff]
    %v12500 = vld [vmem:[%s12453 + $0x170] sm:$0xff]
    %v12501 = vld [vmem:[%s12453 + $0x178] sm:$0xff]
    %v12502 = vld [vmem:[%s12453 + $0x180] sm:$0xff]
    %v12503 = vld [vmem:[%s12453 + $0x188] sm:$0xff]
    %v12504 = vld [vmem:[%s12453 + $0x190] sm:$0xff]
    %v12505 = vld [vmem:[%s12453 + $0x198] sm:$0xff]
    %v12506 = vld [vmem:[%s12453 + $0x1a0] sm:$0xff]
    %v12507 = vld [vmem:[%s12453 + $0x1a8] sm:$0xff]
    %v12508 = vld [vmem:[%s12453 + $0x1b0] sm:$0xff]
    %v12509 = vld [vmem:[%s12453 + $0x1b8] sm:$0xff]
    %v12510 = vld [vmem:[%s12453 + $0x1c0] sm:$0xff]
    %v12511 = vld [vmem:[%s12453 + $0x1c8] sm:$0xff]
    %v12512 = vld [vmem:[%s12453 + $0x1d0] sm:$0xff]
    %v12513 = vld [vmem:[%s12453 + $0x1d8] sm:$0xff]
    %v12514 = vld [vmem:[%s12453 + $0x1e0] sm:$0xff]
    %v12515 = vld [vmem:[%s12453 + $0x1e8] sm:$0xff]
    %v12516 = vld [vmem:[%s12453 + $0x1f0] sm:$0xff]
    %v12517 = vld [vmem:[%s12453 + $0x1f8] sm:$0xff]
    %v12582 = vunpack.c.l.b16 %v12454
    %v12583 = vunpack.c.h.b16 %v12454
    %v12584 = vunpack.c.l.b16 %v12455
    %v12585 = vunpack.c.h.b16 %v12455
    %v12586 = vunpack.c.l.b16 %v12456
    %v12587 = vunpack.c.h.b16 %v12456
    %v12588 = vunpack.c.l.b16 %v12457
    %v12589 = vunpack.c.h.b16 %v12457
    %v12590 = vunpack.c.l.b16 %v12458
    %v12591 = vunpack.c.h.b16 %v12458
    %v12592 = vunpack.c.l.b16 %v12459
    %v12593 = vunpack.c.h.b16 %v12459
    %v12594 = vunpack.c.l.b16 %v12460
    %v12595 = vunpack.c.h.b16 %v12460
    %v12596 = vunpack.c.l.b16 %v12461
    %v12597 = vunpack.c.h.b16 %v12461
    %v12598 = vunpack.c.l.b16 %v12462
    %v12599 = vunpack.c.h.b16 %v12462
    %v12600 = vunpack.c.l.b16 %v12463
    %v12601 = vunpack.c.h.b16 %v12463
    %v12602 = vunpack.c.l.b16 %v12464
    %v12603 = vunpack.c.h.b16 %v12464
    %v12604 = vunpack.c.l.b16 %v12465
    %v12605 = vunpack.c.h.b16 %v12465
    %v12606 = vunpack.c.l.b16 %v12466
    %v12607 = vunpack.c.h.b16 %v12466
    %v12608 = vunpack.c.l.b16 %v12467
    %v12609 = vunpack.c.h.b16 %v12467
    %v12610 = vunpack.c.l.b16 %v12468
    %v12611 = vunpack.c.h.b16 %v12468
    %v12612 = vunpack.c.l.b16 %v12469
    %v12613 = vunpack.c.h.b16 %v12469
    %v12614 = vunpack.c.l.b16 %v12470
    %v12615 = vunpack.c.h.b16 %v12470
    %v12616 = vunpack.c.l.b16 %v12471
    %v12617 = vunpack.c.h.b16 %v12471
    %v12618 = vunpack.c.l.b16 %v12472
    %v12619 = vunpack.c.h.b16 %v12472
    %v12620 = vunpack.c.l.b16 %v12473
    %v12621 = vunpack.c.h.b16 %v12473
    %v12622 = vunpack.c.l.b16 %v12474
    %v12623 = vunpack.c.h.b16 %v12474
    %v12624 = vunpack.c.l.b16 %v12475
    %v12625 = vunpack.c.h.b16 %v12475
    %v12626 = vunpack.c.l.b16 %v12476
    %v12627 = vunpack.c.h.b16 %v12476
    %v12628 = vunpack.c.l.b16 %v12477
    %v12629 = vunpack.c.h.b16 %v12477
    %v12630 = vunpack.c.l.b16 %v12478
    %v12631 = vunpack.c.h.b16 %v12478
    %v12632 = vunpack.c.l.b16 %v12479
    %v12633 = vunpack.c.h.b16 %v12479
    %v12634 = vunpack.c.l.b16 %v12480
    %v12635 = vunpack.c.h.b16 %v12480
    %v12636 = vunpack.c.l.b16 %v12481
    %v12637 = vunpack.c.h.b16 %v12481
    %v12638 = vunpack.c.l.b16 %v12482
    %v12639 = vunpack.c.h.b16 %v12482
    %v12640 = vunpack.c.l.b16 %v12483
    %v12641 = vunpack.c.h.b16 %v12483
    %v12642 = vunpack.c.l.b16 %v12484
    %v12643 = vunpack.c.h.b16 %v12484
    %v12644 = vunpack.c.l.b16 %v12485
    %v12645 = vunpack.c.h.b16 %v12485
    %v12646 = vunpack.c.l.b16 %v12486
    %v12647 = vunpack.c.h.b16 %v12486
    %v12648 = vunpack.c.l.b16 %v12487
    %v12649 = vunpack.c.h.b16 %v12487
    %v12650 = vunpack.c.l.b16 %v12488
    %v12651 = vunpack.c.h.b16 %v12488
    %v12652 = vunpack.c.l.b16 %v12489
    %v12653 = vunpack.c.h.b16 %v12489
    %v12654 = vunpack.c.l.b16 %v12490
    %v12655 = vunpack.c.h.b16 %v12490
    %v12656 = vunpack.c.l.b16 %v12491
    %v12657 = vunpack.c.h.b16 %v12491
    %v12658 = vunpack.c.l.b16 %v12492
    %v12659 = vunpack.c.h.b16 %v12492
    %v12660 = vunpack.c.l.b16 %v12493
    %v12661 = vunpack.c.h.b16 %v12493
    %v12662 = vunpack.c.l.b16 %v12494
    %v12663 = vunpack.c.h.b16 %v12494
    %v12664 = vunpack.c.l.b16 %v12495
    %v12665 = vunpack.c.h.b16 %v12495
    %v12666 = vunpack.c.l.b16 %v12496
    %v12667 = vunpack.c.h.b16 %v12496
    %v12668 = vunpack.c.l.b16 %v12497
    %v12669 = vunpack.c.h.b16 %v12497
    %v12670 = vunpack.c.l.b16 %v12498
    %v12671 = vunpack.c.h.b16 %v12498
    %v12672 = vunpack.c.l.b16 %v12499
    %v12673 = vunpack.c.h.b16 %v12499
    %v12674 = vunpack.c.l.b16 %v12500
    %v12675 = vunpack.c.h.b16 %v12500
    %v12676 = vunpack.c.l.b16 %v12501
    %v12677 = vunpack.c.h.b16 %v12501
    %v12678 = vunpack.c.l.b16 %v12502
    %v12679 = vunpack.c.h.b16 %v12502
    %v12680 = vunpack.c.l.b16 %v12503
    %v12681 = vunpack.c.h.b16 %v12503
    %v12682 = vunpack.c.l.b16 %v12504
    %v12683 = vunpack.c.h.b16 %v12504
    %v12684 = vunpack.c.l.b16 %v12505
    %v12685 = vunpack.c.h.b16 %v12505
    %v12686 = vunpack.c.l.b16 %v12506
    %v12687 = vunpack.c.h.b16 %v12506
    %v12688 = vunpack.c.l.b16 %v12507
    %v12689 = vunpack.c.h.b16 %v12507
    %v12690 = vunpack.c.l.b16 %v12508
    %v12691 = vunpack.c.h.b16 %v12508
    %v12692 = vunpack.c.l.b16 %v12509
    %v12693 = vunpack.c.h.b16 %v12509
    %v12694 = vunpack.c.l.b16 %v12510
    %v12695 = vunpack.c.h.b16 %v12510
    %v12696 = vunpack.c.l.b16 %v12511
    %v12697 = vunpack.c.h.b16 %v12511
    %v12698 = vunpack.c.l.b16 %v12512
    %v12699 = vunpack.c.h.b16 %v12512
    %v12700 = vunpack.c.l.b16 %v12513
    %v12701 = vunpack.c.h.b16 %v12513
    %v12702 = vunpack.c.l.b16 %v12514
    %v12703 = vunpack.c.h.b16 %v12514
    %v12704 = vunpack.c.l.b16 %v12515
    %v12705 = vunpack.c.h.b16 %v12515
    %v12706 = vunpack.c.l.b16 %v12516
    %v12707 = vunpack.c.h.b16 %v12516
    %v12708 = vunpack.c.l.b16 %v12517
    %v12709 = vunpack.c.h.b16 %v12517
    %v12710 = vpack.c.b16 %v12584, %v12582
    %v12711 = vpack.c.b16 %v12585, %v12583
    %v12712 = vpack.c.b16 %v12588, %v12586
    %v12713 = vpack.c.b16 %v12589, %v12587
    %v12714 = vpack.c.b16 %v12592, %v12590
    %v12715 = vpack.c.b16 %v12593, %v12591
    %v12716 = vpack.c.b16 %v12596, %v12594
    %v12717 = vpack.c.b16 %v12597, %v12595
    %v12718 = vpack.c.b16 %v12600, %v12598
    %v12719 = vpack.c.b16 %v12601, %v12599
    %v12720 = vpack.c.b16 %v12604, %v12602
    %v12721 = vpack.c.b16 %v12605, %v12603
    %v12722 = vpack.c.b16 %v12608, %v12606
    %v12723 = vpack.c.b16 %v12609, %v12607
    %v12724 = vpack.c.b16 %v12612, %v12610
    %v12725 = vpack.c.b16 %v12613, %v12611
    %v12726 = vpack.c.b16 %v12616, %v12614
    %v12727 = vpack.c.b16 %v12617, %v12615
    %v12728 = vpack.c.b16 %v12620, %v12618
    %v12729 = vpack.c.b16 %v12621, %v12619
    %v12730 = vpack.c.b16 %v12624, %v12622
    %v12731 = vpack.c.b16 %v12625, %v12623
    %v12732 = vpack.c.b16 %v12628, %v12626
    %v12733 = vpack.c.b16 %v12629, %v12627
    %v12734 = vpack.c.b16 %v12632, %v12630
    %v12735 = vpack.c.b16 %v12633, %v12631
    %v12736 = vpack.c.b16 %v12636, %v12634
    %v12737 = vpack.c.b16 %v12637, %v12635
    %v12738 = vpack.c.b16 %v12640, %v12638
    %v12739 = vpack.c.b16 %v12641, %v12639
    %v12740 = vpack.c.b16 %v12644, %v12642
    %v12741 = vpack.c.b16 %v12645, %v12643
    %v12742 = vpack.c.b16 %v12648, %v12646
    %v12743 = vpack.c.b16 %v12649, %v12647
    %v12744 = vpack.c.b16 %v12652, %v12650
    %v12745 = vpack.c.b16 %v12653, %v12651
    %v12746 = vpack.c.b16 %v12656, %v12654
    %v12747 = vpack.c.b16 %v12657, %v12655
    %v12748 = vpack.c.b16 %v12660, %v12658
    %v12749 = vpack.c.b16 %v12661, %v12659
    %v12750 = vpack.c.b16 %v12664, %v12662
    %v12751 = vpack.c.b16 %v12665, %v12663
    %v12752 = vpack.c.b16 %v12668, %v12666
    %v12753 = vpack.c.b16 %v12669, %v12667
    %v12754 = vpack.c.b16 %v12672, %v12670
    %v12755 = vpack.c.b16 %v12673, %v12671
    %v12756 = vpack.c.b16 %v12676, %v12674
    %v12757 = vpack.c.b16 %v12677, %v12675
    %v12758 = vpack.c.b16 %v12680, %v12678
    %v12759 = vpack.c.b16 %v12681, %v12679
    %v12760 = vpack.c.b16 %v12684, %v12682
    %v12761 = vpack.c.b16 %v12685, %v12683
    %v12762 = vpack.c.b16 %v12688, %v12686
    %v12763 = vpack.c.b16 %v12689, %v12687
    %v12764 = vpack.c.b16 %v12692, %v12690
    %v12765 = vpack.c.b16 %v12693, %v12691
    %v12766 = vpack.c.b16 %v12696, %v12694
    %v12767 = vpack.c.b16 %v12697, %v12695
    %v12768 = vpack.c.b16 %v12700, %v12698
    %v12769 = vpack.c.b16 %v12701, %v12699
    %v12770 = vpack.c.b16 %v12704, %v12702
    %v12771 = vpack.c.b16 %v12705, %v12703
    %v12772 = vpack.c.b16 %v12708, %v12706
    %v12773 = vpack.c.b16 %v12709, %v12707
    %12838 = vmatprep.subr.bf16.mxu0 %v12711
    %12839 = vmatpush1.bf16.msra.mxu0 %v12710
    %12840 = vmatprep.subr.bf16.mxu0 %v12713
    %12841 = vmatpush1.bf16.msra.mxu0 %v12712
    %12842 = vmatprep.subr.bf16.mxu0 %v12715
    %12843 = vmatpush1.bf16.msra.mxu0 %v12714
    %12844 = vmatprep.subr.bf16.mxu0 %v12717
    %12845 = vmatpush1.bf16.msra.mxu0 %v12716
    %12846 = vmatprep.subr.bf16.mxu0 %v12719
    %12847 = vmatpush1.bf16.msra.mxu0 %v12718
    %12848 = vmatprep.subr.bf16.mxu0 %v12721
    %12849 = vmatpush1.bf16.msra.mxu0 %v12720
    %12850 = vmatprep.subr.bf16.mxu0 %v12723
    %12851 = vmatpush1.bf16.msra.mxu0 %v12722
    %12852 = vmatprep.subr.bf16.mxu0 %v12725
    %12853 = vmatpush1.bf16.msra.mxu0 %v12724
    %12854 = vmatprep.subr.bf16.mxu0 %v12727
    %12855 = vmatpush1.bf16.msra.mxu0 %v12726
    %12856 = vmatprep.subr.bf16.mxu0 %v12729
    %12857 = vmatpush1.bf16.msra.mxu0 %v12728
    %12858 = vmatprep.subr.bf16.mxu0 %v12731
    %12859 = vmatpush1.bf16.msra.mxu0 %v12730
    %12860 = vmatprep.subr.bf16.mxu0 %v12733
    %12861 = vmatpush1.bf16.msra.mxu0 %v12732
    %12862 = vmatprep.subr.bf16.mxu0 %v12735
    %12863 = vmatpush1.bf16.msra.mxu0 %v12734
    %12864 = vmatprep.subr.bf16.mxu0 %v12737
    %12865 = vmatpush1.bf16.msra.mxu0 %v12736
    %12866 = vmatprep.subr.bf16.mxu0 %v12739
    %12867 = vmatpush1.bf16.msra.mxu0 %v12738
    %12868 = vmatprep.subr.bf16.mxu0 %v12741
    %12869 = vmatpush1.bf16.msra.mxu0 %v12740
    %12870 = vmatprep.mubr.bf16.mxu0 %v12450
    %12871 = vmatmul.mubr.bf16.gmra.mrb[0].mxu0 %v12449
    %v12872 = vpop.f32.mrb[0].mxu0
    %v12873 = vadd.f32 0.0, %v12872
    %v12874 = vpop.f32.mrb[0].mxu0
    %v12875 = vadd.f32 0.0, %v12874
    %v12876 = vpop.f32.mrb[0].mxu0
    %v12877 = vpop.f32.mrb[0].mxu0
    %12878 = vdwg.mxu0
    %12879 = vmatprep.subr.bf16.mxu0 %v12743
    %12880 = vmatpush1.bf16.msra.mxu0 %v12742
    %12881 = vmatprep.subr.bf16.mxu0 %v12745
    %12882 = vmatpush1.bf16.msra.mxu0 %v12744
    %12883 = vmatprep.subr.bf16.mxu0 %v12747
    %12884 = vmatpush1.bf16.msra.mxu0 %v12746
    %12885 = vmatprep.subr.bf16.mxu0 %v12749
    %12886 = vmatpush1.bf16.msra.mxu0 %v12748
    %12887 = vmatprep.subr.bf16.mxu0 %v12751
    %12888 = vmatpush1.bf16.msra.mxu0 %v12750
    %12889 = vmatprep.subr.bf16.mxu0 %v12753
    %12890 = vmatpush1.bf16.msra.mxu0 %v12752
    %12891 = vmatprep.subr.bf16.mxu0 %v12755
    %12892 = vmatpush1.bf16.msra.mxu0 %v12754
    %12893 = vmatprep.subr.bf16.mxu0 %v12757
    %12894 = vmatpush1.bf16.msra.mxu0 %v12756
    %12895 = vmatprep.subr.bf16.mxu0 %v12759
    %12896 = vmatpush1.bf16.msra.mxu0 %v12758
    %12897 = vmatprep.subr.bf16.mxu0 %v12761
    %12898 = vmatpush1.bf16.msra.mxu0 %v12760
    %12899 = vmatprep.subr.bf16.mxu0 %v12763
    %12900 = vmatpush1.bf16.msra.mxu0 %v12762
    %12901 = vmatprep.subr.bf16.mxu0 %v12765
    %12902 = vmatpush1.bf16.msra.mxu0 %v12764
    %12903 = vmatprep.subr.bf16.mxu0 %v12767
    %12904 = vmatpush1.bf16.msra.mxu0 %v12766
    %12905 = vmatprep.subr.bf16.mxu0 %v12769
    %12906 = vmatpush1.bf16.msra.mxu0 %v12768
    %12907 = vmatprep.subr.bf16.mxu0 %v12771
    %12908 = vmatpush1.bf16.msra.mxu0 %v12770
    %12909 = vmatprep.subr.bf16.mxu0 %v12773
    %12910 = vmatpush1.bf16.msra.mxu0 %v12772
    %12911 = vmatprep.mubr.bf16.mxu0 %v12452
    %12912 = vmatmul.mubr.bf16.gmra.mrb[0].mxu0 %v12451
    %v12913 = vpop.f32.mrb[0].mxu0
    %v12914 = vadd.f32 %v12873, %v12913
    %v12915 = vpop.f32.mrb[0].mxu0
    %v12916 = vadd.f32 %v12875, %v12915
    %v12917 = vpop.f32.mrb[0].mxu0
    %v12918 = vpop.f32.mrb[0].mxu0
    %12919 = vdwg.mxu0
    %v12920 = vadd.f32 %v12447, %v12914
    %v12921 = vadd.f32 %v12448, %v12916
    %v12922 = vpack.c.bf16 %v10085, %v10085
    %v12923 = vpack.c.bf16 %v10086, %v10086
    %v12924 = vpack.c.bf16 %v10087, %v10087
    %v12925 = vpack.c.bf16 %v10088, %v10088
    %s12926 = scalar_lea.vmem [#allocation10], 3072
    %v12927 = vld [vmem:[%s12926] sm:$0xff]
    %v12928 = vld [vmem:[%s12926 + $0x8] sm:$0xff]
    %v12929 = vld [vmem:[%s12926 + $0x10] sm:$0xff]
    %v12930 = vld [vmem:[%s12926 + $0x18] sm:$0xff]
    %v12931 = vld [vmem:[%s12926 + $0x20] sm:$0xff]
    %v12932 = vld [vmem:[%s12926 + $0x28] sm:$0xff]
    %v12933 = vld [vmem:[%s12926 + $0x30] sm:$0xff]
    %v12934 = vld [vmem:[%s12926 + $0x38] sm:$0xff]
    %v12935 = vld [vmem:[%s12926 + $0x40] sm:$0xff]
    %v12936 = vld [vmem:[%s12926 + $0x48] sm:$0xff]
    %v12937 = vld [vmem:[%s12926 + $0x50] sm:$0xff]
    %v12938 = vld [vmem:[%s12926 + $0x58] sm:$0xff]
    %v12939 = vld [vmem:[%s12926 + $0x60] sm:$0xff]
    %v12940 = vld [vmem:[%s12926 + $0x68] sm:$0xff]
    %v12941 = vld [vmem:[%s12926 + $0x70] sm:$0xff]
    %v12942 = vld [vmem:[%s12926 + $0x78] sm:$0xff]
    %v12943 = vld [vmem:[%s12926 + $0x80] sm:$0xff]
    %v12944 = vld [vmem:[%s12926 + $0x88] sm:$0xff]
    %v12945 = vld [vmem:[%s12926 + $0x90] sm:$0xff]
    %v12946 = vld [vmem:[%s12926 + $0x98] sm:$0xff]
    %v12947 = vld [vmem:[%s12926 + $0xa0] sm:$0xff]
    %v12948 = vld [vmem:[%s12926 + $0xa8] sm:$0xff]
    %v12949 = vld [vmem:[%s12926 + $0xb0] sm:$0xff]
    %v12950 = vld [vmem:[%s12926 + $0xb8] sm:$0xff]
    %v12951 = vld [vmem:[%s12926 + $0xc0] sm:$0xff]
    %v12952 = vld [vmem:[%s12926 + $0xc8] sm:$0xff]
    %v12953 = vld [vmem:[%s12926 + $0xd0] sm:$0xff]
    %v12954 = vld [vmem:[%s12926 + $0xd8] sm:$0xff]
    %v12955 = vld [vmem:[%s12926 + $0xe0] sm:$0xff]
    %v12956 = vld [vmem:[%s12926 + $0xe8] sm:$0xff]
    %v12957 = vld [vmem:[%s12926 + $0xf0] sm:$0xff]
    %v12958 = vld [vmem:[%s12926 + $0xf8] sm:$0xff]
    %v12959 = vld [vmem:[%s12926 + $0x100] sm:$0xff]
    %v12960 = vld [vmem:[%s12926 + $0x108] sm:$0xff]
    %v12961 = vld [vmem:[%s12926 + $0x110] sm:$0xff]
    %v12962 = vld [vmem:[%s12926 + $0x118] sm:$0xff]
    %v12963 = vld [vmem:[%s12926 + $0x120] sm:$0xff]
    %v12964 = vld [vmem:[%s12926 + $0x128] sm:$0xff]
    %v12965 = vld [vmem:[%s12926 + $0x130] sm:$0xff]
    %v12966 = vld [vmem:[%s12926 + $0x138] sm:$0xff]
    %v12967 = vld [vmem:[%s12926 + $0x140] sm:$0xff]
    %v12968 = vld [vmem:[%s12926 + $0x148] sm:$0xff]
    %v12969 = vld [vmem:[%s12926 + $0x150] sm:$0xff]
    %v12970 = vld [vmem:[%s12926 + $0x158] sm:$0xff]
    %v12971 = vld [vmem:[%s12926 + $0x160] sm:$0xff]
    %v12972 = vld [vmem:[%s12926 + $0x168] sm:$0xff]
    %v12973 = vld [vmem:[%s12926 + $0x170] sm:$0xff]
    %v12974 = vld [vmem:[%s12926 + $0x178] sm:$0xff]
    %v12975 = vld [vmem:[%s12926 + $0x180] sm:$0xff]
    %v12976 = vld [vmem:[%s12926 + $0x188] sm:$0xff]
    %v12977 = vld [vmem:[%s12926 + $0x190] sm:$0xff]
    %v12978 = vld [vmem:[%s12926 + $0x198] sm:$0xff]
    %v12979 = vld [vmem:[%s12926 + $0x1a0] sm:$0xff]
    %v12980 = vld [vmem:[%s12926 + $0x1a8] sm:$0xff]
    %v12981 = vld [vmem:[%s12926 + $0x1b0] sm:$0xff]
    %v12982 = vld [vmem:[%s12926 + $0x1b8] sm:$0xff]
    %v12983 = vld [vmem:[%s12926 + $0x1c0] sm:$0xff]
    %v12984 = vld [vmem:[%s12926 + $0x1c8] sm:$0xff]
    %v12985 = vld [vmem:[%s12926 + $0x1d0] sm:$0xff]
    %v12986 = vld [vmem:[%s12926 + $0x1d8] sm:$0xff]
    %v12987 = vld [vmem:[%s12926 + $0x1e0] sm:$0xff]
    %v12988 = vld [vmem:[%s12926 + $0x1e8] sm:$0xff]
    %v12989 = vld [vmem:[%s12926 + $0x1f0] sm:$0xff]
    %v12990 = vld [vmem:[%s12926 + $0x1f8] sm:$0xff]
    %v13055 = vunpack.c.l.b16 %v12927
    %v13056 = vunpack.c.h.b16 %v12927
    %v13057 = vunpack.c.l.b16 %v12928
    %v13058 = vunpack.c.h.b16 %v12928
    %v13059 = vunpack.c.l.b16 %v12929
    %v13060 = vunpack.c.h.b16 %v12929
    %v13061 = vunpack.c.l.b16 %v12930
    %v13062 = vunpack.c.h.b16 %v12930
    %v13063 = vunpack.c.l.b16 %v12931
    %v13064 = vunpack.c.h.b16 %v12931
    %v13065 = vunpack.c.l.b16 %v12932
    %v13066 = vunpack.c.h.b16 %v12932
    %v13067 = vunpack.c.l.b16 %v12933
    %v13068 = vunpack.c.h.b16 %v12933
    %v13069 = vunpack.c.l.b16 %v12934
    %v13070 = vunpack.c.h.b16 %v12934
    %v13071 = vunpack.c.l.b16 %v12935
    %v13072 = vunpack.c.h.b16 %v12935
    %v13073 = vunpack.c.l.b16 %v12936
    %v13074 = vunpack.c.h.b16 %v12936
    %v13075 = vunpack.c.l.b16 %v12937
    %v13076 = vunpack.c.h.b16 %v12937
    %v13077 = vunpack.c.l.b16 %v12938
    %v13078 = vunpack.c.h.b16 %v12938
    %v13079 = vunpack.c.l.b16 %v12939
    %v13080 = vunpack.c.h.b16 %v12939
    %v13081 = vunpack.c.l.b16 %v12940
    %v13082 = vunpack.c.h.b16 %v12940
    %v13083 = vunpack.c.l.b16 %v12941
    %v13084 = vunpack.c.h.b16 %v12941
    %v13085 = vunpack.c.l.b16 %v12942
    %v13086 = vunpack.c.h.b16 %v12942
    %v13087 = vunpack.c.l.b16 %v12943
    %v13088 = vunpack.c.h.b16 %v12943
    %v13089 = vunpack.c.l.b16 %v12944
    %v13090 = vunpack.c.h.b16 %v12944
    %v13091 = vunpack.c.l.b16 %v12945
    %v13092 = vunpack.c.h.b16 %v12945
    %v13093 = vunpack.c.l.b16 %v12946
    %v13094 = vunpack.c.h.b16 %v12946
    %v13095 = vunpack.c.l.b16 %v12947
    %v13096 = vunpack.c.h.b16 %v12947
    %v13097 = vunpack.c.l.b16 %v12948
    %v13098 = vunpack.c.h.b16 %v12948
    %v13099 = vunpack.c.l.b16 %v12949
    %v13100 = vunpack.c.h.b16 %v12949
    %v13101 = vunpack.c.l.b16 %v12950
    %v13102 = vunpack.c.h.b16 %v12950
    %v13103 = vunpack.c.l.b16 %v12951
    %v13104 = vunpack.c.h.b16 %v12951
    %v13105 = vunpack.c.l.b16 %v12952
    %v13106 = vunpack.c.h.b16 %v12952
    %v13107 = vunpack.c.l.b16 %v12953
    %v13108 = vunpack.c.h.b16 %v12953
    %v13109 = vunpack.c.l.b16 %v12954
    %v13110 = vunpack.c.h.b16 %v12954
    %v13111 = vunpack.c.l.b16 %v12955
    %v13112 = vunpack.c.h.b16 %v12955
    %v13113 = vunpack.c.l.b16 %v12956
    %v13114 = vunpack.c.h.b16 %v12956
    %v13115 = vunpack.c.l.b16 %v12957
    %v13116 = vunpack.c.h.b16 %v12957
    %v13117 = vunpack.c.l.b16 %v12958
    %v13118 = vunpack.c.h.b16 %v12958
    %v13119 = vunpack.c.l.b16 %v12959
    %v13120 = vunpack.c.h.b16 %v12959
    %v13121 = vunpack.c.l.b16 %v12960
    %v13122 = vunpack.c.h.b16 %v12960
    %v13123 = vunpack.c.l.b16 %v12961
    %v13124 = vunpack.c.h.b16 %v12961
    %v13125 = vunpack.c.l.b16 %v12962
    %v13126 = vunpack.c.h.b16 %v12962
    %v13127 = vunpack.c.l.b16 %v12963
    %v13128 = vunpack.c.h.b16 %v12963
    %v13129 = vunpack.c.l.b16 %v12964
    %v13130 = vunpack.c.h.b16 %v12964
    %v13131 = vunpack.c.l.b16 %v12965
    %v13132 = vunpack.c.h.b16 %v12965
    %v13133 = vunpack.c.l.b16 %v12966
    %v13134 = vunpack.c.h.b16 %v12966
    %v13135 = vunpack.c.l.b16 %v12967
    %v13136 = vunpack.c.h.b16 %v12967
    %v13137 = vunpack.c.l.b16 %v12968
    %v13138 = vunpack.c.h.b16 %v12968
    %v13139 = vunpack.c.l.b16 %v12969
    %v13140 = vunpack.c.h.b16 %v12969
    %v13141 = vunpack.c.l.b16 %v12970
    %v13142 = vunpack.c.h.b16 %v12970
    %v13143 = vunpack.c.l.b16 %v12971
    %v13144 = vunpack.c.h.b16 %v12971
    %v13145 = vunpack.c.l.b16 %v12972
    %v13146 = vunpack.c.h.b16 %v12972
    %v13147 = vunpack.c.l.b16 %v12973
    %v13148 = vunpack.c.h.b16 %v12973
    %v13149 = vunpack.c.l.b16 %v12974
    %v13150 = vunpack.c.h.b16 %v12974
    %v13151 = vunpack.c.l.b16 %v12975
    %v13152 = vunpack.c.h.b16 %v12975
    %v13153 = vunpack.c.l.b16 %v12976
    %v13154 = vunpack.c.h.b16 %v12976
    %v13155 = vunpack.c.l.b16 %v12977
    %v13156 = vunpack.c.h.b16 %v12977
    %v13157 = vunpack.c.l.b16 %v12978
    %v13158 = vunpack.c.h.b16 %v12978
    %v13159 = vunpack.c.l.b16 %v12979
    %v13160 = vunpack.c.h.b16 %v12979
    %v13161 = vunpack.c.l.b16 %v12980
    %v13162 = vunpack.c.h.b16 %v12980
    %v13163 = vunpack.c.l.b16 %v12981
    %v13164 = vunpack.c.h.b16 %v12981
    %v13165 = vunpack.c.l.b16 %v12982
    %v13166 = vunpack.c.h.b16 %v12982
    %v13167 = vunpack.c.l.b16 %v12983
    %v13168 = vunpack.c.h.b16 %v12983
    %v13169 = vunpack.c.l.b16 %v12984
    %v13170 = vunpack.c.h.b16 %v12984
    %v13171 = vunpack.c.l.b16 %v12985
    %v13172 = vunpack.c.h.b16 %v12985
    %v13173 = vunpack.c.l.b16 %v12986
    %v13174 = vunpack.c.h.b16 %v12986
    %v13175 = vunpack.c.l.b16 %v12987
    %v13176 = vunpack.c.h.b16 %v12987
    %v13177 = vunpack.c.l.b16 %v12988
    %v13178 = vunpack.c.h.b16 %v12988
    %v13179 = vunpack.c.l.b16 %v12989
    %v13180 = vunpack.c.h.b16 %v12989
    %v13181 = vunpack.c.l.b16 %v12990
    %v13182 = vunpack.c.h.b16 %v12990
    %v13183 = vpack.c.b16 %v13057, %v13055
    %v13184 = vpack.c.b16 %v13058, %v13056
    %v13185 = vpack.c.b16 %v13061, %v13059
    %v13186 = vpack.c.b16 %v13062, %v13060
    %v13187 = vpack.c.b16 %v13065, %v13063
    %v13188 = vpack.c.b16 %v13066, %v13064
    %v13189 = vpack.c.b16 %v13069, %v13067
    %v13190 = vpack.c.b16 %v13070, %v13068
    %v13191 = vpack.c.b16 %v13073, %v13071
    %v13192 = vpack.c.b16 %v13074, %v13072
    %v13193 = vpack.c.b16 %v13077, %v13075
    %v13194 = vpack.c.b16 %v13078, %v13076
    %v13195 = vpack.c.b16 %v13081, %v13079
    %v13196 = vpack.c.b16 %v13082, %v13080
    %v13197 = vpack.c.b16 %v13085, %v13083
    %v13198 = vpack.c.b16 %v13086, %v13084
    %v13199 = vpack.c.b16 %v13089, %v13087
    %v13200 = vpack.c.b16 %v13090, %v13088
    %v13201 = vpack.c.b16 %v13093, %v13091
    %v13202 = vpack.c.b16 %v13094, %v13092
    %v13203 = vpack.c.b16 %v13097, %v13095
    %v13204 = vpack.c.b16 %v13098, %v13096
    %v13205 = vpack.c.b16 %v13101, %v13099
    %v13206 = vpack.c.b16 %v13102, %v13100
    %v13207 = vpack.c.b16 %v13105, %v13103
    %v13208 = vpack.c.b16 %v13106, %v13104
    %v13209 = vpack.c.b16 %v13109, %v13107
    %v13210 = vpack.c.b16 %v13110, %v13108
    %v13211 = vpack.c.b16 %v13113, %v13111
    %v13212 = vpack.c.b16 %v13114, %v13112
    %v13213 = vpack.c.b16 %v13117, %v13115
    %v13214 = vpack.c.b16 %v13118, %v13116
    %v13215 = vpack.c.b16 %v13121, %v13119
    %v13216 = vpack.c.b16 %v13122, %v13120
    %v13217 = vpack.c.b16 %v13125, %v13123
    %v13218 = vpack.c.b16 %v13126, %v13124
    %v13219 = vpack.c.b16 %v13129, %v13127
    %v13220 = vpack.c.b16 %v13130, %v13128
    %v13221 = vpack.c.b16 %v13133, %v13131
    %v13222 = vpack.c.b16 %v13134, %v13132
    %v13223 = vpack.c.b16 %v13137, %v13135
    %v13224 = vpack.c.b16 %v13138, %v13136
    %v13225 = vpack.c.b16 %v13141, %v13139
    %v13226 = vpack.c.b16 %v13142, %v13140
    %v13227 = vpack.c.b16 %v13145, %v13143
    %v13228 = vpack.c.b16 %v13146, %v13144
    %v13229 = vpack.c.b16 %v13149, %v13147
    %v13230 = vpack.c.b16 %v13150, %v13148
    %v13231 = vpack.c.b16 %v13153, %v13151
    %v13232 = vpack.c.b16 %v13154, %v13152
    %v13233 = vpack.c.b16 %v13157, %v13155
    %v13234 = vpack.c.b16 %v13158, %v13156
    %v13235 = vpack.c.b16 %v13161, %v13159
    %v13236 = vpack.c.b16 %v13162, %v13160
    %v13237 = vpack.c.b16 %v13165, %v13163
    %v13238 = vpack.c.b16 %v13166, %v13164
    %v13239 = vpack.c.b16 %v13169, %v13167
    %v13240 = vpack.c.b16 %v13170, %v13168
    %v13241 = vpack.c.b16 %v13173, %v13171
    %v13242 = vpack.c.b16 %v13174, %v13172
    %v13243 = vpack.c.b16 %v13177, %v13175
    %v13244 = vpack.c.b16 %v13178, %v13176
    %v13245 = vpack.c.b16 %v13181, %v13179
    %v13246 = vpack.c.b16 %v13182, %v13180
    %13311 = vmatprep.subr.bf16.mxu0 %v13184
    %13312 = vmatpush1.bf16.msra.mxu0 %v13183
    %13313 = vmatprep.subr.bf16.mxu0 %v13186
    %13314 = vmatpush1.bf16.msra.mxu0 %v13185
    %13315 = vmatprep.subr.bf16.mxu0 %v13188
    %13316 = vmatpush1.bf16.msra.mxu0 %v13187
    %13317 = vmatprep.subr.bf16.mxu0 %v13190
    %13318 = vmatpush1.bf16.msra.mxu0 %v13189
    %13319 = vmatprep.subr.bf16.mxu0 %v13192
    %13320 = vmatpush1.bf16.msra.mxu0 %v13191
    %13321 = vmatprep.subr.bf16.mxu0 %v13194
    %13322 = vmatpush1.bf16.msra.mxu0 %v13193
    %13323 = vmatprep.subr.bf16.mxu0 %v13196
    %13324 = vmatpush1.bf16.msra.mxu0 %v13195
    %13325 = vmatprep.subr.bf16.mxu0 %v13198
    %13326 = vmatpush1.bf16.msra.mxu0 %v13197
    %13327 = vmatprep.subr.bf16.mxu0 %v13200
    %13328 = vmatpush1.bf16.msra.mxu0 %v13199
    %13329 = vmatprep.subr.bf16.mxu0 %v13202
    %13330 = vmatpush1.bf16.msra.mxu0 %v13201
    %13331 = vmatprep.subr.bf16.mxu0 %v13204
    %13332 = vmatpush1.bf16.msra.mxu0 %v13203
    %13333 = vmatprep.subr.bf16.mxu0 %v13206
    %13334 = vmatpush1.bf16.msra.mxu0 %v13205
    %13335 = vmatprep.subr.bf16.mxu0 %v13208
    %13336 = vmatpush1.bf16.msra.mxu0 %v13207
    %13337 = vmatprep.subr.bf16.mxu0 %v13210
    %13338 = vmatpush1.bf16.msra.mxu0 %v13209
    %13339 = vmatprep.subr.bf16.mxu0 %v13212
    %13340 = vmatpush1.bf16.msra.mxu0 %v13211
    %13341 = vmatprep.subr.bf16.mxu0 %v13214
    %13342 = vmatpush1.bf16.msra.mxu0 %v13213
    %13343 = vmatprep.mubr.bf16.mxu0 %v12923
    %13344 = vmatmul.mubr.bf16.gmra.mrb[0].mxu0 %v12922
    %v13345 = vpop.f32.mrb[0].mxu0
    %v13346 = vadd.f32 0.0, %v13345
    %v13347 = vpop.f32.mrb[0].mxu0
    %v13348 = vadd.f32 0.0, %v13347
    %v13349 = vpop.f32.mrb[0].mxu0
    %v13350 = vpop.f32.mrb[0].mxu0
    %13351 = vdwg.mxu0
    %13352 = vmatprep.subr.bf16.mxu0 %v13216
    %13353 = vmatpush1.bf16.msra.mxu0 %v13215
    %13354 = vmatprep.subr.bf16.mxu0 %v13218
    %13355 = vmatpush1.bf16.msra.mxu0 %v13217
    %13356 = vmatprep.subr.bf16.mxu0 %v13220
    %13357 = vmatpush1.bf16.msra.mxu0 %v13219
    %13358 = vmatprep.subr.bf16.mxu0 %v13222
    %13359 = vmatpush1.bf16.msra.mxu0 %v13221
    %13360 = vmatprep.subr.bf16.mxu0 %v13224
    %13361 = vmatpush1.bf16.msra.mxu0 %v13223
    %13362 = vmatprep.subr.bf16.mxu0 %v13226
    %13363 = vmatpush1.bf16.msra.mxu0 %v13225
    %13364 = vmatprep.subr.bf16.mxu0 %v13228
    %13365 = vmatpush1.bf16.msra.mxu0 %v13227
    %13366 = vmatprep.subr.bf16.mxu0 %v13230
    %13367 = vmatpush1.bf16.msra.mxu0 %v13229
    %13368 = vmatprep.subr.bf16.mxu0 %v13232
    %13369 = vmatpush1.bf16.msra.mxu0 %v13231
    %13370 = vmatprep.subr.bf16.mxu0 %v13234
    %13371 = vmatpush1.bf16.msra.mxu0 %v13233
    %13372 = vmatprep.subr.bf16.mxu0 %v13236
    %13373 = vmatpush1.bf16.msra.mxu0 %v13235
    %13374 = vmatprep.subr.bf16.mxu0 %v13238
    %13375 = vmatpush1.bf16.msra.mxu0 %v13237
    %13376 = vmatprep.subr.bf16.mxu0 %v13240
    %13377 = vmatpush1.bf16.msra.mxu0 %v13239
    %13378 = vmatprep.subr.bf16.mxu0 %v13242
    %13379 = vmatpush1.bf16.msra.mxu0 %v13241
    %13380 = vmatprep.subr.bf16.mxu0 %v13244
    %13381 = vmatpush1.bf16.msra.mxu0 %v13243
    %13382 = vmatprep.subr.bf16.mxu0 %v13246
    %13383 = vmatpush1.bf16.msra.mxu0 %v13245
    %13384 = vmatprep.mubr.bf16.mxu0 %v12925
    %13385 = vmatmul.mubr.bf16.gmra.mrb[0].mxu0 %v12924
    %v13386 = vpop.f32.mrb[0].mxu0
    %v13387 = vadd.f32 %v13346, %v13386
    %v13388 = vpop.f32.mrb[0].mxu0
    %v13389 = vadd.f32 %v13348, %v13388
    %v13390 = vpop.f32.mrb[0].mxu0
    %v13391 = vpop.f32.mrb[0].mxu0
    %13392 = vdwg.mxu0
    %v13393 = vadd.f32 %v12920, %v13387
    %v13394 = vadd.f32 %v12921, %v13389
    %v13395 = vld [vmem:[#allocation11] sm:$0x3]
    %v13397 = vlaneseq
    %v13398 = vshrl.u32 %v13397, 7
    %v13399 = vsub.s32 0, %v13398
    %v13400 = vrot.slane %v13395, %v13399
    %v13401 = vlaneseq
    %v13402 = vshrl.u32 %v13401, 7
    %v13403 = vsub.s32 1, %v13402
    %v13404 = vrot.slane %v13395, %v13403
    %v13407 = vadd.f32 %v13393, %v13400
    %v13408 = vadd.f32 %v13394, %v13404
    %v13409 = vmax.f32 %v13407, 0.0
    %v13410 = vmax.f32 %v13408, 0.0
    %v13411 = vpack.c.bf16 %v13409, %v13409
    %v13412 = vpack.c.bf16 %v13410, %v13410
    %v13413 = vld [vmem:[#allocation13] sm:$0xf]
    %v13414 = vld [vmem:[#allocation13 + $0x4] sm:$0xf]
    %v13415 = vld [vmem:[#allocation13 + $0x8] sm:$0xf]
    %v13416 = vld [vmem:[#allocation13 + $0xc] sm:$0xf]
    %v13417 = vld [vmem:[#allocation13 + $0x10] sm:$0xf]
    %v13418 = vld [vmem:[#allocation13 + $0x14] sm:$0xf]
    %v13419 = vld [vmem:[#allocation13 + $0x18] sm:$0xf]
    %v13420 = vld [vmem:[#allocation13 + $0x1c] sm:$0xf]
    %v13421 = vld [vmem:[#allocation13 + $0x20] sm:$0xf]
    %v13422 = vld [vmem:[#allocation13 + $0x24] sm:$0xf]
    %v13423 = vld [vmem:[#allocation13 + $0x28] sm:$0xf]
    %v13424 = vld [vmem:[#allocation13 + $0x2c] sm:$0xf]
    %v13425 = vld [vmem:[#allocation13 + $0x30] sm:$0xf]
    %v13426 = vld [vmem:[#allocation13 + $0x34] sm:$0xf]
    %v13427 = vld [vmem:[#allocation13 + $0x38] sm:$0xf]
    %v13428 = vld [vmem:[#allocation13 + $0x3c] sm:$0xf]
    %v13429 = vld [vmem:[#allocation13 + $0x40] sm:$0xf]
    %v13430 = vld [vmem:[#allocation13 + $0x44] sm:$0xf]
    %v13431 = vld [vmem:[#allocation13 + $0x48] sm:$0xf]
    %v13432 = vld [vmem:[#allocation13 + $0x4c] sm:$0xf]
    %v13433 = vld [vmem:[#allocation13 + $0x50] sm:$0xf]
    %v13434 = vld [vmem:[#allocation13 + $0x54] sm:$0xf]
    %v13435 = vld [vmem:[#allocation13 + $0x58] sm:$0xf]
    %v13436 = vld [vmem:[#allocation13 + $0x5c] sm:$0xf]
    %v13437 = vld [vmem:[#allocation13 + $0x60] sm:$0xf]
    %v13438 = vld [vmem:[#allocation13 + $0x64] sm:$0xf]
    %v13439 = vld [vmem:[#allocation13 + $0x68] sm:$0xf]
    %v13440 = vld [vmem:[#allocation13 + $0x6c] sm:$0xf]
    %v13441 = vld [vmem:[#allocation13 + $0x70] sm:$0xf]
    %v13442 = vld [vmem:[#allocation13 + $0x74] sm:$0xf]
    %v13443 = vld [vmem:[#allocation13 + $0x78] sm:$0xf]
    %v13444 = vld [vmem:[#allocation13 + $0x7c] sm:$0xf]
    %v13445 = vld [vmem:[#allocation14] sm:$0x1]
    %v13447 = vlaneseq
    %v13448 = vshrl.u32 %v13447, 7
    %v13449 = vsub.s32 0, %v13448
    %v13450 = vrot.slane %v13445, %v13449
    %v13484 = vunpack.c.l.b16 %v13413
    %v13485 = vunpack.c.l.b16 %v13414
    %v13486 = vunpack.c.l.b16 %v13415
    %v13487 = vunpack.c.l.b16 %v13416
    %v13488 = vunpack.c.l.b16 %v13417
    %v13489 = vunpack.c.l.b16 %v13418
    %v13490 = vunpack.c.l.b16 %v13419
    %v13491 = vunpack.c.l.b16 %v13420
    %v13492 = vunpack.c.l.b16 %v13421
    %v13493 = vunpack.c.l.b16 %v13422
    %v13494 = vunpack.c.l.b16 %v13423
    %v13495 = vunpack.c.l.b16 %v13424
    %v13496 = vunpack.c.l.b16 %v13425
    %v13497 = vunpack.c.l.b16 %v13426
    %v13498 = vunpack.c.l.b16 %v13427
    %v13499 = vunpack.c.l.b16 %v13428
    %v13500 = vunpack.c.l.b16 %v13429
    %v13501 = vunpack.c.l.b16 %v13430
    %v13502 = vunpack.c.l.b16 %v13431
    %v13503 = vunpack.c.l.b16 %v13432
    %v13504 = vunpack.c.l.b16 %v13433
    %v13505 = vunpack.c.l.b16 %v13434
    %v13506 = vunpack.c.l.b16 %v13435
    %v13507 = vunpack.c.l.b16 %v13436
    %v13508 = vunpack.c.l.b16 %v13437
    %v13509 = vunpack.c.l.b16 %v13438
    %v13510 = vunpack.c.l.b16 %v13439
    %v13511 = vunpack.c.l.b16 %v13440
    %v13512 = vunpack.c.l.b16 %v13441
    %v13513 = vunpack.c.l.b16 %v13442
    %v13514 = vunpack.c.l.b16 %v13443
    %v13515 = vunpack.c.l.b16 %v13444
    %v13516 = vpack.c.b16 %v13485, %v13484
    %v13517 = vpack.c.b16 %v13487, %v13486
    %v13518 = vpack.c.b16 %v13489, %v13488
    %v13519 = vpack.c.b16 %v13491, %v13490
    %v13520 = vpack.c.b16 %v13493, %v13492
    %v13521 = vpack.c.b16 %v13495, %v13494
    %v13522 = vpack.c.b16 %v13497, %v13496
    %v13523 = vpack.c.b16 %v13499, %v13498
    %v13524 = vpack.c.b16 %v13501, %v13500
    %v13525 = vpack.c.b16 %v13503, %v13502
    %v13526 = vpack.c.b16 %v13505, %v13504
    %v13527 = vpack.c.b16 %v13507, %v13506
    %v13528 = vpack.c.b16 %v13509, %v13508
    %v13529 = vpack.c.b16 %v13511, %v13510
    %v13530 = vpack.c.b16 %v13513, %v13512
    %v13531 = vpack.c.b16 %v13515, %v13514
    %13548 = vmatprep.subr.bf16.mxu0 0
    %13549 = vmatpush1.bf16.msra.mxu0 %v13516
    %13550 = vmatprep.subr.bf16.mxu0 0
    %13551 = vmatpush1.bf16.msra.mxu0 %v13517
    %13552 = vmatprep.subr.bf16.mxu0 0
    %13553 = vmatpush1.bf16.msra.mxu0 %v13518
    %13554 = vmatprep.subr.bf16.mxu0 0
    %13555 = vmatpush1.bf16.msra.mxu0 %v13519
    %13556 = vmatprep.subr.bf16.mxu0 0
    %13557 = vmatpush1.bf16.msra.mxu0 %v13520
    %13558 = vmatprep.subr.bf16.mxu0 0
    %13559 = vmatpush1.bf16.msra.mxu0 %v13521
    %13560 = vmatprep.subr.bf16.mxu0 0
    %13561 = vmatpush1.bf16.msra.mxu0 %v13522
    %13562 = vmatprep.subr.bf16.mxu0 0
    %13563 = vmatpush1.bf16.msra.mxu0 %v13523
    %13564 = vmatprep.subr.bf16.mxu0 0
    %13565 = vmatpush1.bf16.msra.mxu0 %v13524
    %13566 = vmatprep.subr.bf16.mxu0 0
    %13567 = vmatpush1.bf16.msra.mxu0 %v13525
    %13568 = vmatprep.subr.bf16.mxu0 0
    %13569 = vmatpush1.bf16.msra.mxu0 %v13526
    %13570 = vmatprep.subr.bf16.mxu0 0
    %13571 = vmatpush1.bf16.msra.mxu0 %v13527
    %13572 = vmatprep.subr.bf16.mxu0 0
    %13573 = vmatpush1.bf16.msra.mxu0 %v13528
    %13574 = vmatprep.subr.bf16.mxu0 0
    %13575 = vmatpush1.bf16.msra.mxu0 %v13529
    %13576 = vmatprep.subr.bf16.mxu0 0
    %13577 = vmatpush1.bf16.msra.mxu0 %v13530
    %13578 = vmatprep.subr.bf16.mxu0 0
    %13579 = vmatpush1.bf16.msra.mxu0 %v13531
    %13580 = vmatprep.mubr.bf16.mxu0 %v13412
    %13581 = vmatmul.mubr.bf16.gmra.mrb[0].mxu0 %v13411
    %v13582 = vpop.f32.mrb[0].mxu0
    %v13583 = vadd.f32 %v13450, %v13582
    %v13584 = vpop.f32.mrb[0].mxu0
    %v13585 = vpop.f32.mrb[0].mxu0
    %v13586 = vpop.f32.mrb[0].mxu0
    %13587 = vdwg.mxu0
    %13588 = vst [vmem:[%s9] sm:$0xff] %v13583
    // Predicated region
    $region70: #{_forward_core.1} parent=1 // pred_check
      _
    $region71: #{_forward_core.1} parent=1 // pred_check_branch
      %13590 = sbr.rel (0) target = $region73
    $region72: #{_forward_core.1} parent=1 // pred_region
      _
    $region73: #{_forward_core.1} parent=1 // pred_fallthru
      _
    // Predicated region
    $region74: #{_forward_core.1} parent=1 // pred_check
      _
    $region75: #{_forward_core.1} parent=1 // pred_check_branch
      %13592 = sbr.rel (0) target = $region77
    $region76: #{_forward_core.1} parent=1 // pred_region
      _
    $region77: #{_forward_core.1} parent=1 // pred_fallthru
      _
    %13593 = vsyncpa [#allocation4], 1
    %13594 = vsyncpa [#allocation6], 1
    %13595 = vsyncpa [#allocation9], 1
    %13596 = vsyncpa [#allocation12], 1
    %13597 = vsyncpa [#allocation15], 1

</llo_original>
